<compile_context>
chip_gen: v6e
topology: v6e:2x2x1
jax: 0.10.0
libtpu: 0.0.40
codegen_flags: <defaults>
</compile_context>

<pallas_src>
import functools

import jax
import jax.numpy as jnp
from jax.experimental import pallas as pl
from jax.experimental.pallas import tpu as pltpu


# ----------------------------------------------------------------------------
# Tiling helpers
# ----------------------------------------------------------------------------
_VMEM_LIMIT = 32 * 1024 * 1024  # explicit scoped-VMEM limit (safe on v5e/v6e/v7x)


def _round_up(x, m):
    return ((x + m - 1) // m) * m


def _grouped_tiles(g, s, cin, cout, max_tg=256, budget_bytes=6 * 1024 * 1024):
    """Pick the largest group tile TG (multiple of 8) whose bf16 input slab plus
    f32 output rows fit a conservative per-buffer budget, and the padded G."""
    if g < 8:
        return g, g  # tiny problem: one block whose dims equal the full array
    per_group = s * cin * 2 + cout * 4  # bf16 input row + f32 output row
    tg = max_tg
    while tg > 8 and tg * per_group > budget_bytes:
        tg //= 2
    g_pad = _round_up(g, 8)
    tg = min(tg, g_pad)
    # keep >= 2 grid steps when possible so v7x's two TensorCores both get work
    if tg == g_pad and tg % 16 == 0:
        tg //= 2
    g_pad = _round_up(g, tg)
    return tg, g_pad


def _full_spec(shape):
    return pl.BlockSpec(shape, lambda *_: (0,) * len(shape))


# ----------------------------------------------------------------------------
# Pallas kernels
# ----------------------------------------------------------------------------
def _group_bias_relu_max_kernel(x_ref, shift_ref, o_ref):
    # SA1 path: the 3->128 projection has already been applied per point
    # (linearity trick), so the kernel is shift + ReLU + max over the S samples.
    # x_ref: (TG, S, C) bf16, shift_ref: (1, C) f32, o_ref: (TG, C) f32.
    x = x_ref[...].astype(jnp.float32)
    y = jnp.maximum(x + shift_ref[...][None], 0.0)
    o_ref[...] = jnp.max(y, axis=1).astype(o_ref.dtype)


def _group_mlp_relu_max_kernel(x_ref, w_ref, shift_ref, o_ref, *, sc):
    # Shared MLP (BN scale folded into W) + ReLU + max over neighbors,
    # S-chunked so the live intermediate is (TG, SC, Cout), not (TG, S, Cout).
    # x_ref: (TG, S, Cin) bf16, w_ref: (Cin, Cout) bf16,
    # shift_ref: (1, Cout) f32, o_ref: (TG, Cout) f32.
    tg, s, cin = x_ref.shape
    cout = w_ref.shape[1]
    n_chunks = s // sc

    w = w_ref[...]
    shift = shift_ref[...]  # (1, Cout), hoisted out of the loop

    acc = jnp.full((tg, cout), -jnp.inf, dtype=jnp.float32)
    for c in range(n_chunks):  # small static trip count (2-8)
        xc = x_ref[:, c * sc:(c + 1) * sc, :]                       # (TG, SC, Cin)
        y = jnp.dot(xc.reshape(tg * sc, cin), w,
                    preferred_element_type=jnp.float32)             # (TG*SC, Cout)
        y = jnp.maximum(y + shift, 0.0).reshape(tg, sc, cout)
        acc = jnp.maximum(acc, jnp.max(y, axis=1))
    o_ref[...] = acc.astype(o_ref.dtype)


def _fc_head_kernel(x_ref, w1_ref, b1_ref, w2_ref, b2_ref, w3_ref, b3_ref,
                    o1_ref, o2_ref, o3_ref):
    # Fused FC head: Linear+BN+ReLU -> Linear+BN+ReLU -> Linear (+bias).
    # BN scale folded into the weights; dropout is identity in eval mode.
    h1 = jnp.dot(x_ref[...], w1_ref[...], preferred_element_type=jnp.float32)
    h1 = jnp.maximum(h1 + b1_ref[...], 0.0)
    o1_ref[...] = h1.astype(o1_ref.dtype)
    h2 = jnp.dot(h1.astype(w2_ref.dtype), w2_ref[...],
                 preferred_element_type=jnp.float32)
    h2 = jnp.maximum(h2 + b2_ref[...], 0.0)
    o2_ref[...] = h2.astype(o2_ref.dtype)
    h3 = jnp.dot(h2.astype(w3_ref.dtype), w3_ref[...],
                 preferred_element_type=jnp.float32)
    o3_ref[...] = (h3 + b3_ref[...]).astype(o3_ref.dtype)


# ----------------------------------------------------------------------------
# Pallas wrappers
# ----------------------------------------------------------------------------
def grouped_bias_relu_max(x, shift):
    """x: (G, S, C) bf16 pre-projected differences -> (G, C) f32."""
    g, s, c = x.shape
    tg, g_pad = _grouped_tiles(g, s, c, c)
    if g_pad != g:
        x = jnp.pad(x, ((0, g_pad - g), (0, 0), (0, 0)))
    grid = (g_pad // tg,)
    out = pl.pallas_call(
        _group_bias_relu_max_kernel,
        out_shape=jax.ShapeDtypeStruct((g_pad, c), jnp.float32),
        grid=grid,
        in_specs=[
            pl.BlockSpec((tg, s, c), lambda i: (i, 0, 0)),
            pl.BlockSpec((1, c), lambda i: (0, 0)),
        ],
        out_specs=pl.BlockSpec((tg, c), lambda i: (i, 0)),
        compiler_params=pltpu.CompilerParams(
            dimension_semantics=("parallel",),
            vmem_limit_bytes=_VMEM_LIMIT),
        cost_estimate=pl.CostEstimate(
            flops=3 * g_pad * s * c,
            transcendentals=0,
            bytes_accessed=int(g_pad * s * c * 2 + g_pad * c * 4)),
    )(x, shift)
    return out[:g]


def grouped_mlp_relu_max(x, w, shift):
    """x: (G, S, Cin) bf16, w: (Cin, Cout) bf16 (BN folded), shift: (1, Cout) f32
    -> (G, Cout) f32 : max over S of relu(x @ w + shift)."""
    g, s, cin = x.shape
    cout = w.shape[1]
    tg, g_pad = _grouped_tiles(g, s, cin, cout)
    if g_pad != g:
        x = jnp.pad(x, ((0, g_pad - g), (0, 0), (0, 0)))
    sc = 8 if s % 8 == 0 else s
    grid = (g_pad // tg,)
    kern = functools.partial(_group_mlp_relu_max_kernel, sc=sc)
    out = pl.pallas_call(
        kern,
        out_shape=jax.ShapeDtypeStruct((g_pad, cout), jnp.float32),
        grid=grid,
        in_specs=[
            pl.BlockSpec((tg, s, cin), lambda i: (i, 0, 0)),
            pl.BlockSpec((cin, cout), lambda i: (0, 0)),
            pl.BlockSpec((1, cout), lambda i: (0, 0)),
        ],
        out_specs=pl.BlockSpec((tg, cout), lambda i: (i, 0)),
        compiler_params=pltpu.CompilerParams(
            dimension_semantics=("parallel",),
            vmem_limit_bytes=_VMEM_LIMIT),
        cost_estimate=pl.CostEstimate(
            flops=2 * g_pad * s * cin * cout,
            transcendentals=0,
            bytes_accessed=int(g_pad * s * cin * 2 + cin * cout * 2
                               + g_pad * cout * 4)),
    )(x, w, shift)
    return out[:g]


def fc_head(x, w1, b1, w2, b2, w3, b3):
    """Fused FC head: returns (fc1, fc2, fc3) activations."""
    b, cin = x.shape
    c1, c2, c3 = w1.shape[1], w2.shape[1], w3.shape[1]
    flops = 2 * b * (cin * c1 + c1 * c2 + c2 * c3)
    bytes_acc = int(b * cin * 2 + (w1.size + w2.size + w3.size) * 2
                    + (c1 + c2 + c3) * 4 + b * (c1 + c2 + c3) * 4)
    return pl.pallas_call(
        _fc_head_kernel,
        out_shape=(jax.ShapeDtypeStruct((b, c1), jnp.float32),
                   jax.ShapeDtypeStruct((b, c2), jnp.float32),
                   jax.ShapeDtypeStruct((b, c3), jnp.float32)),
        grid=(1,),
        in_specs=[_full_spec((b, cin)),
                  _full_spec(w1.shape), _full_spec(b1.shape),
                  _full_spec(w2.shape), _full_spec(b2.shape),
                  _full_spec(w3.shape), _full_spec(b3.shape)],
        out_specs=(_full_spec((b, c1)), _full_spec((b, c2)), _full_spec((b, c3))),
        compiler_params=pltpu.CompilerParams(
            dimension_semantics=("arbitrary",),
            vmem_limit_bytes=_VMEM_LIMIT),
        cost_estimate=pl.CostEstimate(flops=flops, transcendentals=0,
                                      bytes_accessed=bytes_acc),
    )(x, w1, b1, w2, b2, w3, b3)


# ----------------------------------------------------------------------------
# Plain-JAX glue: FPS, ball query, grouping (data-dependent gathers)
# ----------------------------------------------------------------------------
def farthest_point_sample(xyz, npoint):
    # xyz: (B, N, 3) -> (B, npoint) int32 indices
    n = xyz.shape[1]

    def per_batch(pts):
        def body(i, state):
            dist, idxs = state
            last = idxs[i - 1]
            d = jnp.sum((pts - pts[last]) ** 2, axis=-1)
            dist = jnp.minimum(dist, d)
            nxt = jnp.argmax(dist).astype(jnp.int32)
            idxs = idxs.at[i].set(nxt)
            return dist, idxs

        dist0 = jnp.full((n,), 1e10, jnp.float32)
        idxs0 = jnp.zeros((npoint,), jnp.int32)
        _, idxs = jax.lax.fori_loop(1, npoint, body, (dist0, idxs0))
        return idxs

    return jax.vmap(per_batch)(xyz)


def ball_query(radius, nsample, xyz, centers):
    # xyz: (B, N, 3), centers: (B, P, 3) -> (B, P, nsample) indices
    n = xyz.shape[1]

    def per_batch(pts, ctr):
        d2 = jnp.sum((ctr[:, None, :] - pts[None, :, :]) ** 2, axis=-1)  # (P, N)
        within = d2 < radius * radius
        rank = jnp.where(within, jnp.arange(n)[None, :], n + jnp.arange(n)[None, :])
        idx = jnp.argsort(rank, axis=-1)[:, :nsample]
        valid = jnp.take_along_axis(within, idx, axis=-1)
        first = idx[:, :1]
        return jnp.where(valid, idx, first)

    return jax.vmap(per_batch)(xyz, centers)


def gather_points(arr, idx):
    # arr: (B, N, C), idx: (B, P, S) -> (B, P, S, C)
    return jax.vmap(lambda a, i: a[i])(arr, idx)


# ----------------------------------------------------------------------------
# Set-abstraction modules
# ----------------------------------------------------------------------------
def sa_module_first(xyz, npoint, radius, nsample, w, shift):
    """First SA module (features=None, Cin=3, use_xyz).  Exploits linearity:
    (x_j - c_i) @ W = x_j @ W - c_i @ W, so the grouped tensor is already
    lane-dense 128-channel and the Pallas kernel is only shift+ReLU+max."""
    b = xyz.shape[0]
    fps_idx = farthest_point_sample(xyz, npoint)                         # (B, P)
    new_xyz = jnp.take_along_axis(xyz, fps_idx[..., None], axis=1)       # (B, P, 3)
    idx = ball_query(radius, nsample, xyz, new_xyz)                      # (B, P, S)
    proj = jnp.einsum("bnc,cd->bnd", xyz, w)                             # (B, N, 128)
    cproj = jnp.take_along_axis(proj, fps_idx[..., None], axis=1)        # (B, P, 128)
    grouped = gather_points(proj, idx) - cproj[:, :, None, :]            # (B,P,S,128)
    g = b * npoint
    out = grouped_bias_relu_max(
        grouped.reshape(g, nsample, -1).astype(jnp.bfloat16), shift)
    return new_xyz, out.reshape(b, npoint, -1)


def sa_module(xyz, features, npoint, radius, nsample, w, shift):
    """SA module with features (use_xyz=True).  Channel dim zero-padded to the
    (128-aligned) weight row count for lane-dense DMA; zero weight rows match."""
    b = xyz.shape[0]
    fps_idx = farthest_point_sample(xyz, npoint)
    new_xyz = jnp.take_along_axis(xyz, fps_idx[..., None], axis=1)
    idx = ball_query(radius, nsample, xyz, new_xyz)
    grouped_xyz = gather_points(xyz, idx) - new_xyz[:, :, None, :]       # (B,P,S,3)
    grouped_feat = gather_points(features, idx)                          # (B,P,S,C)
    grouped = jnp.concatenate([grouped_xyz, grouped_feat], axis=-1)
    cin_pad = w.shape[0]
    pad = cin_pad - grouped.shape[-1]
    if pad:
        grouped = jnp.pad(grouped, ((0, 0), (0, 0), (0, 0), (0, pad)))
    g = b * npoint
    out = grouped_mlp_relu_max(
        grouped.reshape(g, nsample, cin_pad).astype(jnp.bfloat16), w, shift)
    return new_xyz, out.reshape(b, npoint, -1)


def sa_module_group_all(xyz, features, w, shift):
    """Global set-abstraction (group_all), use_xyz=True."""
    grouped = jnp.concatenate([xyz, features], axis=-1)                  # (B, P, 3+C)
    cin_pad = w.shape[0]
    pad = cin_pad - grouped.shape[-1]
    if pad:
        grouped = jnp.pad(grouped, ((0, 0), (0, 0), (0, pad)))
    return grouped_mlp_relu_max(grouped.astype(jnp.bfloat16), w, shift)  # (B, Cout)


# ----------------------------------------------------------------------------
# Model: parameters + forward
# ----------------------------------------------------------------------------
def init_params(key, batch_size, num_points, num_classes, sigma_init):
    ks = jax.random.split(key, 12)

    def normal(k, shape):
        return jax.random.normal(k, shape, jnp.float32)

    def conv_bn(kw, kbn, cin, cout, cin_pad=None, dtype=jnp.bfloat16):
        k1, k2 = jax.random.split(kbn)
        w = 0.05 * normal(kw, (cin, cout))
        scale = 1.0 + 0.01 * normal(k1, (1, cout))
        shift = 0.01 * normal(k2, (1, cout))
        w = w * scale                       # fold eval-mode BN scale into weights
        if cin_pad is not None and cin_pad > cin:
            w = jnp.concatenate(
                [w, jnp.zeros((cin_pad - cin, cout), jnp.float32)], axis=0)
        return w.astype(dtype), shift.astype(jnp.float32)

    p = {}
    p["sigma"] = jnp.full((batch_size, num_points, 1), sigma_init, jnp.float32)
    # SA1: npoint=512(scaled), r=0.23, ns=48(scaled), mlp [0+3 -> 128]
    #   weight kept f32: it is applied once per point in plain JAX (linearity trick)
    p["sa1_w"], p["sa1_b"] = conv_bn(ks[0], ks[1], 3, 128, dtype=jnp.float32)
    # SA2: npoint=128(scaled), r=0.32, ns=64(scaled), mlp [128+3 -> 512], pad 131->256
    p["sa2_w"], p["sa2_b"] = conv_bn(ks[2], ks[3], 131, 512, cin_pad=256)
    # SA3: group all, mlp [512+3 -> 1024], pad 515->640
    p["sa3_w"], p["sa3_b"] = conv_bn(ks[4], ks[5], 515, 1024, cin_pad=640)
    # FC head: 1024 -> 512 -> 256 -> num_classes
    p["fc1_w"], p["fc1_b"] = conv_bn(ks[6], ks[7], 1024, 512)
    p["fc2_w"], p["fc2_b"] = conv_bn(ks[8], ks[9], 512, 256)
    p["fc3_w"] = (0.05 * normal(ks[10], (256, num_classes))).astype(jnp.bfloat16)
    p["fc3_b"] = (0.01 * normal(ks[11], (1, num_classes))).astype(jnp.float32)
    return p


def rscnn_ssn_forward(params, pointcloud, noise_key, cfg):
    """pointcloud: (B, N, 3 + input_channels) with input_channels = 0."""
    end_points = {}
    # _break_up_pc: input_channels == 0 -> features is None
    xyz = pointcloud[..., 0:3]

    # add_noisy_by_point: xyz <- xyz + N(0,1) * sigma (per-point learnable sigma)
    sigma = params["sigma"]
    noise = jax.random.normal(noise_key, xyz.shape, jnp.float32)
    xyz = xyz + noise * sigma

    # SA modules
    xyz, features = sa_module_first(
        xyz, cfg["npoint1"], 0.23, cfg["nsample1"], params["sa1_w"], params["sa1_b"])
    xyz, features = sa_module(
        xyz, features, cfg["npoint2"], 0.32, cfg["nsample2"],
        params["sa2_w"], params["sa2_b"])
    features = sa_module_group_all(
        xyz, features, params["sa3_w"], params["sa3_b"])                 # (B, 1024)

    # Fused FC head (dropout = identity in eval mode)
    fc1, fc2, fc3 = fc_head(features.astype(jnp.bfloat16),
                            params["fc1_w"], params["fc1_b"],
                            params["fc2_w"], params["fc2_b"],
                            params["fc3_w"], params["fc3_b"])
    end_points["fc1"] = fc1
    end_points["fc2"] = fc2
    end_points["fc3"] = fc3
    return fc3, sigma, end_points


# ----------------------------------------------------------------------------
if __name__ == "__main__":
    # Small shapes consistent with the module (point counts scaled down,
    # channel plan kept exactly: 3->128->512->1024->512->256->num_classes).
    B, N = 2, 128
    num_classes = 10
    sigma_init = 0.01
    cfg = {"npoint1": 32, "nsample1": 16, "npoint2": 16, "nsample2": 16}

    key = jax.random.PRNGKey(0)
    k_params, k_pc, k_noise = jax.random.split(key, 3)

    params = init_params(k_params, B, N, num_classes, sigma_init)
    pointcloud = jax.random.uniform(k_pc, (B, N, 3), jnp.float32)

    fwd = jax.jit(functools.partial(rscnn_ssn_forward, cfg=cfg))
    logits, sigma, end_points = fwd(params, pointcloud, k_noise)
    jax.block_until_ready((logits, sigma, end_points))

    assert logits.shape == (B, num_classes)
    assert sigma.shape == (B, N, 1)
    assert end_points["fc1"].shape == (B, 512)
    assert end_points["fc2"].shape == (B, 256)
    assert end_points["fc3"].shape == (B, num_classes)
    assert bool(jnp.all(jnp.isfinite(logits)))
    print("KERNEL_OK")
</pallas_src>

<mosaic_0001>
module attributes {stable_mosaic.version = 11 : i64} {
  func.func @_group_bias_relu_max_kernel(%arg0: i32, %arg1: memref<32x16x128xbf16, #tpu.memory_space<vmem>>, %arg2: memref<1x128xf32, #tpu.memory_space<vmem>>, %arg3: memref<32x128xf32, #tpu.memory_space<vmem>>) attributes {dimension_semantics = [#tpu.dimension_semantics<parallel>], iteration_bounds = array<i64: 2>, scalar_prefetch = 0 : i64, scratch_operands = 0 : i64, tpu.core_type = #tpu.core_type<tc>, window_params = [{transform_indices = @transform_0, window_bounds = array<i64: 32, 16, 128>}, {pipeline_mode = #tpu.pipeline_mode<synchronous>, transform_indices = @transform_1, window_bounds = array<i64: 1, 128>}, {transform_indices = @transform_2, window_bounds = array<i64: 32, 128>}]} {
    %c0 = arith.constant 0 : index
    %c0_0 = arith.constant 0 : index
    %c0_1 = arith.constant 0 : index
    %0 = vector.load %arg1[%c0, %c0_0, %c0_1] : memref<32x16x128xbf16, #tpu.memory_space<vmem>>, vector<32x16x128xbf16>
    %1 = arith.extf %0 : vector<32x16x128xbf16> to vector<32x16x128xf32>
    %c0_2 = arith.constant 0 : index
    %c0_3 = arith.constant 0 : index
    %2 = vector.load %arg2[%c0_2, %c0_3] : memref<1x128xf32, #tpu.memory_space<vmem>>, vector<1x128xf32>
    %3 = vector.shape_cast %2 : vector<1x128xf32> to vector<1x1x128xf32>
    %4 = vector.broadcast %3 : vector<1x1x128xf32> to vector<32x16x128xf32>
    %5 = arith.addf %1, %4 : vector<32x16x128xf32>
    %cst = arith.constant 0.000000e+00 : f32
    %6 = vector.broadcast %cst : f32 to vector<32x16x128xf32>
    %7 = arith.maximumf %5, %6 : vector<32x16x128xf32>
    %cst_4 = arith.constant dense<0xFF800000> : vector<32x128xf32>
    %8 = vector.multi_reduction <maximumf>, %7, %cst_4 [1] : vector<32x16x128xf32> to vector<32x128xf32>
    %c0_5 = arith.constant 0 : index
    %c0_6 = arith.constant 0 : index
    %9 = vector.load %arg3[%c0_5, %c0_6] : memref<32x128xf32, #tpu.memory_space<vmem>>, vector<32x128xf32>
    tpu.vector_store %arg3[%c0_5, %c0_6], %8 {strides = array<i32>} : memref<32x128xf32, #tpu.memory_space<vmem>>, vector<32x128xf32>,
    return
  }
  func.func @transform_0(%arg0: i32) -> (i32, i32, i32) {
    %c0_i32 = arith.constant 0 : i32
    %c0_i32_0 = arith.constant 0 : i32
    %c0_i32_1 = arith.constant 0 : i32
    return %arg0, %c0_i32, %c0_i32_0 : i32, i32, i32
  }
  func.func @transform_1(%arg0: i32) -> (i32, i32) {
    %c0_i32 = arith.constant 0 : i32
    %c0_i32_0 = arith.constant 0 : i32
    %c0_i32_1 = arith.constant 0 : i32
    return %c0_i32, %c0_i32_0 : i32, i32
  }
  func.func @transform_2(%arg0: i32) -> (i32, i32) {
    %c0_i32 = arith.constant 0 : i32
    %c0_i32_0 = arith.constant 0 : i32
    return %arg0, %c0_i32 : i32, i32
  }
}

module attributes {stable_mosaic.version = 11 : i64} {
  func.func @_group_mlp_relu_max_kernel(%arg0: i32, %arg1: memref<16x16x256xbf16, #tpu.memory_space<vmem>>, %arg2: memref<256x512xbf16, #tpu.memory_space<vmem>>, %arg3: memref<1x512xf32, #tpu.memory_space<vmem>>, %arg4: memref<16x512xf32, #tpu.memory_space<vmem>>) attributes {dimension_semantics = [#tpu.dimension_semantics<parallel>], iteration_bounds = array<i64: 2>, scalar_prefetch = 0 : i64, scratch_operands = 0 : i64, tpu.core_type = #tpu.core_type<tc>, window_params = [{transform_indices = @transform_0, window_bounds = array<i64: 16, 16, 256>}, {pipeline_mode = #tpu.pipeline_mode<synchronous>, transform_indices = @transform_1, window_bounds = array<i64: 256, 512>}, {pipeline_mode = #tpu.pipeline_mode<synchronous>, transform_indices = @transform_2, window_bounds = array<i64: 1, 512>}, {transform_indices = @transform_3, window_bounds = array<i64: 16, 512>}]} {
    %c0 = arith.constant 0 : index
    %c0_0 = arith.constant 0 : index
    %0 = vector.load %arg2[%c0, %c0_0] : memref<256x512xbf16, #tpu.memory_space<vmem>>, vector<256x512xbf16>
    %c0_1 = arith.constant 0 : index
    %c0_2 = arith.constant 0 : index
    %1 = vector.load %arg3[%c0_1, %c0_2] : memref<1x512xf32, #tpu.memory_space<vmem>>, vector<1x512xf32>
    %cst = arith.constant 0xFF800000 : f32
    %2 = vector.broadcast %cst : f32 to vector<16x512xf32>
    %c0_3 = arith.constant 0 : index
    %c0_4 = arith.constant 0 : index
    %c0_5 = arith.constant 0 : index
    %3 = vector.load %arg1[%c0_3, %c0_4, %c0_5] : memref<16x16x256xbf16, #tpu.memory_space<vmem>>, vector<16x8x256xbf16>
    %4 = vector.shape_cast %3 : vector<16x8x256xbf16> to vector<128x256xbf16>
    %cst_6 = arith.constant dense<0.000000e+00> : vector<128x512xf32>
    %5 = tpu.matmul %4, %0, %cst_6 {dimension_numbers = #tpu.dot_dimension_numbers<[1], [0], [0], [1], [0, 0, 1, 1], [], []>} : vector<128x256xbf16>, vector<256x512xbf16>, vector<128x512xf32> -> vector<128x512xf32>
    %6 = vector.broadcast %1 : vector<1x512xf32> to vector<128x512xf32>
    %7 = arith.addf %5, %6 : vector<128x512xf32>
    %cst_7 = arith.constant 0.000000e+00 : f32
    %8 = vector.broadcast %cst_7 : f32 to vector<128x512xf32>
    %9 = arith.maximumf %7, %8 : vector<128x512xf32>
    %10 = vector.shape_cast %9 : vector<128x512xf32> to vector<16x8x512xf32>
    %cst_8 = arith.constant dense<0xFF800000> : vector<16x512xf32>
    %11 = vector.multi_reduction <maximumf>, %10, %cst_8 [1] : vector<16x8x512xf32> to vector<16x512xf32>
    %12 = arith.maximumf %2, %11 : vector<16x512xf32>
    %c0_9 = arith.constant 0 : index
    %c8 = arith.constant 8 : index
    %c0_10 = arith.constant 0 : index
    %13 = vector.load %arg1[%c0_9, %c8, %c0_10] : memref<16x16x256xbf16, #tpu.memory_space<vmem>>, vector<16x8x256xbf16>
    %14 = vector.shape_cast %13 : vector<16x8x256xbf16> to vector<128x256xbf16>
    %cst_11 = arith.constant dense<0.000000e+00> : vector<128x512xf32>
    %15 = tpu.matmul %14, %0, %cst_11 {dimension_numbers = #tpu.dot_dimension_numbers<[1], [0], [0], [1], [0, 0, 1, 1], [], []>} : vector<128x256xbf16>, vector<256x512xbf16>, vector<128x512xf32> -> vector<128x512xf32>
    %16 = vector.broadcast %1 : vector<1x512xf32> to vector<128x512xf32>
    %17 = arith.addf %15, %16 : vector<128x512xf32>
    %cst_12 = arith.constant 0.000000e+00 : f32
    %18 = vector.broadcast %cst_12 : f32 to vector<128x512xf32>
    %19 = arith.maximumf %17, %18 : vector<128x512xf32>
    %20 = vector.shape_cast %19 : vector<128x512xf32> to vector<16x8x512xf32>
    %cst_13 = arith.constant dense<0xFF800000> : vector<16x512xf32>
    %21 = vector.multi_reduction <maximumf>, %20, %cst_13 [1] : vector<16x8x512xf32> to vector<16x512xf32>
    %22 = arith.maximumf %12, %21 : vector<16x512xf32>
    %c0_14 = arith.constant 0 : index
    %c0_15 = arith.constant 0 : index
    %23 = vector.load %arg4[%c0_14, %c0_15] : memref<16x512xf32, #tpu.memory_space<vmem>>, vector<16x512xf32>
    tpu.vector_store %arg4[%c0_14, %c0_15], %22 {strides = array<i32>} : memref<16x512xf32, #tpu.memory_space<vmem>>, vector<16x512xf32>,
    return
  }
  func.func @transform_0(%arg0: i32) -> (i32, i32, i32) {
    %c0_i32 = arith.constant 0 : i32
    %c0_i32_0 = arith.constant 0 : i32
    %c0_i32_1 = arith.constant 0 : i32
    return %arg0, %c0_i32, %c0_i32_0 : i32, i32, i32
  }
  func.func @transform_1(%arg0: i32) -> (i32, i32) {
    %c0_i32 = arith.constant 0 : i32
    %c0_i32_0 = arith.constant 0 : i32
    %c0_i32_1 = arith.constant 0 : i32
    return %c0_i32, %c0_i32_0 : i32, i32
  }
  func.func @transform_2(%arg0: i32) -> (i32, i32) {
    %c0_i32 = arith.constant 0 : i32
    %c0_i32_0 = arith.constant 0 : i32
    %c0_i32_1 = arith.constant 0 : i32
    return %c0_i32, %c0_i32_0 : i32, i32
  }
  func.func @transform_3(%arg0: i32) -> (i32, i32) {
    %c0_i32 = arith.constant 0 : i32
    %c0_i32_0 = arith.constant 0 : i32
    return %arg0, %c0_i32 : i32, i32
  }
}

module attributes {stable_mosaic.version = 11 : i64} {
  func.func @_group_mlp_relu_max_kernel(%arg0: i32, %arg1: memref<2x16x640xbf16, #tpu.memory_space<vmem>>, %arg2: memref<640x1024xbf16, #tpu.memory_space<vmem>>, %arg3: memref<1x1024xf32, #tpu.memory_space<vmem>>, %arg4: memref<2x1024xf32, #tpu.memory_space<vmem>>) attributes {dimension_semantics = [#tpu.dimension_semantics<parallel>], iteration_bounds = array<i64: 1>, scalar_prefetch = 0 : i64, scratch_operands = 0 : i64, tpu.core_type = #tpu.core_type<tc>, window_params = [{transform_indices = @transform_0, window_bounds = array<i64: 2, 16, 640>}, {pipeline_mode = #tpu.pipeline_mode<synchronous>, transform_indices = @transform_1, window_bounds = array<i64: 640, 1024>}, {pipeline_mode = #tpu.pipeline_mode<synchronous>, transform_indices = @transform_2, window_bounds = array<i64: 1, 1024>}, {transform_indices = @transform_3, window_bounds = array<i64: 2, 1024>}]} {
    %c0 = arith.constant 0 : index
    %c0_0 = arith.constant 0 : index
    %0 = vector.load %arg2[%c0, %c0_0] : memref<640x1024xbf16, #tpu.memory_space<vmem>>, vector<640x1024xbf16>
    %c0_1 = arith.constant 0 : index
    %c0_2 = arith.constant 0 : index
    %1 = vector.load %arg3[%c0_1, %c0_2] : memref<1x1024xf32, #tpu.memory_space<vmem>>, vector<1x1024xf32>
    %cst = arith.constant 0xFF800000 : f32
    %2 = vector.broadcast %cst : f32 to vector<2x1024xf32>
    %c0_3 = arith.constant 0 : index
    %c0_4 = arith.constant 0 : index
    %c0_5 = arith.constant 0 : index
    %3 = vector.load %arg1[%c0_3, %c0_4, %c0_5] : memref<2x16x640xbf16, #tpu.memory_space<vmem>>, vector<2x8x640xbf16>
    %4 = vector.shape_cast %3 : vector<2x8x640xbf16> to vector<16x640xbf16>
    %cst_6 = arith.constant dense<0.000000e+00> : vector<16x1024xf32>
    %5 = tpu.matmul %4, %0, %cst_6 {dimension_numbers = #tpu.dot_dimension_numbers<[1], [0], [0], [1], [0, 0, 1, 1], [], []>} : vector<16x640xbf16>, vector<640x1024xbf16>, vector<16x1024xf32> -> vector<16x1024xf32>
    %6 = vector.broadcast %1 : vector<1x1024xf32> to vector<16x1024xf32>
    %7 = arith.addf %5, %6 : vector<16x1024xf32>
    %cst_7 = arith.constant 0.000000e+00 : f32
    %8 = vector.broadcast %cst_7 : f32 to vector<16x1024xf32>
    %9 = arith.maximumf %7, %8 : vector<16x1024xf32>
    %10 = vector.shape_cast %9 : vector<16x1024xf32> to vector<2x8x1024xf32>
    %cst_8 = arith.constant dense<0xFF800000> : vector<2x1024xf32>
    %11 = vector.multi_reduction <maximumf>, %10, %cst_8 [1] : vector<2x8x1024xf32> to vector<2x1024xf32>
    %12 = arith.maximumf %2, %11 : vector<2x1024xf32>
    %c0_9 = arith.constant 0 : index
    %c8 = arith.constant 8 : index
    %c0_10 = arith.constant 0 : index
    %13 = vector.load %arg1[%c0_9, %c8, %c0_10] : memref<2x16x640xbf16, #tpu.memory_space<vmem>>, vector<2x8x640xbf16>
    %14 = vector.shape_cast %13 : vector<2x8x640xbf16> to vector<16x640xbf16>
    %cst_11 = arith.constant dense<0.000000e+00> : vector<16x1024xf32>
    %15 = tpu.matmul %14, %0, %cst_11 {dimension_numbers = #tpu.dot_dimension_numbers<[1], [0], [0], [1], [0, 0, 1, 1], [], []>} : vector<16x640xbf16>, vector<640x1024xbf16>, vector<16x1024xf32> -> vector<16x1024xf32>
    %16 = vector.broadcast %1 : vector<1x1024xf32> to vector<16x1024xf32>
    %17 = arith.addf %15, %16 : vector<16x1024xf32>
    %cst_12 = arith.constant 0.000000e+00 : f32
    %18 = vector.broadcast %cst_12 : f32 to vector<16x1024xf32>
    %19 = arith.maximumf %17, %18 : vector<16x1024xf32>
    %20 = vector.shape_cast %19 : vector<16x1024xf32> to vector<2x8x1024xf32>
    %cst_13 = arith.constant dense<0xFF800000> : vector<2x1024xf32>
    %21 = vector.multi_reduction <maximumf>, %20, %cst_13 [1] : vector<2x8x1024xf32> to vector<2x1024xf32>
    %22 = arith.maximumf %12, %21 : vector<2x1024xf32>
    %c0_14 = arith.constant 0 : index
    %c0_15 = arith.constant 0 : index
    %23 = vector.load %arg4[%c0_14, %c0_15] : memref<2x1024xf32, #tpu.memory_space<vmem>>, vector<2x1024xf32>
    tpu.vector_store %arg4[%c0_14, %c0_15], %22 {strides = array<i32>} : memref<2x1024xf32, #tpu.memory_space<vmem>>, vector<2x1024xf32>,
    return
  }
  func.func @transform_0(%arg0: i32) -> (i32, i32, i32) {
    %c0_i32 = arith.constant 0 : i32
    %c0_i32_0 = arith.constant 0 : i32
    %c0_i32_1 = arith.constant 0 : i32
    return %arg0, %c0_i32, %c0_i32_0 : i32, i32, i32
  }
  func.func @transform_1(%arg0: i32) -> (i32, i32) {
    %c0_i32 = arith.constant 0 : i32
    %c0_i32_0 = arith.constant 0 : i32
    %c0_i32_1 = arith.constant 0 : i32
    return %c0_i32, %c0_i32_0 : i32, i32
  }
  func.func @transform_2(%arg0: i32) -> (i32, i32) {
    %c0_i32 = arith.constant 0 : i32
    %c0_i32_0 = arith.constant 0 : i32
    %c0_i32_1 = arith.constant 0 : i32
    return %c0_i32, %c0_i32_0 : i32, i32
  }
  func.func @transform_3(%arg0: i32) -> (i32, i32) {
    %c0_i32 = arith.constant 0 : i32
    %c0_i32_0 = arith.constant 0 : i32
    return %arg0, %c0_i32 : i32, i32
  }
}

module attributes {stable_mosaic.version = 11 : i64} {
  func.func @_fc_head_kernel(%arg0: i32, %arg1: memref<2x1024xbf16, #tpu.memory_space<vmem>>, %arg2: memref<1024x512xbf16, #tpu.memory_space<vmem>>, %arg3: memref<1x512xf32, #tpu.memory_space<vmem>>, %arg4: memref<512x256xbf16, #tpu.memory_space<vmem>>, %arg5: memref<1x256xf32, #tpu.memory_space<vmem>>, %arg6: memref<256x10xbf16, #tpu.memory_space<vmem>>, %arg7: memref<1x10xf32, #tpu.memory_space<vmem>>, %arg8: memref<2x512xf32, #tpu.memory_space<vmem>>, %arg9: memref<2x256xf32, #tpu.memory_space<vmem>>, %arg10: memref<2x10xf32, #tpu.memory_space<vmem>>) attributes {dimension_semantics = [#tpu.dimension_semantics<arbitrary>], iteration_bounds = array<i64: 1>, scalar_prefetch = 0 : i64, scratch_operands = 0 : i64, tpu.core_type = #tpu.core_type<tc>, window_params = [{pipeline_mode = #tpu.pipeline_mode<synchronous>, transform_indices = @transform_0, window_bounds = array<i64: 2, 1024>}, {pipeline_mode = #tpu.pipeline_mode<synchronous>, transform_indices = @transform_1, window_bounds = array<i64: 1024, 512>}, {pipeline_mode = #tpu.pipeline_mode<synchronous>, transform_indices = @transform_2, window_bounds = array<i64: 1, 512>}, {pipeline_mode = #tpu.pipeline_mode<synchronous>, transform_indices = @transform_3, window_bounds = array<i64: 512, 256>}, {pipeline_mode = #tpu.pipeline_mode<synchronous>, transform_indices = @transform_4, window_bounds = array<i64: 1, 256>}, {pipeline_mode = #tpu.pipeline_mode<synchronous>, transform_indices = @transform_5, window_bounds = array<i64: 256, 10>}, {pipeline_mode = #tpu.pipeline_mode<synchronous>, transform_indices = @transform_6, window_bounds = array<i64: 1, 10>}, {pipeline_mode = #tpu.pipeline_mode<synchronous>, transform_indices = @transform_7, window_bounds = array<i64: 2, 512>}, {pipeline_mode = #tpu.pipeline_mode<synchronous>, transform_indices = @transform_8, window_bounds = array<i64: 2, 256>}, {pipeline_mode = #tpu.pipeline_mode<synchronous>, transform_indices = @transform_9, window_bounds = array<i64: 2, 10>}]} {
    %c0 = arith.constant 0 : index
    %c0_0 = arith.constant 0 : index
    %0 = vector.load %arg1[%c0, %c0_0] : memref<2x1024xbf16, #tpu.memory_space<vmem>>, vector<2x1024xbf16>
    %c0_1 = arith.constant 0 : index
    %c0_2 = arith.constant 0 : index
    %1 = vector.load %arg2[%c0_1, %c0_2] : memref<1024x512xbf16, #tpu.memory_space<vmem>>, vector<1024x512xbf16>
    %cst = arith.constant dense<0.000000e+00> : vector<2x512xf32>
    %2 = tpu.matmul %0, %1, %cst {dimension_numbers = #tpu.dot_dimension_numbers<[1], [0], [0], [1], [0, 0, 1, 1], [], []>} : vector<2x1024xbf16>, vector<1024x512xbf16>, vector<2x512xf32> -> vector<2x512xf32>
    %c0_3 = arith.constant 0 : index
    %c0_4 = arith.constant 0 : index
    %3 = vector.load %arg3[%c0_3, %c0_4] : memref<1x512xf32, #tpu.memory_space<vmem>>, vector<1x512xf32>
    %4 = vector.broadcast %3 : vector<1x512xf32> to vector<2x512xf32>
    %5 = arith.addf %2, %4 : vector<2x512xf32>
    %cst_5 = arith.constant 0.000000e+00 : f32
    %6 = vector.broadcast %cst_5 : f32 to vector<2x512xf32>
    %7 = arith.maximumf %5, %6 : vector<2x512xf32>
    %c0_6 = arith.constant 0 : index
    %c0_7 = arith.constant 0 : index
    %8 = vector.load %arg8[%c0_6, %c0_7] : memref<2x512xf32, #tpu.memory_space<vmem>>, vector<2x512xf32>
    tpu.vector_store %arg8[%c0_6, %c0_7], %7 {strides = array<i32>} : memref<2x512xf32, #tpu.memory_space<vmem>>, vector<2x512xf32>,
    %9 = arith.truncf %7 : vector<2x512xf32> to vector<2x512xbf16>
    %c0_8 = arith.constant 0 : index
    %c0_9 = arith.constant 0 : index
    %10 = vector.load %arg4[%c0_8, %c0_9] : memref<512x256xbf16, #tpu.memory_space<vmem>>, vector<512x256xbf16>
    %cst_10 = arith.constant dense<0.000000e+00> : vector<2x256xf32>
    %11 = tpu.matmul %9, %10, %cst_10 {dimension_numbers = #tpu.dot_dimension_numbers<[1], [0], [0], [1], [0, 0, 1, 1], [], []>} : vector<2x512xbf16>, vector<512x256xbf16>, vector<2x256xf32> -> vector<2x256xf32>
    %c0_11 = arith.constant 0 : index
    %c0_12 = arith.constant 0 : index
    %12 = vector.load %arg5[%c0_11, %c0_12] : memref<1x256xf32, #tpu.memory_space<vmem>>, vector<1x256xf32>
    %13 = vector.broadcast %12 : vector<1x256xf32> to vector<2x256xf32>
    %14 = arith.addf %11, %13 : vector<2x256xf32>
    %cst_13 = arith.constant 0.000000e+00 : f32
    %15 = vector.broadcast %cst_13 : f32 to vector<2x256xf32>
    %16 = arith.maximumf %14, %15 : vector<2x256xf32>
    %c0_14 = arith.constant 0 : index
    %c0_15 = arith.constant 0 : index
    %17 = vector.load %arg9[%c0_14, %c0_15] : memref<2x256xf32, #tpu.memory_space<vmem>>, vector<2x256xf32>
    tpu.vector_store %arg9[%c0_14, %c0_15], %16 {strides = array<i32>} : memref<2x256xf32, #tpu.memory_space<vmem>>, vector<2x256xf32>,
    %18 = arith.truncf %16 : vector<2x256xf32> to vector<2x256xbf16>
    %c0_16 = arith.constant 0 : index
    %c0_17 = arith.constant 0 : index
    %19 = vector.load %arg6[%c0_16, %c0_17] : memref<256x10xbf16, #tpu.memory_space<vmem>>, vector<256x10xbf16>
    %cst_18 = arith.constant dense<0.000000e+00> : vector<2x10xf32>
    %20 = tpu.matmul %18, %19, %cst_18 {dimension_numbers = #tpu.dot_dimension_numbers<[1], [0], [0], [1], [0, 0, 1, 1], [], []>} : vector<2x256xbf16>, vector<256x10xbf16>, vector<2x10xf32> -> vector<2x10xf32>
    %c0_19 = arith.constant 0 : index
    %c0_20 = arith.constant 0 : index
    %21 = vector.load %arg7[%c0_19, %c0_20] : memref<1x10xf32, #tpu.memory_space<vmem>>, vector<1x10xf32>
    %22 = vector.broadcast %21 : vector<1x10xf32> to vector<2x10xf32>
    %23 = arith.addf %20, %22 : vector<2x10xf32>
    %c0_21 = arith.constant 0 : index
    %c0_22 = arith.constant 0 : index
    %24 = vector.load %arg10[%c0_21, %c0_22] : memref<2x10xf32, #tpu.memory_space<vmem>>, vector<2x10xf32>
    tpu.vector_store %arg10[%c0_21, %c0_22], %23 {strides = array<i32>} : memref<2x10xf32, #tpu.memory_space<vmem>>, vector<2x10xf32>,
    return
  }
  func.func @transform_0(%arg0: i32) -> (i32, i32) {
    %c0_i32 = arith.constant 0 : i32
    %c0_i32_0 = arith.constant 0 : i32
    %c0_i32_1 = arith.constant 0 : i32
    return %c0_i32, %c0_i32_0 : i32, i32
  }
  func.func @transform_1(%arg0: i32) -> (i32, i32) {
    %c0_i32 = arith.constant 0 : i32
    %c0_i32_0 = arith.constant 0 : i32
    %c0_i32_1 = arith.constant 0 : i32
    return %c0_i32, %c0_i32_0 : i32, i32
  }
  func.func @transform_2(%arg0: i32) -> (i32, i32) {
    %c0_i32 = arith.constant 0 : i32
    %c0_i32_0 = arith.constant 0 : i32
    %c0_i32_1 = arith.constant 0 : i32
    return %c0_i32, %c0_i32_0 : i32, i32
  }
  func.func @transform_3(%arg0: i32) -> (i32, i32) {
    %c0_i32 = arith.constant 0 : i32
    %c0_i32_0 = arith.constant 0 : i32
    %c0_i32_1 = arith.constant 0 : i32
    return %c0_i32, %c0_i32_0 : i32, i32
  }
  func.func @transform_4(%arg0: i32) -> (i32, i32) {
    %c0_i32 = arith.constant 0 : i32
    %c0_i32_0 = arith.constant 0 : i32
    %c0_i32_1 = arith.constant 0 : i32
    return %c0_i32, %c0_i32_0 : i32, i32
  }
  func.func @transform_5(%arg0: i32) -> (i32, i32) {
    %c0_i32 = arith.constant 0 : i32
    %c0_i32_0 = arith.constant 0 : i32
    %c0_i32_1 = arith.constant 0 : i32
    return %c0_i32, %c0_i32_0 : i32, i32
  }
  func.func @transform_6(%arg0: i32) -> (i32, i32) {
    %c0_i32 = arith.constant 0 : i32
    %c0_i32_0 = arith.constant 0 : i32
    %c0_i32_1 = arith.constant 0 : i32
    return %c0_i32, %c0_i32_0 : i32, i32
  }
  func.func @transform_7(%arg0: i32) -> (i32, i32) {
    %c0_i32 = arith.constant 0 : i32
    %c0_i32_0 = arith.constant 0 : i32
    %c0_i32_1 = arith.constant 0 : i32
    return %c0_i32, %c0_i32_0 : i32, i32
  }
  func.func @transform_8(%arg0: i32) -> (i32, i32) {
    %c0_i32 = arith.constant 0 : i32
    %c0_i32_0 = arith.constant 0 : i32
    %c0_i32_1 = arith.constant 0 : i32
    return %c0_i32, %c0_i32_0 : i32, i32
  }
  func.func @transform_9(%arg0: i32) -> (i32, i32) {
    %c0_i32 = arith.constant 0 : i32
    %c0_i32_0 = arith.constant 0 : i32
    %c0_i32_1 = arith.constant 0 : i32
    return %c0_i32, %c0_i32_0 : i32, i32
  }
}

</mosaic_0001>

<llo_original>
// kernel: custom-call.20
$region0: #{custom-call.20}
  %s0 = inlined_call_operand.vmem [shape: f32[2,128], index: 0, kind: output, shape index: {}]

// kernel: custom-call.21
$region0: #{custom-call.21}
  %s0 = inlined_call_operand.vmem [shape: f32[2,32], index: 0, kind: output, shape index: {}]

// kernel: rscnn_ssn_forward.4
$region0: #{rscnn_ssn_forward.4}
  #allocation0 [shape = 'u32[]', space=smem, size = 0x4, offset = 0x4, fixed_abs, tag = 'smem constant byte address 0x4 - core index']
  #allocation1 [shape = 'u32[144,128]{1,0:T(1,128)}', space=vmem, size = 0x12000, scoped, tag = 'internal scratch']
  %s0 = inlined_call_operand.vmem [shape: bf16[64,16,128], index: 0, kind: input, shape index: {}]
  %s1 = inlined_call_operand.vmem [shape: f32[1,128], index: 1, kind: input, shape index: {}]
  %s2 = inlined_call_operand.vmem [shape: f32[64,128], index: 2, kind: output, shape index: {}]
  %s3 = sld [smem:[#allocation0]]
  $region41: #{rscnn_ssn_forward.4} parent=0
    _
  %s5 = ssub.s32 1, %s3
  %s6 = scalar_select 0, %s5, %s3
  loop: start=0, step=1, limit=4
  $region2: #{rscnn_ssn_forward.4} parent=0 // loop_pre_header
    _
  $region3: #{rscnn_ssn_forward.4} parent=0 // loop_header
    %s8 = sphi 0, %s12
    %p9 = scmp.ge.s32.totalorder %s8, 4
    %s18 = sphi 0, %s20
    %s21 = sphi 0, %s18
    %s22 = sphi 0, %s21
    %s38 = sphi 0, %s22
    %s42 = sphi 0, %s42
    %s44 = sphi 0, %s42
    %s45 = sphi 0, %s44
    %s59 = sphi 0, %s45
    %s65 = sphi 0, %s67
    %s68 = sphi 0, %s65
    %s69 = sphi 0, %s68
    %s85 = sphi 0, %s69
  $region4: #{rscnn_ssn_forward.4} parent=0 // loop_header_branch
    %11 = sbr.rel (%p9) target = $region8
  $region5: #{rscnn_ssn_forward.4} parent=0 // loop_body
    %s13 = ssub.s32 %s8, 1
    %s14 = ssub.s32 %s8, 2
    %s15 = sadd.s32 %s8, 1
    %s16 = ssub.s32 %s8, %s15
    %p17 = scmp.eq.s32.totalorder %s16, 0
    %s19 = sadd.s32 %s18, 1
    %s20 = scalar_select %p17, %s18, %s19
    %p23 = pneg %p17
    %p24 = scmp.eq.s32.totalorder %s8, 1
    %p25 = por %p23, %p24
    %p26 = scmp.ne.s32.totalorder %s18, %s21
    %p27 = scmp.eq.s32.totalorder %s8, 0
    %p28 = por %p26, %p27
    %p29 = scmp.ne.s32.totalorder %s18, %s21
    %p30 = scmp.eq.s32.totalorder %s13, 1
    %p31 = por %p29, %p30
    %p32 = scmp.ne.s32.totalorder %s21, %s22
    %p33 = scmp.eq.s32.totalorder %s13, 0
    %p34 = por %p32, %p33
    %p35 = scmp.ne.s32.totalorder %s21, %s22
    %p36 = scmp.eq.s32.totalorder %s14, 1
    %p37 = por %p35, %p36
    %p39 = scmp.ne.s32.totalorder %s22, %s38
    %p40 = scmp.eq.s32.totalorder %s14, 0
    %p41 = por %p39, %p40
    %s43 = sadd.s32 %s42, 1
    %p46 = scmp.eq.s32.totalorder %s8, 1
    %p47 = scmp.ne.s32.totalorder %s42, %s44
    %p48 = scmp.eq.s32.totalorder %s8, 0
    %p49 = por %p47, %p48
    %p50 = scmp.ne.s32.totalorder %s42, %s44
    %p51 = scmp.eq.s32.totalorder %s13, 1
    %p52 = por %p50, %p51
    %p53 = scmp.ne.s32.totalorder %s44, %s45
    %p54 = scmp.eq.s32.totalorder %s13, 0
    %p55 = por %p53, %p54
    %p56 = scmp.ne.s32.totalorder %s44, %s45
    %p57 = scmp.eq.s32.totalorder %s14, 1
    %p58 = por %p56, %p57
    %p60 = scmp.ne.s32.totalorder %s45, %s59
    %p61 = scmp.eq.s32.totalorder %s14, 0
    %p62 = por %p60, %p61
    %s63 = ssub.s32 %s8, %s15
    %p64 = scmp.eq.s32.totalorder %s63, 0
    %s66 = sadd.s32 %s65, 1
    %s67 = scalar_select %p64, %s65, %s66
    %p70 = pneg %p64
    %p71 = scmp.eq.s32.totalorder %s8, 1
    %p72 = por %p70, %p71
    %p73 = scmp.ne.s32.totalorder %s65, %s68
    %p74 = scmp.eq.s32.totalorder %s8, 0
    %p75 = por %p73, %p74
    %p76 = scmp.ne.s32.totalorder %s65, %s68
    %p77 = scmp.eq.s32.totalorder %s13, 1
    %p78 = por %p76, %p77
    %p79 = scmp.ne.s32.totalorder %s68, %s69
    %p80 = scmp.eq.s32.totalorder %s13, 0
    %p81 = por %p79, %p80
    %p82 = scmp.ne.s32.totalorder %s68, %s69
    %p83 = scmp.eq.s32.totalorder %s14, 1
    %p84 = por %p82, %p83
    %p86 = scmp.ne.s32.totalorder %s69, %s85
    %p87 = scmp.eq.s32.totalorder %s14, 0
    %p88 = por %p86, %p87
    %p89 = scmp.le.s32.totalorder 1, %s8
    %p90 = scmp.lt.s32.totalorder %s8, 3
    %p91 = pnand %p89, %p90
    %p92 = pneg %p91
    // Predicated region
    $region9: #{rscnn_ssn_forward.4} parent=5 // pred_check
      _
    $region10: #{rscnn_ssn_forward.4} parent=5 // pred_check_branch
      %94 = sbr.rel (%p91) target = $region12
    $region11: #{rscnn_ssn_forward.4} parent=5 // pred_region
      %s95 = ssub.s32 %s8, 1
      // Predicated region
      $region13: #{rscnn_ssn_forward.4} parent=11 // pred_check
        %p96 = pneg %p55
      $region14: #{rscnn_ssn_forward.4} parent=11 // pred_check_branch
        %98 = sbr.rel (%p96) target = $region16
      $region15: #{rscnn_ssn_forward.4} parent=11 // pred_region
        _
      $region16: #{rscnn_ssn_forward.4} parent=11 // pred_fallthru
        _
    $region12: #{rscnn_ssn_forward.4} parent=5 // pred_fallthru
      _
    %p99 = scmp.lt.s32.totalorder %s8, 2
    // Predicated region
    $region17: #{rscnn_ssn_forward.4} parent=5 // pred_check
      %p100 = pneg %p99
    $region18: #{rscnn_ssn_forward.4} parent=5 // pred_check_branch
      %102 = sbr.rel (%p100) target = $region20
    $region19: #{rscnn_ssn_forward.4} parent=5 // pred_region
      // Predicated region
      $region21: #{rscnn_ssn_forward.4} parent=19 // pred_check
        %p103 = pneg %p28
      $region22: #{rscnn_ssn_forward.4} parent=19 // pred_check_branch
        %105 = sbr.rel (%p103) target = $region24
      $region23: #{rscnn_ssn_forward.4} parent=19 // pred_region
        %s106 = smul.u32 32, %s8
        %p107 = scmp.lt.s32.totalorder %s106, 63
        %s108 = scalar_select %p107, %s106, 63
        %s109 = smul.addr %s108, 2
        %s110 = smul.addr %s109, 4
        %s111 = scalar_lea.vmem %s0, %s110
        %s112 = smul.u32 32, %s8
      $region24: #{rscnn_ssn_forward.4} parent=19 // pred_fallthru
        _
    $region20: #{rscnn_ssn_forward.4} parent=5 // pred_fallthru
      _
    %p113 = scmp.le.s32.totalorder 1, %s8
    %p114 = scmp.lt.s32.totalorder %s8, 3
    %p115 = pnand %p113, %p114
    %p116 = pneg %p115
    // Predicated region
    $region25: #{rscnn_ssn_forward.4} parent=5 // pred_check
      _
    $region26: #{rscnn_ssn_forward.4} parent=5 // pred_check_branch
      %118 = sbr.rel (%p115) target = $region28
    $region27: #{rscnn_ssn_forward.4} parent=5 // pred_region
      %s119 = ssub.s32 %s8, 1
      %s120 = smul.u32 32, %s13
      %p121 = scmp.lt.s32.totalorder %s120, 63
      %s122 = scalar_select %p121, %s120, 63
      %s123 = smul.addr %s122, 2
      %s124 = smul.addr %s123, 4
      %s125 = scalar_lea.vmem %s0, %s124
      %p126 = pneg %p34
      %p127 = pneg %p31
      %p128 = pneg %p55
      %p129 = pneg %p52
      %p130 = pneg %p81
      %p131 = pneg %p78
      %s132 = smul.u32 4, %s13
      %p133 = scmp.lt.s32.totalorder %s132, 7
      %s134 = scalar_select %p133, %s132, 7
      %s135 = smul.addr %s134, 8
      %s136 = scalar_lea.vmem %s2, %s135
      %s137 = smul.u32 32, %s13
      %p138 = scmp.lt.s32.totalorder %s137, 63
      %s139 = scalar_select %p138, %s137, 63
      %s140 = smul.addr %s139, 2
      %s141 = smul.addr %s140, 4
      %s142 = scalar_lea.vmem %s0, %s141
      %s143 = smul.u32 32, %s13
      %s144 = smul.u32 4, %s13
      %p145 = scmp.lt.s32.totalorder %s144, 7
      %s146 = scalar_select %p145, %s144, 7
      %s147 = smul.addr %s146, 8
      %s148 = scalar_lea.vmem %s2, %s147
      %s149 = smul.u32 4, %s13
      %v150 = vld [vmem:[%s142] sm:$0xf]
      %v151 = vld [vmem:[%s142 + $0x4] sm:$0xf]
      %v152 = vld [vmem:[%s142 + $0x8] sm:$0xf]
      %v153 = vld [vmem:[%s142 + $0xc] sm:$0xf]
      %v154 = vld [vmem:[%s142 + $0x10] sm:$0xf]
      %v155 = vld [vmem:[%s142 + $0x14] sm:$0xf]
      %v156 = vld [vmem:[%s142 + $0x18] sm:$0xf]
      %v157 = vld [vmem:[%s142 + $0x1c] sm:$0xf]
      %v158 = vld [vmem:[%s142 + $0x20] sm:$0xf]
      %v159 = vld [vmem:[%s142 + $0x24] sm:$0xf]
      %v160 = vld [vmem:[%s142 + $0x28] sm:$0xf]
      %v161 = vld [vmem:[%s142 + $0x2c] sm:$0xf]
      %v162 = vld [vmem:[%s142 + $0x30] sm:$0xf]
      %v163 = vld [vmem:[%s142 + $0x34] sm:$0xf]
      %v164 = vld [vmem:[%s142 + $0x38] sm:$0xf]
      %v165 = vld [vmem:[%s142 + $0x3c] sm:$0xf]
      %v166 = vld [vmem:[%s142 + $0x40] sm:$0xf]
      %v167 = vld [vmem:[%s142 + $0x44] sm:$0xf]
      %v168 = vld [vmem:[%s142 + $0x48] sm:$0xf]
      %v169 = vld [vmem:[%s142 + $0x4c] sm:$0xf]
      %v170 = vld [vmem:[%s142 + $0x50] sm:$0xf]
      %v171 = vld [vmem:[%s142 + $0x54] sm:$0xf]
      %v172 = vld [vmem:[%s142 + $0x58] sm:$0xf]
      %v173 = vld [vmem:[%s142 + $0x5c] sm:$0xf]
      %v174 = vld [vmem:[%s142 + $0x60] sm:$0xf]
      %v175 = vld [vmem:[%s142 + $0x64] sm:$0xf]
      %v176 = vld [vmem:[%s142 + $0x68] sm:$0xf]
      %v177 = vld [vmem:[%s142 + $0x6c] sm:$0xf]
      %v178 = vld [vmem:[%s142 + $0x70] sm:$0xf]
      %v179 = vld [vmem:[%s142 + $0x74] sm:$0xf]
      %v180 = vld [vmem:[%s142 + $0x78] sm:$0xf]
      %v181 = vld [vmem:[%s142 + $0x7c] sm:$0xf]
      %v182 = vld [vmem:[%s142 + $0x80] sm:$0xf]
      %v183 = vld [vmem:[%s142 + $0x84] sm:$0xf]
      %v184 = vld [vmem:[%s142 + $0x88] sm:$0xf]
      %v185 = vld [vmem:[%s142 + $0x8c] sm:$0xf]
      %v186 = vld [vmem:[%s142 + $0x90] sm:$0xf]
      %v187 = vld [vmem:[%s142 + $0x94] sm:$0xf]
      %v188 = vld [vmem:[%s142 + $0x98] sm:$0xf]
      %v189 = vld [vmem:[%s142 + $0x9c] sm:$0xf]
      %v190 = vld [vmem:[%s142 + $0xa0] sm:$0xf]
      %v191 = vld [vmem:[%s142 + $0xa4] sm:$0xf]
      %v192 = vld [vmem:[%s142 + $0xa8] sm:$0xf]
      %v193 = vld [vmem:[%s142 + $0xac] sm:$0xf]
      %v194 = vld [vmem:[%s142 + $0xb0] sm:$0xf]
      %v195 = vld [vmem:[%s142 + $0xb4] sm:$0xf]
      %v196 = vld [vmem:[%s142 + $0xb8] sm:$0xf]
      %v197 = vld [vmem:[%s142 + $0xbc] sm:$0xf]
      %v198 = vld [vmem:[%s142 + $0xc0] sm:$0xf]
      %v199 = vld [vmem:[%s142 + $0xc4] sm:$0xf]
      %v200 = vld [vmem:[%s142 + $0xc8] sm:$0xf]
      %v201 = vld [vmem:[%s142 + $0xcc] sm:$0xf]
      %v202 = vld [vmem:[%s142 + $0xd0] sm:$0xf]
      %v203 = vld [vmem:[%s142 + $0xd4] sm:$0xf]
      %v204 = vld [vmem:[%s142 + $0xd8] sm:$0xf]
      %v205 = vld [vmem:[%s142 + $0xdc] sm:$0xf]
      %v206 = vld [vmem:[%s142 + $0xe0] sm:$0xf]
      %v207 = vld [vmem:[%s142 + $0xe4] sm:$0xf]
      %v208 = vld [vmem:[%s142 + $0xe8] sm:$0xf]
      %v209 = vld [vmem:[%s142 + $0xec] sm:$0xf]
      %v210 = vld [vmem:[%s142 + $0xf0] sm:$0xf]
      %v211 = vld [vmem:[%s142 + $0xf4] sm:$0xf]
      %v212 = vld [vmem:[%s142 + $0xf8] sm:$0xf]
      %v213 = vld [vmem:[%s142 + $0xfc] sm:$0xf]
      %v214 = vunpack.c.l.bf16 %v150
      %v215 = vunpack.c.l.bf16 %v151
      %v216 = vunpack.c.l.bf16 %v152
      %v217 = vunpack.c.l.bf16 %v153
      %v218 = vunpack.c.l.bf16 %v154
      %v219 = vunpack.c.l.bf16 %v155
      %v220 = vunpack.c.l.bf16 %v156
      %v221 = vunpack.c.l.bf16 %v157
      %v222 = vunpack.c.l.bf16 %v158
      %v223 = vunpack.c.l.bf16 %v159
      %v224 = vunpack.c.l.bf16 %v160
      %v225 = vunpack.c.l.bf16 %v161
      %v226 = vunpack.c.l.bf16 %v162
      %v227 = vunpack.c.l.bf16 %v163
      %v228 = vunpack.c.l.bf16 %v164
      %v229 = vunpack.c.l.bf16 %v165
      %v230 = vunpack.c.l.bf16 %v166
      %v231 = vunpack.c.l.bf16 %v167
      %v232 = vunpack.c.l.bf16 %v168
      %v233 = vunpack.c.l.bf16 %v169
      %v234 = vunpack.c.l.bf16 %v170
      %v235 = vunpack.c.l.bf16 %v171
      %v236 = vunpack.c.l.bf16 %v172
      %v237 = vunpack.c.l.bf16 %v173
      %v238 = vunpack.c.l.bf16 %v174
      %v239 = vunpack.c.l.bf16 %v175
      %v240 = vunpack.c.l.bf16 %v176
      %v241 = vunpack.c.l.bf16 %v177
      %v242 = vunpack.c.l.bf16 %v178
      %v243 = vunpack.c.l.bf16 %v179
      %v244 = vunpack.c.l.bf16 %v180
      %v245 = vunpack.c.l.bf16 %v181
      %v246 = vunpack.c.l.bf16 %v182
      %v247 = vunpack.c.l.bf16 %v183
      %v248 = vunpack.c.l.bf16 %v184
      %v249 = vunpack.c.l.bf16 %v185
      %v250 = vunpack.c.l.bf16 %v186
      %v251 = vunpack.c.l.bf16 %v187
      %v252 = vunpack.c.l.bf16 %v188
      %v253 = vunpack.c.l.bf16 %v189
      %v254 = vunpack.c.l.bf16 %v190
      %v255 = vunpack.c.l.bf16 %v191
      %v256 = vunpack.c.l.bf16 %v192
      %v257 = vunpack.c.l.bf16 %v193
      %v258 = vunpack.c.l.bf16 %v194
      %v259 = vunpack.c.l.bf16 %v195
      %v260 = vunpack.c.l.bf16 %v196
      %v261 = vunpack.c.l.bf16 %v197
      %v262 = vunpack.c.l.bf16 %v198
      %v263 = vunpack.c.l.bf16 %v199
      %v264 = vunpack.c.l.bf16 %v200
      %v265 = vunpack.c.l.bf16 %v201
      %v266 = vunpack.c.l.bf16 %v202
      %v267 = vunpack.c.l.bf16 %v203
      %v268 = vunpack.c.l.bf16 %v204
      %v269 = vunpack.c.l.bf16 %v205
      %v270 = vunpack.c.l.bf16 %v206
      %v271 = vunpack.c.l.bf16 %v207
      %v272 = vunpack.c.l.bf16 %v208
      %v273 = vunpack.c.l.bf16 %v209
      %v274 = vunpack.c.l.bf16 %v210
      %v275 = vunpack.c.l.bf16 %v211
      %v276 = vunpack.c.l.bf16 %v212
      %v277 = vunpack.c.l.bf16 %v213
      %v278 = vld [vmem:[%s1] sm:$0x1]
      %v280 = vlaneseq
      %v281 = vshrl.u32 %v280, 7
      %v282 = vsub.s32 0, %v281
      %v283 = vrot.slane %v278, %v282
      %v285 = vadd.f32 %v214, %v283
      %v286 = vadd.f32 %v215, %v283
      %v287 = vadd.f32 %v216, %v283
      %v288 = vadd.f32 %v217, %v283
      %v289 = vadd.f32 %v218, %v283
      %v290 = vadd.f32 %v219, %v283
      %v291 = vadd.f32 %v220, %v283
      %v292 = vadd.f32 %v221, %v283
      %v293 = vadd.f32 %v222, %v283
      %v294 = vadd.f32 %v223, %v283
      %v295 = vadd.f32 %v224, %v283
      %v296 = vadd.f32 %v225, %v283
      %v297 = vadd.f32 %v226, %v283
      %v298 = vadd.f32 %v227, %v283
      %v299 = vadd.f32 %v228, %v283
      %v300 = vadd.f32 %v229, %v283
      %v301 = vadd.f32 %v230, %v283
      %v302 = vadd.f32 %v231, %v283
      %v303 = vadd.f32 %v232, %v283
      %v304 = vadd.f32 %v233, %v283
      %v305 = vadd.f32 %v234, %v283
      %v306 = vadd.f32 %v235, %v283
      %v307 = vadd.f32 %v236, %v283
      %v308 = vadd.f32 %v237, %v283
      %v309 = vadd.f32 %v238, %v283
      %v310 = vadd.f32 %v239, %v283
      %v311 = vadd.f32 %v240, %v283
      %v312 = vadd.f32 %v241, %v283
      %v313 = vadd.f32 %v242, %v283
      %v314 = vadd.f32 %v243, %v283
      %v315 = vadd.f32 %v244, %v283
      %v316 = vadd.f32 %v245, %v283
      %v317 = vadd.f32 %v246, %v283
      %v318 = vadd.f32 %v247, %v283
      %v319 = vadd.f32 %v248, %v283
      %v320 = vadd.f32 %v249, %v283
      %v321 = vadd.f32 %v250, %v283
      %v322 = vadd.f32 %v251, %v283
      %v323 = vadd.f32 %v252, %v283
      %v324 = vadd.f32 %v253, %v283
      %v325 = vadd.f32 %v254, %v283
      %v326 = vadd.f32 %v255, %v283
      %v327 = vadd.f32 %v256, %v283
      %v328 = vadd.f32 %v257, %v283
      %v329 = vadd.f32 %v258, %v283
      %v330 = vadd.f32 %v259, %v283
      %v331 = vadd.f32 %v260, %v283
      %v332 = vadd.f32 %v261, %v283
      %v333 = vadd.f32 %v262, %v283
      %v334 = vadd.f32 %v263, %v283
      %v335 = vadd.f32 %v264, %v283
      %v336 = vadd.f32 %v265, %v283
      %v337 = vadd.f32 %v266, %v283
      %v338 = vadd.f32 %v267, %v283
      %v339 = vadd.f32 %v268, %v283
      %v340 = vadd.f32 %v269, %v283
      %v341 = vadd.f32 %v270, %v283
      %v342 = vadd.f32 %v271, %v283
      %v343 = vadd.f32 %v272, %v283
      %v344 = vadd.f32 %v273, %v283
      %v345 = vadd.f32 %v274, %v283
      %v346 = vadd.f32 %v275, %v283
      %v347 = vadd.f32 %v276, %v283
      %v348 = vadd.f32 %v277, %v283
      %v349 = vmax.f32 %v285, 0.0
      %v350 = vmax.f32 %v286, 0.0
      %v351 = vmax.f32 %v287, 0.0
      %v352 = vmax.f32 %v288, 0.0
      %v353 = vmax.f32 %v289, 0.0
      %v354 = vmax.f32 %v290, 0.0
      %v355 = vmax.f32 %v291, 0.0
      %v356 = vmax.f32 %v292, 0.0
      %v357 = vmax.f32 %v293, 0.0
      %v358 = vmax.f32 %v294, 0.0
      %v359 = vmax.f32 %v295, 0.0
      %v360 = vmax.f32 %v296, 0.0
      %v361 = vmax.f32 %v297, 0.0
      %v362 = vmax.f32 %v298, 0.0
      %v363 = vmax.f32 %v299, 0.0
      %v364 = vmax.f32 %v300, 0.0
      %v365 = vmax.f32 %v301, 0.0
      %v366 = vmax.f32 %v302, 0.0
      %v367 = vmax.f32 %v303, 0.0
      %v368 = vmax.f32 %v304, 0.0
      %v369 = vmax.f32 %v305, 0.0
      %v370 = vmax.f32 %v306, 0.0
      %v371 = vmax.f32 %v307, 0.0
      %v372 = vmax.f32 %v308, 0.0
      %v373 = vmax.f32 %v309, 0.0
      %v374 = vmax.f32 %v310, 0.0
      %v375 = vmax.f32 %v311, 0.0
      %v376 = vmax.f32 %v312, 0.0
      %v377 = vmax.f32 %v313, 0.0
      %v378 = vmax.f32 %v314, 0.0
      %v379 = vmax.f32 %v315, 0.0
      %v380 = vmax.f32 %v316, 0.0
      %v381 = vmax.f32 %v317, 0.0
      %v382 = vmax.f32 %v318, 0.0
      %v383 = vmax.f32 %v319, 0.0
      %v384 = vmax.f32 %v320, 0.0
      %v385 = vmax.f32 %v321, 0.0
      %v386 = vmax.f32 %v322, 0.0
      %v387 = vmax.f32 %v323, 0.0
      %v388 = vmax.f32 %v324, 0.0
      %v389 = vmax.f32 %v325, 0.0
      %v390 = vmax.f32 %v326, 0.0
      %v391 = vmax.f32 %v327, 0.0
      %v392 = vmax.f32 %v328, 0.0
      %v393 = vmax.f32 %v329, 0.0
      %v394 = vmax.f32 %v330, 0.0
      %v395 = vmax.f32 %v331, 0.0
      %v396 = vmax.f32 %v332, 0.0
      %v397 = vmax.f32 %v333, 0.0
      %v398 = vmax.f32 %v334, 0.0
      %v399 = vmax.f32 %v335, 0.0
      %v400 = vmax.f32 %v336, 0.0
      %v401 = vmax.f32 %v337, 0.0
      %v402 = vmax.f32 %v338, 0.0
      %v403 = vmax.f32 %v339, 0.0
      %v404 = vmax.f32 %v340, 0.0
      %v405 = vmax.f32 %v341, 0.0
      %v406 = vmax.f32 %v342, 0.0
      %v407 = vmax.f32 %v343, 0.0
      %v408 = vmax.f32 %v344, 0.0
      %v409 = vmax.f32 %v345, 0.0
      %v410 = vmax.f32 %v346, 0.0
      %v411 = vmax.f32 %v347, 0.0
      %v412 = vmax.f32 %v348, 0.0
      %v413 = vmax.f32 %v349, %v350
      %v414 = vrot.slane %v413, 4
      %v415 = vmax.f32 %v413, %v414
      %v416 = vrot.slane %v415, 2
      %v417 = vmax.f32 %v415, %v416
      %v418 = vrot.slane %v417, 1
      %v419 = vmax.f32 %v417, %v418
      %v420 = vmax.f32 %v351, %v352
      %v421 = vrot.slane %v420, 4
      %v422 = vmax.f32 %v420, %v421
      %v423 = vrot.slane %v422, 2
      %v424 = vmax.f32 %v422, %v423
      %v425 = vrot.slane %v424, 1
      %v426 = vmax.f32 %v424, %v425
      %v427 = vmax.f32 %v353, %v354
      %v428 = vrot.slane %v427, 4
      %v429 = vmax.f32 %v427, %v428
      %v430 = vrot.slane %v429, 2
      %v431 = vmax.f32 %v429, %v430
      %v432 = vrot.slane %v431, 1
      %v433 = vmax.f32 %v431, %v432
      %v434 = vmax.f32 %v355, %v356
      %v435 = vrot.slane %v434, 4
      %v436 = vmax.f32 %v434, %v435
      %v437 = vrot.slane %v436, 2
      %v438 = vmax.f32 %v436, %v437
      %v439 = vrot.slane %v438, 1
      %v440 = vmax.f32 %v438, %v439
      %v441 = vmax.f32 %v357, %v358
      %v442 = vrot.slane %v441, 4
      %v443 = vmax.f32 %v441, %v442
      %v444 = vrot.slane %v443, 2
      %v445 = vmax.f32 %v443, %v444
      %v446 = vrot.slane %v445, 1
      %v447 = vmax.f32 %v445, %v446
      %v448 = vmax.f32 %v359, %v360
      %v449 = vrot.slane %v448, 4
      %v450 = vmax.f32 %v448, %v449
      %v451 = vrot.slane %v450, 2
      %v452 = vmax.f32 %v450, %v451
      %v453 = vrot.slane %v452, 1
      %v454 = vmax.f32 %v452, %v453
      %v455 = vmax.f32 %v361, %v362
      %v456 = vrot.slane %v455, 4
      %v457 = vmax.f32 %v455, %v456
      %v458 = vrot.slane %v457, 2
      %v459 = vmax.f32 %v457, %v458
      %v460 = vrot.slane %v459, 1
      %v461 = vmax.f32 %v459, %v460
      %v462 = vmax.f32 %v363, %v364
      %v463 = vrot.slane %v462, 4
      %v464 = vmax.f32 %v462, %v463
      %v465 = vrot.slane %v464, 2
      %v466 = vmax.f32 %v464, %v465
      %v467 = vrot.slane %v466, 1
      %v468 = vmax.f32 %v466, %v467
      %v469 = vmax.f32 %v365, %v366
      %v470 = vrot.slane %v469, 4
      %v471 = vmax.f32 %v469, %v470
      %v472 = vrot.slane %v471, 2
      %v473 = vmax.f32 %v471, %v472
      %v474 = vrot.slane %v473, 1
      %v475 = vmax.f32 %v473, %v474
      %v476 = vmax.f32 %v367, %v368
      %v477 = vrot.slane %v476, 4
      %v478 = vmax.f32 %v476, %v477
      %v479 = vrot.slane %v478, 2
      %v480 = vmax.f32 %v478, %v479
      %v481 = vrot.slane %v480, 1
      %v482 = vmax.f32 %v480, %v481
      %v483 = vmax.f32 %v369, %v370
      %v484 = vrot.slane %v483, 4
      %v485 = vmax.f32 %v483, %v484
      %v486 = vrot.slane %v485, 2
      %v487 = vmax.f32 %v485, %v486
      %v488 = vrot.slane %v487, 1
      %v489 = vmax.f32 %v487, %v488
      %v490 = vmax.f32 %v371, %v372
      %v491 = vrot.slane %v490, 4
      %v492 = vmax.f32 %v490, %v491
      %v493 = vrot.slane %v492, 2
      %v494 = vmax.f32 %v492, %v493
      %v495 = vrot.slane %v494, 1
      %v496 = vmax.f32 %v494, %v495
      %v497 = vmax.f32 %v373, %v374
      %v498 = vrot.slane %v497, 4
      %v499 = vmax.f32 %v497, %v498
      %v500 = vrot.slane %v499, 2
      %v501 = vmax.f32 %v499, %v500
      %v502 = vrot.slane %v501, 1
      %v503 = vmax.f32 %v501, %v502
      %v504 = vmax.f32 %v375, %v376
      %v505 = vrot.slane %v504, 4
      %v506 = vmax.f32 %v504, %v505
      %v507 = vrot.slane %v506, 2
      %v508 = vmax.f32 %v506, %v507
      %v509 = vrot.slane %v508, 1
      %v510 = vmax.f32 %v508, %v509
      %v511 = vmax.f32 %v377, %v378
      %v512 = vrot.slane %v511, 4
      %v513 = vmax.f32 %v511, %v512
      %v514 = vrot.slane %v513, 2
      %v515 = vmax.f32 %v513, %v514
      %v516 = vrot.slane %v515, 1
      %v517 = vmax.f32 %v515, %v516
      %v518 = vmax.f32 %v379, %v380
      %v519 = vrot.slane %v518, 4
      %v520 = vmax.f32 %v518, %v519
      %v521 = vrot.slane %v520, 2
      %v522 = vmax.f32 %v520, %v521
      %v523 = vrot.slane %v522, 1
      %v524 = vmax.f32 %v522, %v523
      %v525 = vmax.f32 %v381, %v382
      %v526 = vrot.slane %v525, 4
      %v527 = vmax.f32 %v525, %v526
      %v528 = vrot.slane %v527, 2
      %v529 = vmax.f32 %v527, %v528
      %v530 = vrot.slane %v529, 1
      %v531 = vmax.f32 %v529, %v530
      %v532 = vmax.f32 %v383, %v384
      %v533 = vrot.slane %v532, 4
      %v534 = vmax.f32 %v532, %v533
      %v535 = vrot.slane %v534, 2
      %v536 = vmax.f32 %v534, %v535
      %v537 = vrot.slane %v536, 1
      %v538 = vmax.f32 %v536, %v537
      %v539 = vmax.f32 %v385, %v386
      %v540 = vrot.slane %v539, 4
      %v541 = vmax.f32 %v539, %v540
      %v542 = vrot.slane %v541, 2
      %v543 = vmax.f32 %v541, %v542
      %v544 = vrot.slane %v543, 1
      %v545 = vmax.f32 %v543, %v544
      %v546 = vmax.f32 %v387, %v388
      %v547 = vrot.slane %v546, 4
      %v548 = vmax.f32 %v546, %v547
      %v549 = vrot.slane %v548, 2
      %v550 = vmax.f32 %v548, %v549
      %v551 = vrot.slane %v550, 1
      %v552 = vmax.f32 %v550, %v551
      %v553 = vmax.f32 %v389, %v390
      %v554 = vrot.slane %v553, 4
      %v555 = vmax.f32 %v553, %v554
      %v556 = vrot.slane %v555, 2
      %v557 = vmax.f32 %v555, %v556
      %v558 = vrot.slane %v557, 1
      %v559 = vmax.f32 %v557, %v558
      %v560 = vmax.f32 %v391, %v392
      %v561 = vrot.slane %v560, 4
      %v562 = vmax.f32 %v560, %v561
      %v563 = vrot.slane %v562, 2
      %v564 = vmax.f32 %v562, %v563
      %v565 = vrot.slane %v564, 1
      %v566 = vmax.f32 %v564, %v565
      %v567 = vmax.f32 %v393, %v394
      %v568 = vrot.slane %v567, 4
      %v569 = vmax.f32 %v567, %v568
      %v570 = vrot.slane %v569, 2
      %v571 = vmax.f32 %v569, %v570
      %v572 = vrot.slane %v571, 1
      %v573 = vmax.f32 %v571, %v572
      %v574 = vmax.f32 %v395, %v396
      %v575 = vrot.slane %v574, 4
      %v576 = vmax.f32 %v574, %v575
      %v577 = vrot.slane %v576, 2
      %v578 = vmax.f32 %v576, %v577
      %v579 = vrot.slane %v578, 1
      %v580 = vmax.f32 %v578, %v579
      %v581 = vmax.f32 %v397, %v398
      %v582 = vrot.slane %v581, 4
      %v583 = vmax.f32 %v581, %v582
      %v584 = vrot.slane %v583, 2
      %v585 = vmax.f32 %v583, %v584
      %v586 = vrot.slane %v585, 1
      %v587 = vmax.f32 %v585, %v586
      %v588 = vmax.f32 %v399, %v400
      %v589 = vrot.slane %v588, 4
      %v590 = vmax.f32 %v588, %v589
      %v591 = vrot.slane %v590, 2
      %v592 = vmax.f32 %v590, %v591
      %v593 = vrot.slane %v592, 1
      %v594 = vmax.f32 %v592, %v593
      %v595 = vmax.f32 %v401, %v402
      %v596 = vrot.slane %v595, 4
      %v597 = vmax.f32 %v595, %v596
      %v598 = vrot.slane %v597, 2
      %v599 = vmax.f32 %v597, %v598
      %v600 = vrot.slane %v599, 1
      %v601 = vmax.f32 %v599, %v600
      %v602 = vmax.f32 %v403, %v404
      %v603 = vrot.slane %v602, 4
      %v604 = vmax.f32 %v602, %v603
      %v605 = vrot.slane %v604, 2
      %v606 = vmax.f32 %v604, %v605
      %v607 = vrot.slane %v606, 1
      %v608 = vmax.f32 %v606, %v607
      %v609 = vmax.f32 %v405, %v406
      %v610 = vrot.slane %v609, 4
      %v611 = vmax.f32 %v609, %v610
      %v612 = vrot.slane %v611, 2
      %v613 = vmax.f32 %v611, %v612
      %v614 = vrot.slane %v613, 1
      %v615 = vmax.f32 %v613, %v614
      %v616 = vmax.f32 %v407, %v408
      %v617 = vrot.slane %v616, 4
      %v618 = vmax.f32 %v616, %v617
      %v619 = vrot.slane %v618, 2
      %v620 = vmax.f32 %v618, %v619
      %v621 = vrot.slane %v620, 1
      %v622 = vmax.f32 %v620, %v621
      %v623 = vmax.f32 %v409, %v410
      %v624 = vrot.slane %v623, 4
      %v625 = vmax.f32 %v623, %v624
      %v626 = vrot.slane %v625, 2
      %v627 = vmax.f32 %v625, %v626
      %v628 = vrot.slane %v627, 1
      %v629 = vmax.f32 %v627, %v628
      %v630 = vmax.f32 %v411, %v412
      %v631 = vrot.slane %v630, 4
      %v632 = vmax.f32 %v630, %v631
      %v633 = vrot.slane %v632, 2
      %v634 = vmax.f32 %v632, %v633
      %v635 = vrot.slane %v634, 1
      %v636 = vmax.f32 %v634, %v635
      %vm669 = vcmask 1041409
      %v670 = vsel %vm669, %v426, %v419
      %vm671 = vcmask 1042434
      %v672 = vsel %vm671, %v433, %v670
      %vm673 = vcmask 1043459
      %v674 = vsel %vm673, %v440, %v672
      %vm675 = vcmask 1044484
      %v676 = vsel %vm675, %v447, %v674
      %vm677 = vcmask 1045509
      %v678 = vsel %vm677, %v454, %v676
      %vm679 = vcmask 1046534
      %v680 = vsel %vm679, %v461, %v678
      %vm681 = vcmask 1047559
      %v682 = vsel %vm681, %v468, %v680
      %v683 = vsel %vm669, %v482, %v475
      %v684 = vsel %vm671, %v489, %v683
      %v685 = vsel %vm673, %v496, %v684
      %v686 = vsel %vm675, %v503, %v685
      %v687 = vsel %vm677, %v510, %v686
      %v688 = vsel %vm679, %v517, %v687
      %v689 = vsel %vm681, %v524, %v688
      %v690 = vsel %vm669, %v538, %v531
      %v691 = vsel %vm671, %v545, %v690
      %v692 = vsel %vm673, %v552, %v691
      %v693 = vsel %vm675, %v559, %v692
      %v694 = vsel %vm677, %v566, %v693
      %v695 = vsel %vm679, %v573, %v694
      %v696 = vsel %vm681, %v580, %v695
      %v697 = vsel %vm669, %v594, %v587
      %v698 = vsel %vm671, %v601, %v697
      %v699 = vsel %vm673, %v608, %v698
      %v700 = vsel %vm675, %v615, %v699
      %v701 = vsel %vm677, %v622, %v700
      %v702 = vsel %vm679, %v629, %v701
      %v703 = vsel %vm681, %v636, %v702
      %708 = vst [vmem:[%s148] sm:$0xff] %v682
      %709 = vst [vmem:[%s148 + $0x8] sm:$0xff] %v689
      %710 = vst [vmem:[%s148 + $0x10] sm:$0xff] %v696
      %711 = vst [vmem:[%s148 + $0x18] sm:$0xff] %v703
      %s712 = smul.u32 4, %s13
      %p713 = scmp.lt.s32.totalorder %s712, 7
      %s714 = scalar_select %p713, %s712, 7
      %s715 = smul.addr %s714, 8
      %s716 = scalar_lea.vmem %s2, %s715
      // Predicated region
      $region29: #{rscnn_ssn_forward.4} parent=27 // pred_check
        %p717 = pneg %p78
      $region30: #{rscnn_ssn_forward.4} parent=27 // pred_check_branch
        %719 = sbr.rel (%p717) target = $region32
      $region31: #{rscnn_ssn_forward.4} parent=27 // pred_region
        %s720 = smul.u32 4, %s13
      $region32: #{rscnn_ssn_forward.4} parent=27 // pred_fallthru
        _
    $region28: #{rscnn_ssn_forward.4} parent=5 // pred_fallthru
      _
    %p721 = scmp.le.s32.totalorder 2, %s8
    // Predicated region
    $region33: #{rscnn_ssn_forward.4} parent=5 // pred_check
      %p722 = pneg %p721
    $region34: #{rscnn_ssn_forward.4} parent=5 // pred_check_branch
      %724 = sbr.rel (%p722) target = $region36
    $region35: #{rscnn_ssn_forward.4} parent=5 // pred_region
      %s725 = ssub.s32 %s8, 2
      // Predicated region
      $region37: #{rscnn_ssn_forward.4} parent=35 // pred_check
        %p726 = pneg %p84
      $region38: #{rscnn_ssn_forward.4} parent=35 // pred_check_branch
        %728 = sbr.rel (%p726) target = $region40
      $region39: #{rscnn_ssn_forward.4} parent=35 // pred_region
        %s729 = smul.u32 4, %s14
        %p730 = scmp.lt.s32.totalorder %s729, 7
        %s731 = scalar_select %p730, %s729, 7
        %s732 = smul.addr %s731, 8
        %s733 = scalar_lea.vmem %s2, %s732
      $region40: #{rscnn_ssn_forward.4} parent=35 // pred_fallthru
        _
    $region36: #{rscnn_ssn_forward.4} parent=5 // pred_fallthru
      _
  $region6: #{rscnn_ssn_forward.4} parent=0 // loop_footer
    %s12 = sadd.s32 1, %s8
  $region7: #{rscnn_ssn_forward.4} parent=0 // loop_footer_branch
    %7 = sbr.rel target = $region3
  $region8: #{rscnn_ssn_forward.4} parent=0 // loop_exit
    _

// kernel: rscnn_ssn_forward.5
$region0: #{rscnn_ssn_forward.5}
  #allocation0 [shape = 'u32[]', space=smem, size = 0x4, offset = 0x4, fixed_abs, tag = 'smem constant byte address 0x4 - core index']
  #allocation1 [shape = 'u32[144,128]{1,0:T(1,128)}', space=vmem, size = 0x12000, scoped, tag = 'internal scratch']
  %s0 = inlined_call_operand.vmem [shape: bf16[32,16,256], index: 0, kind: input, shape index: {}]
  %s1 = inlined_call_operand.vmem [shape: bf16[256,512], index: 1, kind: input, shape index: {}]
  %s2 = inlined_call_operand.vmem [shape: f32[1,512], index: 2, kind: input, shape index: {}]
  %s3 = inlined_call_operand.vmem [shape: f32[32,512], index: 3, kind: output, shape index: {}]
  %s4 = sld [smem:[#allocation0]]
  $region45: #{rscnn_ssn_forward.5} parent=0
    _
  %s6 = ssub.s32 1, %s4
  %s7 = scalar_select 0, %s6, %s4
  loop: start=0, step=1, limit=4
  $region2: #{rscnn_ssn_forward.5} parent=0 // loop_pre_header
    _
  $region3: #{rscnn_ssn_forward.5} parent=0 // loop_header
    %s9 = sphi 0, %s13
    %p10 = scmp.ge.s32.totalorder %s9, 4
    %s19 = sphi 0, %s21
    %s22 = sphi 0, %s19
    %s23 = sphi 0, %s22
    %s39 = sphi 0, %s23
    %s43 = sphi 0, %s43
    %s45 = sphi 0, %s43
    %s46 = sphi 0, %s45
    %s60 = sphi 0, %s46
    %s64 = sphi 0, %s64
    %s66 = sphi 0, %s64
    %s67 = sphi 0, %s66
    %s81 = sphi 0, %s67
    %s87 = sphi 0, %s89
    %s90 = sphi 0, %s87
    %s91 = sphi 0, %s90
    %s107 = sphi 0, %s91
  $region4: #{rscnn_ssn_forward.5} parent=0 // loop_header_branch
    %12 = sbr.rel (%p10) target = $region8
  $region5: #{rscnn_ssn_forward.5} parent=0 // loop_body
    %s14 = ssub.s32 %s9, 1
    %s15 = ssub.s32 %s9, 2
    %s16 = sadd.s32 %s9, 1
    %s17 = ssub.s32 %s9, %s16
    %p18 = scmp.eq.s32.totalorder %s17, 0
    %s20 = sadd.s32 %s19, 1
    %s21 = scalar_select %p18, %s19, %s20
    %p24 = pneg %p18
    %p25 = scmp.eq.s32.totalorder %s9, 1
    %p26 = por %p24, %p25
    %p27 = scmp.ne.s32.totalorder %s19, %s22
    %p28 = scmp.eq.s32.totalorder %s9, 0
    %p29 = por %p27, %p28
    %p30 = scmp.ne.s32.totalorder %s19, %s22
    %p31 = scmp.eq.s32.totalorder %s14, 1
    %p32 = por %p30, %p31
    %p33 = scmp.ne.s32.totalorder %s22, %s23
    %p34 = scmp.eq.s32.totalorder %s14, 0
    %p35 = por %p33, %p34
    %p36 = scmp.ne.s32.totalorder %s22, %s23
    %p37 = scmp.eq.s32.totalorder %s15, 1
    %p38 = por %p36, %p37
    %p40 = scmp.ne.s32.totalorder %s23, %s39
    %p41 = scmp.eq.s32.totalorder %s15, 0
    %p42 = por %p40, %p41
    %s44 = sadd.s32 %s43, 1
    %p47 = scmp.eq.s32.totalorder %s9, 1
    %p48 = scmp.ne.s32.totalorder %s43, %s45
    %p49 = scmp.eq.s32.totalorder %s9, 0
    %p50 = por %p48, %p49
    %p51 = scmp.ne.s32.totalorder %s43, %s45
    %p52 = scmp.eq.s32.totalorder %s14, 1
    %p53 = por %p51, %p52
    %p54 = scmp.ne.s32.totalorder %s45, %s46
    %p55 = scmp.eq.s32.totalorder %s14, 0
    %p56 = por %p54, %p55
    %p57 = scmp.ne.s32.totalorder %s45, %s46
    %p58 = scmp.eq.s32.totalorder %s15, 1
    %p59 = por %p57, %p58
    %p61 = scmp.ne.s32.totalorder %s46, %s60
    %p62 = scmp.eq.s32.totalorder %s15, 0
    %p63 = por %p61, %p62
    %s65 = sadd.s32 %s64, 1
    %p68 = scmp.eq.s32.totalorder %s9, 1
    %p69 = scmp.ne.s32.totalorder %s64, %s66
    %p70 = scmp.eq.s32.totalorder %s9, 0
    %p71 = por %p69, %p70
    %p72 = scmp.ne.s32.totalorder %s64, %s66
    %p73 = scmp.eq.s32.totalorder %s14, 1
    %p74 = por %p72, %p73
    %p75 = scmp.ne.s32.totalorder %s66, %s67
    %p76 = scmp.eq.s32.totalorder %s14, 0
    %p77 = por %p75, %p76
    %p78 = scmp.ne.s32.totalorder %s66, %s67
    %p79 = scmp.eq.s32.totalorder %s15, 1
    %p80 = por %p78, %p79
    %p82 = scmp.ne.s32.totalorder %s67, %s81
    %p83 = scmp.eq.s32.totalorder %s15, 0
    %p84 = por %p82, %p83
    %s85 = ssub.s32 %s9, %s16
    %p86 = scmp.eq.s32.totalorder %s85, 0
    %s88 = sadd.s32 %s87, 1
    %s89 = scalar_select %p86, %s87, %s88
    %p92 = pneg %p86
    %p93 = scmp.eq.s32.totalorder %s9, 1
    %p94 = por %p92, %p93
    %p95 = scmp.ne.s32.totalorder %s87, %s90
    %p96 = scmp.eq.s32.totalorder %s9, 0
    %p97 = por %p95, %p96
    %p98 = scmp.ne.s32.totalorder %s87, %s90
    %p99 = scmp.eq.s32.totalorder %s14, 1
    %p100 = por %p98, %p99
    %p101 = scmp.ne.s32.totalorder %s90, %s91
    %p102 = scmp.eq.s32.totalorder %s14, 0
    %p103 = por %p101, %p102
    %p104 = scmp.ne.s32.totalorder %s90, %s91
    %p105 = scmp.eq.s32.totalorder %s15, 1
    %p106 = por %p104, %p105
    %p108 = scmp.ne.s32.totalorder %s91, %s107
    %p109 = scmp.eq.s32.totalorder %s15, 0
    %p110 = por %p108, %p109
    %p111 = scmp.le.s32.totalorder 1, %s9
    %p112 = scmp.lt.s32.totalorder %s9, 3
    %p113 = pnand %p111, %p112
    %p114 = pneg %p113
    // Predicated region
    $region9: #{rscnn_ssn_forward.5} parent=5 // pred_check
      _
    $region10: #{rscnn_ssn_forward.5} parent=5 // pred_check_branch
      %116 = sbr.rel (%p113) target = $region12
    $region11: #{rscnn_ssn_forward.5} parent=5 // pred_region
      %s117 = ssub.s32 %s9, 1
      // Predicated region
      $region13: #{rscnn_ssn_forward.5} parent=11 // pred_check
        %p118 = pneg %p56
      $region14: #{rscnn_ssn_forward.5} parent=11 // pred_check_branch
        %120 = sbr.rel (%p118) target = $region16
      $region15: #{rscnn_ssn_forward.5} parent=11 // pred_region
        _
      $region16: #{rscnn_ssn_forward.5} parent=11 // pred_fallthru
        _
      // Predicated region
      $region17: #{rscnn_ssn_forward.5} parent=11 // pred_check
        %p121 = pneg %p77
      $region18: #{rscnn_ssn_forward.5} parent=11 // pred_check_branch
        %123 = sbr.rel (%p121) target = $region20
      $region19: #{rscnn_ssn_forward.5} parent=11 // pred_region
        _
      $region20: #{rscnn_ssn_forward.5} parent=11 // pred_fallthru
        _
    $region12: #{rscnn_ssn_forward.5} parent=5 // pred_fallthru
      _
    %p124 = scmp.lt.s32.totalorder %s9, 2
    // Predicated region
    $region21: #{rscnn_ssn_forward.5} parent=5 // pred_check
      %p125 = pneg %p124
    $region22: #{rscnn_ssn_forward.5} parent=5 // pred_check_branch
      %127 = sbr.rel (%p125) target = $region24
    $region23: #{rscnn_ssn_forward.5} parent=5 // pred_region
      // Predicated region
      $region25: #{rscnn_ssn_forward.5} parent=23 // pred_check
        %p128 = pneg %p29
      $region26: #{rscnn_ssn_forward.5} parent=23 // pred_check_branch
        %130 = sbr.rel (%p128) target = $region28
      $region27: #{rscnn_ssn_forward.5} parent=23 // pred_region
        %s131 = smul.u32 16, %s9
        %p132 = scmp.lt.s32.totalorder %s131, 31
        %s133 = scalar_select %p132, %s131, 31
        %s134 = smul.addr %s133, 4
        %s135 = smul.addr %s134, 4
        %s136 = scalar_lea.vmem %s0, %s135
        %s137 = smul.u32 16, %s9
      $region28: #{rscnn_ssn_forward.5} parent=23 // pred_fallthru
        _
    $region24: #{rscnn_ssn_forward.5} parent=5 // pred_fallthru
      _
    %p138 = scmp.le.s32.totalorder 1, %s9
    %p139 = scmp.lt.s32.totalorder %s9, 3
    %p140 = pnand %p138, %p139
    %p141 = pneg %p140
    // Predicated region
    $region29: #{rscnn_ssn_forward.5} parent=5 // pred_check
      _
    $region30: #{rscnn_ssn_forward.5} parent=5 // pred_check_branch
      %143 = sbr.rel (%p140) target = $region32
    $region31: #{rscnn_ssn_forward.5} parent=5 // pred_region
      %s144 = ssub.s32 %s9, 1
      %s145 = smul.u32 16, %s14
      %p146 = scmp.lt.s32.totalorder %s145, 31
      %s147 = scalar_select %p146, %s145, 31
      %s148 = smul.addr %s147, 4
      %s149 = smul.addr %s148, 4
      %s150 = scalar_lea.vmem %s0, %s149
      %p151 = pneg %p35
      %p152 = pneg %p32
      %p153 = pneg %p56
      %p154 = pneg %p53
      %p155 = pneg %p77
      %p156 = pneg %p74
      %p157 = pneg %p103
      %p158 = pneg %p100
      %s159 = smul.u32 2, %s14
      %p160 = scmp.lt.s32.totalorder %s159, 3
      %s161 = scalar_select %p160, %s159, 3
      %s162 = smul.addr %s161, 4
      %s163 = smul.addr %s162, 8
      %s164 = scalar_lea.vmem %s3, %s163
      %s165 = smul.u32 16, %s14
      %p166 = scmp.lt.s32.totalorder %s165, 31
      %s167 = scalar_select %p166, %s165, 31
      %s168 = smul.addr %s167, 4
      %s169 = smul.addr %s168, 4
      %s170 = scalar_lea.vmem %s0, %s169
      %s171 = smul.u32 16, %s14
      %s172 = smul.u32 2, %s14
      %p173 = scmp.lt.s32.totalorder %s172, 3
      %s174 = scalar_select %p173, %s172, 3
      %s175 = smul.addr %s174, 4
      %s176 = smul.addr %s175, 8
      %s177 = scalar_lea.vmem %s3, %s176
      %s178 = smul.u32 2, %s14
      %v179 = vld [vmem:[%s1] sm:$0xff]
      %v180 = vld [vmem:[%s1 + $0x8] sm:$0xff]
      %v181 = vld [vmem:[%s1 + $0x10] sm:$0xff]
      %v182 = vld [vmem:[%s1 + $0x18] sm:$0xff]
      %v183 = vld [vmem:[%s1 + $0x20] sm:$0xff]
      %v184 = vld [vmem:[%s1 + $0x28] sm:$0xff]
      %v185 = vld [vmem:[%s1 + $0x30] sm:$0xff]
      %v186 = vld [vmem:[%s1 + $0x38] sm:$0xff]
      %v187 = vld [vmem:[%s1 + $0x40] sm:$0xff]
      %v188 = vld [vmem:[%s1 + $0x48] sm:$0xff]
      %v189 = vld [vmem:[%s1 + $0x50] sm:$0xff]
      %v190 = vld [vmem:[%s1 + $0x58] sm:$0xff]
      %v191 = vld [vmem:[%s1 + $0x60] sm:$0xff]
      %v192 = vld [vmem:[%s1 + $0x68] sm:$0xff]
      %v193 = vld [vmem:[%s1 + $0x70] sm:$0xff]
      %v194 = vld [vmem:[%s1 + $0x78] sm:$0xff]
      %v195 = vld [vmem:[%s1 + $0x80] sm:$0xff]
      %v196 = vld [vmem:[%s1 + $0x88] sm:$0xff]
      %v197 = vld [vmem:[%s1 + $0x90] sm:$0xff]
      %v198 = vld [vmem:[%s1 + $0x98] sm:$0xff]
      %v199 = vld [vmem:[%s1 + $0xa0] sm:$0xff]
      %v200 = vld [vmem:[%s1 + $0xa8] sm:$0xff]
      %v201 = vld [vmem:[%s1 + $0xb0] sm:$0xff]
      %v202 = vld [vmem:[%s1 + $0xb8] sm:$0xff]
      %v203 = vld [vmem:[%s1 + $0xc0] sm:$0xff]
      %v204 = vld [vmem:[%s1 + $0xc8] sm:$0xff]
      %v205 = vld [vmem:[%s1 + $0xd0] sm:$0xff]
      %v206 = vld [vmem:[%s1 + $0xd8] sm:$0xff]
      %v207 = vld [vmem:[%s1 + $0xe0] sm:$0xff]
      %v208 = vld [vmem:[%s1 + $0xe8] sm:$0xff]
      %v209 = vld [vmem:[%s1 + $0xf0] sm:$0xff]
      %v210 = vld [vmem:[%s1 + $0xf8] sm:$0xff]
      %v211 = vld [vmem:[%s1 + $0x100] sm:$0xff]
      %v212 = vld [vmem:[%s1 + $0x108] sm:$0xff]
      %v213 = vld [vmem:[%s1 + $0x110] sm:$0xff]
      %v214 = vld [vmem:[%s1 + $0x118] sm:$0xff]
      %v215 = vld [vmem:[%s1 + $0x120] sm:$0xff]
      %v216 = vld [vmem:[%s1 + $0x128] sm:$0xff]
      %v217 = vld [vmem:[%s1 + $0x130] sm:$0xff]
      %v218 = vld [vmem:[%s1 + $0x138] sm:$0xff]
      %v219 = vld [vmem:[%s1 + $0x140] sm:$0xff]
      %v220 = vld [vmem:[%s1 + $0x148] sm:$0xff]
      %v221 = vld [vmem:[%s1 + $0x150] sm:$0xff]
      %v222 = vld [vmem:[%s1 + $0x158] sm:$0xff]
      %v223 = vld [vmem:[%s1 + $0x160] sm:$0xff]
      %v224 = vld [vmem:[%s1 + $0x168] sm:$0xff]
      %v225 = vld [vmem:[%s1 + $0x170] sm:$0xff]
      %v226 = vld [vmem:[%s1 + $0x178] sm:$0xff]
      %v227 = vld [vmem:[%s1 + $0x180] sm:$0xff]
      %v228 = vld [vmem:[%s1 + $0x188] sm:$0xff]
      %v229 = vld [vmem:[%s1 + $0x190] sm:$0xff]
      %v230 = vld [vmem:[%s1 + $0x198] sm:$0xff]
      %v231 = vld [vmem:[%s1 + $0x1a0] sm:$0xff]
      %v232 = vld [vmem:[%s1 + $0x1a8] sm:$0xff]
      %v233 = vld [vmem:[%s1 + $0x1b0] sm:$0xff]
      %v234 = vld [vmem:[%s1 + $0x1b8] sm:$0xff]
      %v235 = vld [vmem:[%s1 + $0x1c0] sm:$0xff]
      %v236 = vld [vmem:[%s1 + $0x1c8] sm:$0xff]
      %v237 = vld [vmem:[%s1 + $0x1d0] sm:$0xff]
      %v238 = vld [vmem:[%s1 + $0x1d8] sm:$0xff]
      %v239 = vld [vmem:[%s1 + $0x1e0] sm:$0xff]
      %v240 = vld [vmem:[%s1 + $0x1e8] sm:$0xff]
      %v241 = vld [vmem:[%s1 + $0x1f0] sm:$0xff]
      %v242 = vld [vmem:[%s1 + $0x1f8] sm:$0xff]
      %v243 = vld [vmem:[%s2] sm:$0xf]
      %v244 = vld [vmem:[%s170] sm:$0xff]
      %v245 = vld [vmem:[%s170 + $0x10] sm:$0xff]
      %v246 = vld [vmem:[%s170 + $0x20] sm:$0xff]
      %v247 = vld [vmem:[%s170 + $0x30] sm:$0xff]
      %v248 = vld [vmem:[%s170 + $0x40] sm:$0xff]
      %v249 = vld [vmem:[%s170 + $0x50] sm:$0xff]
      %v250 = vld [vmem:[%s170 + $0x60] sm:$0xff]
      %v251 = vld [vmem:[%s170 + $0x70] sm:$0xff]
      %v252 = vld [vmem:[%s170 + $0x80] sm:$0xff]
      %v253 = vld [vmem:[%s170 + $0x90] sm:$0xff]
      %v254 = vld [vmem:[%s170 + $0xa0] sm:$0xff]
      %v255 = vld [vmem:[%s170 + $0xb0] sm:$0xff]
      %v256 = vld [vmem:[%s170 + $0xc0] sm:$0xff]
      %v257 = vld [vmem:[%s170 + $0xd0] sm:$0xff]
      %v258 = vld [vmem:[%s170 + $0xe0] sm:$0xff]
      %v259 = vld [vmem:[%s170 + $0xf0] sm:$0xff]
      %v261 = vlaneseq
      %v262 = vshrl.u32 %v261, 7
      %v263 = vsub.s32 0, %v262
      %v264 = vrot.slane %v243, %v263
      %v265 = vlaneseq
      %v266 = vshrl.u32 %v265, 7
      %v267 = vsub.s32 1, %v266
      %v268 = vrot.slane %v243, %v267
      %v269 = vlaneseq
      %v270 = vshrl.u32 %v269, 7
      %v271 = vsub.s32 2, %v270
      %v272 = vrot.slane %v243, %v271
      %v273 = vlaneseq
      %v274 = vshrl.u32 %v273, 7
      %v275 = vsub.s32 3, %v274
      %v276 = vrot.slane %v243, %v275
      %v297 = vunpack.c.l.b16 %v244
      %v298 = vunpack.c.h.b16 %v244
      %v299 = vunpack.c.l.b16 %v245
      %v300 = vunpack.c.h.b16 %v245
      %v301 = vunpack.c.l.b16 %v246
      %v302 = vunpack.c.h.b16 %v246
      %v303 = vunpack.c.l.b16 %v247
      %v304 = vunpack.c.h.b16 %v247
      %v305 = vunpack.c.l.b16 %v248
      %v306 = vunpack.c.h.b16 %v248
      %v307 = vunpack.c.l.b16 %v249
      %v308 = vunpack.c.h.b16 %v249
      %v309 = vunpack.c.l.b16 %v250
      %v310 = vunpack.c.h.b16 %v250
      %v311 = vunpack.c.l.b16 %v251
      %v312 = vunpack.c.h.b16 %v251
      %v313 = vunpack.c.l.b16 %v252
      %v314 = vunpack.c.h.b16 %v252
      %v315 = vunpack.c.l.b16 %v253
      %v316 = vunpack.c.h.b16 %v253
      %v317 = vunpack.c.l.b16 %v254
      %v318 = vunpack.c.h.b16 %v254
      %v319 = vunpack.c.l.b16 %v255
      %v320 = vunpack.c.h.b16 %v255
      %v321 = vunpack.c.l.b16 %v256
      %v322 = vunpack.c.h.b16 %v256
      %v323 = vunpack.c.l.b16 %v257
      %v324 = vunpack.c.h.b16 %v257
      %v325 = vunpack.c.l.b16 %v258
      %v326 = vunpack.c.h.b16 %v258
      %v327 = vunpack.c.l.b16 %v259
      %v328 = vunpack.c.h.b16 %v259
      %v329 = vpack.c.b16 %v299, %v297
      %v330 = vpack.c.b16 %v300, %v298
      %v331 = vpack.c.b16 %v303, %v301
      %v332 = vpack.c.b16 %v304, %v302
      %v333 = vpack.c.b16 %v307, %v305
      %v334 = vpack.c.b16 %v308, %v306
      %v335 = vpack.c.b16 %v311, %v309
      %v336 = vpack.c.b16 %v312, %v310
      %v337 = vpack.c.b16 %v315, %v313
      %v338 = vpack.c.b16 %v316, %v314
      %v339 = vpack.c.b16 %v319, %v317
      %v340 = vpack.c.b16 %v320, %v318
      %v341 = vpack.c.b16 %v323, %v321
      %v342 = vpack.c.b16 %v324, %v322
      %v343 = vpack.c.b16 %v327, %v325
      %v344 = vpack.c.b16 %v328, %v326
      %v425 = vunpack.c.l.b16 %v179
      %v426 = vunpack.c.h.b16 %v179
      %v427 = vunpack.c.l.b16 %v180
      %v428 = vunpack.c.h.b16 %v180
      %v429 = vunpack.c.l.b16 %v181
      %v430 = vunpack.c.h.b16 %v181
      %v431 = vunpack.c.l.b16 %v182
      %v432 = vunpack.c.h.b16 %v182
      %v433 = vunpack.c.l.b16 %v183
      %v434 = vunpack.c.h.b16 %v183
      %v435 = vunpack.c.l.b16 %v184
      %v436 = vunpack.c.h.b16 %v184
      %v437 = vunpack.c.l.b16 %v185
      %v438 = vunpack.c.h.b16 %v185
      %v439 = vunpack.c.l.b16 %v186
      %v440 = vunpack.c.h.b16 %v186
      %v441 = vunpack.c.l.b16 %v187
      %v442 = vunpack.c.h.b16 %v187
      %v443 = vunpack.c.l.b16 %v188
      %v444 = vunpack.c.h.b16 %v188
      %v445 = vunpack.c.l.b16 %v189
      %v446 = vunpack.c.h.b16 %v189
      %v447 = vunpack.c.l.b16 %v190
      %v448 = vunpack.c.h.b16 %v190
      %v449 = vunpack.c.l.b16 %v191
      %v450 = vunpack.c.h.b16 %v191
      %v451 = vunpack.c.l.b16 %v192
      %v452 = vunpack.c.h.b16 %v192
      %v453 = vunpack.c.l.b16 %v193
      %v454 = vunpack.c.h.b16 %v193
      %v455 = vunpack.c.l.b16 %v194
      %v456 = vunpack.c.h.b16 %v194
      %v457 = vunpack.c.l.b16 %v195
      %v458 = vunpack.c.h.b16 %v195
      %v459 = vunpack.c.l.b16 %v196
      %v460 = vunpack.c.h.b16 %v196
      %v461 = vunpack.c.l.b16 %v197
      %v462 = vunpack.c.h.b16 %v197
      %v463 = vunpack.c.l.b16 %v198
      %v464 = vunpack.c.h.b16 %v198
      %v465 = vunpack.c.l.b16 %v199
      %v466 = vunpack.c.h.b16 %v199
      %v467 = vunpack.c.l.b16 %v200
      %v468 = vunpack.c.h.b16 %v200
      %v469 = vunpack.c.l.b16 %v201
      %v470 = vunpack.c.h.b16 %v201
      %v471 = vunpack.c.l.b16 %v202
      %v472 = vunpack.c.h.b16 %v202
      %v473 = vunpack.c.l.b16 %v203
      %v474 = vunpack.c.h.b16 %v203
      %v475 = vunpack.c.l.b16 %v204
      %v476 = vunpack.c.h.b16 %v204
      %v477 = vunpack.c.l.b16 %v205
      %v478 = vunpack.c.h.b16 %v205
      %v479 = vunpack.c.l.b16 %v206
      %v480 = vunpack.c.h.b16 %v206
      %v481 = vunpack.c.l.b16 %v207
      %v482 = vunpack.c.h.b16 %v207
      %v483 = vunpack.c.l.b16 %v208
      %v484 = vunpack.c.h.b16 %v208
      %v485 = vunpack.c.l.b16 %v209
      %v486 = vunpack.c.h.b16 %v209
      %v487 = vunpack.c.l.b16 %v210
      %v488 = vunpack.c.h.b16 %v210
      %v489 = vunpack.c.l.b16 %v211
      %v490 = vunpack.c.h.b16 %v211
      %v491 = vunpack.c.l.b16 %v212
      %v492 = vunpack.c.h.b16 %v212
      %v493 = vunpack.c.l.b16 %v213
      %v494 = vunpack.c.h.b16 %v213
      %v495 = vunpack.c.l.b16 %v214
      %v496 = vunpack.c.h.b16 %v214
      %v497 = vunpack.c.l.b16 %v215
      %v498 = vunpack.c.h.b16 %v215
      %v499 = vunpack.c.l.b16 %v216
      %v500 = vunpack.c.h.b16 %v216
      %v501 = vunpack.c.l.b16 %v217
      %v502 = vunpack.c.h.b16 %v217
      %v503 = vunpack.c.l.b16 %v218
      %v504 = vunpack.c.h.b16 %v218
      %v505 = vunpack.c.l.b16 %v219
      %v506 = vunpack.c.h.b16 %v219
      %v507 = vunpack.c.l.b16 %v220
      %v508 = vunpack.c.h.b16 %v220
      %v509 = vunpack.c.l.b16 %v221
      %v510 = vunpack.c.h.b16 %v221
      %v511 = vunpack.c.l.b16 %v222
      %v512 = vunpack.c.h.b16 %v222
      %v513 = vunpack.c.l.b16 %v223
      %v514 = vunpack.c.h.b16 %v223
      %v515 = vunpack.c.l.b16 %v224
      %v516 = vunpack.c.h.b16 %v224
      %v517 = vunpack.c.l.b16 %v225
      %v518 = vunpack.c.h.b16 %v225
      %v519 = vunpack.c.l.b16 %v226
      %v520 = vunpack.c.h.b16 %v226
      %v521 = vunpack.c.l.b16 %v227
      %v522 = vunpack.c.h.b16 %v227
      %v523 = vunpack.c.l.b16 %v228
      %v524 = vunpack.c.h.b16 %v228
      %v525 = vunpack.c.l.b16 %v229
      %v526 = vunpack.c.h.b16 %v229
      %v527 = vunpack.c.l.b16 %v230
      %v528 = vunpack.c.h.b16 %v230
      %v529 = vunpack.c.l.b16 %v231
      %v530 = vunpack.c.h.b16 %v231
      %v531 = vunpack.c.l.b16 %v232
      %v532 = vunpack.c.h.b16 %v232
      %v533 = vunpack.c.l.b16 %v233
      %v534 = vunpack.c.h.b16 %v233
      %v535 = vunpack.c.l.b16 %v234
      %v536 = vunpack.c.h.b16 %v234
      %v537 = vunpack.c.l.b16 %v235
      %v538 = vunpack.c.h.b16 %v235
      %v539 = vunpack.c.l.b16 %v236
      %v540 = vunpack.c.h.b16 %v236
      %v541 = vunpack.c.l.b16 %v237
      %v542 = vunpack.c.h.b16 %v237
      %v543 = vunpack.c.l.b16 %v238
      %v544 = vunpack.c.h.b16 %v238
      %v545 = vunpack.c.l.b16 %v239
      %v546 = vunpack.c.h.b16 %v239
      %v547 = vunpack.c.l.b16 %v240
      %v548 = vunpack.c.h.b16 %v240
      %v549 = vunpack.c.l.b16 %v241
      %v550 = vunpack.c.h.b16 %v241
      %v551 = vunpack.c.l.b16 %v242
      %v552 = vunpack.c.h.b16 %v242
      %v553 = vpack.c.b16 %v429, %v425
      %v554 = vpack.c.b16 %v430, %v426
      %v555 = vpack.c.b16 %v431, %v427
      %v556 = vpack.c.b16 %v432, %v428
      %v557 = vpack.c.b16 %v437, %v433
      %v558 = vpack.c.b16 %v438, %v434
      %v559 = vpack.c.b16 %v439, %v435
      %v560 = vpack.c.b16 %v440, %v436
      %v561 = vpack.c.b16 %v445, %v441
      %v562 = vpack.c.b16 %v446, %v442
      %v563 = vpack.c.b16 %v447, %v443
      %v564 = vpack.c.b16 %v448, %v444
      %v565 = vpack.c.b16 %v453, %v449
      %v566 = vpack.c.b16 %v454, %v450
      %v567 = vpack.c.b16 %v455, %v451
      %v568 = vpack.c.b16 %v456, %v452
      %v569 = vpack.c.b16 %v461, %v457
      %v570 = vpack.c.b16 %v462, %v458
      %v571 = vpack.c.b16 %v463, %v459
      %v572 = vpack.c.b16 %v464, %v460
      %v573 = vpack.c.b16 %v469, %v465
      %v574 = vpack.c.b16 %v470, %v466
      %v575 = vpack.c.b16 %v471, %v467
      %v576 = vpack.c.b16 %v472, %v468
      %v577 = vpack.c.b16 %v477, %v473
      %v578 = vpack.c.b16 %v478, %v474
      %v579 = vpack.c.b16 %v479, %v475
      %v580 = vpack.c.b16 %v480, %v476
      %v581 = vpack.c.b16 %v485, %v481
      %v582 = vpack.c.b16 %v486, %v482
      %v583 = vpack.c.b16 %v487, %v483
      %v584 = vpack.c.b16 %v488, %v484
      %v585 = vpack.c.b16 %v493, %v489
      %v586 = vpack.c.b16 %v494, %v490
      %v587 = vpack.c.b16 %v495, %v491
      %v588 = vpack.c.b16 %v496, %v492
      %v589 = vpack.c.b16 %v501, %v497
      %v590 = vpack.c.b16 %v502, %v498
      %v591 = vpack.c.b16 %v503, %v499
      %v592 = vpack.c.b16 %v504, %v500
      %v593 = vpack.c.b16 %v509, %v505
      %v594 = vpack.c.b16 %v510, %v506
      %v595 = vpack.c.b16 %v511, %v507
      %v596 = vpack.c.b16 %v512, %v508
      %v597 = vpack.c.b16 %v517, %v513
      %v598 = vpack.c.b16 %v518, %v514
      %v599 = vpack.c.b16 %v519, %v515
      %v600 = vpack.c.b16 %v520, %v516
      %v601 = vpack.c.b16 %v525, %v521
      %v602 = vpack.c.b16 %v526, %v522
      %v603 = vpack.c.b16 %v527, %v523
      %v604 = vpack.c.b16 %v528, %v524
      %v605 = vpack.c.b16 %v533, %v529
      %v606 = vpack.c.b16 %v534, %v530
      %v607 = vpack.c.b16 %v535, %v531
      %v608 = vpack.c.b16 %v536, %v532
      %v609 = vpack.c.b16 %v541, %v537
      %v610 = vpack.c.b16 %v542, %v538
      %v611 = vpack.c.b16 %v543, %v539
      %v612 = vpack.c.b16 %v544, %v540
      %v613 = vpack.c.b16 %v549, %v545
      %v614 = vpack.c.b16 %v550, %v546
      %v615 = vpack.c.b16 %v551, %v547
      %v616 = vpack.c.b16 %v552, %v548
      %681 = vmatprep.subr.bf16.mxu0 %v582
      %682 = vmatpush1.bf16.msra.mxu0 %v581
      %683 = vmatprep.subr.bf16.mxu0 %v578
      %684 = vmatpush1.bf16.msra.mxu0 %v577
      %685 = vmatprep.subr.bf16.mxu0 %v574
      %686 = vmatpush1.bf16.msra.mxu0 %v573
      %687 = vmatprep.subr.bf16.mxu0 %v570
      %688 = vmatpush1.bf16.msra.mxu0 %v569
      %689 = vmatprep.subr.bf16.mxu0 %v566
      %690 = vmatpush1.bf16.msra.mxu0 %v565
      %691 = vmatprep.subr.bf16.mxu0 %v562
      %692 = vmatpush1.bf16.msra.mxu0 %v561
      %693 = vmatprep.subr.bf16.mxu0 %v558
      %694 = vmatpush1.bf16.msra.mxu0 %v557
      %695 = vmatprep.subr.bf16.mxu0 %v554
      %696 = vmatpush1.bf16.msra.mxu0 %v553
      %697 = vmatprep.subr.bf16.mxu0 %v614
      %698 = vmatpush2.bf16.msra.mxu0 %v613
      %699 = vmatprep.subr.bf16.mxu0 %v610
      %700 = vmatpush2.bf16.msra.mxu0 %v609
      %701 = vmatprep.subr.bf16.mxu0 %v606
      %702 = vmatpush2.bf16.msra.mxu0 %v605
      %703 = vmatprep.subr.bf16.mxu0 %v602
      %704 = vmatpush2.bf16.msra.mxu0 %v601
      %705 = vmatprep.subr.bf16.mxu0 %v598
      %706 = vmatpush2.bf16.msra.mxu0 %v597
      %707 = vmatprep.subr.bf16.mxu0 %v594
      %708 = vmatpush2.bf16.msra.mxu0 %v593
      %709 = vmatprep.subr.bf16.mxu0 %v590
      %710 = vmatpush2.bf16.msra.mxu0 %v589
      %711 = vmatprep.subr.bf16.mxu0 %v586
      %712 = vmatpush2.bf16.msra.mxu0 %v585
      %713 = vmatprep.mubr.bf16.mxu0 %v330
      %714 = vmatmul.mubr.bf16.gmra.mxu0 %v329
      %v715 = vpop.f32.mrf.mxu0
      %v716 = vadd.f32 %v264, %v715
      %v717 = vpop.f32.mrf.mxu0
      %v718 = vadd.f32 %v268, %v717
      %v719 = vpop.f32.mrf.mxu0
      %v720 = vadd.f32 %v264, %v719
      %v721 = vpop.f32.mrf.mxu0
      %v722 = vadd.f32 %v268, %v721
      %723 = vmatprep.mubr.bf16.mxu0 %v332
      %724 = vmatmul.mubr.bf16.gmra.mxu0 %v331
      %v725 = vpop.f32.mrf.mxu0
      %v726 = vadd.f32 %v264, %v725
      %v727 = vpop.f32.mrf.mxu0
      %v728 = vadd.f32 %v268, %v727
      %v729 = vpop.f32.mrf.mxu0
      %v730 = vadd.f32 %v264, %v729
      %v731 = vpop.f32.mrf.mxu0
      %v732 = vadd.f32 %v268, %v731
      %733 = vmatprep.mubr.bf16.mxu0 %v334
      %734 = vmatmul.mubr.bf16.gmra.mxu0 %v333
      %v735 = vpop.f32.mrf.mxu0
      %v736 = vadd.f32 %v264, %v735
      %v737 = vpop.f32.mrf.mxu0
      %v738 = vadd.f32 %v268, %v737
      %v739 = vpop.f32.mrf.mxu0
      %v740 = vadd.f32 %v264, %v739
      %v741 = vpop.f32.mrf.mxu0
      %v742 = vadd.f32 %v268, %v741
      %743 = vmatprep.mubr.bf16.mxu0 %v336
      %744 = vmatmul.mubr.bf16.gmra.mxu0 %v335
      %v745 = vpop.f32.mrf.mxu0
      %v746 = vadd.f32 %v264, %v745
      %v747 = vpop.f32.mrf.mxu0
      %v748 = vadd.f32 %v268, %v747
      %v749 = vpop.f32.mrf.mxu0
      %v750 = vadd.f32 %v264, %v749
      %v751 = vpop.f32.mrf.mxu0
      %v752 = vadd.f32 %v268, %v751
      %753 = vmatprep.mubr.bf16.mxu0 %v338
      %754 = vmatmul.mubr.bf16.gmra.mxu0 %v337
      %v755 = vpop.f32.mrf.mxu0
      %v756 = vadd.f32 %v264, %v755
      %v757 = vpop.f32.mrf.mxu0
      %v758 = vadd.f32 %v268, %v757
      %v759 = vpop.f32.mrf.mxu0
      %v760 = vadd.f32 %v264, %v759
      %v761 = vpop.f32.mrf.mxu0
      %v762 = vadd.f32 %v268, %v761
      %763 = vmatprep.mubr.bf16.mxu0 %v340
      %764 = vmatmul.mubr.bf16.gmra.mxu0 %v339
      %v765 = vpop.f32.mrf.mxu0
      %v766 = vadd.f32 %v264, %v765
      %v767 = vpop.f32.mrf.mxu0
      %v768 = vadd.f32 %v268, %v767
      %v769 = vpop.f32.mrf.mxu0
      %v770 = vadd.f32 %v264, %v769
      %v771 = vpop.f32.mrf.mxu0
      %v772 = vadd.f32 %v268, %v771
      %773 = vmatprep.mubr.bf16.mxu0 %v342
      %774 = vmatmul.mubr.bf16.gmra.mxu0 %v341
      %v775 = vpop.f32.mrf.mxu0
      %v776 = vadd.f32 %v264, %v775
      %v777 = vpop.f32.mrf.mxu0
      %v778 = vadd.f32 %v268, %v777
      %v779 = vpop.f32.mrf.mxu0
      %v780 = vadd.f32 %v264, %v779
      %v781 = vpop.f32.mrf.mxu0
      %v782 = vadd.f32 %v268, %v781
      %783 = vmatprep.mubr.bf16.mxu0 %v344
      %784 = vmatmul.mubr.bf16.gmra.mxu0 %v343
      %v785 = vpop.f32.mrf.mxu0
      %v786 = vadd.f32 %v264, %v785
      %v787 = vpop.f32.mrf.mxu0
      %v788 = vadd.f32 %v268, %v787
      %v789 = vpop.f32.mrf.mxu0
      %v790 = vadd.f32 %v264, %v789
      %v791 = vpop.f32.mrf.mxu0
      %v792 = vadd.f32 %v268, %v791
      %793 = vdwg.mxu0
      %794 = vmatprep.subr.bf16.mxu0 %v584
      %795 = vmatpush1.bf16.msra.mxu0 %v583
      %796 = vmatprep.subr.bf16.mxu0 %v580
      %797 = vmatpush1.bf16.msra.mxu0 %v579
      %798 = vmatprep.subr.bf16.mxu0 %v576
      %799 = vmatpush1.bf16.msra.mxu0 %v575
      %800 = vmatprep.subr.bf16.mxu0 %v572
      %801 = vmatpush1.bf16.msra.mxu0 %v571
      %802 = vmatprep.subr.bf16.mxu0 %v568
      %803 = vmatpush1.bf16.msra.mxu0 %v567
      %804 = vmatprep.subr.bf16.mxu0 %v564
      %805 = vmatpush1.bf16.msra.mxu0 %v563
      %806 = vmatprep.subr.bf16.mxu0 %v560
      %807 = vmatpush1.bf16.msra.mxu0 %v559
      %808 = vmatprep.subr.bf16.mxu0 %v556
      %809 = vmatpush1.bf16.msra.mxu0 %v555
      %810 = vmatprep.subr.bf16.mxu0 %v616
      %811 = vmatpush2.bf16.msra.mxu0 %v615
      %812 = vmatprep.subr.bf16.mxu0 %v612
      %813 = vmatpush2.bf16.msra.mxu0 %v611
      %814 = vmatprep.subr.bf16.mxu0 %v608
      %815 = vmatpush2.bf16.msra.mxu0 %v607
      %816 = vmatprep.subr.bf16.mxu0 %v604
      %817 = vmatpush2.bf16.msra.mxu0 %v603
      %818 = vmatprep.subr.bf16.mxu0 %v600
      %819 = vmatpush2.bf16.msra.mxu0 %v599
      %820 = vmatprep.subr.bf16.mxu0 %v596
      %821 = vmatpush2.bf16.msra.mxu0 %v595
      %822 = vmatprep.subr.bf16.mxu0 %v592
      %823 = vmatpush2.bf16.msra.mxu0 %v591
      %824 = vmatprep.subr.bf16.mxu0 %v588
      %825 = vmatpush2.bf16.msra.mxu0 %v587
      %826 = vmatprep.mubr.bf16.mxu0 %v330
      %827 = vmatmul.mubr.bf16.gmra.mxu0 %v329
      %v828 = vpop.f32.mrf.mxu0
      %v829 = vadd.f32 %v272, %v828
      %v830 = vpop.f32.mrf.mxu0
      %v831 = vadd.f32 %v276, %v830
      %v832 = vpop.f32.mrf.mxu0
      %v833 = vadd.f32 %v272, %v832
      %v834 = vpop.f32.mrf.mxu0
      %v835 = vadd.f32 %v276, %v834
      %836 = vmatprep.mubr.bf16.mxu0 %v332
      %837 = vmatmul.mubr.bf16.gmra.mxu0 %v331
      %v838 = vpop.f32.mrf.mxu0
      %v839 = vadd.f32 %v272, %v838
      %v840 = vpop.f32.mrf.mxu0
      %v841 = vadd.f32 %v276, %v840
      %v842 = vpop.f32.mrf.mxu0
      %v843 = vadd.f32 %v272, %v842
      %v844 = vpop.f32.mrf.mxu0
      %v845 = vadd.f32 %v276, %v844
      %846 = vmatprep.mubr.bf16.mxu0 %v334
      %847 = vmatmul.mubr.bf16.gmra.mxu0 %v333
      %v848 = vpop.f32.mrf.mxu0
      %v849 = vadd.f32 %v272, %v848
      %v850 = vpop.f32.mrf.mxu0
      %v851 = vadd.f32 %v276, %v850
      %v852 = vpop.f32.mrf.mxu0
      %v853 = vadd.f32 %v272, %v852
      %v854 = vpop.f32.mrf.mxu0
      %v855 = vadd.f32 %v276, %v854
      %856 = vmatprep.mubr.bf16.mxu0 %v336
      %857 = vmatmul.mubr.bf16.gmra.mxu0 %v335
      %v858 = vpop.f32.mrf.mxu0
      %v859 = vadd.f32 %v272, %v858
      %v860 = vpop.f32.mrf.mxu0
      %v861 = vadd.f32 %v276, %v860
      %v862 = vpop.f32.mrf.mxu0
      %v863 = vadd.f32 %v272, %v862
      %v864 = vpop.f32.mrf.mxu0
      %v865 = vadd.f32 %v276, %v864
      %866 = vmatprep.mubr.bf16.mxu0 %v338
      %867 = vmatmul.mubr.bf16.gmra.mxu0 %v337
      %v868 = vpop.f32.mrf.mxu0
      %v869 = vadd.f32 %v272, %v868
      %v870 = vpop.f32.mrf.mxu0
      %v871 = vadd.f32 %v276, %v870
      %v872 = vpop.f32.mrf.mxu0
      %v873 = vadd.f32 %v272, %v872
      %v874 = vpop.f32.mrf.mxu0
      %v875 = vadd.f32 %v276, %v874
      %876 = vmatprep.mubr.bf16.mxu0 %v340
      %877 = vmatmul.mubr.bf16.gmra.mxu0 %v339
      %v878 = vpop.f32.mrf.mxu0
      %v879 = vadd.f32 %v272, %v878
      %v880 = vpop.f32.mrf.mxu0
      %v881 = vadd.f32 %v276, %v880
      %v882 = vpop.f32.mrf.mxu0
      %v883 = vadd.f32 %v272, %v882
      %v884 = vpop.f32.mrf.mxu0
      %v885 = vadd.f32 %v276, %v884
      %886 = vmatprep.mubr.bf16.mxu0 %v342
      %887 = vmatmul.mubr.bf16.gmra.mxu0 %v341
      %v888 = vpop.f32.mrf.mxu0
      %v889 = vadd.f32 %v272, %v888
      %v890 = vpop.f32.mrf.mxu0
      %v891 = vadd.f32 %v276, %v890
      %v892 = vpop.f32.mrf.mxu0
      %v893 = vadd.f32 %v272, %v892
      %v894 = vpop.f32.mrf.mxu0
      %v895 = vadd.f32 %v276, %v894
      %896 = vmatprep.mubr.bf16.mxu0 %v344
      %897 = vmatmul.mubr.bf16.gmra.mxu0 %v343
      %v898 = vpop.f32.mrf.mxu0
      %v899 = vadd.f32 %v272, %v898
      %v900 = vpop.f32.mrf.mxu0
      %v901 = vadd.f32 %v276, %v900
      %v902 = vpop.f32.mrf.mxu0
      %v903 = vadd.f32 %v272, %v902
      %v904 = vpop.f32.mrf.mxu0
      %v905 = vadd.f32 %v276, %v904
      %906 = vdwg.mxu0
      %v907 = vmax.f32 %v716, 0.0
      %v908 = vmax.f32 %v718, 0.0
      %v909 = vmax.f32 %v829, 0.0
      %v910 = vmax.f32 %v831, 0.0
      %v911 = vmax.f32 %v720, 0.0
      %v912 = vmax.f32 %v722, 0.0
      %v913 = vmax.f32 %v833, 0.0
      %v914 = vmax.f32 %v835, 0.0
      %v915 = vmax.f32 %v726, 0.0
      %v916 = vmax.f32 %v728, 0.0
      %v917 = vmax.f32 %v839, 0.0
      %v918 = vmax.f32 %v841, 0.0
      %v919 = vmax.f32 %v730, 0.0
      %v920 = vmax.f32 %v732, 0.0
      %v921 = vmax.f32 %v843, 0.0
      %v922 = vmax.f32 %v845, 0.0
      %v923 = vmax.f32 %v736, 0.0
      %v924 = vmax.f32 %v738, 0.0
      %v925 = vmax.f32 %v849, 0.0
      %v926 = vmax.f32 %v851, 0.0
      %v927 = vmax.f32 %v740, 0.0
      %v928 = vmax.f32 %v742, 0.0
      %v929 = vmax.f32 %v853, 0.0
      %v930 = vmax.f32 %v855, 0.0
      %v931 = vmax.f32 %v746, 0.0
      %v932 = vmax.f32 %v748, 0.0
      %v933 = vmax.f32 %v859, 0.0
      %v934 = vmax.f32 %v861, 0.0
      %v935 = vmax.f32 %v750, 0.0
      %v936 = vmax.f32 %v752, 0.0
      %v937 = vmax.f32 %v863, 0.0
      %v938 = vmax.f32 %v865, 0.0
      %v939 = vmax.f32 %v756, 0.0
      %v940 = vmax.f32 %v758, 0.0
      %v941 = vmax.f32 %v869, 0.0
      %v942 = vmax.f32 %v871, 0.0
      %v943 = vmax.f32 %v760, 0.0
      %v944 = vmax.f32 %v762, 0.0
      %v945 = vmax.f32 %v873, 0.0
      %v946 = vmax.f32 %v875, 0.0
      %v947 = vmax.f32 %v766, 0.0
      %v948 = vmax.f32 %v768, 0.0
      %v949 = vmax.f32 %v879, 0.0
      %v950 = vmax.f32 %v881, 0.0
      %v951 = vmax.f32 %v770, 0.0
      %v952 = vmax.f32 %v772, 0.0
      %v953 = vmax.f32 %v883, 0.0
      %v954 = vmax.f32 %v885, 0.0
      %v955 = vmax.f32 %v776, 0.0
      %v956 = vmax.f32 %v778, 0.0
      %v957 = vmax.f32 %v889, 0.0
      %v958 = vmax.f32 %v891, 0.0
      %v959 = vmax.f32 %v780, 0.0
      %v960 = vmax.f32 %v782, 0.0
      %v961 = vmax.f32 %v893, 0.0
      %v962 = vmax.f32 %v895, 0.0
      %v963 = vmax.f32 %v786, 0.0
      %v964 = vmax.f32 %v788, 0.0
      %v965 = vmax.f32 %v899, 0.0
      %v966 = vmax.f32 %v901, 0.0
      %v967 = vmax.f32 %v790, 0.0
      %v968 = vmax.f32 %v792, 0.0
      %v969 = vmax.f32 %v903, 0.0
      %v970 = vmax.f32 %v905, 0.0
      %v971 = vrot.slane %v907, 4
      %v972 = vmax.f32 %v907, %v971
      %v973 = vrot.slane %v972, 2
      %v974 = vmax.f32 %v972, %v973
      %v975 = vrot.slane %v974, 1
      %v976 = vmax.f32 %v974, %v975
      %v977 = vrot.slane %v908, 4
      %v978 = vmax.f32 %v908, %v977
      %v979 = vrot.slane %v978, 2
      %v980 = vmax.f32 %v978, %v979
      %v981 = vrot.slane %v980, 1
      %v982 = vmax.f32 %v980, %v981
      %v983 = vrot.slane %v909, 4
      %v984 = vmax.f32 %v909, %v983
      %v985 = vrot.slane %v984, 2
      %v986 = vmax.f32 %v984, %v985
      %v987 = vrot.slane %v986, 1
      %v988 = vmax.f32 %v986, %v987
      %v989 = vrot.slane %v910, 4
      %v990 = vmax.f32 %v910, %v989
      %v991 = vrot.slane %v990, 2
      %v992 = vmax.f32 %v990, %v991
      %v993 = vrot.slane %v992, 1
      %v994 = vmax.f32 %v992, %v993
      %v995 = vrot.slane %v911, 4
      %v996 = vmax.f32 %v911, %v995
      %v997 = vrot.slane %v996, 2
      %v998 = vmax.f32 %v996, %v997
      %v999 = vrot.slane %v998, 1
      %v1000 = vmax.f32 %v998, %v999
      %v1001 = vrot.slane %v912, 4
      %v1002 = vmax.f32 %v912, %v1001
      %v1003 = vrot.slane %v1002, 2
      %v1004 = vmax.f32 %v1002, %v1003
      %v1005 = vrot.slane %v1004, 1
      %v1006 = vmax.f32 %v1004, %v1005
      %v1007 = vrot.slane %v913, 4
      %v1008 = vmax.f32 %v913, %v1007
      %v1009 = vrot.slane %v1008, 2
      %v1010 = vmax.f32 %v1008, %v1009
      %v1011 = vrot.slane %v1010, 1
      %v1012 = vmax.f32 %v1010, %v1011
      %v1013 = vrot.slane %v914, 4
      %v1014 = vmax.f32 %v914, %v1013
      %v1015 = vrot.slane %v1014, 2
      %v1016 = vmax.f32 %v1014, %v1015
      %v1017 = vrot.slane %v1016, 1
      %v1018 = vmax.f32 %v1016, %v1017
      %v1019 = vrot.slane %v915, 4
      %v1020 = vmax.f32 %v915, %v1019
      %v1021 = vrot.slane %v1020, 2
      %v1022 = vmax.f32 %v1020, %v1021
      %v1023 = vrot.slane %v1022, 1
      %v1024 = vmax.f32 %v1022, %v1023
      %v1025 = vrot.slane %v916, 4
      %v1026 = vmax.f32 %v916, %v1025
      %v1027 = vrot.slane %v1026, 2
      %v1028 = vmax.f32 %v1026, %v1027
      %v1029 = vrot.slane %v1028, 1
      %v1030 = vmax.f32 %v1028, %v1029
      %v1031 = vrot.slane %v917, 4
      %v1032 = vmax.f32 %v917, %v1031
      %v1033 = vrot.slane %v1032, 2
      %v1034 = vmax.f32 %v1032, %v1033
      %v1035 = vrot.slane %v1034, 1
      %v1036 = vmax.f32 %v1034, %v1035
      %v1037 = vrot.slane %v918, 4
      %v1038 = vmax.f32 %v918, %v1037
      %v1039 = vrot.slane %v1038, 2
      %v1040 = vmax.f32 %v1038, %v1039
      %v1041 = vrot.slane %v1040, 1
      %v1042 = vmax.f32 %v1040, %v1041
      %v1043 = vrot.slane %v919, 4
      %v1044 = vmax.f32 %v919, %v1043
      %v1045 = vrot.slane %v1044, 2
      %v1046 = vmax.f32 %v1044, %v1045
      %v1047 = vrot.slane %v1046, 1
      %v1048 = vmax.f32 %v1046, %v1047
      %v1049 = vrot.slane %v920, 4
      %v1050 = vmax.f32 %v920, %v1049
      %v1051 = vrot.slane %v1050, 2
      %v1052 = vmax.f32 %v1050, %v1051
      %v1053 = vrot.slane %v1052, 1
      %v1054 = vmax.f32 %v1052, %v1053
      %v1055 = vrot.slane %v921, 4
      %v1056 = vmax.f32 %v921, %v1055
      %v1057 = vrot.slane %v1056, 2
      %v1058 = vmax.f32 %v1056, %v1057
      %v1059 = vrot.slane %v1058, 1
      %v1060 = vmax.f32 %v1058, %v1059
      %v1061 = vrot.slane %v922, 4
      %v1062 = vmax.f32 %v922, %v1061
      %v1063 = vrot.slane %v1062, 2
      %v1064 = vmax.f32 %v1062, %v1063
      %v1065 = vrot.slane %v1064, 1
      %v1066 = vmax.f32 %v1064, %v1065
      %v1067 = vrot.slane %v923, 4
      %v1068 = vmax.f32 %v923, %v1067
      %v1069 = vrot.slane %v1068, 2
      %v1070 = vmax.f32 %v1068, %v1069
      %v1071 = vrot.slane %v1070, 1
      %v1072 = vmax.f32 %v1070, %v1071
      %v1073 = vrot.slane %v924, 4
      %v1074 = vmax.f32 %v924, %v1073
      %v1075 = vrot.slane %v1074, 2
      %v1076 = vmax.f32 %v1074, %v1075
      %v1077 = vrot.slane %v1076, 1
      %v1078 = vmax.f32 %v1076, %v1077
      %v1079 = vrot.slane %v925, 4
      %v1080 = vmax.f32 %v925, %v1079
      %v1081 = vrot.slane %v1080, 2
      %v1082 = vmax.f32 %v1080, %v1081
      %v1083 = vrot.slane %v1082, 1
      %v1084 = vmax.f32 %v1082, %v1083
      %v1085 = vrot.slane %v926, 4
      %v1086 = vmax.f32 %v926, %v1085
      %v1087 = vrot.slane %v1086, 2
      %v1088 = vmax.f32 %v1086, %v1087
      %v1089 = vrot.slane %v1088, 1
      %v1090 = vmax.f32 %v1088, %v1089
      %v1091 = vrot.slane %v927, 4
      %v1092 = vmax.f32 %v927, %v1091
      %v1093 = vrot.slane %v1092, 2
      %v1094 = vmax.f32 %v1092, %v1093
      %v1095 = vrot.slane %v1094, 1
      %v1096 = vmax.f32 %v1094, %v1095
      %v1097 = vrot.slane %v928, 4
      %v1098 = vmax.f32 %v928, %v1097
      %v1099 = vrot.slane %v1098, 2
      %v1100 = vmax.f32 %v1098, %v1099
      %v1101 = vrot.slane %v1100, 1
      %v1102 = vmax.f32 %v1100, %v1101
      %v1103 = vrot.slane %v929, 4
      %v1104 = vmax.f32 %v929, %v1103
      %v1105 = vrot.slane %v1104, 2
      %v1106 = vmax.f32 %v1104, %v1105
      %v1107 = vrot.slane %v1106, 1
      %v1108 = vmax.f32 %v1106, %v1107
      %v1109 = vrot.slane %v930, 4
      %v1110 = vmax.f32 %v930, %v1109
      %v1111 = vrot.slane %v1110, 2
      %v1112 = vmax.f32 %v1110, %v1111
      %v1113 = vrot.slane %v1112, 1
      %v1114 = vmax.f32 %v1112, %v1113
      %v1115 = vrot.slane %v931, 4
      %v1116 = vmax.f32 %v931, %v1115
      %v1117 = vrot.slane %v1116, 2
      %v1118 = vmax.f32 %v1116, %v1117
      %v1119 = vrot.slane %v1118, 1
      %v1120 = vmax.f32 %v1118, %v1119
      %v1121 = vrot.slane %v932, 4
      %v1122 = vmax.f32 %v932, %v1121
      %v1123 = vrot.slane %v1122, 2
      %v1124 = vmax.f32 %v1122, %v1123
      %v1125 = vrot.slane %v1124, 1
      %v1126 = vmax.f32 %v1124, %v1125
      %v1127 = vrot.slane %v933, 4
      %v1128 = vmax.f32 %v933, %v1127
      %v1129 = vrot.slane %v1128, 2
      %v1130 = vmax.f32 %v1128, %v1129
      %v1131 = vrot.slane %v1130, 1
      %v1132 = vmax.f32 %v1130, %v1131
      %v1133 = vrot.slane %v934, 4
      %v1134 = vmax.f32 %v934, %v1133
      %v1135 = vrot.slane %v1134, 2
      %v1136 = vmax.f32 %v1134, %v1135
      %v1137 = vrot.slane %v1136, 1
      %v1138 = vmax.f32 %v1136, %v1137
      %v1139 = vrot.slane %v935, 4
      %v1140 = vmax.f32 %v935, %v1139
      %v1141 = vrot.slane %v1140, 2
      %v1142 = vmax.f32 %v1140, %v1141
      %v1143 = vrot.slane %v1142, 1
      %v1144 = vmax.f32 %v1142, %v1143
      %v1145 = vrot.slane %v936, 4
      %v1146 = vmax.f32 %v936, %v1145
      %v1147 = vrot.slane %v1146, 2
      %v1148 = vmax.f32 %v1146, %v1147
      %v1149 = vrot.slane %v1148, 1
      %v1150 = vmax.f32 %v1148, %v1149
      %v1151 = vrot.slane %v937, 4
      %v1152 = vmax.f32 %v937, %v1151
      %v1153 = vrot.slane %v1152, 2
      %v1154 = vmax.f32 %v1152, %v1153
      %v1155 = vrot.slane %v1154, 1
      %v1156 = vmax.f32 %v1154, %v1155
      %v1157 = vrot.slane %v938, 4
      %v1158 = vmax.f32 %v938, %v1157
      %v1159 = vrot.slane %v1158, 2
      %v1160 = vmax.f32 %v1158, %v1159
      %v1161 = vrot.slane %v1160, 1
      %v1162 = vmax.f32 %v1160, %v1161
      %v1163 = vrot.slane %v939, 4
      %v1164 = vmax.f32 %v939, %v1163
      %v1165 = vrot.slane %v1164, 2
      %v1166 = vmax.f32 %v1164, %v1165
      %v1167 = vrot.slane %v1166, 1
      %v1168 = vmax.f32 %v1166, %v1167
      %v1169 = vrot.slane %v940, 4
      %v1170 = vmax.f32 %v940, %v1169
      %v1171 = vrot.slane %v1170, 2
      %v1172 = vmax.f32 %v1170, %v1171
      %v1173 = vrot.slane %v1172, 1
      %v1174 = vmax.f32 %v1172, %v1173
      %v1175 = vrot.slane %v941, 4
      %v1176 = vmax.f32 %v941, %v1175
      %v1177 = vrot.slane %v1176, 2
      %v1178 = vmax.f32 %v1176, %v1177
      %v1179 = vrot.slane %v1178, 1
      %v1180 = vmax.f32 %v1178, %v1179
      %v1181 = vrot.slane %v942, 4
      %v1182 = vmax.f32 %v942, %v1181
      %v1183 = vrot.slane %v1182, 2
      %v1184 = vmax.f32 %v1182, %v1183
      %v1185 = vrot.slane %v1184, 1
      %v1186 = vmax.f32 %v1184, %v1185
      %v1187 = vrot.slane %v943, 4
      %v1188 = vmax.f32 %v943, %v1187
      %v1189 = vrot.slane %v1188, 2
      %v1190 = vmax.f32 %v1188, %v1189
      %v1191 = vrot.slane %v1190, 1
      %v1192 = vmax.f32 %v1190, %v1191
      %v1193 = vrot.slane %v944, 4
      %v1194 = vmax.f32 %v944, %v1193
      %v1195 = vrot.slane %v1194, 2
      %v1196 = vmax.f32 %v1194, %v1195
      %v1197 = vrot.slane %v1196, 1
      %v1198 = vmax.f32 %v1196, %v1197
      %v1199 = vrot.slane %v945, 4
      %v1200 = vmax.f32 %v945, %v1199
      %v1201 = vrot.slane %v1200, 2
      %v1202 = vmax.f32 %v1200, %v1201
      %v1203 = vrot.slane %v1202, 1
      %v1204 = vmax.f32 %v1202, %v1203
      %v1205 = vrot.slane %v946, 4
      %v1206 = vmax.f32 %v946, %v1205
      %v1207 = vrot.slane %v1206, 2
      %v1208 = vmax.f32 %v1206, %v1207
      %v1209 = vrot.slane %v1208, 1
      %v1210 = vmax.f32 %v1208, %v1209
      %v1211 = vrot.slane %v947, 4
      %v1212 = vmax.f32 %v947, %v1211
      %v1213 = vrot.slane %v1212, 2
      %v1214 = vmax.f32 %v1212, %v1213
      %v1215 = vrot.slane %v1214, 1
      %v1216 = vmax.f32 %v1214, %v1215
      %v1217 = vrot.slane %v948, 4
      %v1218 = vmax.f32 %v948, %v1217
      %v1219 = vrot.slane %v1218, 2
      %v1220 = vmax.f32 %v1218, %v1219
      %v1221 = vrot.slane %v1220, 1
      %v1222 = vmax.f32 %v1220, %v1221
      %v1223 = vrot.slane %v949, 4
      %v1224 = vmax.f32 %v949, %v1223
      %v1225 = vrot.slane %v1224, 2
      %v1226 = vmax.f32 %v1224, %v1225
      %v1227 = vrot.slane %v1226, 1
      %v1228 = vmax.f32 %v1226, %v1227
      %v1229 = vrot.slane %v950, 4
      %v1230 = vmax.f32 %v950, %v1229
      %v1231 = vrot.slane %v1230, 2
      %v1232 = vmax.f32 %v1230, %v1231
      %v1233 = vrot.slane %v1232, 1
      %v1234 = vmax.f32 %v1232, %v1233
      %v1235 = vrot.slane %v951, 4
      %v1236 = vmax.f32 %v951, %v1235
      %v1237 = vrot.slane %v1236, 2
      %v1238 = vmax.f32 %v1236, %v1237
      %v1239 = vrot.slane %v1238, 1
      %v1240 = vmax.f32 %v1238, %v1239
      %v1241 = vrot.slane %v952, 4
      %v1242 = vmax.f32 %v952, %v1241
      %v1243 = vrot.slane %v1242, 2
      %v1244 = vmax.f32 %v1242, %v1243
      %v1245 = vrot.slane %v1244, 1
      %v1246 = vmax.f32 %v1244, %v1245
      %v1247 = vrot.slane %v953, 4
      %v1248 = vmax.f32 %v953, %v1247
      %v1249 = vrot.slane %v1248, 2
      %v1250 = vmax.f32 %v1248, %v1249
      %v1251 = vrot.slane %v1250, 1
      %v1252 = vmax.f32 %v1250, %v1251
      %v1253 = vrot.slane %v954, 4
      %v1254 = vmax.f32 %v954, %v1253
      %v1255 = vrot.slane %v1254, 2
      %v1256 = vmax.f32 %v1254, %v1255
      %v1257 = vrot.slane %v1256, 1
      %v1258 = vmax.f32 %v1256, %v1257
      %v1259 = vrot.slane %v955, 4
      %v1260 = vmax.f32 %v955, %v1259
      %v1261 = vrot.slane %v1260, 2
      %v1262 = vmax.f32 %v1260, %v1261
      %v1263 = vrot.slane %v1262, 1
      %v1264 = vmax.f32 %v1262, %v1263
      %v1265 = vrot.slane %v956, 4
      %v1266 = vmax.f32 %v956, %v1265
      %v1267 = vrot.slane %v1266, 2
      %v1268 = vmax.f32 %v1266, %v1267
      %v1269 = vrot.slane %v1268, 1
      %v1270 = vmax.f32 %v1268, %v1269
      %v1271 = vrot.slane %v957, 4
      %v1272 = vmax.f32 %v957, %v1271
      %v1273 = vrot.slane %v1272, 2
      %v1274 = vmax.f32 %v1272, %v1273
      %v1275 = vrot.slane %v1274, 1
      %v1276 = vmax.f32 %v1274, %v1275
      %v1277 = vrot.slane %v958, 4
      %v1278 = vmax.f32 %v958, %v1277
      %v1279 = vrot.slane %v1278, 2
      %v1280 = vmax.f32 %v1278, %v1279
      %v1281 = vrot.slane %v1280, 1
      %v1282 = vmax.f32 %v1280, %v1281
      %v1283 = vrot.slane %v959, 4
      %v1284 = vmax.f32 %v959, %v1283
      %v1285 = vrot.slane %v1284, 2
      %v1286 = vmax.f32 %v1284, %v1285
      %v1287 = vrot.slane %v1286, 1
      %v1288 = vmax.f32 %v1286, %v1287
      %v1289 = vrot.slane %v960, 4
      %v1290 = vmax.f32 %v960, %v1289
      %v1291 = vrot.slane %v1290, 2
      %v1292 = vmax.f32 %v1290, %v1291
      %v1293 = vrot.slane %v1292, 1
      %v1294 = vmax.f32 %v1292, %v1293
      %v1295 = vrot.slane %v961, 4
      %v1296 = vmax.f32 %v961, %v1295
      %v1297 = vrot.slane %v1296, 2
      %v1298 = vmax.f32 %v1296, %v1297
      %v1299 = vrot.slane %v1298, 1
      %v1300 = vmax.f32 %v1298, %v1299
      %v1301 = vrot.slane %v962, 4
      %v1302 = vmax.f32 %v962, %v1301
      %v1303 = vrot.slane %v1302, 2
      %v1304 = vmax.f32 %v1302, %v1303
      %v1305 = vrot.slane %v1304, 1
      %v1306 = vmax.f32 %v1304, %v1305
      %v1307 = vrot.slane %v963, 4
      %v1308 = vmax.f32 %v963, %v1307
      %v1309 = vrot.slane %v1308, 2
      %v1310 = vmax.f32 %v1308, %v1309
      %v1311 = vrot.slane %v1310, 1
      %v1312 = vmax.f32 %v1310, %v1311
      %v1313 = vrot.slane %v964, 4
      %v1314 = vmax.f32 %v964, %v1313
      %v1315 = vrot.slane %v1314, 2
      %v1316 = vmax.f32 %v1314, %v1315
      %v1317 = vrot.slane %v1316, 1
      %v1318 = vmax.f32 %v1316, %v1317
      %v1319 = vrot.slane %v965, 4
      %v1320 = vmax.f32 %v965, %v1319
      %v1321 = vrot.slane %v1320, 2
      %v1322 = vmax.f32 %v1320, %v1321
      %v1323 = vrot.slane %v1322, 1
      %v1324 = vmax.f32 %v1322, %v1323
      %v1325 = vrot.slane %v966, 4
      %v1326 = vmax.f32 %v966, %v1325
      %v1327 = vrot.slane %v1326, 2
      %v1328 = vmax.f32 %v1326, %v1327
      %v1329 = vrot.slane %v1328, 1
      %v1330 = vmax.f32 %v1328, %v1329
      %v1331 = vrot.slane %v967, 4
      %v1332 = vmax.f32 %v967, %v1331
      %v1333 = vrot.slane %v1332, 2
      %v1334 = vmax.f32 %v1332, %v1333
      %v1335 = vrot.slane %v1334, 1
      %v1336 = vmax.f32 %v1334, %v1335
      %v1337 = vrot.slane %v968, 4
      %v1338 = vmax.f32 %v968, %v1337
      %v1339 = vrot.slane %v1338, 2
      %v1340 = vmax.f32 %v1338, %v1339
      %v1341 = vrot.slane %v1340, 1
      %v1342 = vmax.f32 %v1340, %v1341
      %v1343 = vrot.slane %v969, 4
      %v1344 = vmax.f32 %v969, %v1343
      %v1345 = vrot.slane %v1344, 2
      %v1346 = vmax.f32 %v1344, %v1345
      %v1347 = vrot.slane %v1346, 1
      %v1348 = vmax.f32 %v1346, %v1347
      %v1349 = vrot.slane %v970, 4
      %v1350 = vmax.f32 %v970, %v1349
      %v1351 = vrot.slane %v1350, 2
      %v1352 = vmax.f32 %v1350, %v1351
      %v1353 = vrot.slane %v1352, 1
      %v1354 = vmax.f32 %v1352, %v1353
      %v1355 = vld [vmem:[%s170 + $0x8] sm:$0xff]
      %v1356 = vld [vmem:[%s170 + $0x18] sm:$0xff]
      %v1357 = vld [vmem:[%s170 + $0x28] sm:$0xff]
      %v1358 = vld [vmem:[%s170 + $0x38] sm:$0xff]
      %v1359 = vld [vmem:[%s170 + $0x48] sm:$0xff]
      %v1360 = vld [vmem:[%s170 + $0x58] sm:$0xff]
      %v1361 = vld [vmem:[%s170 + $0x68] sm:$0xff]
      %v1362 = vld [vmem:[%s170 + $0x78] sm:$0xff]
      %v1363 = vld [vmem:[%s170 + $0x88] sm:$0xff]
      %v1364 = vld [vmem:[%s170 + $0x98] sm:$0xff]
      %v1365 = vld [vmem:[%s170 + $0xa8] sm:$0xff]
      %v1366 = vld [vmem:[%s170 + $0xb8] sm:$0xff]
      %v1367 = vld [vmem:[%s170 + $0xc8] sm:$0xff]
      %v1368 = vld [vmem:[%s170 + $0xd8] sm:$0xff]
      %v1369 = vld [vmem:[%s170 + $0xe8] sm:$0xff]
      %v1370 = vld [vmem:[%s170 + $0xf8] sm:$0xff]
      %v1387 = vunpack.c.l.b16 %v1355
      %v1388 = vunpack.c.h.b16 %v1355
      %v1389 = vunpack.c.l.b16 %v1356
      %v1390 = vunpack.c.h.b16 %v1356
      %v1391 = vunpack.c.l.b16 %v1357
      %v1392 = vunpack.c.h.b16 %v1357
      %v1393 = vunpack.c.l.b16 %v1358
      %v1394 = vunpack.c.h.b16 %v1358
      %v1395 = vunpack.c.l.b16 %v1359
      %v1396 = vunpack.c.h.b16 %v1359
      %v1397 = vunpack.c.l.b16 %v1360
      %v1398 = vunpack.c.h.b16 %v1360
      %v1399 = vunpack.c.l.b16 %v1361
      %v1400 = vunpack.c.h.b16 %v1361
      %v1401 = vunpack.c.l.b16 %v1362
      %v1402 = vunpack.c.h.b16 %v1362
      %v1403 = vunpack.c.l.b16 %v1363
      %v1404 = vunpack.c.h.b16 %v1363
      %v1405 = vunpack.c.l.b16 %v1364
      %v1406 = vunpack.c.h.b16 %v1364
      %v1407 = vunpack.c.l.b16 %v1365
      %v1408 = vunpack.c.h.b16 %v1365
      %v1409 = vunpack.c.l.b16 %v1366
      %v1410 = vunpack.c.h.b16 %v1366
      %v1411 = vunpack.c.l.b16 %v1367
      %v1412 = vunpack.c.h.b16 %v1367
      %v1413 = vunpack.c.l.b16 %v1368
      %v1414 = vunpack.c.h.b16 %v1368
      %v1415 = vunpack.c.l.b16 %v1369
      %v1416 = vunpack.c.h.b16 %v1369
      %v1417 = vunpack.c.l.b16 %v1370
      %v1418 = vunpack.c.h.b16 %v1370
      %v1419 = vpack.c.b16 %v1389, %v1387
      %v1420 = vpack.c.b16 %v1390, %v1388
      %v1421 = vpack.c.b16 %v1393, %v1391
      %v1422 = vpack.c.b16 %v1394, %v1392
      %v1423 = vpack.c.b16 %v1397, %v1395
      %v1424 = vpack.c.b16 %v1398, %v1396
      %v1425 = vpack.c.b16 %v1401, %v1399
      %v1426 = vpack.c.b16 %v1402, %v1400
      %v1427 = vpack.c.b16 %v1405, %v1403
      %v1428 = vpack.c.b16 %v1406, %v1404
      %v1429 = vpack.c.b16 %v1409, %v1407
      %v1430 = vpack.c.b16 %v1410, %v1408
      %v1431 = vpack.c.b16 %v1413, %v1411
      %v1432 = vpack.c.b16 %v1414, %v1412
      %v1433 = vpack.c.b16 %v1417, %v1415
      %v1434 = vpack.c.b16 %v1418, %v1416
      %1451 = vmatprep.subr.bf16.mxu0 %v582
      %1452 = vmatpush1.bf16.msra.mxu0 %v581
      %1453 = vmatprep.subr.bf16.mxu0 %v578
      %1454 = vmatpush1.bf16.msra.mxu0 %v577
      %1455 = vmatprep.subr.bf16.mxu0 %v574
      %1456 = vmatpush1.bf16.msra.mxu0 %v573
      %1457 = vmatprep.subr.bf16.mxu0 %v570
      %1458 = vmatpush1.bf16.msra.mxu0 %v569
      %1459 = vmatprep.subr.bf16.mxu0 %v566
      %1460 = vmatpush1.bf16.msra.mxu0 %v565
      %1461 = vmatprep.subr.bf16.mxu0 %v562
      %1462 = vmatpush1.bf16.msra.mxu0 %v561
      %1463 = vmatprep.subr.bf16.mxu0 %v558
      %1464 = vmatpush1.bf16.msra.mxu0 %v557
      %1465 = vmatprep.subr.bf16.mxu0 %v554
      %1466 = vmatpush1.bf16.msra.mxu0 %v553
      %1467 = vmatprep.subr.bf16.mxu0 %v614
      %1468 = vmatpush2.bf16.msra.mxu0 %v613
      %1469 = vmatprep.subr.bf16.mxu0 %v610
      %1470 = vmatpush2.bf16.msra.mxu0 %v609
      %1471 = vmatprep.subr.bf16.mxu0 %v606
      %1472 = vmatpush2.bf16.msra.mxu0 %v605
      %1473 = vmatprep.subr.bf16.mxu0 %v602
      %1474 = vmatpush2.bf16.msra.mxu0 %v601
      %1475 = vmatprep.subr.bf16.mxu0 %v598
      %1476 = vmatpush2.bf16.msra.mxu0 %v597
      %1477 = vmatprep.subr.bf16.mxu0 %v594
      %1478 = vmatpush2.bf16.msra.mxu0 %v593
      %1479 = vmatprep.subr.bf16.mxu0 %v590
      %1480 = vmatpush2.bf16.msra.mxu0 %v589
      %1481 = vmatprep.subr.bf16.mxu0 %v586
      %1482 = vmatpush2.bf16.msra.mxu0 %v585
      %1483 = vmatprep.mubr.bf16.mxu0 %v1420
      %1484 = vmatmul.mubr.bf16.gmra.mxu0 %v1419
      %v1485 = vpop.f32.mrf.mxu0
      %v1486 = vadd.f32 %v264, %v1485
      %v1487 = vpop.f32.mrf.mxu0
      %v1488 = vadd.f32 %v268, %v1487
      %v1489 = vpop.f32.mrf.mxu0
      %v1490 = vadd.f32 %v264, %v1489
      %v1491 = vpop.f32.mrf.mxu0
      %v1492 = vadd.f32 %v268, %v1491
      %1493 = vmatprep.mubr.bf16.mxu0 %v1422
      %1494 = vmatmul.mubr.bf16.gmra.mxu0 %v1421
      %v1495 = vpop.f32.mrf.mxu0
      %v1496 = vadd.f32 %v264, %v1495
      %v1497 = vpop.f32.mrf.mxu0
      %v1498 = vadd.f32 %v268, %v1497
      %v1499 = vpop.f32.mrf.mxu0
      %v1500 = vadd.f32 %v264, %v1499
      %v1501 = vpop.f32.mrf.mxu0
      %v1502 = vadd.f32 %v268, %v1501
      %1503 = vmatprep.mubr.bf16.mxu0 %v1424
      %1504 = vmatmul.mubr.bf16.gmra.mxu0 %v1423
      %v1505 = vpop.f32.mrf.mxu0
      %v1506 = vadd.f32 %v264, %v1505
      %v1507 = vpop.f32.mrf.mxu0
      %v1508 = vadd.f32 %v268, %v1507
      %v1509 = vpop.f32.mrf.mxu0
      %v1510 = vadd.f32 %v264, %v1509
      %v1511 = vpop.f32.mrf.mxu0
      %v1512 = vadd.f32 %v268, %v1511
      %1513 = vmatprep.mubr.bf16.mxu0 %v1426
      %1514 = vmatmul.mubr.bf16.gmra.mxu0 %v1425
      %v1515 = vpop.f32.mrf.mxu0
      %v1516 = vadd.f32 %v264, %v1515
      %v1517 = vpop.f32.mrf.mxu0
      %v1518 = vadd.f32 %v268, %v1517
      %v1519 = vpop.f32.mrf.mxu0
      %v1520 = vadd.f32 %v264, %v1519
      %v1521 = vpop.f32.mrf.mxu0
      %v1522 = vadd.f32 %v268, %v1521
      %1523 = vmatprep.mubr.bf16.mxu0 %v1428
      %1524 = vmatmul.mubr.bf16.gmra.mxu0 %v1427
      %v1525 = vpop.f32.mrf.mxu0
      %v1526 = vadd.f32 %v264, %v1525
      %v1527 = vpop.f32.mrf.mxu0
      %v1528 = vadd.f32 %v268, %v1527
      %v1529 = vpop.f32.mrf.mxu0
      %v1530 = vadd.f32 %v264, %v1529
      %v1531 = vpop.f32.mrf.mxu0
      %v1532 = vadd.f32 %v268, %v1531
      %1533 = vmatprep.mubr.bf16.mxu0 %v1430
      %1534 = vmatmul.mubr.bf16.gmra.mxu0 %v1429
      %v1535 = vpop.f32.mrf.mxu0
      %v1536 = vadd.f32 %v264, %v1535
      %v1537 = vpop.f32.mrf.mxu0
      %v1538 = vadd.f32 %v268, %v1537
      %v1539 = vpop.f32.mrf.mxu0
      %v1540 = vadd.f32 %v264, %v1539
      %v1541 = vpop.f32.mrf.mxu0
      %v1542 = vadd.f32 %v268, %v1541
      %1543 = vmatprep.mubr.bf16.mxu0 %v1432
      %1544 = vmatmul.mubr.bf16.gmra.mxu0 %v1431
      %v1545 = vpop.f32.mrf.mxu0
      %v1546 = vadd.f32 %v264, %v1545
      %v1547 = vpop.f32.mrf.mxu0
      %v1548 = vadd.f32 %v268, %v1547
      %v1549 = vpop.f32.mrf.mxu0
      %v1550 = vadd.f32 %v264, %v1549
      %v1551 = vpop.f32.mrf.mxu0
      %v1552 = vadd.f32 %v268, %v1551
      %1553 = vmatprep.mubr.bf16.mxu0 %v1434
      %1554 = vmatmul.mubr.bf16.gmra.mxu0 %v1433
      %v1555 = vpop.f32.mrf.mxu0
      %v1556 = vadd.f32 %v264, %v1555
      %v1557 = vpop.f32.mrf.mxu0
      %v1558 = vadd.f32 %v268, %v1557
      %v1559 = vpop.f32.mrf.mxu0
      %v1560 = vadd.f32 %v264, %v1559
      %v1561 = vpop.f32.mrf.mxu0
      %v1562 = vadd.f32 %v268, %v1561
      %1563 = vdwg.mxu0
      %1564 = vmatprep.subr.bf16.mxu0 %v584
      %1565 = vmatpush1.bf16.msra.mxu0 %v583
      %1566 = vmatprep.subr.bf16.mxu0 %v580
      %1567 = vmatpush1.bf16.msra.mxu0 %v579
      %1568 = vmatprep.subr.bf16.mxu0 %v576
      %1569 = vmatpush1.bf16.msra.mxu0 %v575
      %1570 = vmatprep.subr.bf16.mxu0 %v572
      %1571 = vmatpush1.bf16.msra.mxu0 %v571
      %1572 = vmatprep.subr.bf16.mxu0 %v568
      %1573 = vmatpush1.bf16.msra.mxu0 %v567
      %1574 = vmatprep.subr.bf16.mxu0 %v564
      %1575 = vmatpush1.bf16.msra.mxu0 %v563
      %1576 = vmatprep.subr.bf16.mxu0 %v560
      %1577 = vmatpush1.bf16.msra.mxu0 %v559
      %1578 = vmatprep.subr.bf16.mxu0 %v556
      %1579 = vmatpush1.bf16.msra.mxu0 %v555
      %1580 = vmatprep.subr.bf16.mxu0 %v616
      %1581 = vmatpush2.bf16.msra.mxu0 %v615
      %1582 = vmatprep.subr.bf16.mxu0 %v612
      %1583 = vmatpush2.bf16.msra.mxu0 %v611
      %1584 = vmatprep.subr.bf16.mxu0 %v608
      %1585 = vmatpush2.bf16.msra.mxu0 %v607
      %1586 = vmatprep.subr.bf16.mxu0 %v604
      %1587 = vmatpush2.bf16.msra.mxu0 %v603
      %1588 = vmatprep.subr.bf16.mxu0 %v600
      %1589 = vmatpush2.bf16.msra.mxu0 %v599
      %1590 = vmatprep.subr.bf16.mxu0 %v596
      %1591 = vmatpush2.bf16.msra.mxu0 %v595
      %1592 = vmatprep.subr.bf16.mxu0 %v592
      %1593 = vmatpush2.bf16.msra.mxu0 %v591
      %1594 = vmatprep.subr.bf16.mxu0 %v588
      %1595 = vmatpush2.bf16.msra.mxu0 %v587
      %1596 = vmatprep.mubr.bf16.mxu0 %v1420
      %1597 = vmatmul.mubr.bf16.gmra.mxu0 %v1419
      %v1598 = vpop.f32.mrf.mxu0
      %v1599 = vadd.f32 %v272, %v1598
      %v1600 = vpop.f32.mrf.mxu0
      %v1601 = vadd.f32 %v276, %v1600
      %v1602 = vpop.f32.mrf.mxu0
      %v1603 = vadd.f32 %v272, %v1602
      %v1604 = vpop.f32.mrf.mxu0
      %v1605 = vadd.f32 %v276, %v1604
      %1606 = vmatprep.mubr.bf16.mxu0 %v1422
      %1607 = vmatmul.mubr.bf16.gmra.mxu0 %v1421
      %v1608 = vpop.f32.mrf.mxu0
      %v1609 = vadd.f32 %v272, %v1608
      %v1610 = vpop.f32.mrf.mxu0
      %v1611 = vadd.f32 %v276, %v1610
      %v1612 = vpop.f32.mrf.mxu0
      %v1613 = vadd.f32 %v272, %v1612
      %v1614 = vpop.f32.mrf.mxu0
      %v1615 = vadd.f32 %v276, %v1614
      %1616 = vmatprep.mubr.bf16.mxu0 %v1424
      %1617 = vmatmul.mubr.bf16.gmra.mxu0 %v1423
      %v1618 = vpop.f32.mrf.mxu0
      %v1619 = vadd.f32 %v272, %v1618
      %v1620 = vpop.f32.mrf.mxu0
      %v1621 = vadd.f32 %v276, %v1620
      %v1622 = vpop.f32.mrf.mxu0
      %v1623 = vadd.f32 %v272, %v1622
      %v1624 = vpop.f32.mrf.mxu0
      %v1625 = vadd.f32 %v276, %v1624
      %1626 = vmatprep.mubr.bf16.mxu0 %v1426
      %1627 = vmatmul.mubr.bf16.gmra.mxu0 %v1425
      %v1628 = vpop.f32.mrf.mxu0
      %v1629 = vadd.f32 %v272, %v1628
      %v1630 = vpop.f32.mrf.mxu0
      %v1631 = vadd.f32 %v276, %v1630
      %v1632 = vpop.f32.mrf.mxu0
      %v1633 = vadd.f32 %v272, %v1632
      %v1634 = vpop.f32.mrf.mxu0
      %v1635 = vadd.f32 %v276, %v1634
      %1636 = vmatprep.mubr.bf16.mxu0 %v1428
      %1637 = vmatmul.mubr.bf16.gmra.mxu0 %v1427
      %v1638 = vpop.f32.mrf.mxu0
      %v1639 = vadd.f32 %v272, %v1638
      %v1640 = vpop.f32.mrf.mxu0
      %v1641 = vadd.f32 %v276, %v1640
      %v1642 = vpop.f32.mrf.mxu0
      %v1643 = vadd.f32 %v272, %v1642
      %v1644 = vpop.f32.mrf.mxu0
      %v1645 = vadd.f32 %v276, %v1644
      %1646 = vmatprep.mubr.bf16.mxu0 %v1430
      %1647 = vmatmul.mubr.bf16.gmra.mxu0 %v1429
      %v1648 = vpop.f32.mrf.mxu0
      %v1649 = vadd.f32 %v272, %v1648
      %v1650 = vpop.f32.mrf.mxu0
      %v1651 = vadd.f32 %v276, %v1650
      %v1652 = vpop.f32.mrf.mxu0
      %v1653 = vadd.f32 %v272, %v1652
      %v1654 = vpop.f32.mrf.mxu0
      %v1655 = vadd.f32 %v276, %v1654
      %1656 = vmatprep.mubr.bf16.mxu0 %v1432
      %1657 = vmatmul.mubr.bf16.gmra.mxu0 %v1431
      %v1658 = vpop.f32.mrf.mxu0
      %v1659 = vadd.f32 %v272, %v1658
      %v1660 = vpop.f32.mrf.mxu0
      %v1661 = vadd.f32 %v276, %v1660
      %v1662 = vpop.f32.mrf.mxu0
      %v1663 = vadd.f32 %v272, %v1662
      %v1664 = vpop.f32.mrf.mxu0
      %v1665 = vadd.f32 %v276, %v1664
      %1666 = vmatprep.mubr.bf16.mxu0 %v1434
      %1667 = vmatmul.mubr.bf16.gmra.mxu0 %v1433
      %v1668 = vpop.f32.mrf.mxu0
      %v1669 = vadd.f32 %v272, %v1668
      %v1670 = vpop.f32.mrf.mxu0
      %v1671 = vadd.f32 %v276, %v1670
      %v1672 = vpop.f32.mrf.mxu0
      %v1673 = vadd.f32 %v272, %v1672
      %v1674 = vpop.f32.mrf.mxu0
      %v1675 = vadd.f32 %v276, %v1674
      %1676 = vdwg.mxu0
      %v1677 = vmax.f32 %v1486, 0.0
      %v1678 = vmax.f32 %v1488, 0.0
      %v1679 = vmax.f32 %v1599, 0.0
      %v1680 = vmax.f32 %v1601, 0.0
      %v1681 = vmax.f32 %v1490, 0.0
      %v1682 = vmax.f32 %v1492, 0.0
      %v1683 = vmax.f32 %v1603, 0.0
      %v1684 = vmax.f32 %v1605, 0.0
      %v1685 = vmax.f32 %v1496, 0.0
      %v1686 = vmax.f32 %v1498, 0.0
      %v1687 = vmax.f32 %v1609, 0.0
      %v1688 = vmax.f32 %v1611, 0.0
      %v1689 = vmax.f32 %v1500, 0.0
      %v1690 = vmax.f32 %v1502, 0.0
      %v1691 = vmax.f32 %v1613, 0.0
      %v1692 = vmax.f32 %v1615, 0.0
      %v1693 = vmax.f32 %v1506, 0.0
      %v1694 = vmax.f32 %v1508, 0.0
      %v1695 = vmax.f32 %v1619, 0.0
      %v1696 = vmax.f32 %v1621, 0.0
      %v1697 = vmax.f32 %v1510, 0.0
      %v1698 = vmax.f32 %v1512, 0.0
      %v1699 = vmax.f32 %v1623, 0.0
      %v1700 = vmax.f32 %v1625, 0.0
      %v1701 = vmax.f32 %v1516, 0.0
      %v1702 = vmax.f32 %v1518, 0.0
      %v1703 = vmax.f32 %v1629, 0.0
      %v1704 = vmax.f32 %v1631, 0.0
      %v1705 = vmax.f32 %v1520, 0.0
      %v1706 = vmax.f32 %v1522, 0.0
      %v1707 = vmax.f32 %v1633, 0.0
      %v1708 = vmax.f32 %v1635, 0.0
      %v1709 = vmax.f32 %v1526, 0.0
      %v1710 = vmax.f32 %v1528, 0.0
      %v1711 = vmax.f32 %v1639, 0.0
      %v1712 = vmax.f32 %v1641, 0.0
      %v1713 = vmax.f32 %v1530, 0.0
      %v1714 = vmax.f32 %v1532, 0.0
      %v1715 = vmax.f32 %v1643, 0.0
      %v1716 = vmax.f32 %v1645, 0.0
      %v1717 = vmax.f32 %v1536, 0.0
      %v1718 = vmax.f32 %v1538, 0.0
      %v1719 = vmax.f32 %v1649, 0.0
      %v1720 = vmax.f32 %v1651, 0.0
      %v1721 = vmax.f32 %v1540, 0.0
      %v1722 = vmax.f32 %v1542, 0.0
      %v1723 = vmax.f32 %v1653, 0.0
      %v1724 = vmax.f32 %v1655, 0.0
      %v1725 = vmax.f32 %v1546, 0.0
      %v1726 = vmax.f32 %v1548, 0.0
      %v1727 = vmax.f32 %v1659, 0.0
      %v1728 = vmax.f32 %v1661, 0.0
      %v1729 = vmax.f32 %v1550, 0.0
      %v1730 = vmax.f32 %v1552, 0.0
      %v1731 = vmax.f32 %v1663, 0.0
      %v1732 = vmax.f32 %v1665, 0.0
      %v1733 = vmax.f32 %v1556, 0.0
      %v1734 = vmax.f32 %v1558, 0.0
      %v1735 = vmax.f32 %v1669, 0.0
      %v1736 = vmax.f32 %v1671, 0.0
      %v1737 = vmax.f32 %v1560, 0.0
      %v1738 = vmax.f32 %v1562, 0.0
      %v1739 = vmax.f32 %v1673, 0.0
      %v1740 = vmax.f32 %v1675, 0.0
      %v1741 = vrot.slane %v1677, 4
      %v1742 = vmax.f32 %v1677, %v1741
      %v1743 = vrot.slane %v1742, 2
      %v1744 = vmax.f32 %v1742, %v1743
      %v1745 = vrot.slane %v1744, 1
      %v1746 = vmax.f32 %v1744, %v1745
      %v1747 = vrot.slane %v1678, 4
      %v1748 = vmax.f32 %v1678, %v1747
      %v1749 = vrot.slane %v1748, 2
      %v1750 = vmax.f32 %v1748, %v1749
      %v1751 = vrot.slane %v1750, 1
      %v1752 = vmax.f32 %v1750, %v1751
      %v1753 = vrot.slane %v1679, 4
      %v1754 = vmax.f32 %v1679, %v1753
      %v1755 = vrot.slane %v1754, 2
      %v1756 = vmax.f32 %v1754, %v1755
      %v1757 = vrot.slane %v1756, 1
      %v1758 = vmax.f32 %v1756, %v1757
      %v1759 = vrot.slane %v1680, 4
      %v1760 = vmax.f32 %v1680, %v1759
      %v1761 = vrot.slane %v1760, 2
      %v1762 = vmax.f32 %v1760, %v1761
      %v1763 = vrot.slane %v1762, 1
      %v1764 = vmax.f32 %v1762, %v1763
      %v1765 = vrot.slane %v1681, 4
      %v1766 = vmax.f32 %v1681, %v1765
      %v1767 = vrot.slane %v1766, 2
      %v1768 = vmax.f32 %v1766, %v1767
      %v1769 = vrot.slane %v1768, 1
      %v1770 = vmax.f32 %v1768, %v1769
      %v1771 = vrot.slane %v1682, 4
      %v1772 = vmax.f32 %v1682, %v1771
      %v1773 = vrot.slane %v1772, 2
      %v1774 = vmax.f32 %v1772, %v1773
      %v1775 = vrot.slane %v1774, 1
      %v1776 = vmax.f32 %v1774, %v1775
      %v1777 = vrot.slane %v1683, 4
      %v1778 = vmax.f32 %v1683, %v1777
      %v1779 = vrot.slane %v1778, 2
      %v1780 = vmax.f32 %v1778, %v1779
      %v1781 = vrot.slane %v1780, 1
      %v1782 = vmax.f32 %v1780, %v1781
      %v1783 = vrot.slane %v1684, 4
      %v1784 = vmax.f32 %v1684, %v1783
      %v1785 = vrot.slane %v1784, 2
      %v1786 = vmax.f32 %v1784, %v1785
      %v1787 = vrot.slane %v1786, 1
      %v1788 = vmax.f32 %v1786, %v1787
      %v1789 = vrot.slane %v1685, 4
      %v1790 = vmax.f32 %v1685, %v1789
      %v1791 = vrot.slane %v1790, 2
      %v1792 = vmax.f32 %v1790, %v1791
      %v1793 = vrot.slane %v1792, 1
      %v1794 = vmax.f32 %v1792, %v1793
      %v1795 = vrot.slane %v1686, 4
      %v1796 = vmax.f32 %v1686, %v1795
      %v1797 = vrot.slane %v1796, 2
      %v1798 = vmax.f32 %v1796, %v1797
      %v1799 = vrot.slane %v1798, 1
      %v1800 = vmax.f32 %v1798, %v1799
      %v1801 = vrot.slane %v1687, 4
      %v1802 = vmax.f32 %v1687, %v1801
      %v1803 = vrot.slane %v1802, 2
      %v1804 = vmax.f32 %v1802, %v1803
      %v1805 = vrot.slane %v1804, 1
      %v1806 = vmax.f32 %v1804, %v1805
      %v1807 = vrot.slane %v1688, 4
      %v1808 = vmax.f32 %v1688, %v1807
      %v1809 = vrot.slane %v1808, 2
      %v1810 = vmax.f32 %v1808, %v1809
      %v1811 = vrot.slane %v1810, 1
      %v1812 = vmax.f32 %v1810, %v1811
      %v1813 = vrot.slane %v1689, 4
      %v1814 = vmax.f32 %v1689, %v1813
      %v1815 = vrot.slane %v1814, 2
      %v1816 = vmax.f32 %v1814, %v1815
      %v1817 = vrot.slane %v1816, 1
      %v1818 = vmax.f32 %v1816, %v1817
      %v1819 = vrot.slane %v1690, 4
      %v1820 = vmax.f32 %v1690, %v1819
      %v1821 = vrot.slane %v1820, 2
      %v1822 = vmax.f32 %v1820, %v1821
      %v1823 = vrot.slane %v1822, 1
      %v1824 = vmax.f32 %v1822, %v1823
      %v1825 = vrot.slane %v1691, 4
      %v1826 = vmax.f32 %v1691, %v1825
      %v1827 = vrot.slane %v1826, 2
      %v1828 = vmax.f32 %v1826, %v1827
      %v1829 = vrot.slane %v1828, 1
      %v1830 = vmax.f32 %v1828, %v1829
      %v1831 = vrot.slane %v1692, 4
      %v1832 = vmax.f32 %v1692, %v1831
      %v1833 = vrot.slane %v1832, 2
      %v1834 = vmax.f32 %v1832, %v1833
      %v1835 = vrot.slane %v1834, 1
      %v1836 = vmax.f32 %v1834, %v1835
      %v1837 = vrot.slane %v1693, 4
      %v1838 = vmax.f32 %v1693, %v1837
      %v1839 = vrot.slane %v1838, 2
      %v1840 = vmax.f32 %v1838, %v1839
      %v1841 = vrot.slane %v1840, 1
      %v1842 = vmax.f32 %v1840, %v1841
      %v1843 = vrot.slane %v1694, 4
      %v1844 = vmax.f32 %v1694, %v1843
      %v1845 = vrot.slane %v1844, 2
      %v1846 = vmax.f32 %v1844, %v1845
      %v1847 = vrot.slane %v1846, 1
      %v1848 = vmax.f32 %v1846, %v1847
      %v1849 = vrot.slane %v1695, 4
      %v1850 = vmax.f32 %v1695, %v1849
      %v1851 = vrot.slane %v1850, 2
      %v1852 = vmax.f32 %v1850, %v1851
      %v1853 = vrot.slane %v1852, 1
      %v1854 = vmax.f32 %v1852, %v1853
      %v1855 = vrot.slane %v1696, 4
      %v1856 = vmax.f32 %v1696, %v1855
      %v1857 = vrot.slane %v1856, 2
      %v1858 = vmax.f32 %v1856, %v1857
      %v1859 = vrot.slane %v1858, 1
      %v1860 = vmax.f32 %v1858, %v1859
      %v1861 = vrot.slane %v1697, 4
      %v1862 = vmax.f32 %v1697, %v1861
      %v1863 = vrot.slane %v1862, 2
      %v1864 = vmax.f32 %v1862, %v1863
      %v1865 = vrot.slane %v1864, 1
      %v1866 = vmax.f32 %v1864, %v1865
      %v1867 = vrot.slane %v1698, 4
      %v1868 = vmax.f32 %v1698, %v1867
      %v1869 = vrot.slane %v1868, 2
      %v1870 = vmax.f32 %v1868, %v1869
      %v1871 = vrot.slane %v1870, 1
      %v1872 = vmax.f32 %v1870, %v1871
      %v1873 = vrot.slane %v1699, 4
      %v1874 = vmax.f32 %v1699, %v1873
      %v1875 = vrot.slane %v1874, 2
      %v1876 = vmax.f32 %v1874, %v1875
      %v1877 = vrot.slane %v1876, 1
      %v1878 = vmax.f32 %v1876, %v1877
      %v1879 = vrot.slane %v1700, 4
      %v1880 = vmax.f32 %v1700, %v1879
      %v1881 = vrot.slane %v1880, 2
      %v1882 = vmax.f32 %v1880, %v1881
      %v1883 = vrot.slane %v1882, 1
      %v1884 = vmax.f32 %v1882, %v1883
      %v1885 = vrot.slane %v1701, 4
      %v1886 = vmax.f32 %v1701, %v1885
      %v1887 = vrot.slane %v1886, 2
      %v1888 = vmax.f32 %v1886, %v1887
      %v1889 = vrot.slane %v1888, 1
      %v1890 = vmax.f32 %v1888, %v1889
      %v1891 = vrot.slane %v1702, 4
      %v1892 = vmax.f32 %v1702, %v1891
      %v1893 = vrot.slane %v1892, 2
      %v1894 = vmax.f32 %v1892, %v1893
      %v1895 = vrot.slane %v1894, 1
      %v1896 = vmax.f32 %v1894, %v1895
      %v1897 = vrot.slane %v1703, 4
      %v1898 = vmax.f32 %v1703, %v1897
      %v1899 = vrot.slane %v1898, 2
      %v1900 = vmax.f32 %v1898, %v1899
      %v1901 = vrot.slane %v1900, 1
      %v1902 = vmax.f32 %v1900, %v1901
      %v1903 = vrot.slane %v1704, 4
      %v1904 = vmax.f32 %v1704, %v1903
      %v1905 = vrot.slane %v1904, 2
      %v1906 = vmax.f32 %v1904, %v1905
      %v1907 = vrot.slane %v1906, 1
      %v1908 = vmax.f32 %v1906, %v1907
      %v1909 = vrot.slane %v1705, 4
      %v1910 = vmax.f32 %v1705, %v1909
      %v1911 = vrot.slane %v1910, 2
      %v1912 = vmax.f32 %v1910, %v1911
      %v1913 = vrot.slane %v1912, 1
      %v1914 = vmax.f32 %v1912, %v1913
      %v1915 = vrot.slane %v1706, 4
      %v1916 = vmax.f32 %v1706, %v1915
      %v1917 = vrot.slane %v1916, 2
      %v1918 = vmax.f32 %v1916, %v1917
      %v1919 = vrot.slane %v1918, 1
      %v1920 = vmax.f32 %v1918, %v1919
      %v1921 = vrot.slane %v1707, 4
      %v1922 = vmax.f32 %v1707, %v1921
      %v1923 = vrot.slane %v1922, 2
      %v1924 = vmax.f32 %v1922, %v1923
      %v1925 = vrot.slane %v1924, 1
      %v1926 = vmax.f32 %v1924, %v1925
      %v1927 = vrot.slane %v1708, 4
      %v1928 = vmax.f32 %v1708, %v1927
      %v1929 = vrot.slane %v1928, 2
      %v1930 = vmax.f32 %v1928, %v1929
      %v1931 = vrot.slane %v1930, 1
      %v1932 = vmax.f32 %v1930, %v1931
      %v1933 = vrot.slane %v1709, 4
      %v1934 = vmax.f32 %v1709, %v1933
      %v1935 = vrot.slane %v1934, 2
      %v1936 = vmax.f32 %v1934, %v1935
      %v1937 = vrot.slane %v1936, 1
      %v1938 = vmax.f32 %v1936, %v1937
      %v1939 = vrot.slane %v1710, 4
      %v1940 = vmax.f32 %v1710, %v1939
      %v1941 = vrot.slane %v1940, 2
      %v1942 = vmax.f32 %v1940, %v1941
      %v1943 = vrot.slane %v1942, 1
      %v1944 = vmax.f32 %v1942, %v1943
      %v1945 = vrot.slane %v1711, 4
      %v1946 = vmax.f32 %v1711, %v1945
      %v1947 = vrot.slane %v1946, 2
      %v1948 = vmax.f32 %v1946, %v1947
      %v1949 = vrot.slane %v1948, 1
      %v1950 = vmax.f32 %v1948, %v1949
      %v1951 = vrot.slane %v1712, 4
      %v1952 = vmax.f32 %v1712, %v1951
      %v1953 = vrot.slane %v1952, 2
      %v1954 = vmax.f32 %v1952, %v1953
      %v1955 = vrot.slane %v1954, 1
      %v1956 = vmax.f32 %v1954, %v1955
      %v1957 = vrot.slane %v1713, 4
      %v1958 = vmax.f32 %v1713, %v1957
      %v1959 = vrot.slane %v1958, 2
      %v1960 = vmax.f32 %v1958, %v1959
      %v1961 = vrot.slane %v1960, 1
      %v1962 = vmax.f32 %v1960, %v1961
      %v1963 = vrot.slane %v1714, 4
      %v1964 = vmax.f32 %v1714, %v1963
      %v1965 = vrot.slane %v1964, 2
      %v1966 = vmax.f32 %v1964, %v1965
      %v1967 = vrot.slane %v1966, 1
      %v1968 = vmax.f32 %v1966, %v1967
      %v1969 = vrot.slane %v1715, 4
      %v1970 = vmax.f32 %v1715, %v1969
      %v1971 = vrot.slane %v1970, 2
      %v1972 = vmax.f32 %v1970, %v1971
      %v1973 = vrot.slane %v1972, 1
      %v1974 = vmax.f32 %v1972, %v1973
      %v1975 = vrot.slane %v1716, 4
      %v1976 = vmax.f32 %v1716, %v1975
      %v1977 = vrot.slane %v1976, 2
      %v1978 = vmax.f32 %v1976, %v1977
      %v1979 = vrot.slane %v1978, 1
      %v1980 = vmax.f32 %v1978, %v1979
      %v1981 = vrot.slane %v1717, 4
      %v1982 = vmax.f32 %v1717, %v1981
      %v1983 = vrot.slane %v1982, 2
      %v1984 = vmax.f32 %v1982, %v1983
      %v1985 = vrot.slane %v1984, 1
      %v1986 = vmax.f32 %v1984, %v1985
      %v1987 = vrot.slane %v1718, 4
      %v1988 = vmax.f32 %v1718, %v1987
      %v1989 = vrot.slane %v1988, 2
      %v1990 = vmax.f32 %v1988, %v1989
      %v1991 = vrot.slane %v1990, 1
      %v1992 = vmax.f32 %v1990, %v1991
      %v1993 = vrot.slane %v1719, 4
      %v1994 = vmax.f32 %v1719, %v1993
      %v1995 = vrot.slane %v1994, 2
      %v1996 = vmax.f32 %v1994, %v1995
      %v1997 = vrot.slane %v1996, 1
      %v1998 = vmax.f32 %v1996, %v1997
      %v1999 = vrot.slane %v1720, 4
      %v2000 = vmax.f32 %v1720, %v1999
      %v2001 = vrot.slane %v2000, 2
      %v2002 = vmax.f32 %v2000, %v2001
      %v2003 = vrot.slane %v2002, 1
      %v2004 = vmax.f32 %v2002, %v2003
      %v2005 = vrot.slane %v1721, 4
      %v2006 = vmax.f32 %v1721, %v2005
      %v2007 = vrot.slane %v2006, 2
      %v2008 = vmax.f32 %v2006, %v2007
      %v2009 = vrot.slane %v2008, 1
      %v2010 = vmax.f32 %v2008, %v2009
      %v2011 = vrot.slane %v1722, 4
      %v2012 = vmax.f32 %v1722, %v2011
      %v2013 = vrot.slane %v2012, 2
      %v2014 = vmax.f32 %v2012, %v2013
      %v2015 = vrot.slane %v2014, 1
      %v2016 = vmax.f32 %v2014, %v2015
      %v2017 = vrot.slane %v1723, 4
      %v2018 = vmax.f32 %v1723, %v2017
      %v2019 = vrot.slane %v2018, 2
      %v2020 = vmax.f32 %v2018, %v2019
      %v2021 = vrot.slane %v2020, 1
      %v2022 = vmax.f32 %v2020, %v2021
      %v2023 = vrot.slane %v1724, 4
      %v2024 = vmax.f32 %v1724, %v2023
      %v2025 = vrot.slane %v2024, 2
      %v2026 = vmax.f32 %v2024, %v2025
      %v2027 = vrot.slane %v2026, 1
      %v2028 = vmax.f32 %v2026, %v2027
      %v2029 = vrot.slane %v1725, 4
      %v2030 = vmax.f32 %v1725, %v2029
      %v2031 = vrot.slane %v2030, 2
      %v2032 = vmax.f32 %v2030, %v2031
      %v2033 = vrot.slane %v2032, 1
      %v2034 = vmax.f32 %v2032, %v2033
      %v2035 = vrot.slane %v1726, 4
      %v2036 = vmax.f32 %v1726, %v2035
      %v2037 = vrot.slane %v2036, 2
      %v2038 = vmax.f32 %v2036, %v2037
      %v2039 = vrot.slane %v2038, 1
      %v2040 = vmax.f32 %v2038, %v2039
      %v2041 = vrot.slane %v1727, 4
      %v2042 = vmax.f32 %v1727, %v2041
      %v2043 = vrot.slane %v2042, 2
      %v2044 = vmax.f32 %v2042, %v2043
      %v2045 = vrot.slane %v2044, 1
      %v2046 = vmax.f32 %v2044, %v2045
      %v2047 = vrot.slane %v1728, 4
      %v2048 = vmax.f32 %v1728, %v2047
      %v2049 = vrot.slane %v2048, 2
      %v2050 = vmax.f32 %v2048, %v2049
      %v2051 = vrot.slane %v2050, 1
      %v2052 = vmax.f32 %v2050, %v2051
      %v2053 = vrot.slane %v1729, 4
      %v2054 = vmax.f32 %v1729, %v2053
      %v2055 = vrot.slane %v2054, 2
      %v2056 = vmax.f32 %v2054, %v2055
      %v2057 = vrot.slane %v2056, 1
      %v2058 = vmax.f32 %v2056, %v2057
      %v2059 = vrot.slane %v1730, 4
      %v2060 = vmax.f32 %v1730, %v2059
      %v2061 = vrot.slane %v2060, 2
      %v2062 = vmax.f32 %v2060, %v2061
      %v2063 = vrot.slane %v2062, 1
      %v2064 = vmax.f32 %v2062, %v2063
      %v2065 = vrot.slane %v1731, 4
      %v2066 = vmax.f32 %v1731, %v2065
      %v2067 = vrot.slane %v2066, 2
      %v2068 = vmax.f32 %v2066, %v2067
      %v2069 = vrot.slane %v2068, 1
      %v2070 = vmax.f32 %v2068, %v2069
      %v2071 = vrot.slane %v1732, 4
      %v2072 = vmax.f32 %v1732, %v2071
      %v2073 = vrot.slane %v2072, 2
      %v2074 = vmax.f32 %v2072, %v2073
      %v2075 = vrot.slane %v2074, 1
      %v2076 = vmax.f32 %v2074, %v2075
      %v2077 = vrot.slane %v1733, 4
      %v2078 = vmax.f32 %v1733, %v2077
      %v2079 = vrot.slane %v2078, 2
      %v2080 = vmax.f32 %v2078, %v2079
      %v2081 = vrot.slane %v2080, 1
      %v2082 = vmax.f32 %v2080, %v2081
      %v2083 = vrot.slane %v1734, 4
      %v2084 = vmax.f32 %v1734, %v2083
      %v2085 = vrot.slane %v2084, 2
      %v2086 = vmax.f32 %v2084, %v2085
      %v2087 = vrot.slane %v2086, 1
      %v2088 = vmax.f32 %v2086, %v2087
      %v2089 = vrot.slane %v1735, 4
      %v2090 = vmax.f32 %v1735, %v2089
      %v2091 = vrot.slane %v2090, 2
      %v2092 = vmax.f32 %v2090, %v2091
      %v2093 = vrot.slane %v2092, 1
      %v2094 = vmax.f32 %v2092, %v2093
      %v2095 = vrot.slane %v1736, 4
      %v2096 = vmax.f32 %v1736, %v2095
      %v2097 = vrot.slane %v2096, 2
      %v2098 = vmax.f32 %v2096, %v2097
      %v2099 = vrot.slane %v2098, 1
      %v2100 = vmax.f32 %v2098, %v2099
      %v2101 = vrot.slane %v1737, 4
      %v2102 = vmax.f32 %v1737, %v2101
      %v2103 = vrot.slane %v2102, 2
      %v2104 = vmax.f32 %v2102, %v2103
      %v2105 = vrot.slane %v2104, 1
      %v2106 = vmax.f32 %v2104, %v2105
      %v2107 = vrot.slane %v1738, 4
      %v2108 = vmax.f32 %v1738, %v2107
      %v2109 = vrot.slane %v2108, 2
      %v2110 = vmax.f32 %v2108, %v2109
      %v2111 = vrot.slane %v2110, 1
      %v2112 = vmax.f32 %v2110, %v2111
      %v2113 = vrot.slane %v1739, 4
      %v2114 = vmax.f32 %v1739, %v2113
      %v2115 = vrot.slane %v2114, 2
      %v2116 = vmax.f32 %v2114, %v2115
      %v2117 = vrot.slane %v2116, 1
      %v2118 = vmax.f32 %v2116, %v2117
      %v2119 = vrot.slane %v1740, 4
      %v2120 = vmax.f32 %v1740, %v2119
      %v2121 = vrot.slane %v2120, 2
      %v2122 = vmax.f32 %v2120, %v2121
      %v2123 = vrot.slane %v2122, 1
      %v2124 = vmax.f32 %v2122, %v2123
      %v2125 = vmax.f32 %v976, %v1746
      %v2126 = vmax.f32 %v982, %v1752
      %v2127 = vmax.f32 %v988, %v1758
      %v2128 = vmax.f32 %v994, %v1764
      %v2129 = vmax.f32 %v1000, %v1770
      %v2130 = vmax.f32 %v1006, %v1776
      %v2131 = vmax.f32 %v1012, %v1782
      %v2132 = vmax.f32 %v1018, %v1788
      %v2133 = vmax.f32 %v1024, %v1794
      %v2134 = vmax.f32 %v1030, %v1800
      %v2135 = vmax.f32 %v1036, %v1806
      %v2136 = vmax.f32 %v1042, %v1812
      %v2137 = vmax.f32 %v1048, %v1818
      %v2138 = vmax.f32 %v1054, %v1824
      %v2139 = vmax.f32 %v1060, %v1830
      %v2140 = vmax.f32 %v1066, %v1836
      %v2141 = vmax.f32 %v1072, %v1842
      %v2142 = vmax.f32 %v1078, %v1848
      %v2143 = vmax.f32 %v1084, %v1854
      %v2144 = vmax.f32 %v1090, %v1860
      %v2145 = vmax.f32 %v1096, %v1866
      %v2146 = vmax.f32 %v1102, %v1872
      %v2147 = vmax.f32 %v1108, %v1878
      %v2148 = vmax.f32 %v1114, %v1884
      %v2149 = vmax.f32 %v1120, %v1890
      %v2150 = vmax.f32 %v1126, %v1896
      %v2151 = vmax.f32 %v1132, %v1902
      %v2152 = vmax.f32 %v1138, %v1908
      %v2153 = vmax.f32 %v1144, %v1914
      %v2154 = vmax.f32 %v1150, %v1920
      %v2155 = vmax.f32 %v1156, %v1926
      %v2156 = vmax.f32 %v1162, %v1932
      %v2157 = vmax.f32 %v1168, %v1938
      %v2158 = vmax.f32 %v1174, %v1944
      %v2159 = vmax.f32 %v1180, %v1950
      %v2160 = vmax.f32 %v1186, %v1956
      %v2161 = vmax.f32 %v1192, %v1962
      %v2162 = vmax.f32 %v1198, %v1968
      %v2163 = vmax.f32 %v1204, %v1974
      %v2164 = vmax.f32 %v1210, %v1980
      %v2165 = vmax.f32 %v1216, %v1986
      %v2166 = vmax.f32 %v1222, %v1992
      %v2167 = vmax.f32 %v1228, %v1998
      %v2168 = vmax.f32 %v1234, %v2004
      %v2169 = vmax.f32 %v1240, %v2010
      %v2170 = vmax.f32 %v1246, %v2016
      %v2171 = vmax.f32 %v1252, %v2022
      %v2172 = vmax.f32 %v1258, %v2028
      %v2173 = vmax.f32 %v1264, %v2034
      %v2174 = vmax.f32 %v1270, %v2040
      %v2175 = vmax.f32 %v1276, %v2046
      %v2176 = vmax.f32 %v1282, %v2052
      %v2177 = vmax.f32 %v1288, %v2058
      %v2178 = vmax.f32 %v1294, %v2064
      %v2179 = vmax.f32 %v1300, %v2070
      %v2180 = vmax.f32 %v1306, %v2076
      %v2181 = vmax.f32 %v1312, %v2082
      %v2182 = vmax.f32 %v1318, %v2088
      %v2183 = vmax.f32 %v1324, %v2094
      %v2184 = vmax.f32 %v1330, %v2100
      %v2185 = vmax.f32 %v1336, %v2106
      %v2186 = vmax.f32 %v1342, %v2112
      %v2187 = vmax.f32 %v1348, %v2118
      %v2188 = vmax.f32 %v1354, %v2124
      %vm2253 = vcmask 1041409
      %v2254 = vsel %vm2253, %v2129, %v2125
      %vm2255 = vcmask 1042434
      %v2256 = vsel %vm2255, %v2133, %v2254
      %vm2257 = vcmask 1043459
      %v2258 = vsel %vm2257, %v2137, %v2256
      %vm2259 = vcmask 1044484
      %v2260 = vsel %vm2259, %v2141, %v2258
      %vm2261 = vcmask 1045509
      %v2262 = vsel %vm2261, %v2145, %v2260
      %vm2263 = vcmask 1046534
      %v2264 = vsel %vm2263, %v2149, %v2262
      %vm2265 = vcmask 1047559
      %v2266 = vsel %vm2265, %v2153, %v2264
      %v2267 = vsel %vm2253, %v2130, %v2126
      %v2268 = vsel %vm2255, %v2134, %v2267
      %v2269 = vsel %vm2257, %v2138, %v2268
      %v2270 = vsel %vm2259, %v2142, %v2269
      %v2271 = vsel %vm2261, %v2146, %v2270
      %v2272 = vsel %vm2263, %v2150, %v2271
      %v2273 = vsel %vm2265, %v2154, %v2272
      %v2274 = vsel %vm2253, %v2131, %v2127
      %v2275 = vsel %vm2255, %v2135, %v2274
      %v2276 = vsel %vm2257, %v2139, %v2275
      %v2277 = vsel %vm2259, %v2143, %v2276
      %v2278 = vsel %vm2261, %v2147, %v2277
      %v2279 = vsel %vm2263, %v2151, %v2278
      %v2280 = vsel %vm2265, %v2155, %v2279
      %v2281 = vsel %vm2253, %v2132, %v2128
      %v2282 = vsel %vm2255, %v2136, %v2281
      %v2283 = vsel %vm2257, %v2140, %v2282
      %v2284 = vsel %vm2259, %v2144, %v2283
      %v2285 = vsel %vm2261, %v2148, %v2284
      %v2286 = vsel %vm2263, %v2152, %v2285
      %v2287 = vsel %vm2265, %v2156, %v2286
      %v2288 = vsel %vm2253, %v2161, %v2157
      %v2289 = vsel %vm2255, %v2165, %v2288
      %v2290 = vsel %vm2257, %v2169, %v2289
      %v2291 = vsel %vm2259, %v2173, %v2290
      %v2292 = vsel %vm2261, %v2177, %v2291
      %v2293 = vsel %vm2263, %v2181, %v2292
      %v2294 = vsel %vm2265, %v2185, %v2293
      %v2295 = vsel %vm2253, %v2162, %v2158
      %v2296 = vsel %vm2255, %v2166, %v2295
      %v2297 = vsel %vm2257, %v2170, %v2296
      %v2298 = vsel %vm2259, %v2174, %v2297
      %v2299 = vsel %vm2261, %v2178, %v2298
      %v2300 = vsel %vm2263, %v2182, %v2299
      %v2301 = vsel %vm2265, %v2186, %v2300
      %v2302 = vsel %vm2253, %v2163, %v2159
      %v2303 = vsel %vm2255, %v2167, %v2302
      %v2304 = vsel %vm2257, %v2171, %v2303
      %v2305 = vsel %vm2259, %v2175, %v2304
      %v2306 = vsel %vm2261, %v2179, %v2305
      %v2307 = vsel %vm2263, %v2183, %v2306
      %v2308 = vsel %vm2265, %v2187, %v2307
      %v2309 = vsel %vm2253, %v2164, %v2160
      %v2310 = vsel %vm2255, %v2168, %v2309
      %v2311 = vsel %vm2257, %v2172, %v2310
      %v2312 = vsel %vm2259, %v2176, %v2311
      %v2313 = vsel %vm2261, %v2180, %v2312
      %v2314 = vsel %vm2263, %v2184, %v2313
      %v2315 = vsel %vm2265, %v2188, %v2314
      %2324 = vst [vmem:[%s177] sm:$0xff] %v2266
      %2325 = vst [vmem:[%s177 + $0x8] sm:$0xff] %v2273
      %2326 = vst [vmem:[%s177 + $0x10] sm:$0xff] %v2280
      %2327 = vst [vmem:[%s177 + $0x18] sm:$0xff] %v2287
      %2328 = vst [vmem:[%s177 + $0x20] sm:$0xff] %v2294
      %2329 = vst [vmem:[%s177 + $0x28] sm:$0xff] %v2301
      %2330 = vst [vmem:[%s177 + $0x30] sm:$0xff] %v2308
      %2331 = vst [vmem:[%s177 + $0x38] sm:$0xff] %v2315
      %s2332 = smul.u32 2, %s14
      %p2333 = scmp.lt.s32.totalorder %s2332, 3
      %s2334 = scalar_select %p2333, %s2332, 3
      %s2335 = smul.addr %s2334, 4
      %s2336 = smul.addr %s2335, 8
      %s2337 = scalar_lea.vmem %s3, %s2336
      // Predicated region
      $region33: #{rscnn_ssn_forward.5} parent=31 // pred_check
        %p2338 = pneg %p100
      $region34: #{rscnn_ssn_forward.5} parent=31 // pred_check_branch
        %2340 = sbr.rel (%p2338) target = $region36
      $region35: #{rscnn_ssn_forward.5} parent=31 // pred_region
        %s2341 = smul.u32 2, %s14
      $region36: #{rscnn_ssn_forward.5} parent=31 // pred_fallthru
        _
    $region32: #{rscnn_ssn_forward.5} parent=5 // pred_fallthru
      _
    %p2342 = scmp.le.s32.totalorder 2, %s9
    // Predicated region
    $region37: #{rscnn_ssn_forward.5} parent=5 // pred_check
      %p2343 = pneg %p2342
    $region38: #{rscnn_ssn_forward.5} parent=5 // pred_check_branch
      %2345 = sbr.rel (%p2343) target = $region40
    $region39: #{rscnn_ssn_forward.5} parent=5 // pred_region
      %s2346 = ssub.s32 %s9, 2
      // Predicated region
      $region41: #{rscnn_ssn_forward.5} parent=39 // pred_check
        %p2347 = pneg %p106
      $region42: #{rscnn_ssn_forward.5} parent=39 // pred_check_branch
        %2349 = sbr.rel (%p2347) target = $region44
      $region43: #{rscnn_ssn_forward.5} parent=39 // pred_region
        %s2350 = smul.u32 2, %s15
        %p2351 = scmp.lt.s32.totalorder %s2350, 3
        %s2352 = scalar_select %p2351, %s2350, 3
        %s2353 = smul.addr %s2352, 4
        %s2354 = smul.addr %s2353, 8
        %s2355 = scalar_lea.vmem %s3, %s2354
      $region44: #{rscnn_ssn_forward.5} parent=39 // pred_fallthru
        _
    $region40: #{rscnn_ssn_forward.5} parent=5 // pred_fallthru
      _
  $region6: #{rscnn_ssn_forward.5} parent=0 // loop_footer
    %s13 = sadd.s32 1, %s9
  $region7: #{rscnn_ssn_forward.5} parent=0 // loop_footer_branch
    %8 = sbr.rel target = $region3
  $region8: #{rscnn_ssn_forward.5} parent=0 // loop_exit
    _

// kernel: rscnn_ssn_forward.7
$region0: #{rscnn_ssn_forward.7}
  #allocation0 [shape = 'u32[]', space=smem, size = 0x4, offset = 0x4, fixed_abs, tag = 'smem constant byte address 0x4 - core index']
  #allocation1 [shape = 'u32[144,128]{1,0:T(1,128)}', space=vmem, size = 0x12000, scoped, tag = 'internal scratch']
  %s0 = inlined_call_operand.vmem [shape: bf16[2,1024], index: 0, kind: input, shape index: {}]
  %s1 = inlined_call_operand.vmem [shape: bf16[1024,512], index: 1, kind: input, shape index: {}]
  %s2 = inlined_call_operand.vmem [shape: f32[1,512], index: 2, kind: input, shape index: {}]
  %s3 = inlined_call_operand.vmem [shape: bf16[512,256], index: 3, kind: input, shape index: {}]
  %s4 = inlined_call_operand.vmem [shape: f32[1,256], index: 4, kind: input, shape index: {}]
  %s5 = inlined_call_operand.vmem [shape: bf16[256,10], index: 5, kind: input, shape index: {}]
  %s6 = inlined_call_operand.vmem [shape: f32[1,10], index: 6, kind: input, shape index: {}]
  %s7 = inlined_call_operand.hbm [shape: f32[2,512], index: 7, kind: output, shape index: {0}]
  %s8 = inlined_call_operand.hbm [shape: f32[2,256], index: 8, kind: output, shape index: {1}]
  %s9 = inlined_call_operand.vmem [shape: f32[2,10], index: 9, kind: output, shape index: {2}]
  %10 = xla_tuple %s7, %s8, %s9
  %s11 = sld [smem:[#allocation0]]
  $region54: #{rscnn_ssn_forward.7} parent=0
    _
  %s13 = ssub.s32 1, %s11
  %s14 = scalar_select 0, %s13, %s11
  $region1: #{rscnn_ssn_forward.7} parent=0
    #allocation2 [shape = 'u8[4096]{0}', space=vmem, size = 0x1000, scoped, tag = 'output window, operand 0, single buffered']
    #allocation3 [shape = 's32[1]{0}', space=sflag, size = 0x4, scoped, tag = 'scoped memory for rscnn_ssn_forward.7']
    #allocation4 [shape = 'u8[2048]{0}', space=vmem, size = 0x800, scoped, tag = 'output window, operand 1, single buffered']
    #allocation5 [shape = 's32[1]{0}', space=sflag, size = 0x4, scoped, tag = 'scoped memory for rscnn_ssn_forward.7']
    %15 = vsyncpa [#allocation3], 0
    %16 = vsyncpa [#allocation5], 0
    // Predicated region
    $region2: #{rscnn_ssn_forward.7} parent=1 // pred_check
      _
    $region3: #{rscnn_ssn_forward.7} parent=1 // pred_check_branch
      %18 = sbr.rel (0) target = $region5
    $region4: #{rscnn_ssn_forward.7} parent=1 // pred_region
      _
    $region5: #{rscnn_ssn_forward.7} parent=1 // pred_fallthru
      _
    // Predicated region
    $region6: #{rscnn_ssn_forward.7} parent=1 // pred_check
      _
    $region7: #{rscnn_ssn_forward.7} parent=1 // pred_check_branch
      %20 = sbr.rel (0) target = $region9
    $region8: #{rscnn_ssn_forward.7} parent=1 // pred_region
      _
    $region9: #{rscnn_ssn_forward.7} parent=1 // pred_fallthru
      _
    // Predicated region
    $region10: #{rscnn_ssn_forward.7} parent=1 // pred_check
      _
    $region11: #{rscnn_ssn_forward.7} parent=1 // pred_check_branch
      %22 = sbr.rel (0) target = $region13
    $region12: #{rscnn_ssn_forward.7} parent=1 // pred_region
      _
    $region13: #{rscnn_ssn_forward.7} parent=1 // pred_fallthru
      _
    // Predicated region
    $region14: #{rscnn_ssn_forward.7} parent=1 // pred_check
      _
    $region15: #{rscnn_ssn_forward.7} parent=1 // pred_check_branch
      %24 = sbr.rel (0) target = $region17
    $region16: #{rscnn_ssn_forward.7} parent=1 // pred_region
      _
    $region17: #{rscnn_ssn_forward.7} parent=1 // pred_fallthru
      _
    // Predicated region
    $region18: #{rscnn_ssn_forward.7} parent=1 // pred_check
      _
    $region19: #{rscnn_ssn_forward.7} parent=1 // pred_check_branch
      %26 = sbr.rel (0) target = $region21
    $region20: #{rscnn_ssn_forward.7} parent=1 // pred_region
      _
    $region21: #{rscnn_ssn_forward.7} parent=1 // pred_fallthru
      _
    // Predicated region
    $region22: #{rscnn_ssn_forward.7} parent=1 // pred_check
      _
    $region23: #{rscnn_ssn_forward.7} parent=1 // pred_check_branch
      %28 = sbr.rel (0) target = $region25
    $region24: #{rscnn_ssn_forward.7} parent=1 // pred_region
      _
    $region25: #{rscnn_ssn_forward.7} parent=1 // pred_fallthru
      _
    // Predicated region
    $region26: #{rscnn_ssn_forward.7} parent=1 // pred_check
      _
    $region27: #{rscnn_ssn_forward.7} parent=1 // pred_check_branch
      %30 = sbr.rel (0) target = $region29
    $region28: #{rscnn_ssn_forward.7} parent=1 // pred_region
      _
    $region29: #{rscnn_ssn_forward.7} parent=1 // pred_fallthru
      _
    %v32 = vld [vmem:[%s0] sm:$0xff]
    %v33 = vld [vmem:[%s1] sm:$0xff]
    %v34 = vld [vmem:[%s1 + $0x8] sm:$0xff]
    %v35 = vld [vmem:[%s1 + $0x10] sm:$0xff]
    %v36 = vld [vmem:[%s1 + $0x18] sm:$0xff]
    %v37 = vld [vmem:[%s1 + $0x20] sm:$0xff]
    %v38 = vld [vmem:[%s1 + $0x28] sm:$0xff]
    %v39 = vld [vmem:[%s1 + $0x30] sm:$0xff]
    %v40 = vld [vmem:[%s1 + $0x38] sm:$0xff]
    %v41 = vld [vmem:[%s1 + $0x40] sm:$0xff]
    %v42 = vld [vmem:[%s1 + $0x48] sm:$0xff]
    %v43 = vld [vmem:[%s1 + $0x50] sm:$0xff]
    %v44 = vld [vmem:[%s1 + $0x58] sm:$0xff]
    %v45 = vld [vmem:[%s1 + $0x60] sm:$0xff]
    %v46 = vld [vmem:[%s1 + $0x68] sm:$0xff]
    %v47 = vld [vmem:[%s1 + $0x70] sm:$0xff]
    %v48 = vld [vmem:[%s1 + $0x78] sm:$0xff]
    %v49 = vld [vmem:[%s1 + $0x80] sm:$0xff]
    %v50 = vld [vmem:[%s1 + $0x88] sm:$0xff]
    %v51 = vld [vmem:[%s1 + $0x90] sm:$0xff]
    %v52 = vld [vmem:[%s1 + $0x98] sm:$0xff]
    %v53 = vld [vmem:[%s1 + $0xa0] sm:$0xff]
    %v54 = vld [vmem:[%s1 + $0xa8] sm:$0xff]
    %v55 = vld [vmem:[%s1 + $0xb0] sm:$0xff]
    %v56 = vld [vmem:[%s1 + $0xb8] sm:$0xff]
    %v57 = vld [vmem:[%s1 + $0xc0] sm:$0xff]
    %v58 = vld [vmem:[%s1 + $0xc8] sm:$0xff]
    %v59 = vld [vmem:[%s1 + $0xd0] sm:$0xff]
    %v60 = vld [vmem:[%s1 + $0xd8] sm:$0xff]
    %v61 = vld [vmem:[%s1 + $0xe0] sm:$0xff]
    %v62 = vld [vmem:[%s1 + $0xe8] sm:$0xff]
    %v63 = vld [vmem:[%s1 + $0xf0] sm:$0xff]
    %v64 = vld [vmem:[%s1 + $0xf8] sm:$0xff]
    %v65 = vld [vmem:[%s1 + $0x100] sm:$0xff]
    %v66 = vld [vmem:[%s1 + $0x108] sm:$0xff]
    %v67 = vld [vmem:[%s1 + $0x110] sm:$0xff]
    %v68 = vld [vmem:[%s1 + $0x118] sm:$0xff]
    %v69 = vld [vmem:[%s1 + $0x120] sm:$0xff]
    %v70 = vld [vmem:[%s1 + $0x128] sm:$0xff]
    %v71 = vld [vmem:[%s1 + $0x130] sm:$0xff]
    %v72 = vld [vmem:[%s1 + $0x138] sm:$0xff]
    %v73 = vld [vmem:[%s1 + $0x140] sm:$0xff]
    %v74 = vld [vmem:[%s1 + $0x148] sm:$0xff]
    %v75 = vld [vmem:[%s1 + $0x150] sm:$0xff]
    %v76 = vld [vmem:[%s1 + $0x158] sm:$0xff]
    %v77 = vld [vmem:[%s1 + $0x160] sm:$0xff]
    %v78 = vld [vmem:[%s1 + $0x168] sm:$0xff]
    %v79 = vld [vmem:[%s1 + $0x170] sm:$0xff]
    %v80 = vld [vmem:[%s1 + $0x178] sm:$0xff]
    %v81 = vld [vmem:[%s1 + $0x180] sm:$0xff]
    %v82 = vld [vmem:[%s1 + $0x188] sm:$0xff]
    %v83 = vld [vmem:[%s1 + $0x190] sm:$0xff]
    %v84 = vld [vmem:[%s1 + $0x198] sm:$0xff]
    %v85 = vld [vmem:[%s1 + $0x1a0] sm:$0xff]
    %v86 = vld [vmem:[%s1 + $0x1a8] sm:$0xff]
    %v87 = vld [vmem:[%s1 + $0x1b0] sm:$0xff]
    %v88 = vld [vmem:[%s1 + $0x1b8] sm:$0xff]
    %v89 = vld [vmem:[%s1 + $0x1c0] sm:$0xff]
    %v90 = vld [vmem:[%s1 + $0x1c8] sm:$0xff]
    %v91 = vld [vmem:[%s1 + $0x1d0] sm:$0xff]
    %v92 = vld [vmem:[%s1 + $0x1d8] sm:$0xff]
    %v93 = vld [vmem:[%s1 + $0x1e0] sm:$0xff]
    %v94 = vld [vmem:[%s1 + $0x1e8] sm:$0xff]
    %v95 = vld [vmem:[%s1 + $0x1f0] sm:$0xff]
    %v96 = vld [vmem:[%s1 + $0x1f8] sm:$0xff]
    %v97 = vld [vmem:[%s1 + $0x200] sm:$0xff]
    %v98 = vld [vmem:[%s1 + $0x208] sm:$0xff]
    %v99 = vld [vmem:[%s1 + $0x210] sm:$0xff]
    %v100 = vld [vmem:[%s1 + $0x218] sm:$0xff]
    %v101 = vld [vmem:[%s1 + $0x220] sm:$0xff]
    %v102 = vld [vmem:[%s1 + $0x228] sm:$0xff]
    %v103 = vld [vmem:[%s1 + $0x230] sm:$0xff]
    %v104 = vld [vmem:[%s1 + $0x238] sm:$0xff]
    %v105 = vld [vmem:[%s1 + $0x240] sm:$0xff]
    %v106 = vld [vmem:[%s1 + $0x248] sm:$0xff]
    %v107 = vld [vmem:[%s1 + $0x250] sm:$0xff]
    %v108 = vld [vmem:[%s1 + $0x258] sm:$0xff]
    %v109 = vld [vmem:[%s1 + $0x260] sm:$0xff]
    %v110 = vld [vmem:[%s1 + $0x268] sm:$0xff]
    %v111 = vld [vmem:[%s1 + $0x270] sm:$0xff]
    %v112 = vld [vmem:[%s1 + $0x278] sm:$0xff]
    %v113 = vld [vmem:[%s1 + $0x280] sm:$0xff]
    %v114 = vld [vmem:[%s1 + $0x288] sm:$0xff]
    %v115 = vld [vmem:[%s1 + $0x290] sm:$0xff]
    %v116 = vld [vmem:[%s1 + $0x298] sm:$0xff]
    %v117 = vld [vmem:[%s1 + $0x2a0] sm:$0xff]
    %v118 = vld [vmem:[%s1 + $0x2a8] sm:$0xff]
    %v119 = vld [vmem:[%s1 + $0x2b0] sm:$0xff]
    %v120 = vld [vmem:[%s1 + $0x2b8] sm:$0xff]
    %v121 = vld [vmem:[%s1 + $0x2c0] sm:$0xff]
    %v122 = vld [vmem:[%s1 + $0x2c8] sm:$0xff]
    %v123 = vld [vmem:[%s1 + $0x2d0] sm:$0xff]
    %v124 = vld [vmem:[%s1 + $0x2d8] sm:$0xff]
    %v125 = vld [vmem:[%s1 + $0x2e0] sm:$0xff]
    %v126 = vld [vmem:[%s1 + $0x2e8] sm:$0xff]
    %v127 = vld [vmem:[%s1 + $0x2f0] sm:$0xff]
    %v128 = vld [vmem:[%s1 + $0x2f8] sm:$0xff]
    %v129 = vld [vmem:[%s1 + $0x300] sm:$0xff]
    %v130 = vld [vmem:[%s1 + $0x308] sm:$0xff]
    %v131 = vld [vmem:[%s1 + $0x310] sm:$0xff]
    %v132 = vld [vmem:[%s1 + $0x318] sm:$0xff]
    %v133 = vld [vmem:[%s1 + $0x320] sm:$0xff]
    %v134 = vld [vmem:[%s1 + $0x328] sm:$0xff]
    %v135 = vld [vmem:[%s1 + $0x330] sm:$0xff]
    %v136 = vld [vmem:[%s1 + $0x338] sm:$0xff]
    %v137 = vld [vmem:[%s1 + $0x340] sm:$0xff]
    %v138 = vld [vmem:[%s1 + $0x348] sm:$0xff]
    %v139 = vld [vmem:[%s1 + $0x350] sm:$0xff]
    %v140 = vld [vmem:[%s1 + $0x358] sm:$0xff]
    %v141 = vld [vmem:[%s1 + $0x360] sm:$0xff]
    %v142 = vld [vmem:[%s1 + $0x368] sm:$0xff]
    %v143 = vld [vmem:[%s1 + $0x370] sm:$0xff]
    %v144 = vld [vmem:[%s1 + $0x378] sm:$0xff]
    %v145 = vld [vmem:[%s1 + $0x380] sm:$0xff]
    %v146 = vld [vmem:[%s1 + $0x388] sm:$0xff]
    %v147 = vld [vmem:[%s1 + $0x390] sm:$0xff]
    %v148 = vld [vmem:[%s1 + $0x398] sm:$0xff]
    %v149 = vld [vmem:[%s1 + $0x3a0] sm:$0xff]
    %v150 = vld [vmem:[%s1 + $0x3a8] sm:$0xff]
    %v151 = vld [vmem:[%s1 + $0x3b0] sm:$0xff]
    %v152 = vld [vmem:[%s1 + $0x3b8] sm:$0xff]
    %v153 = vld [vmem:[%s1 + $0x3c0] sm:$0xff]
    %v154 = vld [vmem:[%s1 + $0x3c8] sm:$0xff]
    %v155 = vld [vmem:[%s1 + $0x3d0] sm:$0xff]
    %v156 = vld [vmem:[%s1 + $0x3d8] sm:$0xff]
    %v157 = vld [vmem:[%s1 + $0x3e0] sm:$0xff]
    %v158 = vld [vmem:[%s1 + $0x3e8] sm:$0xff]
    %v159 = vld [vmem:[%s1 + $0x3f0] sm:$0xff]
    %v160 = vld [vmem:[%s1 + $0x3f8] sm:$0xff]
    %v161 = vld [vmem:[%s1 + $0x400] sm:$0xff]
    %v162 = vld [vmem:[%s1 + $0x408] sm:$0xff]
    %v163 = vld [vmem:[%s1 + $0x410] sm:$0xff]
    %v164 = vld [vmem:[%s1 + $0x418] sm:$0xff]
    %v165 = vld [vmem:[%s1 + $0x420] sm:$0xff]
    %v166 = vld [vmem:[%s1 + $0x428] sm:$0xff]
    %v167 = vld [vmem:[%s1 + $0x430] sm:$0xff]
    %v168 = vld [vmem:[%s1 + $0x438] sm:$0xff]
    %v169 = vld [vmem:[%s1 + $0x440] sm:$0xff]
    %v170 = vld [vmem:[%s1 + $0x448] sm:$0xff]
    %v171 = vld [vmem:[%s1 + $0x450] sm:$0xff]
    %v172 = vld [vmem:[%s1 + $0x458] sm:$0xff]
    %v173 = vld [vmem:[%s1 + $0x460] sm:$0xff]
    %v174 = vld [vmem:[%s1 + $0x468] sm:$0xff]
    %v175 = vld [vmem:[%s1 + $0x470] sm:$0xff]
    %v176 = vld [vmem:[%s1 + $0x478] sm:$0xff]
    %v177 = vld [vmem:[%s1 + $0x480] sm:$0xff]
    %v178 = vld [vmem:[%s1 + $0x488] sm:$0xff]
    %v179 = vld [vmem:[%s1 + $0x490] sm:$0xff]
    %v180 = vld [vmem:[%s1 + $0x498] sm:$0xff]
    %v181 = vld [vmem:[%s1 + $0x4a0] sm:$0xff]
    %v182 = vld [vmem:[%s1 + $0x4a8] sm:$0xff]
    %v183 = vld [vmem:[%s1 + $0x4b0] sm:$0xff]
    %v184 = vld [vmem:[%s1 + $0x4b8] sm:$0xff]
    %v185 = vld [vmem:[%s1 + $0x4c0] sm:$0xff]
    %v186 = vld [vmem:[%s1 + $0x4c8] sm:$0xff]
    %v187 = vld [vmem:[%s1 + $0x4d0] sm:$0xff]
    %v188 = vld [vmem:[%s1 + $0x4d8] sm:$0xff]
    %v189 = vld [vmem:[%s1 + $0x4e0] sm:$0xff]
    %v190 = vld [vmem:[%s1 + $0x4e8] sm:$0xff]
    %v191 = vld [vmem:[%s1 + $0x4f0] sm:$0xff]
    %v192 = vld [vmem:[%s1 + $0x4f8] sm:$0xff]
    %v193 = vld [vmem:[%s1 + $0x500] sm:$0xff]
    %v194 = vld [vmem:[%s1 + $0x508] sm:$0xff]
    %v195 = vld [vmem:[%s1 + $0x510] sm:$0xff]
    %v196 = vld [vmem:[%s1 + $0x518] sm:$0xff]
    %v197 = vld [vmem:[%s1 + $0x520] sm:$0xff]
    %v198 = vld [vmem:[%s1 + $0x528] sm:$0xff]
    %v199 = vld [vmem:[%s1 + $0x530] sm:$0xff]
    %v200 = vld [vmem:[%s1 + $0x538] sm:$0xff]
    %v201 = vld [vmem:[%s1 + $0x540] sm:$0xff]
    %v202 = vld [vmem:[%s1 + $0x548] sm:$0xff]
    %v203 = vld [vmem:[%s1 + $0x550] sm:$0xff]
    %v204 = vld [vmem:[%s1 + $0x558] sm:$0xff]
    %v205 = vld [vmem:[%s1 + $0x560] sm:$0xff]
    %v206 = vld [vmem:[%s1 + $0x568] sm:$0xff]
    %v207 = vld [vmem:[%s1 + $0x570] sm:$0xff]
    %v208 = vld [vmem:[%s1 + $0x578] sm:$0xff]
    %v209 = vld [vmem:[%s1 + $0x580] sm:$0xff]
    %v210 = vld [vmem:[%s1 + $0x588] sm:$0xff]
    %v211 = vld [vmem:[%s1 + $0x590] sm:$0xff]
    %v212 = vld [vmem:[%s1 + $0x598] sm:$0xff]
    %v213 = vld [vmem:[%s1 + $0x5a0] sm:$0xff]
    %v214 = vld [vmem:[%s1 + $0x5a8] sm:$0xff]
    %v215 = vld [vmem:[%s1 + $0x5b0] sm:$0xff]
    %v216 = vld [vmem:[%s1 + $0x5b8] sm:$0xff]
    %v217 = vld [vmem:[%s1 + $0x5c0] sm:$0xff]
    %v218 = vld [vmem:[%s1 + $0x5c8] sm:$0xff]
    %v219 = vld [vmem:[%s1 + $0x5d0] sm:$0xff]
    %v220 = vld [vmem:[%s1 + $0x5d8] sm:$0xff]
    %v221 = vld [vmem:[%s1 + $0x5e0] sm:$0xff]
    %v222 = vld [vmem:[%s1 + $0x5e8] sm:$0xff]
    %v223 = vld [vmem:[%s1 + $0x5f0] sm:$0xff]
    %v224 = vld [vmem:[%s1 + $0x5f8] sm:$0xff]
    %v225 = vld [vmem:[%s1 + $0x600] sm:$0xff]
    %v226 = vld [vmem:[%s1 + $0x608] sm:$0xff]
    %v227 = vld [vmem:[%s1 + $0x610] sm:$0xff]
    %v228 = vld [vmem:[%s1 + $0x618] sm:$0xff]
    %v229 = vld [vmem:[%s1 + $0x620] sm:$0xff]
    %v230 = vld [vmem:[%s1 + $0x628] sm:$0xff]
    %v231 = vld [vmem:[%s1 + $0x630] sm:$0xff]
    %v232 = vld [vmem:[%s1 + $0x638] sm:$0xff]
    %v233 = vld [vmem:[%s1 + $0x640] sm:$0xff]
    %v234 = vld [vmem:[%s1 + $0x648] sm:$0xff]
    %v235 = vld [vmem:[%s1 + $0x650] sm:$0xff]
    %v236 = vld [vmem:[%s1 + $0x658] sm:$0xff]
    %v237 = vld [vmem:[%s1 + $0x660] sm:$0xff]
    %v238 = vld [vmem:[%s1 + $0x668] sm:$0xff]
    %v239 = vld [vmem:[%s1 + $0x670] sm:$0xff]
    %v240 = vld [vmem:[%s1 + $0x678] sm:$0xff]
    %v241 = vld [vmem:[%s1 + $0x680] sm:$0xff]
    %v242 = vld [vmem:[%s1 + $0x688] sm:$0xff]
    %v243 = vld [vmem:[%s1 + $0x690] sm:$0xff]
    %v244 = vld [vmem:[%s1 + $0x698] sm:$0xff]
    %v245 = vld [vmem:[%s1 + $0x6a0] sm:$0xff]
    %v246 = vld [vmem:[%s1 + $0x6a8] sm:$0xff]
    %v247 = vld [vmem:[%s1 + $0x6b0] sm:$0xff]
    %v248 = vld [vmem:[%s1 + $0x6b8] sm:$0xff]
    %v249 = vld [vmem:[%s1 + $0x6c0] sm:$0xff]
    %v250 = vld [vmem:[%s1 + $0x6c8] sm:$0xff]
    %v251 = vld [vmem:[%s1 + $0x6d0] sm:$0xff]
    %v252 = vld [vmem:[%s1 + $0x6d8] sm:$0xff]
    %v253 = vld [vmem:[%s1 + $0x6e0] sm:$0xff]
    %v254 = vld [vmem:[%s1 + $0x6e8] sm:$0xff]
    %v255 = vld [vmem:[%s1 + $0x6f0] sm:$0xff]
    %v256 = vld [vmem:[%s1 + $0x6f8] sm:$0xff]
    %v257 = vld [vmem:[%s1 + $0x700] sm:$0xff]
    %v258 = vld [vmem:[%s1 + $0x708] sm:$0xff]
    %v259 = vld [vmem:[%s1 + $0x710] sm:$0xff]
    %v260 = vld [vmem:[%s1 + $0x718] sm:$0xff]
    %v261 = vld [vmem:[%s1 + $0x720] sm:$0xff]
    %v262 = vld [vmem:[%s1 + $0x728] sm:$0xff]
    %v263 = vld [vmem:[%s1 + $0x730] sm:$0xff]
    %v264 = vld [vmem:[%s1 + $0x738] sm:$0xff]
    %v265 = vld [vmem:[%s1 + $0x740] sm:$0xff]
    %v266 = vld [vmem:[%s1 + $0x748] sm:$0xff]
    %v267 = vld [vmem:[%s1 + $0x750] sm:$0xff]
    %v268 = vld [vmem:[%s1 + $0x758] sm:$0xff]
    %v269 = vld [vmem:[%s1 + $0x760] sm:$0xff]
    %v270 = vld [vmem:[%s1 + $0x768] sm:$0xff]
    %v271 = vld [vmem:[%s1 + $0x770] sm:$0xff]
    %v272 = vld [vmem:[%s1 + $0x778] sm:$0xff]
    %v273 = vld [vmem:[%s1 + $0x780] sm:$0xff]
    %v274 = vld [vmem:[%s1 + $0x788] sm:$0xff]
    %v275 = vld [vmem:[%s1 + $0x790] sm:$0xff]
    %v276 = vld [vmem:[%s1 + $0x798] sm:$0xff]
    %v277 = vld [vmem:[%s1 + $0x7a0] sm:$0xff]
    %v278 = vld [vmem:[%s1 + $0x7a8] sm:$0xff]
    %v279 = vld [vmem:[%s1 + $0x7b0] sm:$0xff]
    %v280 = vld [vmem:[%s1 + $0x7b8] sm:$0xff]
    %v281 = vld [vmem:[%s1 + $0x7c0] sm:$0xff]
    %v282 = vld [vmem:[%s1 + $0x7c8] sm:$0xff]
    %v283 = vld [vmem:[%s1 + $0x7d0] sm:$0xff]
    %v284 = vld [vmem:[%s1 + $0x7d8] sm:$0xff]
    %v285 = vld [vmem:[%s1 + $0x7e0] sm:$0xff]
    %v286 = vld [vmem:[%s1 + $0x7e8] sm:$0xff]
    %v287 = vld [vmem:[%s1 + $0x7f0] sm:$0xff]
    %v288 = vld [vmem:[%s1 + $0x7f8] sm:$0xff]
    %v289 = vld [vmem:[%s2] sm:$0xf]
    %v291 = vlaneseq
    %v292 = vshrl.u32 %v291, 7
    %v293 = vsub.s32 0, %v292
    %v294 = vrot.slane %v289, %v293
    %v295 = vlaneseq
    %v296 = vshrl.u32 %v295, 7
    %v297 = vsub.s32 1, %v296
    %v298 = vrot.slane %v289, %v297
    %v299 = vlaneseq
    %v300 = vshrl.u32 %v299, 7
    %v301 = vsub.s32 2, %v300
    %v302 = vrot.slane %v289, %v301
    %v303 = vlaneseq
    %v304 = vshrl.u32 %v303, 7
    %v305 = vsub.s32 3, %v304
    %v306 = vrot.slane %v289, %v305
    %v312 = vcombine.high %v32, %v32
    %v314 = vunpack.c.l.s4 1966171168
    %v315 = vunpack.c.0.s8 %v314
    %v316 = vlaneseq
    %v317 = vshrl.u32 %v316, 7
    %v318 = vsub.s32 %v315, %v317
    %v319 = vrot.slane %v32, %v318
    %v321 = vunpack.c.l.s4 1966171168
    %v322 = vunpack.c.0.s8 %v321
    %v323 = vlaneseq
    %v324 = vshrl.u32 %v323, 7
    %v325 = vsub.s32 %v322, %v324
    %v326 = vrot.slane %v312, %v325
    %v327 = vcombine.high %v319, %v319
    %v328 = vcombine.high %v326, %v326
    %v330 = vunpack.c.l.s4 1966171168
    %v331 = vunpack.c.0.s8 %v330
    %v332 = vlaneseq
    %v333 = vshrl.u32 %v332, 7
    %v334 = vsub.s32 %v331, %v333
    %v335 = vrot.slane %v319, %v334
    %v337 = vunpack.c.l.s4 1966171168
    %v338 = vunpack.c.0.s8 %v337
    %v339 = vlaneseq
    %v340 = vshrl.u32 %v339, 7
    %v341 = vsub.s32 %v338, %v340
    %v342 = vrot.slane %v326, %v341
    %v344 = vunpack.c.l.s4 1966171168
    %v345 = vunpack.c.0.s8 %v344
    %v346 = vlaneseq
    %v347 = vshrl.u32 %v346, 7
    %v348 = vsub.s32 %v345, %v347
    %v349 = vrot.slane %v327, %v348
    %v351 = vunpack.c.l.s4 1966171168
    %v352 = vunpack.c.0.s8 %v351
    %v353 = vlaneseq
    %v354 = vshrl.u32 %v353, 7
    %v355 = vsub.s32 %v352, %v354
    %v356 = vrot.slane %v328, %v355
    %v357 = vcombine.high %v335, %v335
    %v358 = vcombine.high %v342, %v342
    %v359 = vcombine.high %v349, %v349
    %v360 = vcombine.high %v356, %v356
    %v625 = vunpack.c.l.b16 %v33
    %v626 = vunpack.c.h.b16 %v33
    %v627 = vunpack.c.l.b16 %v34
    %v628 = vunpack.c.h.b16 %v34
    %v629 = vunpack.c.l.b16 %v35
    %v630 = vunpack.c.h.b16 %v35
    %v631 = vunpack.c.l.b16 %v36
    %v632 = vunpack.c.h.b16 %v36
    %v633 = vunpack.c.l.b16 %v37
    %v634 = vunpack.c.h.b16 %v37
    %v635 = vunpack.c.l.b16 %v38
    %v636 = vunpack.c.h.b16 %v38
    %v637 = vunpack.c.l.b16 %v39
    %v638 = vunpack.c.h.b16 %v39
    %v639 = vunpack.c.l.b16 %v40
    %v640 = vunpack.c.h.b16 %v40
    %v641 = vunpack.c.l.b16 %v41
    %v642 = vunpack.c.h.b16 %v41
    %v643 = vunpack.c.l.b16 %v42
    %v644 = vunpack.c.h.b16 %v42
    %v645 = vunpack.c.l.b16 %v43
    %v646 = vunpack.c.h.b16 %v43
    %v647 = vunpack.c.l.b16 %v44
    %v648 = vunpack.c.h.b16 %v44
    %v649 = vunpack.c.l.b16 %v45
    %v650 = vunpack.c.h.b16 %v45
    %v651 = vunpack.c.l.b16 %v46
    %v652 = vunpack.c.h.b16 %v46
    %v653 = vunpack.c.l.b16 %v47
    %v654 = vunpack.c.h.b16 %v47
    %v655 = vunpack.c.l.b16 %v48
    %v656 = vunpack.c.h.b16 %v48
    %v657 = vunpack.c.l.b16 %v49
    %v658 = vunpack.c.h.b16 %v49
    %v659 = vunpack.c.l.b16 %v50
    %v660 = vunpack.c.h.b16 %v50
    %v661 = vunpack.c.l.b16 %v51
    %v662 = vunpack.c.h.b16 %v51
    %v663 = vunpack.c.l.b16 %v52
    %v664 = vunpack.c.h.b16 %v52
    %v665 = vunpack.c.l.b16 %v53
    %v666 = vunpack.c.h.b16 %v53
    %v667 = vunpack.c.l.b16 %v54
    %v668 = vunpack.c.h.b16 %v54
    %v669 = vunpack.c.l.b16 %v55
    %v670 = vunpack.c.h.b16 %v55
    %v671 = vunpack.c.l.b16 %v56
    %v672 = vunpack.c.h.b16 %v56
    %v673 = vunpack.c.l.b16 %v57
    %v674 = vunpack.c.h.b16 %v57
    %v675 = vunpack.c.l.b16 %v58
    %v676 = vunpack.c.h.b16 %v58
    %v677 = vunpack.c.l.b16 %v59
    %v678 = vunpack.c.h.b16 %v59
    %v679 = vunpack.c.l.b16 %v60
    %v680 = vunpack.c.h.b16 %v60
    %v681 = vunpack.c.l.b16 %v61
    %v682 = vunpack.c.h.b16 %v61
    %v683 = vunpack.c.l.b16 %v62
    %v684 = vunpack.c.h.b16 %v62
    %v685 = vunpack.c.l.b16 %v63
    %v686 = vunpack.c.h.b16 %v63
    %v687 = vunpack.c.l.b16 %v64
    %v688 = vunpack.c.h.b16 %v64
    %v689 = vunpack.c.l.b16 %v65
    %v690 = vunpack.c.h.b16 %v65
    %v691 = vunpack.c.l.b16 %v66
    %v692 = vunpack.c.h.b16 %v66
    %v693 = vunpack.c.l.b16 %v67
    %v694 = vunpack.c.h.b16 %v67
    %v695 = vunpack.c.l.b16 %v68
    %v696 = vunpack.c.h.b16 %v68
    %v697 = vunpack.c.l.b16 %v69
    %v698 = vunpack.c.h.b16 %v69
    %v699 = vunpack.c.l.b16 %v70
    %v700 = vunpack.c.h.b16 %v70
    %v701 = vunpack.c.l.b16 %v71
    %v702 = vunpack.c.h.b16 %v71
    %v703 = vunpack.c.l.b16 %v72
    %v704 = vunpack.c.h.b16 %v72
    %v705 = vunpack.c.l.b16 %v73
    %v706 = vunpack.c.h.b16 %v73
    %v707 = vunpack.c.l.b16 %v74
    %v708 = vunpack.c.h.b16 %v74
    %v709 = vunpack.c.l.b16 %v75
    %v710 = vunpack.c.h.b16 %v75
    %v711 = vunpack.c.l.b16 %v76
    %v712 = vunpack.c.h.b16 %v76
    %v713 = vunpack.c.l.b16 %v77
    %v714 = vunpack.c.h.b16 %v77
    %v715 = vunpack.c.l.b16 %v78
    %v716 = vunpack.c.h.b16 %v78
    %v717 = vunpack.c.l.b16 %v79
    %v718 = vunpack.c.h.b16 %v79
    %v719 = vunpack.c.l.b16 %v80
    %v720 = vunpack.c.h.b16 %v80
    %v721 = vunpack.c.l.b16 %v81
    %v722 = vunpack.c.h.b16 %v81
    %v723 = vunpack.c.l.b16 %v82
    %v724 = vunpack.c.h.b16 %v82
    %v725 = vunpack.c.l.b16 %v83
    %v726 = vunpack.c.h.b16 %v83
    %v727 = vunpack.c.l.b16 %v84
    %v728 = vunpack.c.h.b16 %v84
    %v729 = vunpack.c.l.b16 %v85
    %v730 = vunpack.c.h.b16 %v85
    %v731 = vunpack.c.l.b16 %v86
    %v732 = vunpack.c.h.b16 %v86
    %v733 = vunpack.c.l.b16 %v87
    %v734 = vunpack.c.h.b16 %v87
    %v735 = vunpack.c.l.b16 %v88
    %v736 = vunpack.c.h.b16 %v88
    %v737 = vunpack.c.l.b16 %v89
    %v738 = vunpack.c.h.b16 %v89
    %v739 = vunpack.c.l.b16 %v90
    %v740 = vunpack.c.h.b16 %v90
    %v741 = vunpack.c.l.b16 %v91
    %v742 = vunpack.c.h.b16 %v91
    %v743 = vunpack.c.l.b16 %v92
    %v744 = vunpack.c.h.b16 %v92
    %v745 = vunpack.c.l.b16 %v93
    %v746 = vunpack.c.h.b16 %v93
    %v747 = vunpack.c.l.b16 %v94
    %v748 = vunpack.c.h.b16 %v94
    %v749 = vunpack.c.l.b16 %v95
    %v750 = vunpack.c.h.b16 %v95
    %v751 = vunpack.c.l.b16 %v96
    %v752 = vunpack.c.h.b16 %v96
    %v753 = vunpack.c.l.b16 %v97
    %v754 = vunpack.c.h.b16 %v97
    %v755 = vunpack.c.l.b16 %v98
    %v756 = vunpack.c.h.b16 %v98
    %v757 = vunpack.c.l.b16 %v99
    %v758 = vunpack.c.h.b16 %v99
    %v759 = vunpack.c.l.b16 %v100
    %v760 = vunpack.c.h.b16 %v100
    %v761 = vunpack.c.l.b16 %v101
    %v762 = vunpack.c.h.b16 %v101
    %v763 = vunpack.c.l.b16 %v102
    %v764 = vunpack.c.h.b16 %v102
    %v765 = vunpack.c.l.b16 %v103
    %v766 = vunpack.c.h.b16 %v103
    %v767 = vunpack.c.l.b16 %v104
    %v768 = vunpack.c.h.b16 %v104
    %v769 = vunpack.c.l.b16 %v105
    %v770 = vunpack.c.h.b16 %v105
    %v771 = vunpack.c.l.b16 %v106
    %v772 = vunpack.c.h.b16 %v106
    %v773 = vunpack.c.l.b16 %v107
    %v774 = vunpack.c.h.b16 %v107
    %v775 = vunpack.c.l.b16 %v108
    %v776 = vunpack.c.h.b16 %v108
    %v777 = vunpack.c.l.b16 %v109
    %v778 = vunpack.c.h.b16 %v109
    %v779 = vunpack.c.l.b16 %v110
    %v780 = vunpack.c.h.b16 %v110
    %v781 = vunpack.c.l.b16 %v111
    %v782 = vunpack.c.h.b16 %v111
    %v783 = vunpack.c.l.b16 %v112
    %v784 = vunpack.c.h.b16 %v112
    %v785 = vunpack.c.l.b16 %v113
    %v786 = vunpack.c.h.b16 %v113
    %v787 = vunpack.c.l.b16 %v114
    %v788 = vunpack.c.h.b16 %v114
    %v789 = vunpack.c.l.b16 %v115
    %v790 = vunpack.c.h.b16 %v115
    %v791 = vunpack.c.l.b16 %v116
    %v792 = vunpack.c.h.b16 %v116
    %v793 = vunpack.c.l.b16 %v117
    %v794 = vunpack.c.h.b16 %v117
    %v795 = vunpack.c.l.b16 %v118
    %v796 = vunpack.c.h.b16 %v118
    %v797 = vunpack.c.l.b16 %v119
    %v798 = vunpack.c.h.b16 %v119
    %v799 = vunpack.c.l.b16 %v120
    %v800 = vunpack.c.h.b16 %v120
    %v801 = vunpack.c.l.b16 %v121
    %v802 = vunpack.c.h.b16 %v121
    %v803 = vunpack.c.l.b16 %v122
    %v804 = vunpack.c.h.b16 %v122
    %v805 = vunpack.c.l.b16 %v123
    %v806 = vunpack.c.h.b16 %v123
    %v807 = vunpack.c.l.b16 %v124
    %v808 = vunpack.c.h.b16 %v124
    %v809 = vunpack.c.l.b16 %v125
    %v810 = vunpack.c.h.b16 %v125
    %v811 = vunpack.c.l.b16 %v126
    %v812 = vunpack.c.h.b16 %v126
    %v813 = vunpack.c.l.b16 %v127
    %v814 = vunpack.c.h.b16 %v127
    %v815 = vunpack.c.l.b16 %v128
    %v816 = vunpack.c.h.b16 %v128
    %v817 = vunpack.c.l.b16 %v129
    %v818 = vunpack.c.h.b16 %v129
    %v819 = vunpack.c.l.b16 %v130
    %v820 = vunpack.c.h.b16 %v130
    %v821 = vunpack.c.l.b16 %v131
    %v822 = vunpack.c.h.b16 %v131
    %v823 = vunpack.c.l.b16 %v132
    %v824 = vunpack.c.h.b16 %v132
    %v825 = vunpack.c.l.b16 %v133
    %v826 = vunpack.c.h.b16 %v133
    %v827 = vunpack.c.l.b16 %v134
    %v828 = vunpack.c.h.b16 %v134
    %v829 = vunpack.c.l.b16 %v135
    %v830 = vunpack.c.h.b16 %v135
    %v831 = vunpack.c.l.b16 %v136
    %v832 = vunpack.c.h.b16 %v136
    %v833 = vunpack.c.l.b16 %v137
    %v834 = vunpack.c.h.b16 %v137
    %v835 = vunpack.c.l.b16 %v138
    %v836 = vunpack.c.h.b16 %v138
    %v837 = vunpack.c.l.b16 %v139
    %v838 = vunpack.c.h.b16 %v139
    %v839 = vunpack.c.l.b16 %v140
    %v840 = vunpack.c.h.b16 %v140
    %v841 = vunpack.c.l.b16 %v141
    %v842 = vunpack.c.h.b16 %v141
    %v843 = vunpack.c.l.b16 %v142
    %v844 = vunpack.c.h.b16 %v142
    %v845 = vunpack.c.l.b16 %v143
    %v846 = vunpack.c.h.b16 %v143
    %v847 = vunpack.c.l.b16 %v144
    %v848 = vunpack.c.h.b16 %v144
    %v849 = vunpack.c.l.b16 %v145
    %v850 = vunpack.c.h.b16 %v145
    %v851 = vunpack.c.l.b16 %v146
    %v852 = vunpack.c.h.b16 %v146
    %v853 = vunpack.c.l.b16 %v147
    %v854 = vunpack.c.h.b16 %v147
    %v855 = vunpack.c.l.b16 %v148
    %v856 = vunpack.c.h.b16 %v148
    %v857 = vunpack.c.l.b16 %v149
    %v858 = vunpack.c.h.b16 %v149
    %v859 = vunpack.c.l.b16 %v150
    %v860 = vunpack.c.h.b16 %v150
    %v861 = vunpack.c.l.b16 %v151
    %v862 = vunpack.c.h.b16 %v151
    %v863 = vunpack.c.l.b16 %v152
    %v864 = vunpack.c.h.b16 %v152
    %v865 = vunpack.c.l.b16 %v153
    %v866 = vunpack.c.h.b16 %v153
    %v867 = vunpack.c.l.b16 %v154
    %v868 = vunpack.c.h.b16 %v154
    %v869 = vunpack.c.l.b16 %v155
    %v870 = vunpack.c.h.b16 %v155
    %v871 = vunpack.c.l.b16 %v156
    %v872 = vunpack.c.h.b16 %v156
    %v873 = vunpack.c.l.b16 %v157
    %v874 = vunpack.c.h.b16 %v157
    %v875 = vunpack.c.l.b16 %v158
    %v876 = vunpack.c.h.b16 %v158
    %v877 = vunpack.c.l.b16 %v159
    %v878 = vunpack.c.h.b16 %v159
    %v879 = vunpack.c.l.b16 %v160
    %v880 = vunpack.c.h.b16 %v160
    %v881 = vunpack.c.l.b16 %v161
    %v882 = vunpack.c.h.b16 %v161
    %v883 = vunpack.c.l.b16 %v162
    %v884 = vunpack.c.h.b16 %v162
    %v885 = vunpack.c.l.b16 %v163
    %v886 = vunpack.c.h.b16 %v163
    %v887 = vunpack.c.l.b16 %v164
    %v888 = vunpack.c.h.b16 %v164
    %v889 = vunpack.c.l.b16 %v165
    %v890 = vunpack.c.h.b16 %v165
    %v891 = vunpack.c.l.b16 %v166
    %v892 = vunpack.c.h.b16 %v166
    %v893 = vunpack.c.l.b16 %v167
    %v894 = vunpack.c.h.b16 %v167
    %v895 = vunpack.c.l.b16 %v168
    %v896 = vunpack.c.h.b16 %v168
    %v897 = vunpack.c.l.b16 %v169
    %v898 = vunpack.c.h.b16 %v169
    %v899 = vunpack.c.l.b16 %v170
    %v900 = vunpack.c.h.b16 %v170
    %v901 = vunpack.c.l.b16 %v171
    %v902 = vunpack.c.h.b16 %v171
    %v903 = vunpack.c.l.b16 %v172
    %v904 = vunpack.c.h.b16 %v172
    %v905 = vunpack.c.l.b16 %v173
    %v906 = vunpack.c.h.b16 %v173
    %v907 = vunpack.c.l.b16 %v174
    %v908 = vunpack.c.h.b16 %v174
    %v909 = vunpack.c.l.b16 %v175
    %v910 = vunpack.c.h.b16 %v175
    %v911 = vunpack.c.l.b16 %v176
    %v912 = vunpack.c.h.b16 %v176
    %v913 = vunpack.c.l.b16 %v177
    %v914 = vunpack.c.h.b16 %v177
    %v915 = vunpack.c.l.b16 %v178
    %v916 = vunpack.c.h.b16 %v178
    %v917 = vunpack.c.l.b16 %v179
    %v918 = vunpack.c.h.b16 %v179
    %v919 = vunpack.c.l.b16 %v180
    %v920 = vunpack.c.h.b16 %v180
    %v921 = vunpack.c.l.b16 %v181
    %v922 = vunpack.c.h.b16 %v181
    %v923 = vunpack.c.l.b16 %v182
    %v924 = vunpack.c.h.b16 %v182
    %v925 = vunpack.c.l.b16 %v183
    %v926 = vunpack.c.h.b16 %v183
    %v927 = vunpack.c.l.b16 %v184
    %v928 = vunpack.c.h.b16 %v184
    %v929 = vunpack.c.l.b16 %v185
    %v930 = vunpack.c.h.b16 %v185
    %v931 = vunpack.c.l.b16 %v186
    %v932 = vunpack.c.h.b16 %v186
    %v933 = vunpack.c.l.b16 %v187
    %v934 = vunpack.c.h.b16 %v187
    %v935 = vunpack.c.l.b16 %v188
    %v936 = vunpack.c.h.b16 %v188
    %v937 = vunpack.c.l.b16 %v189
    %v938 = vunpack.c.h.b16 %v189
    %v939 = vunpack.c.l.b16 %v190
    %v940 = vunpack.c.h.b16 %v190
    %v941 = vunpack.c.l.b16 %v191
    %v942 = vunpack.c.h.b16 %v191
    %v943 = vunpack.c.l.b16 %v192
    %v944 = vunpack.c.h.b16 %v192
    %v945 = vunpack.c.l.b16 %v193
    %v946 = vunpack.c.h.b16 %v193
    %v947 = vunpack.c.l.b16 %v194
    %v948 = vunpack.c.h.b16 %v194
    %v949 = vunpack.c.l.b16 %v195
    %v950 = vunpack.c.h.b16 %v195
    %v951 = vunpack.c.l.b16 %v196
    %v952 = vunpack.c.h.b16 %v196
    %v953 = vunpack.c.l.b16 %v197
    %v954 = vunpack.c.h.b16 %v197
    %v955 = vunpack.c.l.b16 %v198
    %v956 = vunpack.c.h.b16 %v198
    %v957 = vunpack.c.l.b16 %v199
    %v958 = vunpack.c.h.b16 %v199
    %v959 = vunpack.c.l.b16 %v200
    %v960 = vunpack.c.h.b16 %v200
    %v961 = vunpack.c.l.b16 %v201
    %v962 = vunpack.c.h.b16 %v201
    %v963 = vunpack.c.l.b16 %v202
    %v964 = vunpack.c.h.b16 %v202
    %v965 = vunpack.c.l.b16 %v203
    %v966 = vunpack.c.h.b16 %v203
    %v967 = vunpack.c.l.b16 %v204
    %v968 = vunpack.c.h.b16 %v204
    %v969 = vunpack.c.l.b16 %v205
    %v970 = vunpack.c.h.b16 %v205
    %v971 = vunpack.c.l.b16 %v206
    %v972 = vunpack.c.h.b16 %v206
    %v973 = vunpack.c.l.b16 %v207
    %v974 = vunpack.c.h.b16 %v207
    %v975 = vunpack.c.l.b16 %v208
    %v976 = vunpack.c.h.b16 %v208
    %v977 = vunpack.c.l.b16 %v209
    %v978 = vunpack.c.h.b16 %v209
    %v979 = vunpack.c.l.b16 %v210
    %v980 = vunpack.c.h.b16 %v210
    %v981 = vunpack.c.l.b16 %v211
    %v982 = vunpack.c.h.b16 %v211
    %v983 = vunpack.c.l.b16 %v212
    %v984 = vunpack.c.h.b16 %v212
    %v985 = vunpack.c.l.b16 %v213
    %v986 = vunpack.c.h.b16 %v213
    %v987 = vunpack.c.l.b16 %v214
    %v988 = vunpack.c.h.b16 %v214
    %v989 = vunpack.c.l.b16 %v215
    %v990 = vunpack.c.h.b16 %v215
    %v991 = vunpack.c.l.b16 %v216
    %v992 = vunpack.c.h.b16 %v216
    %v993 = vunpack.c.l.b16 %v217
    %v994 = vunpack.c.h.b16 %v217
    %v995 = vunpack.c.l.b16 %v218
    %v996 = vunpack.c.h.b16 %v218
    %v997 = vunpack.c.l.b16 %v219
    %v998 = vunpack.c.h.b16 %v219
    %v999 = vunpack.c.l.b16 %v220
    %v1000 = vunpack.c.h.b16 %v220
    %v1001 = vunpack.c.l.b16 %v221
    %v1002 = vunpack.c.h.b16 %v221
    %v1003 = vunpack.c.l.b16 %v222
    %v1004 = vunpack.c.h.b16 %v222
    %v1005 = vunpack.c.l.b16 %v223
    %v1006 = vunpack.c.h.b16 %v223
    %v1007 = vunpack.c.l.b16 %v224
    %v1008 = vunpack.c.h.b16 %v224
    %v1009 = vunpack.c.l.b16 %v225
    %v1010 = vunpack.c.h.b16 %v225
    %v1011 = vunpack.c.l.b16 %v226
    %v1012 = vunpack.c.h.b16 %v226
    %v1013 = vunpack.c.l.b16 %v227
    %v1014 = vunpack.c.h.b16 %v227
    %v1015 = vunpack.c.l.b16 %v228
    %v1016 = vunpack.c.h.b16 %v228
    %v1017 = vunpack.c.l.b16 %v229
    %v1018 = vunpack.c.h.b16 %v229
    %v1019 = vunpack.c.l.b16 %v230
    %v1020 = vunpack.c.h.b16 %v230
    %v1021 = vunpack.c.l.b16 %v231
    %v1022 = vunpack.c.h.b16 %v231
    %v1023 = vunpack.c.l.b16 %v232
    %v1024 = vunpack.c.h.b16 %v232
    %v1025 = vunpack.c.l.b16 %v233
    %v1026 = vunpack.c.h.b16 %v233
    %v1027 = vunpack.c.l.b16 %v234
    %v1028 = vunpack.c.h.b16 %v234
    %v1029 = vunpack.c.l.b16 %v235
    %v1030 = vunpack.c.h.b16 %v235
    %v1031 = vunpack.c.l.b16 %v236
    %v1032 = vunpack.c.h.b16 %v236
    %v1033 = vunpack.c.l.b16 %v237
    %v1034 = vunpack.c.h.b16 %v237
    %v1035 = vunpack.c.l.b16 %v238
    %v1036 = vunpack.c.h.b16 %v238
    %v1037 = vunpack.c.l.b16 %v239
    %v1038 = vunpack.c.h.b16 %v239
    %v1039 = vunpack.c.l.b16 %v240
    %v1040 = vunpack.c.h.b16 %v240
    %v1041 = vunpack.c.l.b16 %v241
    %v1042 = vunpack.c.h.b16 %v241
    %v1043 = vunpack.c.l.b16 %v242
    %v1044 = vunpack.c.h.b16 %v242
    %v1045 = vunpack.c.l.b16 %v243
    %v1046 = vunpack.c.h.b16 %v243
    %v1047 = vunpack.c.l.b16 %v244
    %v1048 = vunpack.c.h.b16 %v244
    %v1049 = vunpack.c.l.b16 %v245
    %v1050 = vunpack.c.h.b16 %v245
    %v1051 = vunpack.c.l.b16 %v246
    %v1052 = vunpack.c.h.b16 %v246
    %v1053 = vunpack.c.l.b16 %v247
    %v1054 = vunpack.c.h.b16 %v247
    %v1055 = vunpack.c.l.b16 %v248
    %v1056 = vunpack.c.h.b16 %v248
    %v1057 = vunpack.c.l.b16 %v249
    %v1058 = vunpack.c.h.b16 %v249
    %v1059 = vunpack.c.l.b16 %v250
    %v1060 = vunpack.c.h.b16 %v250
    %v1061 = vunpack.c.l.b16 %v251
    %v1062 = vunpack.c.h.b16 %v251
    %v1063 = vunpack.c.l.b16 %v252
    %v1064 = vunpack.c.h.b16 %v252
    %v1065 = vunpack.c.l.b16 %v253
    %v1066 = vunpack.c.h.b16 %v253
    %v1067 = vunpack.c.l.b16 %v254
    %v1068 = vunpack.c.h.b16 %v254
    %v1069 = vunpack.c.l.b16 %v255
    %v1070 = vunpack.c.h.b16 %v255
    %v1071 = vunpack.c.l.b16 %v256
    %v1072 = vunpack.c.h.b16 %v256
    %v1073 = vunpack.c.l.b16 %v257
    %v1074 = vunpack.c.h.b16 %v257
    %v1075 = vunpack.c.l.b16 %v258
    %v1076 = vunpack.c.h.b16 %v258
    %v1077 = vunpack.c.l.b16 %v259
    %v1078 = vunpack.c.h.b16 %v259
    %v1079 = vunpack.c.l.b16 %v260
    %v1080 = vunpack.c.h.b16 %v260
    %v1081 = vunpack.c.l.b16 %v261
    %v1082 = vunpack.c.h.b16 %v261
    %v1083 = vunpack.c.l.b16 %v262
    %v1084 = vunpack.c.h.b16 %v262
    %v1085 = vunpack.c.l.b16 %v263
    %v1086 = vunpack.c.h.b16 %v263
    %v1087 = vunpack.c.l.b16 %v264
    %v1088 = vunpack.c.h.b16 %v264
    %v1089 = vunpack.c.l.b16 %v265
    %v1090 = vunpack.c.h.b16 %v265
    %v1091 = vunpack.c.l.b16 %v266
    %v1092 = vunpack.c.h.b16 %v266
    %v1093 = vunpack.c.l.b16 %v267
    %v1094 = vunpack.c.h.b16 %v267
    %v1095 = vunpack.c.l.b16 %v268
    %v1096 = vunpack.c.h.b16 %v268
    %v1097 = vunpack.c.l.b16 %v269
    %v1098 = vunpack.c.h.b16 %v269
    %v1099 = vunpack.c.l.b16 %v270
    %v1100 = vunpack.c.h.b16 %v270
    %v1101 = vunpack.c.l.b16 %v271
    %v1102 = vunpack.c.h.b16 %v271
    %v1103 = vunpack.c.l.b16 %v272
    %v1104 = vunpack.c.h.b16 %v272
    %v1105 = vunpack.c.l.b16 %v273
    %v1106 = vunpack.c.h.b16 %v273
    %v1107 = vunpack.c.l.b16 %v274
    %v1108 = vunpack.c.h.b16 %v274
    %v1109 = vunpack.c.l.b16 %v275
    %v1110 = vunpack.c.h.b16 %v275
    %v1111 = vunpack.c.l.b16 %v276
    %v1112 = vunpack.c.h.b16 %v276
    %v1113 = vunpack.c.l.b16 %v277
    %v1114 = vunpack.c.h.b16 %v277
    %v1115 = vunpack.c.l.b16 %v278
    %v1116 = vunpack.c.h.b16 %v278
    %v1117 = vunpack.c.l.b16 %v279
    %v1118 = vunpack.c.h.b16 %v279
    %v1119 = vunpack.c.l.b16 %v280
    %v1120 = vunpack.c.h.b16 %v280
    %v1121 = vunpack.c.l.b16 %v281
    %v1122 = vunpack.c.h.b16 %v281
    %v1123 = vunpack.c.l.b16 %v282
    %v1124 = vunpack.c.h.b16 %v282
    %v1125 = vunpack.c.l.b16 %v283
    %v1126 = vunpack.c.h.b16 %v283
    %v1127 = vunpack.c.l.b16 %v284
    %v1128 = vunpack.c.h.b16 %v284
    %v1129 = vunpack.c.l.b16 %v285
    %v1130 = vunpack.c.h.b16 %v285
    %v1131 = vunpack.c.l.b16 %v286
    %v1132 = vunpack.c.h.b16 %v286
    %v1133 = vunpack.c.l.b16 %v287
    %v1134 = vunpack.c.h.b16 %v287
    %v1135 = vunpack.c.l.b16 %v288
    %v1136 = vunpack.c.h.b16 %v288
    %v1137 = vpack.c.b16 %v629, %v625
    %v1138 = vpack.c.b16 %v630, %v626
    %v1139 = vpack.c.b16 %v631, %v627
    %v1140 = vpack.c.b16 %v632, %v628
    %v1141 = vpack.c.b16 %v637, %v633
    %v1142 = vpack.c.b16 %v638, %v634
    %v1143 = vpack.c.b16 %v639, %v635
    %v1144 = vpack.c.b16 %v640, %v636
    %v1145 = vpack.c.b16 %v645, %v641
    %v1146 = vpack.c.b16 %v646, %v642
    %v1147 = vpack.c.b16 %v647, %v643
    %v1148 = vpack.c.b16 %v648, %v644
    %v1149 = vpack.c.b16 %v653, %v649
    %v1150 = vpack.c.b16 %v654, %v650
    %v1151 = vpack.c.b16 %v655, %v651
    %v1152 = vpack.c.b16 %v656, %v652
    %v1153 = vpack.c.b16 %v661, %v657
    %v1154 = vpack.c.b16 %v662, %v658
    %v1155 = vpack.c.b16 %v663, %v659
    %v1156 = vpack.c.b16 %v664, %v660
    %v1157 = vpack.c.b16 %v669, %v665
    %v1158 = vpack.c.b16 %v670, %v666
    %v1159 = vpack.c.b16 %v671, %v667
    %v1160 = vpack.c.b16 %v672, %v668
    %v1161 = vpack.c.b16 %v677, %v673
    %v1162 = vpack.c.b16 %v678, %v674
    %v1163 = vpack.c.b16 %v679, %v675
    %v1164 = vpack.c.b16 %v680, %v676
    %v1165 = vpack.c.b16 %v685, %v681
    %v1166 = vpack.c.b16 %v686, %v682
    %v1167 = vpack.c.b16 %v687, %v683
    %v1168 = vpack.c.b16 %v688, %v684
    %v1169 = vpack.c.b16 %v693, %v689
    %v1170 = vpack.c.b16 %v694, %v690
    %v1171 = vpack.c.b16 %v695, %v691
    %v1172 = vpack.c.b16 %v696, %v692
    %v1173 = vpack.c.b16 %v701, %v697
    %v1174 = vpack.c.b16 %v702, %v698
    %v1175 = vpack.c.b16 %v703, %v699
    %v1176 = vpack.c.b16 %v704, %v700
    %v1177 = vpack.c.b16 %v709, %v705
    %v1178 = vpack.c.b16 %v710, %v706
    %v1179 = vpack.c.b16 %v711, %v707
    %v1180 = vpack.c.b16 %v712, %v708
    %v1181 = vpack.c.b16 %v717, %v713
    %v1182 = vpack.c.b16 %v718, %v714
    %v1183 = vpack.c.b16 %v719, %v715
    %v1184 = vpack.c.b16 %v720, %v716
    %v1185 = vpack.c.b16 %v725, %v721
    %v1186 = vpack.c.b16 %v726, %v722
    %v1187 = vpack.c.b16 %v727, %v723
    %v1188 = vpack.c.b16 %v728, %v724
    %v1189 = vpack.c.b16 %v733, %v729
    %v1190 = vpack.c.b16 %v734, %v730
    %v1191 = vpack.c.b16 %v735, %v731
    %v1192 = vpack.c.b16 %v736, %v732
    %v1193 = vpack.c.b16 %v741, %v737
    %v1194 = vpack.c.b16 %v742, %v738
    %v1195 = vpack.c.b16 %v743, %v739
    %v1196 = vpack.c.b16 %v744, %v740
    %v1197 = vpack.c.b16 %v749, %v745
    %v1198 = vpack.c.b16 %v750, %v746
    %v1199 = vpack.c.b16 %v751, %v747
    %v1200 = vpack.c.b16 %v752, %v748
    %v1201 = vpack.c.b16 %v757, %v753
    %v1202 = vpack.c.b16 %v758, %v754
    %v1203 = vpack.c.b16 %v759, %v755
    %v1204 = vpack.c.b16 %v760, %v756
    %v1205 = vpack.c.b16 %v765, %v761
    %v1206 = vpack.c.b16 %v766, %v762
    %v1207 = vpack.c.b16 %v767, %v763
    %v1208 = vpack.c.b16 %v768, %v764
    %v1209 = vpack.c.b16 %v773, %v769
    %v1210 = vpack.c.b16 %v774, %v770
    %v1211 = vpack.c.b16 %v775, %v771
    %v1212 = vpack.c.b16 %v776, %v772
    %v1213 = vpack.c.b16 %v781, %v777
    %v1214 = vpack.c.b16 %v782, %v778
    %v1215 = vpack.c.b16 %v783, %v779
    %v1216 = vpack.c.b16 %v784, %v780
    %v1217 = vpack.c.b16 %v789, %v785
    %v1218 = vpack.c.b16 %v790, %v786
    %v1219 = vpack.c.b16 %v791, %v787
    %v1220 = vpack.c.b16 %v792, %v788
    %v1221 = vpack.c.b16 %v797, %v793
    %v1222 = vpack.c.b16 %v798, %v794
    %v1223 = vpack.c.b16 %v799, %v795
    %v1224 = vpack.c.b16 %v800, %v796
    %v1225 = vpack.c.b16 %v805, %v801
    %v1226 = vpack.c.b16 %v806, %v802
    %v1227 = vpack.c.b16 %v807, %v803
    %v1228 = vpack.c.b16 %v808, %v804
    %v1229 = vpack.c.b16 %v813, %v809
    %v1230 = vpack.c.b16 %v814, %v810
    %v1231 = vpack.c.b16 %v815, %v811
    %v1232 = vpack.c.b16 %v816, %v812
    %v1233 = vpack.c.b16 %v821, %v817
    %v1234 = vpack.c.b16 %v822, %v818
    %v1235 = vpack.c.b16 %v823, %v819
    %v1236 = vpack.c.b16 %v824, %v820
    %v1237 = vpack.c.b16 %v829, %v825
    %v1238 = vpack.c.b16 %v830, %v826
    %v1239 = vpack.c.b16 %v831, %v827
    %v1240 = vpack.c.b16 %v832, %v828
    %v1241 = vpack.c.b16 %v837, %v833
    %v1242 = vpack.c.b16 %v838, %v834
    %v1243 = vpack.c.b16 %v839, %v835
    %v1244 = vpack.c.b16 %v840, %v836
    %v1245 = vpack.c.b16 %v845, %v841
    %v1246 = vpack.c.b16 %v846, %v842
    %v1247 = vpack.c.b16 %v847, %v843
    %v1248 = vpack.c.b16 %v848, %v844
    %v1249 = vpack.c.b16 %v853, %v849
    %v1250 = vpack.c.b16 %v854, %v850
    %v1251 = vpack.c.b16 %v855, %v851
    %v1252 = vpack.c.b16 %v856, %v852
    %v1253 = vpack.c.b16 %v861, %v857
    %v1254 = vpack.c.b16 %v862, %v858
    %v1255 = vpack.c.b16 %v863, %v859
    %v1256 = vpack.c.b16 %v864, %v860
    %v1257 = vpack.c.b16 %v869, %v865
    %v1258 = vpack.c.b16 %v870, %v866
    %v1259 = vpack.c.b16 %v871, %v867
    %v1260 = vpack.c.b16 %v872, %v868
    %v1261 = vpack.c.b16 %v877, %v873
    %v1262 = vpack.c.b16 %v878, %v874
    %v1263 = vpack.c.b16 %v879, %v875
    %v1264 = vpack.c.b16 %v880, %v876
    %v1265 = vpack.c.b16 %v885, %v881
    %v1266 = vpack.c.b16 %v886, %v882
    %v1267 = vpack.c.b16 %v887, %v883
    %v1268 = vpack.c.b16 %v888, %v884
    %v1269 = vpack.c.b16 %v893, %v889
    %v1270 = vpack.c.b16 %v894, %v890
    %v1271 = vpack.c.b16 %v895, %v891
    %v1272 = vpack.c.b16 %v896, %v892
    %v1273 = vpack.c.b16 %v901, %v897
    %v1274 = vpack.c.b16 %v902, %v898
    %v1275 = vpack.c.b16 %v903, %v899
    %v1276 = vpack.c.b16 %v904, %v900
    %v1277 = vpack.c.b16 %v909, %v905
    %v1278 = vpack.c.b16 %v910, %v906
    %v1279 = vpack.c.b16 %v911, %v907
    %v1280 = vpack.c.b16 %v912, %v908
    %v1281 = vpack.c.b16 %v917, %v913
    %v1282 = vpack.c.b16 %v918, %v914
    %v1283 = vpack.c.b16 %v919, %v915
    %v1284 = vpack.c.b16 %v920, %v916
    %v1285 = vpack.c.b16 %v925, %v921
    %v1286 = vpack.c.b16 %v926, %v922
    %v1287 = vpack.c.b16 %v927, %v923
    %v1288 = vpack.c.b16 %v928, %v924
    %v1289 = vpack.c.b16 %v933, %v929
    %v1290 = vpack.c.b16 %v934, %v930
    %v1291 = vpack.c.b16 %v935, %v931
    %v1292 = vpack.c.b16 %v936, %v932
    %v1293 = vpack.c.b16 %v941, %v937
    %v1294 = vpack.c.b16 %v942, %v938
    %v1295 = vpack.c.b16 %v943, %v939
    %v1296 = vpack.c.b16 %v944, %v940
    %v1297 = vpack.c.b16 %v949, %v945
    %v1298 = vpack.c.b16 %v950, %v946
    %v1299 = vpack.c.b16 %v951, %v947
    %v1300 = vpack.c.b16 %v952, %v948
    %v1301 = vpack.c.b16 %v957, %v953
    %v1302 = vpack.c.b16 %v958, %v954
    %v1303 = vpack.c.b16 %v959, %v955
    %v1304 = vpack.c.b16 %v960, %v956
    %v1305 = vpack.c.b16 %v965, %v961
    %v1306 = vpack.c.b16 %v966, %v962
    %v1307 = vpack.c.b16 %v967, %v963
    %v1308 = vpack.c.b16 %v968, %v964
    %v1309 = vpack.c.b16 %v973, %v969
    %v1310 = vpack.c.b16 %v974, %v970
    %v1311 = vpack.c.b16 %v975, %v971
    %v1312 = vpack.c.b16 %v976, %v972
    %v1313 = vpack.c.b16 %v981, %v977
    %v1314 = vpack.c.b16 %v982, %v978
    %v1315 = vpack.c.b16 %v983, %v979
    %v1316 = vpack.c.b16 %v984, %v980
    %v1317 = vpack.c.b16 %v989, %v985
    %v1318 = vpack.c.b16 %v990, %v986
    %v1319 = vpack.c.b16 %v991, %v987
    %v1320 = vpack.c.b16 %v992, %v988
    %v1321 = vpack.c.b16 %v997, %v993
    %v1322 = vpack.c.b16 %v998, %v994
    %v1323 = vpack.c.b16 %v999, %v995
    %v1324 = vpack.c.b16 %v1000, %v996
    %v1325 = vpack.c.b16 %v1005, %v1001
    %v1326 = vpack.c.b16 %v1006, %v1002
    %v1327 = vpack.c.b16 %v1007, %v1003
    %v1328 = vpack.c.b16 %v1008, %v1004
    %v1329 = vpack.c.b16 %v1013, %v1009
    %v1330 = vpack.c.b16 %v1014, %v1010
    %v1331 = vpack.c.b16 %v1015, %v1011
    %v1332 = vpack.c.b16 %v1016, %v1012
    %v1333 = vpack.c.b16 %v1021, %v1017
    %v1334 = vpack.c.b16 %v1022, %v1018
    %v1335 = vpack.c.b16 %v1023, %v1019
    %v1336 = vpack.c.b16 %v1024, %v1020
    %v1337 = vpack.c.b16 %v1029, %v1025
    %v1338 = vpack.c.b16 %v1030, %v1026
    %v1339 = vpack.c.b16 %v1031, %v1027
    %v1340 = vpack.c.b16 %v1032, %v1028
    %v1341 = vpack.c.b16 %v1037, %v1033
    %v1342 = vpack.c.b16 %v1038, %v1034
    %v1343 = vpack.c.b16 %v1039, %v1035
    %v1344 = vpack.c.b16 %v1040, %v1036
    %v1345 = vpack.c.b16 %v1045, %v1041
    %v1346 = vpack.c.b16 %v1046, %v1042
    %v1347 = vpack.c.b16 %v1047, %v1043
    %v1348 = vpack.c.b16 %v1048, %v1044
    %v1349 = vpack.c.b16 %v1053, %v1049
    %v1350 = vpack.c.b16 %v1054, %v1050
    %v1351 = vpack.c.b16 %v1055, %v1051
    %v1352 = vpack.c.b16 %v1056, %v1052
    %v1353 = vpack.c.b16 %v1061, %v1057
    %v1354 = vpack.c.b16 %v1062, %v1058
    %v1355 = vpack.c.b16 %v1063, %v1059
    %v1356 = vpack.c.b16 %v1064, %v1060
    %v1357 = vpack.c.b16 %v1069, %v1065
    %v1358 = vpack.c.b16 %v1070, %v1066
    %v1359 = vpack.c.b16 %v1071, %v1067
    %v1360 = vpack.c.b16 %v1072, %v1068
    %v1361 = vpack.c.b16 %v1077, %v1073
    %v1362 = vpack.c.b16 %v1078, %v1074
    %v1363 = vpack.c.b16 %v1079, %v1075
    %v1364 = vpack.c.b16 %v1080, %v1076
    %v1365 = vpack.c.b16 %v1085, %v1081
    %v1366 = vpack.c.b16 %v1086, %v1082
    %v1367 = vpack.c.b16 %v1087, %v1083
    %v1368 = vpack.c.b16 %v1088, %v1084
    %v1369 = vpack.c.b16 %v1093, %v1089
    %v1370 = vpack.c.b16 %v1094, %v1090
    %v1371 = vpack.c.b16 %v1095, %v1091
    %v1372 = vpack.c.b16 %v1096, %v1092
    %v1373 = vpack.c.b16 %v1101, %v1097
    %v1374 = vpack.c.b16 %v1102, %v1098
    %v1375 = vpack.c.b16 %v1103, %v1099
    %v1376 = vpack.c.b16 %v1104, %v1100
    %v1377 = vpack.c.b16 %v1109, %v1105
    %v1378 = vpack.c.b16 %v1110, %v1106
    %v1379 = vpack.c.b16 %v1111, %v1107
    %v1380 = vpack.c.b16 %v1112, %v1108
    %v1381 = vpack.c.b16 %v1117, %v1113
    %v1382 = vpack.c.b16 %v1118, %v1114
    %v1383 = vpack.c.b16 %v1119, %v1115
    %v1384 = vpack.c.b16 %v1120, %v1116
    %v1385 = vpack.c.b16 %v1125, %v1121
    %v1386 = vpack.c.b16 %v1126, %v1122
    %v1387 = vpack.c.b16 %v1127, %v1123
    %v1388 = vpack.c.b16 %v1128, %v1124
    %v1389 = vpack.c.b16 %v1133, %v1129
    %v1390 = vpack.c.b16 %v1134, %v1130
    %v1391 = vpack.c.b16 %v1135, %v1131
    %v1392 = vpack.c.b16 %v1136, %v1132
    %1649 = vmatprep.subr.bf16.mxu0 %v1166
    %1650 = vmatpush1.bf16.msra.mxu0 %v1165
    %1651 = vmatprep.subr.bf16.mxu0 %v1162
    %1652 = vmatpush1.bf16.msra.mxu0 %v1161
    %1653 = vmatprep.subr.bf16.mxu0 %v1158
    %1654 = vmatpush1.bf16.msra.mxu0 %v1157
    %1655 = vmatprep.subr.bf16.mxu0 %v1154
    %1656 = vmatpush1.bf16.msra.mxu0 %v1153
    %1657 = vmatprep.subr.bf16.mxu0 %v1150
    %1658 = vmatpush1.bf16.msra.mxu0 %v1149
    %1659 = vmatprep.subr.bf16.mxu0 %v1146
    %1660 = vmatpush1.bf16.msra.mxu0 %v1145
    %1661 = vmatprep.subr.bf16.mxu0 %v1142
    %1662 = vmatpush1.bf16.msra.mxu0 %v1141
    %1663 = vmatprep.subr.bf16.mxu0 %v1138
    %1664 = vmatpush1.bf16.msra.mxu0 %v1137
    %1665 = vmatprep.subr.bf16.mxu0 %v1198
    %1666 = vmatpush2.bf16.msra.mxu0 %v1197
    %1667 = vmatprep.subr.bf16.mxu0 %v1194
    %1668 = vmatpush2.bf16.msra.mxu0 %v1193
    %1669 = vmatprep.subr.bf16.mxu0 %v1190
    %1670 = vmatpush2.bf16.msra.mxu0 %v1189
    %1671 = vmatprep.subr.bf16.mxu0 %v1186
    %1672 = vmatpush2.bf16.msra.mxu0 %v1185
    %1673 = vmatprep.subr.bf16.mxu0 %v1182
    %1674 = vmatpush2.bf16.msra.mxu0 %v1181
    %1675 = vmatprep.subr.bf16.mxu0 %v1178
    %1676 = vmatpush2.bf16.msra.mxu0 %v1177
    %1677 = vmatprep.subr.bf16.mxu0 %v1174
    %1678 = vmatpush2.bf16.msra.mxu0 %v1173
    %1679 = vmatprep.subr.bf16.mxu0 %v1170
    %1680 = vmatpush2.bf16.msra.mxu0 %v1169
    %1681 = vmatprep.mubr.bf16.mxu0 %v349
    %1682 = vmatmul.mubr.bf16.gmra.mxu0 %v335
    %v1683 = vpop.f32.mrf.mxu0
    %v1684 = vadd.f32 %v294, %v1683
    %v1685 = vpop.f32.mrf.mxu0
    %v1686 = vadd.f32 %v298, %v1685
    %v1687 = vpop.f32.mrf.mxu0
    %v1688 = vpop.f32.mrf.mxu0
    %1689 = vdwg.mxu0
    %1690 = vmatprep.subr.bf16.mxu0 %v1230
    %1691 = vmatpush1.bf16.msra.mxu0 %v1229
    %1692 = vmatprep.subr.bf16.mxu0 %v1226
    %1693 = vmatpush1.bf16.msra.mxu0 %v1225
    %1694 = vmatprep.subr.bf16.mxu0 %v1222
    %1695 = vmatpush1.bf16.msra.mxu0 %v1221
    %1696 = vmatprep.subr.bf16.mxu0 %v1218
    %1697 = vmatpush1.bf16.msra.mxu0 %v1217
    %1698 = vmatprep.subr.bf16.mxu0 %v1214
    %1699 = vmatpush1.bf16.msra.mxu0 %v1213
    %1700 = vmatprep.subr.bf16.mxu0 %v1210
    %1701 = vmatpush1.bf16.msra.mxu0 %v1209
    %1702 = vmatprep.subr.bf16.mxu0 %v1206
    %1703 = vmatpush1.bf16.msra.mxu0 %v1205
    %1704 = vmatprep.subr.bf16.mxu0 %v1202
    %1705 = vmatpush1.bf16.msra.mxu0 %v1201
    %1706 = vmatprep.subr.bf16.mxu0 %v1262
    %1707 = vmatpush2.bf16.msra.mxu0 %v1261
    %1708 = vmatprep.subr.bf16.mxu0 %v1258
    %1709 = vmatpush2.bf16.msra.mxu0 %v1257
    %1710 = vmatprep.subr.bf16.mxu0 %v1254
    %1711 = vmatpush2.bf16.msra.mxu0 %v1253
    %1712 = vmatprep.subr.bf16.mxu0 %v1250
    %1713 = vmatpush2.bf16.msra.mxu0 %v1249
    %1714 = vmatprep.subr.bf16.mxu0 %v1246
    %1715 = vmatpush2.bf16.msra.mxu0 %v1245
    %1716 = vmatprep.subr.bf16.mxu0 %v1242
    %1717 = vmatpush2.bf16.msra.mxu0 %v1241
    %1718 = vmatprep.subr.bf16.mxu0 %v1238
    %1719 = vmatpush2.bf16.msra.mxu0 %v1237
    %1720 = vmatprep.subr.bf16.mxu0 %v1234
    %1721 = vmatpush2.bf16.msra.mxu0 %v1233
    %1722 = vmatprep.mubr.bf16.mxu0 %v359
    %1723 = vmatmul.mubr.bf16.gmra.mxu0 %v357
    %v1724 = vpop.f32.mrf.mxu0
    %v1725 = vadd.f32 %v1684, %v1724
    %v1726 = vpop.f32.mrf.mxu0
    %v1727 = vadd.f32 %v1686, %v1726
    %v1728 = vpop.f32.mrf.mxu0
    %v1729 = vpop.f32.mrf.mxu0
    %1730 = vdwg.mxu0
    %1731 = vmatprep.subr.bf16.mxu0 %v1294
    %1732 = vmatpush1.bf16.msra.mxu0 %v1293
    %1733 = vmatprep.subr.bf16.mxu0 %v1290
    %1734 = vmatpush1.bf16.msra.mxu0 %v1289
    %1735 = vmatprep.subr.bf16.mxu0 %v1286
    %1736 = vmatpush1.bf16.msra.mxu0 %v1285
    %1737 = vmatprep.subr.bf16.mxu0 %v1282
    %1738 = vmatpush1.bf16.msra.mxu0 %v1281
    %1739 = vmatprep.subr.bf16.mxu0 %v1278
    %1740 = vmatpush1.bf16.msra.mxu0 %v1277
    %1741 = vmatprep.subr.bf16.mxu0 %v1274
    %1742 = vmatpush1.bf16.msra.mxu0 %v1273
    %1743 = vmatprep.subr.bf16.mxu0 %v1270
    %1744 = vmatpush1.bf16.msra.mxu0 %v1269
    %1745 = vmatprep.subr.bf16.mxu0 %v1266
    %1746 = vmatpush1.bf16.msra.mxu0 %v1265
    %1747 = vmatprep.subr.bf16.mxu0 %v1326
    %1748 = vmatpush2.bf16.msra.mxu0 %v1325
    %1749 = vmatprep.subr.bf16.mxu0 %v1322
    %1750 = vmatpush2.bf16.msra.mxu0 %v1321
    %1751 = vmatprep.subr.bf16.mxu0 %v1318
    %1752 = vmatpush2.bf16.msra.mxu0 %v1317
    %1753 = vmatprep.subr.bf16.mxu0 %v1314
    %1754 = vmatpush2.bf16.msra.mxu0 %v1313
    %1755 = vmatprep.subr.bf16.mxu0 %v1310
    %1756 = vmatpush2.bf16.msra.mxu0 %v1309
    %1757 = vmatprep.subr.bf16.mxu0 %v1306
    %1758 = vmatpush2.bf16.msra.mxu0 %v1305
    %1759 = vmatprep.subr.bf16.mxu0 %v1302
    %1760 = vmatpush2.bf16.msra.mxu0 %v1301
    %1761 = vmatprep.subr.bf16.mxu0 %v1298
    %1762 = vmatpush2.bf16.msra.mxu0 %v1297
    %1763 = vmatprep.mubr.bf16.mxu0 %v356
    %1764 = vmatmul.mubr.bf16.gmra.mxu0 %v342
    %v1765 = vpop.f32.mrf.mxu0
    %v1766 = vadd.f32 %v1725, %v1765
    %v1767 = vpop.f32.mrf.mxu0
    %v1768 = vadd.f32 %v1727, %v1767
    %v1769 = vpop.f32.mrf.mxu0
    %v1770 = vpop.f32.mrf.mxu0
    %1771 = vdwg.mxu0
    %1772 = vmatprep.subr.bf16.mxu0 %v1358
    %1773 = vmatpush1.bf16.msra.mxu0 %v1357
    %1774 = vmatprep.subr.bf16.mxu0 %v1354
    %1775 = vmatpush1.bf16.msra.mxu0 %v1353
    %1776 = vmatprep.subr.bf16.mxu0 %v1350
    %1777 = vmatpush1.bf16.msra.mxu0 %v1349
    %1778 = vmatprep.subr.bf16.mxu0 %v1346
    %1779 = vmatpush1.bf16.msra.mxu0 %v1345
    %1780 = vmatprep.subr.bf16.mxu0 %v1342
    %1781 = vmatpush1.bf16.msra.mxu0 %v1341
    %1782 = vmatprep.subr.bf16.mxu0 %v1338
    %1783 = vmatpush1.bf16.msra.mxu0 %v1337
    %1784 = vmatprep.subr.bf16.mxu0 %v1334
    %1785 = vmatpush1.bf16.msra.mxu0 %v1333
    %1786 = vmatprep.subr.bf16.mxu0 %v1330
    %1787 = vmatpush1.bf16.msra.mxu0 %v1329
    %1788 = vmatprep.subr.bf16.mxu0 %v1390
    %1789 = vmatpush2.bf16.msra.mxu0 %v1389
    %1790 = vmatprep.subr.bf16.mxu0 %v1386
    %1791 = vmatpush2.bf16.msra.mxu0 %v1385
    %1792 = vmatprep.subr.bf16.mxu0 %v1382
    %1793 = vmatpush2.bf16.msra.mxu0 %v1381
    %1794 = vmatprep.subr.bf16.mxu0 %v1378
    %1795 = vmatpush2.bf16.msra.mxu0 %v1377
    %1796 = vmatprep.subr.bf16.mxu0 %v1374
    %1797 = vmatpush2.bf16.msra.mxu0 %v1373
    %1798 = vmatprep.subr.bf16.mxu0 %v1370
    %1799 = vmatpush2.bf16.msra.mxu0 %v1369
    %1800 = vmatprep.subr.bf16.mxu0 %v1366
    %1801 = vmatpush2.bf16.msra.mxu0 %v1365
    %1802 = vmatprep.subr.bf16.mxu0 %v1362
    %1803 = vmatpush2.bf16.msra.mxu0 %v1361
    %1804 = vmatprep.mubr.bf16.mxu0 %v360
    %1805 = vmatmul.mubr.bf16.gmra.mxu0 %v358
    %v1806 = vpop.f32.mrf.mxu0
    %v1807 = vadd.f32 %v1766, %v1806
    %v1808 = vpop.f32.mrf.mxu0
    %v1809 = vadd.f32 %v1768, %v1808
    %v1810 = vpop.f32.mrf.mxu0
    %v1811 = vpop.f32.mrf.mxu0
    %1812 = vdwg.mxu0
    %1813 = vmatprep.subr.bf16.mxu0 %v1168
    %1814 = vmatpush1.bf16.msra.mxu0 %v1167
    %1815 = vmatprep.subr.bf16.mxu0 %v1164
    %1816 = vmatpush1.bf16.msra.mxu0 %v1163
    %1817 = vmatprep.subr.bf16.mxu0 %v1160
    %1818 = vmatpush1.bf16.msra.mxu0 %v1159
    %1819 = vmatprep.subr.bf16.mxu0 %v1156
    %1820 = vmatpush1.bf16.msra.mxu0 %v1155
    %1821 = vmatprep.subr.bf16.mxu0 %v1152
    %1822 = vmatpush1.bf16.msra.mxu0 %v1151
    %1823 = vmatprep.subr.bf16.mxu0 %v1148
    %1824 = vmatpush1.bf16.msra.mxu0 %v1147
    %1825 = vmatprep.subr.bf16.mxu0 %v1144
    %1826 = vmatpush1.bf16.msra.mxu0 %v1143
    %1827 = vmatprep.subr.bf16.mxu0 %v1140
    %1828 = vmatpush1.bf16.msra.mxu0 %v1139
    %1829 = vmatprep.subr.bf16.mxu0 %v1200
    %1830 = vmatpush2.bf16.msra.mxu0 %v1199
    %1831 = vmatprep.subr.bf16.mxu0 %v1196
    %1832 = vmatpush2.bf16.msra.mxu0 %v1195
    %1833 = vmatprep.subr.bf16.mxu0 %v1192
    %1834 = vmatpush2.bf16.msra.mxu0 %v1191
    %1835 = vmatprep.subr.bf16.mxu0 %v1188
    %1836 = vmatpush2.bf16.msra.mxu0 %v1187
    %1837 = vmatprep.subr.bf16.mxu0 %v1184
    %1838 = vmatpush2.bf16.msra.mxu0 %v1183
    %1839 = vmatprep.subr.bf16.mxu0 %v1180
    %1840 = vmatpush2.bf16.msra.mxu0 %v1179
    %1841 = vmatprep.subr.bf16.mxu0 %v1176
    %1842 = vmatpush2.bf16.msra.mxu0 %v1175
    %1843 = vmatprep.subr.bf16.mxu0 %v1172
    %1844 = vmatpush2.bf16.msra.mxu0 %v1171
    %1845 = vmatprep.mubr.bf16.mxu0 %v349
    %1846 = vmatmul.mubr.bf16.gmra.mxu0 %v335
    %v1847 = vpop.f32.mrf.mxu0
    %v1848 = vadd.f32 %v302, %v1847
    %v1849 = vpop.f32.mrf.mxu0
    %v1850 = vadd.f32 %v306, %v1849
    %v1851 = vpop.f32.mrf.mxu0
    %v1852 = vpop.f32.mrf.mxu0
    %1853 = vdwg.mxu0
    %1854 = vmatprep.subr.bf16.mxu0 %v1232
    %1855 = vmatpush1.bf16.msra.mxu0 %v1231
    %1856 = vmatprep.subr.bf16.mxu0 %v1228
    %1857 = vmatpush1.bf16.msra.mxu0 %v1227
    %1858 = vmatprep.subr.bf16.mxu0 %v1224
    %1859 = vmatpush1.bf16.msra.mxu0 %v1223
    %1860 = vmatprep.subr.bf16.mxu0 %v1220
    %1861 = vmatpush1.bf16.msra.mxu0 %v1219
    %1862 = vmatprep.subr.bf16.mxu0 %v1216
    %1863 = vmatpush1.bf16.msra.mxu0 %v1215
    %1864 = vmatprep.subr.bf16.mxu0 %v1212
    %1865 = vmatpush1.bf16.msra.mxu0 %v1211
    %1866 = vmatprep.subr.bf16.mxu0 %v1208
    %1867 = vmatpush1.bf16.msra.mxu0 %v1207
    %1868 = vmatprep.subr.bf16.mxu0 %v1204
    %1869 = vmatpush1.bf16.msra.mxu0 %v1203
    %1870 = vmatprep.subr.bf16.mxu0 %v1264
    %1871 = vmatpush2.bf16.msra.mxu0 %v1263
    %1872 = vmatprep.subr.bf16.mxu0 %v1260
    %1873 = vmatpush2.bf16.msra.mxu0 %v1259
    %1874 = vmatprep.subr.bf16.mxu0 %v1256
    %1875 = vmatpush2.bf16.msra.mxu0 %v1255
    %1876 = vmatprep.subr.bf16.mxu0 %v1252
    %1877 = vmatpush2.bf16.msra.mxu0 %v1251
    %1878 = vmatprep.subr.bf16.mxu0 %v1248
    %1879 = vmatpush2.bf16.msra.mxu0 %v1247
    %1880 = vmatprep.subr.bf16.mxu0 %v1244
    %1881 = vmatpush2.bf16.msra.mxu0 %v1243
    %1882 = vmatprep.subr.bf16.mxu0 %v1240
    %1883 = vmatpush2.bf16.msra.mxu0 %v1239
    %1884 = vmatprep.subr.bf16.mxu0 %v1236
    %1885 = vmatpush2.bf16.msra.mxu0 %v1235
    %1886 = vmatprep.mubr.bf16.mxu0 %v359
    %1887 = vmatmul.mubr.bf16.gmra.mxu0 %v357
    %v1888 = vpop.f32.mrf.mxu0
    %v1889 = vadd.f32 %v1848, %v1888
    %v1890 = vpop.f32.mrf.mxu0
    %v1891 = vadd.f32 %v1850, %v1890
    %v1892 = vpop.f32.mrf.mxu0
    %v1893 = vpop.f32.mrf.mxu0
    %1894 = vdwg.mxu0
    %1895 = vmatprep.subr.bf16.mxu0 %v1296
    %1896 = vmatpush1.bf16.msra.mxu0 %v1295
    %1897 = vmatprep.subr.bf16.mxu0 %v1292
    %1898 = vmatpush1.bf16.msra.mxu0 %v1291
    %1899 = vmatprep.subr.bf16.mxu0 %v1288
    %1900 = vmatpush1.bf16.msra.mxu0 %v1287
    %1901 = vmatprep.subr.bf16.mxu0 %v1284
    %1902 = vmatpush1.bf16.msra.mxu0 %v1283
    %1903 = vmatprep.subr.bf16.mxu0 %v1280
    %1904 = vmatpush1.bf16.msra.mxu0 %v1279
    %1905 = vmatprep.subr.bf16.mxu0 %v1276
    %1906 = vmatpush1.bf16.msra.mxu0 %v1275
    %1907 = vmatprep.subr.bf16.mxu0 %v1272
    %1908 = vmatpush1.bf16.msra.mxu0 %v1271
    %1909 = vmatprep.subr.bf16.mxu0 %v1268
    %1910 = vmatpush1.bf16.msra.mxu0 %v1267
    %1911 = vmatprep.subr.bf16.mxu0 %v1328
    %1912 = vmatpush2.bf16.msra.mxu0 %v1327
    %1913 = vmatprep.subr.bf16.mxu0 %v1324
    %1914 = vmatpush2.bf16.msra.mxu0 %v1323
    %1915 = vmatprep.subr.bf16.mxu0 %v1320
    %1916 = vmatpush2.bf16.msra.mxu0 %v1319
    %1917 = vmatprep.subr.bf16.mxu0 %v1316
    %1918 = vmatpush2.bf16.msra.mxu0 %v1315
    %1919 = vmatprep.subr.bf16.mxu0 %v1312
    %1920 = vmatpush2.bf16.msra.mxu0 %v1311
    %1921 = vmatprep.subr.bf16.mxu0 %v1308
    %1922 = vmatpush2.bf16.msra.mxu0 %v1307
    %1923 = vmatprep.subr.bf16.mxu0 %v1304
    %1924 = vmatpush2.bf16.msra.mxu0 %v1303
    %1925 = vmatprep.subr.bf16.mxu0 %v1300
    %1926 = vmatpush2.bf16.msra.mxu0 %v1299
    %1927 = vmatprep.mubr.bf16.mxu0 %v356
    %1928 = vmatmul.mubr.bf16.gmra.mxu0 %v342
    %v1929 = vpop.f32.mrf.mxu0
    %v1930 = vadd.f32 %v1889, %v1929
    %v1931 = vpop.f32.mrf.mxu0
    %v1932 = vadd.f32 %v1891, %v1931
    %v1933 = vpop.f32.mrf.mxu0
    %v1934 = vpop.f32.mrf.mxu0
    %1935 = vdwg.mxu0
    %1936 = vmatprep.subr.bf16.mxu0 %v1360
    %1937 = vmatpush1.bf16.msra.mxu0 %v1359
    %1938 = vmatprep.subr.bf16.mxu0 %v1356
    %1939 = vmatpush1.bf16.msra.mxu0 %v1355
    %1940 = vmatprep.subr.bf16.mxu0 %v1352
    %1941 = vmatpush1.bf16.msra.mxu0 %v1351
    %1942 = vmatprep.subr.bf16.mxu0 %v1348
    %1943 = vmatpush1.bf16.msra.mxu0 %v1347
    %1944 = vmatprep.subr.bf16.mxu0 %v1344
    %1945 = vmatpush1.bf16.msra.mxu0 %v1343
    %1946 = vmatprep.subr.bf16.mxu0 %v1340
    %1947 = vmatpush1.bf16.msra.mxu0 %v1339
    %1948 = vmatprep.subr.bf16.mxu0 %v1336
    %1949 = vmatpush1.bf16.msra.mxu0 %v1335
    %1950 = vmatprep.subr.bf16.mxu0 %v1332
    %1951 = vmatpush1.bf16.msra.mxu0 %v1331
    %1952 = vmatprep.subr.bf16.mxu0 %v1392
    %1953 = vmatpush2.bf16.msra.mxu0 %v1391
    %1954 = vmatprep.subr.bf16.mxu0 %v1388
    %1955 = vmatpush2.bf16.msra.mxu0 %v1387
    %1956 = vmatprep.subr.bf16.mxu0 %v1384
    %1957 = vmatpush2.bf16.msra.mxu0 %v1383
    %1958 = vmatprep.subr.bf16.mxu0 %v1380
    %1959 = vmatpush2.bf16.msra.mxu0 %v1379
    %1960 = vmatprep.subr.bf16.mxu0 %v1376
    %1961 = vmatpush2.bf16.msra.mxu0 %v1375
    %1962 = vmatprep.subr.bf16.mxu0 %v1372
    %1963 = vmatpush2.bf16.msra.mxu0 %v1371
    %1964 = vmatprep.subr.bf16.mxu0 %v1368
    %1965 = vmatpush2.bf16.msra.mxu0 %v1367
    %1966 = vmatprep.subr.bf16.mxu0 %v1364
    %1967 = vmatpush2.bf16.msra.mxu0 %v1363
    %1968 = vmatprep.mubr.bf16.mxu0 %v360
    %1969 = vmatmul.mubr.bf16.gmra.mxu0 %v358
    %v1970 = vpop.f32.mrf.mxu0
    %v1971 = vadd.f32 %v1930, %v1970
    %v1972 = vpop.f32.mrf.mxu0
    %v1973 = vadd.f32 %v1932, %v1972
    %v1974 = vpop.f32.mrf.mxu0
    %v1975 = vpop.f32.mrf.mxu0
    %1976 = vdwg.mxu0
    %v1977 = vmax.f32 %v1807, 0.0
    %v1978 = vmax.f32 %v1809, 0.0
    %v1979 = vmax.f32 %v1971, 0.0
    %v1980 = vmax.f32 %v1973, 0.0
    %v1985 = vcombine.low %v1977, %v1978
    %v1986 = vcombine.low %v1979, %v1980
    %v1988 = vunpack.c.l.s4 1983009808
    %v1989 = vunpack.c.0.s8 %v1988
    %v1990 = vlaneseq
    %v1991 = vshrl.u32 %v1990, 7
    %v1992 = vsub.s32 %v1989, %v1991
    %v1993 = vrot.slane %v1985, %v1992
    %v1995 = vunpack.c.l.s4 1983009808
    %v1996 = vunpack.c.0.s8 %v1995
    %v1997 = vlaneseq
    %v1998 = vshrl.u32 %v1997, 7
    %v1999 = vsub.s32 %v1996, %v1998
    %v2000 = vrot.slane %v1986, %v1999
    %v2001 = vcombine.low %v1993, %v2000
    %2003 = vst [vmem:[#allocation2] sm:$0xff] %v2001
    %v2004 = vpack.c.bf16 %v1977, %v1977
    %v2005 = vpack.c.bf16 %v1978, %v1978
    %v2006 = vpack.c.bf16 %v1979, %v1979
    %v2007 = vpack.c.bf16 %v1980, %v1980
    %v2008 = vld [vmem:[%s3] sm:$0xff]
    %v2009 = vld [vmem:[%s3 + $0x8] sm:$0xff]
    %v2010 = vld [vmem:[%s3 + $0x10] sm:$0xff]
    %v2011 = vld [vmem:[%s3 + $0x18] sm:$0xff]
    %v2012 = vld [vmem:[%s3 + $0x20] sm:$0xff]
    %v2013 = vld [vmem:[%s3 + $0x28] sm:$0xff]
    %v2014 = vld [vmem:[%s3 + $0x30] sm:$0xff]
    %v2015 = vld [vmem:[%s3 + $0x38] sm:$0xff]
    %v2016 = vld [vmem:[%s3 + $0x40] sm:$0xff]
    %v2017 = vld [vmem:[%s3 + $0x48] sm:$0xff]
    %v2018 = vld [vmem:[%s3 + $0x50] sm:$0xff]
    %v2019 = vld [vmem:[%s3 + $0x58] sm:$0xff]
    %v2020 = vld [vmem:[%s3 + $0x60] sm:$0xff]
    %v2021 = vld [vmem:[%s3 + $0x68] sm:$0xff]
    %v2022 = vld [vmem:[%s3 + $0x70] sm:$0xff]
    %v2023 = vld [vmem:[%s3 + $0x78] sm:$0xff]
    %v2024 = vld [vmem:[%s3 + $0x80] sm:$0xff]
    %v2025 = vld [vmem:[%s3 + $0x88] sm:$0xff]
    %v2026 = vld [vmem:[%s3 + $0x90] sm:$0xff]
    %v2027 = vld [vmem:[%s3 + $0x98] sm:$0xff]
    %v2028 = vld [vmem:[%s3 + $0xa0] sm:$0xff]
    %v2029 = vld [vmem:[%s3 + $0xa8] sm:$0xff]
    %v2030 = vld [vmem:[%s3 + $0xb0] sm:$0xff]
    %v2031 = vld [vmem:[%s3 + $0xb8] sm:$0xff]
    %v2032 = vld [vmem:[%s3 + $0xc0] sm:$0xff]
    %v2033 = vld [vmem:[%s3 + $0xc8] sm:$0xff]
    %v2034 = vld [vmem:[%s3 + $0xd0] sm:$0xff]
    %v2035 = vld [vmem:[%s3 + $0xd8] sm:$0xff]
    %v2036 = vld [vmem:[%s3 + $0xe0] sm:$0xff]
    %v2037 = vld [vmem:[%s3 + $0xe8] sm:$0xff]
    %v2038 = vld [vmem:[%s3 + $0xf0] sm:$0xff]
    %v2039 = vld [vmem:[%s3 + $0xf8] sm:$0xff]
    %v2040 = vld [vmem:[%s3 + $0x100] sm:$0xff]
    %v2041 = vld [vmem:[%s3 + $0x108] sm:$0xff]
    %v2042 = vld [vmem:[%s3 + $0x110] sm:$0xff]
    %v2043 = vld [vmem:[%s3 + $0x118] sm:$0xff]
    %v2044 = vld [vmem:[%s3 + $0x120] sm:$0xff]
    %v2045 = vld [vmem:[%s3 + $0x128] sm:$0xff]
    %v2046 = vld [vmem:[%s3 + $0x130] sm:$0xff]
    %v2047 = vld [vmem:[%s3 + $0x138] sm:$0xff]
    %v2048 = vld [vmem:[%s3 + $0x140] sm:$0xff]
    %v2049 = vld [vmem:[%s3 + $0x148] sm:$0xff]
    %v2050 = vld [vmem:[%s3 + $0x150] sm:$0xff]
    %v2051 = vld [vmem:[%s3 + $0x158] sm:$0xff]
    %v2052 = vld [vmem:[%s3 + $0x160] sm:$0xff]
    %v2053 = vld [vmem:[%s3 + $0x168] sm:$0xff]
    %v2054 = vld [vmem:[%s3 + $0x170] sm:$0xff]
    %v2055 = vld [vmem:[%s3 + $0x178] sm:$0xff]
    %v2056 = vld [vmem:[%s3 + $0x180] sm:$0xff]
    %v2057 = vld [vmem:[%s3 + $0x188] sm:$0xff]
    %v2058 = vld [vmem:[%s3 + $0x190] sm:$0xff]
    %v2059 = vld [vmem:[%s3 + $0x198] sm:$0xff]
    %v2060 = vld [vmem:[%s3 + $0x1a0] sm:$0xff]
    %v2061 = vld [vmem:[%s3 + $0x1a8] sm:$0xff]
    %v2062 = vld [vmem:[%s3 + $0x1b0] sm:$0xff]
    %v2063 = vld [vmem:[%s3 + $0x1b8] sm:$0xff]
    %v2064 = vld [vmem:[%s3 + $0x1c0] sm:$0xff]
    %v2065 = vld [vmem:[%s3 + $0x1c8] sm:$0xff]
    %v2066 = vld [vmem:[%s3 + $0x1d0] sm:$0xff]
    %v2067 = vld [vmem:[%s3 + $0x1d8] sm:$0xff]
    %v2068 = vld [vmem:[%s3 + $0x1e0] sm:$0xff]
    %v2069 = vld [vmem:[%s3 + $0x1e8] sm:$0xff]
    %v2070 = vld [vmem:[%s3 + $0x1f0] sm:$0xff]
    %v2071 = vld [vmem:[%s3 + $0x1f8] sm:$0xff]
    %v2072 = vld [vmem:[%s4] sm:$0x3]
    %v2074 = vlaneseq
    %v2075 = vshrl.u32 %v2074, 7
    %v2076 = vsub.s32 0, %v2075
    %v2077 = vrot.slane %v2072, %v2076
    %v2078 = vlaneseq
    %v2079 = vshrl.u32 %v2078, 7
    %v2080 = vsub.s32 1, %v2079
    %v2081 = vrot.slane %v2072, %v2080
    %v2148 = vunpack.c.l.b16 %v2008
    %v2149 = vunpack.c.h.b16 %v2008
    %v2150 = vunpack.c.l.b16 %v2009
    %v2151 = vunpack.c.h.b16 %v2009
    %v2152 = vunpack.c.l.b16 %v2010
    %v2153 = vunpack.c.h.b16 %v2010
    %v2154 = vunpack.c.l.b16 %v2011
    %v2155 = vunpack.c.h.b16 %v2011
    %v2156 = vunpack.c.l.b16 %v2012
    %v2157 = vunpack.c.h.b16 %v2012
    %v2158 = vunpack.c.l.b16 %v2013
    %v2159 = vunpack.c.h.b16 %v2013
    %v2160 = vunpack.c.l.b16 %v2014
    %v2161 = vunpack.c.h.b16 %v2014
    %v2162 = vunpack.c.l.b16 %v2015
    %v2163 = vunpack.c.h.b16 %v2015
    %v2164 = vunpack.c.l.b16 %v2016
    %v2165 = vunpack.c.h.b16 %v2016
    %v2166 = vunpack.c.l.b16 %v2017
    %v2167 = vunpack.c.h.b16 %v2017
    %v2168 = vunpack.c.l.b16 %v2018
    %v2169 = vunpack.c.h.b16 %v2018
    %v2170 = vunpack.c.l.b16 %v2019
    %v2171 = vunpack.c.h.b16 %v2019
    %v2172 = vunpack.c.l.b16 %v2020
    %v2173 = vunpack.c.h.b16 %v2020
    %v2174 = vunpack.c.l.b16 %v2021
    %v2175 = vunpack.c.h.b16 %v2021
    %v2176 = vunpack.c.l.b16 %v2022
    %v2177 = vunpack.c.h.b16 %v2022
    %v2178 = vunpack.c.l.b16 %v2023
    %v2179 = vunpack.c.h.b16 %v2023
    %v2180 = vunpack.c.l.b16 %v2024
    %v2181 = vunpack.c.h.b16 %v2024
    %v2182 = vunpack.c.l.b16 %v2025
    %v2183 = vunpack.c.h.b16 %v2025
    %v2184 = vunpack.c.l.b16 %v2026
    %v2185 = vunpack.c.h.b16 %v2026
    %v2186 = vunpack.c.l.b16 %v2027
    %v2187 = vunpack.c.h.b16 %v2027
    %v2188 = vunpack.c.l.b16 %v2028
    %v2189 = vunpack.c.h.b16 %v2028
    %v2190 = vunpack.c.l.b16 %v2029
    %v2191 = vunpack.c.h.b16 %v2029
    %v2192 = vunpack.c.l.b16 %v2030
    %v2193 = vunpack.c.h.b16 %v2030
    %v2194 = vunpack.c.l.b16 %v2031
    %v2195 = vunpack.c.h.b16 %v2031
    %v2196 = vunpack.c.l.b16 %v2032
    %v2197 = vunpack.c.h.b16 %v2032
    %v2198 = vunpack.c.l.b16 %v2033
    %v2199 = vunpack.c.h.b16 %v2033
    %v2200 = vunpack.c.l.b16 %v2034
    %v2201 = vunpack.c.h.b16 %v2034
    %v2202 = vunpack.c.l.b16 %v2035
    %v2203 = vunpack.c.h.b16 %v2035
    %v2204 = vunpack.c.l.b16 %v2036
    %v2205 = vunpack.c.h.b16 %v2036
    %v2206 = vunpack.c.l.b16 %v2037
    %v2207 = vunpack.c.h.b16 %v2037
    %v2208 = vunpack.c.l.b16 %v2038
    %v2209 = vunpack.c.h.b16 %v2038
    %v2210 = vunpack.c.l.b16 %v2039
    %v2211 = vunpack.c.h.b16 %v2039
    %v2212 = vunpack.c.l.b16 %v2040
    %v2213 = vunpack.c.h.b16 %v2040
    %v2214 = vunpack.c.l.b16 %v2041
    %v2215 = vunpack.c.h.b16 %v2041
    %v2216 = vunpack.c.l.b16 %v2042
    %v2217 = vunpack.c.h.b16 %v2042
    %v2218 = vunpack.c.l.b16 %v2043
    %v2219 = vunpack.c.h.b16 %v2043
    %v2220 = vunpack.c.l.b16 %v2044
    %v2221 = vunpack.c.h.b16 %v2044
    %v2222 = vunpack.c.l.b16 %v2045
    %v2223 = vunpack.c.h.b16 %v2045
    %v2224 = vunpack.c.l.b16 %v2046
    %v2225 = vunpack.c.h.b16 %v2046
    %v2226 = vunpack.c.l.b16 %v2047
    %v2227 = vunpack.c.h.b16 %v2047
    %v2228 = vunpack.c.l.b16 %v2048
    %v2229 = vunpack.c.h.b16 %v2048
    %v2230 = vunpack.c.l.b16 %v2049
    %v2231 = vunpack.c.h.b16 %v2049
    %v2232 = vunpack.c.l.b16 %v2050
    %v2233 = vunpack.c.h.b16 %v2050
    %v2234 = vunpack.c.l.b16 %v2051
    %v2235 = vunpack.c.h.b16 %v2051
    %v2236 = vunpack.c.l.b16 %v2052
    %v2237 = vunpack.c.h.b16 %v2052
    %v2238 = vunpack.c.l.b16 %v2053
    %v2239 = vunpack.c.h.b16 %v2053
    %v2240 = vunpack.c.l.b16 %v2054
    %v2241 = vunpack.c.h.b16 %v2054
    %v2242 = vunpack.c.l.b16 %v2055
    %v2243 = vunpack.c.h.b16 %v2055
    %v2244 = vunpack.c.l.b16 %v2056
    %v2245 = vunpack.c.h.b16 %v2056
    %v2246 = vunpack.c.l.b16 %v2057
    %v2247 = vunpack.c.h.b16 %v2057
    %v2248 = vunpack.c.l.b16 %v2058
    %v2249 = vunpack.c.h.b16 %v2058
    %v2250 = vunpack.c.l.b16 %v2059
    %v2251 = vunpack.c.h.b16 %v2059
    %v2252 = vunpack.c.l.b16 %v2060
    %v2253 = vunpack.c.h.b16 %v2060
    %v2254 = vunpack.c.l.b16 %v2061
    %v2255 = vunpack.c.h.b16 %v2061
    %v2256 = vunpack.c.l.b16 %v2062
    %v2257 = vunpack.c.h.b16 %v2062
    %v2258 = vunpack.c.l.b16 %v2063
    %v2259 = vunpack.c.h.b16 %v2063
    %v2260 = vunpack.c.l.b16 %v2064
    %v2261 = vunpack.c.h.b16 %v2064
    %v2262 = vunpack.c.l.b16 %v2065
    %v2263 = vunpack.c.h.b16 %v2065
    %v2264 = vunpack.c.l.b16 %v2066
    %v2265 = vunpack.c.h.b16 %v2066
    %v2266 = vunpack.c.l.b16 %v2067
    %v2267 = vunpack.c.h.b16 %v2067
    %v2268 = vunpack.c.l.b16 %v2068
    %v2269 = vunpack.c.h.b16 %v2068
    %v2270 = vunpack.c.l.b16 %v2069
    %v2271 = vunpack.c.h.b16 %v2069
    %v2272 = vunpack.c.l.b16 %v2070
    %v2273 = vunpack.c.h.b16 %v2070
    %v2274 = vunpack.c.l.b16 %v2071
    %v2275 = vunpack.c.h.b16 %v2071
    %v2276 = vpack.c.b16 %v2150, %v2148
    %v2277 = vpack.c.b16 %v2151, %v2149
    %v2278 = vpack.c.b16 %v2154, %v2152
    %v2279 = vpack.c.b16 %v2155, %v2153
    %v2280 = vpack.c.b16 %v2158, %v2156
    %v2281 = vpack.c.b16 %v2159, %v2157
    %v2282 = vpack.c.b16 %v2162, %v2160
    %v2283 = vpack.c.b16 %v2163, %v2161
    %v2284 = vpack.c.b16 %v2166, %v2164
    %v2285 = vpack.c.b16 %v2167, %v2165
    %v2286 = vpack.c.b16 %v2170, %v2168
    %v2287 = vpack.c.b16 %v2171, %v2169
    %v2288 = vpack.c.b16 %v2174, %v2172
    %v2289 = vpack.c.b16 %v2175, %v2173
    %v2290 = vpack.c.b16 %v2178, %v2176
    %v2291 = vpack.c.b16 %v2179, %v2177
    %v2292 = vpack.c.b16 %v2182, %v2180
    %v2293 = vpack.c.b16 %v2183, %v2181
    %v2294 = vpack.c.b16 %v2186, %v2184
    %v2295 = vpack.c.b16 %v2187, %v2185
    %v2296 = vpack.c.b16 %v2190, %v2188
    %v2297 = vpack.c.b16 %v2191, %v2189
    %v2298 = vpack.c.b16 %v2194, %v2192
    %v2299 = vpack.c.b16 %v2195, %v2193
    %v2300 = vpack.c.b16 %v2198, %v2196
    %v2301 = vpack.c.b16 %v2199, %v2197
    %v2302 = vpack.c.b16 %v2202, %v2200
    %v2303 = vpack.c.b16 %v2203, %v2201
    %v2304 = vpack.c.b16 %v2206, %v2204
    %v2305 = vpack.c.b16 %v2207, %v2205
    %v2306 = vpack.c.b16 %v2210, %v2208
    %v2307 = vpack.c.b16 %v2211, %v2209
    %v2308 = vpack.c.b16 %v2214, %v2212
    %v2309 = vpack.c.b16 %v2215, %v2213
    %v2310 = vpack.c.b16 %v2218, %v2216
    %v2311 = vpack.c.b16 %v2219, %v2217
    %v2312 = vpack.c.b16 %v2222, %v2220
    %v2313 = vpack.c.b16 %v2223, %v2221
    %v2314 = vpack.c.b16 %v2226, %v2224
    %v2315 = vpack.c.b16 %v2227, %v2225
    %v2316 = vpack.c.b16 %v2230, %v2228
    %v2317 = vpack.c.b16 %v2231, %v2229
    %v2318 = vpack.c.b16 %v2234, %v2232
    %v2319 = vpack.c.b16 %v2235, %v2233
    %v2320 = vpack.c.b16 %v2238, %v2236
    %v2321 = vpack.c.b16 %v2239, %v2237
    %v2322 = vpack.c.b16 %v2242, %v2240
    %v2323 = vpack.c.b16 %v2243, %v2241
    %v2324 = vpack.c.b16 %v2246, %v2244
    %v2325 = vpack.c.b16 %v2247, %v2245
    %v2326 = vpack.c.b16 %v2250, %v2248
    %v2327 = vpack.c.b16 %v2251, %v2249
    %v2328 = vpack.c.b16 %v2254, %v2252
    %v2329 = vpack.c.b16 %v2255, %v2253
    %v2330 = vpack.c.b16 %v2258, %v2256
    %v2331 = vpack.c.b16 %v2259, %v2257
    %v2332 = vpack.c.b16 %v2262, %v2260
    %v2333 = vpack.c.b16 %v2263, %v2261
    %v2334 = vpack.c.b16 %v2266, %v2264
    %v2335 = vpack.c.b16 %v2267, %v2265
    %v2336 = vpack.c.b16 %v2270, %v2268
    %v2337 = vpack.c.b16 %v2271, %v2269
    %v2338 = vpack.c.b16 %v2274, %v2272
    %v2339 = vpack.c.b16 %v2275, %v2273
    %2404 = vmatprep.subr.bf16.mxu0 %v2291
    %2405 = vmatpush1.bf16.msra.mxu0 %v2290
    %2406 = vmatprep.subr.bf16.mxu0 %v2289
    %2407 = vmatpush1.bf16.msra.mxu0 %v2288
    %2408 = vmatprep.subr.bf16.mxu0 %v2287
    %2409 = vmatpush1.bf16.msra.mxu0 %v2286
    %2410 = vmatprep.subr.bf16.mxu0 %v2285
    %2411 = vmatpush1.bf16.msra.mxu0 %v2284
    %2412 = vmatprep.subr.bf16.mxu0 %v2283
    %2413 = vmatpush1.bf16.msra.mxu0 %v2282
    %2414 = vmatprep.subr.bf16.mxu0 %v2281
    %2415 = vmatpush1.bf16.msra.mxu0 %v2280
    %2416 = vmatprep.subr.bf16.mxu0 %v2279
    %2417 = vmatpush1.bf16.msra.mxu0 %v2278
    %2418 = vmatprep.subr.bf16.mxu0 %v2277
    %2419 = vmatpush1.bf16.msra.mxu0 %v2276
    %2420 = vmatprep.subr.bf16.mxu0 %v2307
    %2421 = vmatpush2.bf16.msra.mxu0 %v2306
    %2422 = vmatprep.subr.bf16.mxu0 %v2305
    %2423 = vmatpush2.bf16.msra.mxu0 %v2304
    %2424 = vmatprep.subr.bf16.mxu0 %v2303
    %2425 = vmatpush2.bf16.msra.mxu0 %v2302
    %2426 = vmatprep.subr.bf16.mxu0 %v2301
    %2427 = vmatpush2.bf16.msra.mxu0 %v2300
    %2428 = vmatprep.subr.bf16.mxu0 %v2299
    %2429 = vmatpush2.bf16.msra.mxu0 %v2298
    %2430 = vmatprep.subr.bf16.mxu0 %v2297
    %2431 = vmatpush2.bf16.msra.mxu0 %v2296
    %2432 = vmatprep.subr.bf16.mxu0 %v2295
    %2433 = vmatpush2.bf16.msra.mxu0 %v2294
    %2434 = vmatprep.subr.bf16.mxu0 %v2293
    %2435 = vmatpush2.bf16.msra.mxu0 %v2292
    %2436 = vmatprep.mubr.bf16.mxu0 %v2005
    %2437 = vmatmul.mubr.bf16.gmra.mxu0 %v2004
    %v2438 = vpop.f32.mrf.mxu0
    %v2439 = vadd.f32 %v2077, %v2438
    %v2440 = vpop.f32.mrf.mxu0
    %v2441 = vadd.f32 %v2081, %v2440
    %v2442 = vpop.f32.mrf.mxu0
    %v2443 = vpop.f32.mrf.mxu0
    %2444 = vdwg.mxu0
    %2445 = vmatprep.subr.bf16.mxu0 %v2323
    %2446 = vmatpush1.bf16.msra.mxu0 %v2322
    %2447 = vmatprep.subr.bf16.mxu0 %v2321
    %2448 = vmatpush1.bf16.msra.mxu0 %v2320
    %2449 = vmatprep.subr.bf16.mxu0 %v2319
    %2450 = vmatpush1.bf16.msra.mxu0 %v2318
    %2451 = vmatprep.subr.bf16.mxu0 %v2317
    %2452 = vmatpush1.bf16.msra.mxu0 %v2316
    %2453 = vmatprep.subr.bf16.mxu0 %v2315
    %2454 = vmatpush1.bf16.msra.mxu0 %v2314
    %2455 = vmatprep.subr.bf16.mxu0 %v2313
    %2456 = vmatpush1.bf16.msra.mxu0 %v2312
    %2457 = vmatprep.subr.bf16.mxu0 %v2311
    %2458 = vmatpush1.bf16.msra.mxu0 %v2310
    %2459 = vmatprep.subr.bf16.mxu0 %v2309
    %2460 = vmatpush1.bf16.msra.mxu0 %v2308
    %2461 = vmatprep.subr.bf16.mxu0 %v2339
    %2462 = vmatpush2.bf16.msra.mxu0 %v2338
    %2463 = vmatprep.subr.bf16.mxu0 %v2337
    %2464 = vmatpush2.bf16.msra.mxu0 %v2336
    %2465 = vmatprep.subr.bf16.mxu0 %v2335
    %2466 = vmatpush2.bf16.msra.mxu0 %v2334
    %2467 = vmatprep.subr.bf16.mxu0 %v2333
    %2468 = vmatpush2.bf16.msra.mxu0 %v2332
    %2469 = vmatprep.subr.bf16.mxu0 %v2331
    %2470 = vmatpush2.bf16.msra.mxu0 %v2330
    %2471 = vmatprep.subr.bf16.mxu0 %v2329
    %2472 = vmatpush2.bf16.msra.mxu0 %v2328
    %2473 = vmatprep.subr.bf16.mxu0 %v2327
    %2474 = vmatpush2.bf16.msra.mxu0 %v2326
    %2475 = vmatprep.subr.bf16.mxu0 %v2325
    %2476 = vmatpush2.bf16.msra.mxu0 %v2324
    %2477 = vmatprep.mubr.bf16.mxu0 %v2007
    %2478 = vmatmul.mubr.bf16.gmra.mxu0 %v2006
    %v2479 = vpop.f32.mrf.mxu0
    %v2480 = vadd.f32 %v2439, %v2479
    %v2481 = vpop.f32.mrf.mxu0
    %v2482 = vadd.f32 %v2441, %v2481
    %v2483 = vpop.f32.mrf.mxu0
    %v2484 = vpop.f32.mrf.mxu0
    %2485 = vdwg.mxu0
    %v2486 = vmax.f32 %v2480, 0.0
    %v2487 = vmax.f32 %v2482, 0.0
    %v2490 = vcombine.low %v2486, %v2487
    %v2492 = vunpack.c.l.s4 1983009808
    %v2493 = vunpack.c.0.s8 %v2492
    %v2494 = vlaneseq
    %v2495 = vshrl.u32 %v2494, 7
    %v2496 = vsub.s32 %v2493, %v2495
    %v2497 = vrot.slane %v2490, %v2496
    %2499 = vst [vmem:[#allocation4] sm:$0xf] %v2497
    %v2500 = vpack.c.bf16 %v2486, %v2486
    %v2501 = vpack.c.bf16 %v2487, %v2487
    %v2502 = vld [vmem:[%s5] sm:$0xf]
    %v2503 = vld [vmem:[%s5 + $0x4] sm:$0xf]
    %v2504 = vld [vmem:[%s5 + $0x8] sm:$0xf]
    %v2505 = vld [vmem:[%s5 + $0xc] sm:$0xf]
    %v2506 = vld [vmem:[%s5 + $0x10] sm:$0xf]
    %v2507 = vld [vmem:[%s5 + $0x14] sm:$0xf]
    %v2508 = vld [vmem:[%s5 + $0x18] sm:$0xf]
    %v2509 = vld [vmem:[%s5 + $0x1c] sm:$0xf]
    %v2510 = vld [vmem:[%s5 + $0x20] sm:$0xf]
    %v2511 = vld [vmem:[%s5 + $0x24] sm:$0xf]
    %v2512 = vld [vmem:[%s5 + $0x28] sm:$0xf]
    %v2513 = vld [vmem:[%s5 + $0x2c] sm:$0xf]
    %v2514 = vld [vmem:[%s5 + $0x30] sm:$0xf]
    %v2515 = vld [vmem:[%s5 + $0x34] sm:$0xf]
    %v2516 = vld [vmem:[%s5 + $0x38] sm:$0xf]
    %v2517 = vld [vmem:[%s5 + $0x3c] sm:$0xf]
    %v2518 = vld [vmem:[%s5 + $0x40] sm:$0xf]
    %v2519 = vld [vmem:[%s5 + $0x44] sm:$0xf]
    %v2520 = vld [vmem:[%s5 + $0x48] sm:$0xf]
    %v2521 = vld [vmem:[%s5 + $0x4c] sm:$0xf]
    %v2522 = vld [vmem:[%s5 + $0x50] sm:$0xf]
    %v2523 = vld [vmem:[%s5 + $0x54] sm:$0xf]
    %v2524 = vld [vmem:[%s5 + $0x58] sm:$0xf]
    %v2525 = vld [vmem:[%s5 + $0x5c] sm:$0xf]
    %v2526 = vld [vmem:[%s5 + $0x60] sm:$0xf]
    %v2527 = vld [vmem:[%s5 + $0x64] sm:$0xf]
    %v2528 = vld [vmem:[%s5 + $0x68] sm:$0xf]
    %v2529 = vld [vmem:[%s5 + $0x6c] sm:$0xf]
    %v2530 = vld [vmem:[%s5 + $0x70] sm:$0xf]
    %v2531 = vld [vmem:[%s5 + $0x74] sm:$0xf]
    %v2532 = vld [vmem:[%s5 + $0x78] sm:$0xf]
    %v2533 = vld [vmem:[%s5 + $0x7c] sm:$0xf]
    %v2534 = vld [vmem:[%s6] sm:$0x1]
    %v2536 = vlaneseq
    %v2537 = vshrl.u32 %v2536, 7
    %v2538 = vsub.s32 0, %v2537
    %v2539 = vrot.slane %v2534, %v2538
    %v2573 = vunpack.c.l.b16 %v2502
    %v2574 = vunpack.c.l.b16 %v2503
    %v2575 = vunpack.c.l.b16 %v2504
    %v2576 = vunpack.c.l.b16 %v2505
    %v2577 = vunpack.c.l.b16 %v2506
    %v2578 = vunpack.c.l.b16 %v2507
    %v2579 = vunpack.c.l.b16 %v2508
    %v2580 = vunpack.c.l.b16 %v2509
    %v2581 = vunpack.c.l.b16 %v2510
    %v2582 = vunpack.c.l.b16 %v2511
    %v2583 = vunpack.c.l.b16 %v2512
    %v2584 = vunpack.c.l.b16 %v2513
    %v2585 = vunpack.c.l.b16 %v2514
    %v2586 = vunpack.c.l.b16 %v2515
    %v2587 = vunpack.c.l.b16 %v2516
    %v2588 = vunpack.c.l.b16 %v2517
    %v2589 = vunpack.c.l.b16 %v2518
    %v2590 = vunpack.c.l.b16 %v2519
    %v2591 = vunpack.c.l.b16 %v2520
    %v2592 = vunpack.c.l.b16 %v2521
    %v2593 = vunpack.c.l.b16 %v2522
    %v2594 = vunpack.c.l.b16 %v2523
    %v2595 = vunpack.c.l.b16 %v2524
    %v2596 = vunpack.c.l.b16 %v2525
    %v2597 = vunpack.c.l.b16 %v2526
    %v2598 = vunpack.c.l.b16 %v2527
    %v2599 = vunpack.c.l.b16 %v2528
    %v2600 = vunpack.c.l.b16 %v2529
    %v2601 = vunpack.c.l.b16 %v2530
    %v2602 = vunpack.c.l.b16 %v2531
    %v2603 = vunpack.c.l.b16 %v2532
    %v2604 = vunpack.c.l.b16 %v2533
    %v2605 = vpack.c.b16 %v2574, %v2573
    %v2606 = vpack.c.b16 %v2576, %v2575
    %v2607 = vpack.c.b16 %v2578, %v2577
    %v2608 = vpack.c.b16 %v2580, %v2579
    %v2609 = vpack.c.b16 %v2582, %v2581
    %v2610 = vpack.c.b16 %v2584, %v2583
    %v2611 = vpack.c.b16 %v2586, %v2585
    %v2612 = vpack.c.b16 %v2588, %v2587
    %v2613 = vpack.c.b16 %v2590, %v2589
    %v2614 = vpack.c.b16 %v2592, %v2591
    %v2615 = vpack.c.b16 %v2594, %v2593
    %v2616 = vpack.c.b16 %v2596, %v2595
    %v2617 = vpack.c.b16 %v2598, %v2597
    %v2618 = vpack.c.b16 %v2600, %v2599
    %v2619 = vpack.c.b16 %v2602, %v2601
    %v2620 = vpack.c.b16 %v2604, %v2603
    %2637 = vmatprep.subr.bf16.mxu0 0
    %2638 = vmatpush1.bf16.msra.mxu0 %v2612
    %2639 = vmatprep.subr.bf16.mxu0 0
    %2640 = vmatpush1.bf16.msra.mxu0 %v2611
    %2641 = vmatprep.subr.bf16.mxu0 0
    %2642 = vmatpush1.bf16.msra.mxu0 %v2610
    %2643 = vmatprep.subr.bf16.mxu0 0
    %2644 = vmatpush1.bf16.msra.mxu0 %v2609
    %2645 = vmatprep.subr.bf16.mxu0 0
    %2646 = vmatpush1.bf16.msra.mxu0 %v2608
    %2647 = vmatprep.subr.bf16.mxu0 0
    %2648 = vmatpush1.bf16.msra.mxu0 %v2607
    %2649 = vmatprep.subr.bf16.mxu0 0
    %2650 = vmatpush1.bf16.msra.mxu0 %v2606
    %2651 = vmatprep.subr.bf16.mxu0 0
    %2652 = vmatpush1.bf16.msra.mxu0 %v2605
    %2653 = vmatprep.subr.bf16.mxu0 0
    %2654 = vmatpush2.bf16.msra.mxu0 %v2620
    %2655 = vmatprep.subr.bf16.mxu0 0
    %2656 = vmatpush2.bf16.msra.mxu0 %v2619
    %2657 = vmatprep.subr.bf16.mxu0 0
    %2658 = vmatpush2.bf16.msra.mxu0 %v2618
    %2659 = vmatprep.subr.bf16.mxu0 0
    %2660 = vmatpush2.bf16.msra.mxu0 %v2617
    %2661 = vmatprep.subr.bf16.mxu0 0
    %2662 = vmatpush2.bf16.msra.mxu0 %v2616
    %2663 = vmatprep.subr.bf16.mxu0 0
    %2664 = vmatpush2.bf16.msra.mxu0 %v2615
    %2665 = vmatprep.subr.bf16.mxu0 0
    %2666 = vmatpush2.bf16.msra.mxu0 %v2614
    %2667 = vmatprep.subr.bf16.mxu0 0
    %2668 = vmatpush2.bf16.msra.mxu0 %v2613
    %2669 = vmatprep.mubr.bf16.mxu0 %v2501
    %2670 = vmatmul.mubr.bf16.gmra.mxu0 %v2500
    %v2671 = vpop.f32.mrf.mxu0
    %v2672 = vadd.f32 %v2539, %v2671
    %v2673 = vpop.f32.mrf.mxu0
    %v2674 = vpop.f32.mrf.mxu0
    %v2675 = vpop.f32.mrf.mxu0
    %2676 = vdwg.mxu0
    %vm2677 = vcmask 74752
    %2678 = vst.msk [vmem:[%s9] sm:$0x3] %vm2677, %v2672
    // Predicated region
    $region30: #{rscnn_ssn_forward.7} parent=1 // pred_check
      _
    $region31: #{rscnn_ssn_forward.7} parent=1 // pred_check_branch
      %2680 = sbr.rel (0) target = $region33
    $region32: #{rscnn_ssn_forward.7} parent=1 // pred_region
      %s2682 = ssub.s32 128, 128
      %2683 = vsyncadd [#allocation3], %s2682
      %s2685 = sshll.u32 [#allocation2], 4
      %s2686 = int_to_ptr.vmem [resolvable:$true] %s2685
      %2688 = dma.vmem_to_hbm [thread:$0]  %s2686, 128, %s7, [#allocation3]
    $region33: #{rscnn_ssn_forward.7} parent=1 // pred_fallthru
      _
    // Predicated region
    $region34: #{rscnn_ssn_forward.7} parent=1 // pred_check
      _
    $region35: #{rscnn_ssn_forward.7} parent=1 // pred_check_branch
      %2690 = sbr.rel (0) target = $region37
    $region36: #{rscnn_ssn_forward.7} parent=1 // pred_region
      %s2692 = ssub.s32 64, 64
      %2693 = vsyncadd [#allocation5], %s2692
      %s2695 = sshll.u32 [#allocation4], 4
      %s2696 = int_to_ptr.vmem [resolvable:$true] %s2695
      %2698 = dma.vmem_to_hbm [thread:$0]  %s2696, 64, %s8, [#allocation5]
    $region37: #{rscnn_ssn_forward.7} parent=1 // pred_fallthru
      _
    // Predicated region
    $region38: #{rscnn_ssn_forward.7} parent=1 // pred_check
      _
    $region39: #{rscnn_ssn_forward.7} parent=1 // pred_check_branch
      %2700 = sbr.rel (0) target = $region41
    $region40: #{rscnn_ssn_forward.7} parent=1 // pred_region
      _
    $region41: #{rscnn_ssn_forward.7} parent=1 // pred_fallthru
      _
    // Predicated region
    $region42: #{rscnn_ssn_forward.7} parent=1 // pred_check
      _
    $region43: #{rscnn_ssn_forward.7} parent=1 // pred_check_branch
      %2702 = sbr.rel (0) target = $region45
    $region44: #{rscnn_ssn_forward.7} parent=1 // pred_region
      %2703 = dma.done [#allocation3], 128
    $region45: #{rscnn_ssn_forward.7} parent=1 // pred_fallthru
      _
    // Predicated region
    $region46: #{rscnn_ssn_forward.7} parent=1 // pred_check
      _
    $region47: #{rscnn_ssn_forward.7} parent=1 // pred_check_branch
      %2705 = sbr.rel (0) target = $region49
    $region48: #{rscnn_ssn_forward.7} parent=1 // pred_region
      %2706 = dma.done [#allocation5], 64
    $region49: #{rscnn_ssn_forward.7} parent=1 // pred_fallthru
      _
    // Predicated region
    $region50: #{rscnn_ssn_forward.7} parent=1 // pred_check
      _
    $region51: #{rscnn_ssn_forward.7} parent=1 // pred_check_branch
      %2708 = sbr.rel (0) target = $region53
    $region52: #{rscnn_ssn_forward.7} parent=1 // pred_region
      _
    $region53: #{rscnn_ssn_forward.7} parent=1 // pred_fallthru
      _
    %2709 = vsyncpa [#allocation3], 1
    %2710 = vsyncpa [#allocation5], 1

// kernel: rscnn_ssn_forward.6
$region0: #{rscnn_ssn_forward.6}
  #allocation0 [shape = 'u32[]', space=smem, size = 0x4, offset = 0x4, fixed_abs, tag = 'smem constant byte address 0x4 - core index']
  #allocation1 [shape = 'u32[144,128]{1,0:T(1,128)}', space=vmem, size = 0x12000, scoped, tag = 'internal scratch']
  %s0 = inlined_call_operand.vmem [shape: bf16[2,16,640], index: 0, kind: input, shape index: {}]
  %s1 = inlined_call_operand.vmem [shape: bf16[640,1024], index: 1, kind: input, shape index: {}]
  %s2 = inlined_call_operand.vmem [shape: f32[1,1024], index: 2, kind: input, shape index: {}]
  %s3 = inlined_call_operand.vmem [shape: f32[2,1024], index: 3, kind: output, shape index: {}]
  %s4 = sld [smem:[#allocation0]]
  $region22: #{rscnn_ssn_forward.6} parent=0
    _
  %s6 = ssub.s32 1, %s4
  %s7 = scalar_select 0, %s6, %s4
  // Predicated region
  $region2: #{rscnn_ssn_forward.6} parent=0 // pred_check
    _
  $region3: #{rscnn_ssn_forward.6} parent=0 // pred_check_branch
    %9 = sbr.rel (0) target = $region5
  $region4: #{rscnn_ssn_forward.6} parent=0 // pred_region
    _
  $region5: #{rscnn_ssn_forward.6} parent=0 // pred_fallthru
    _
  // Predicated region
  $region6: #{rscnn_ssn_forward.6} parent=0 // pred_check
    _
  $region7: #{rscnn_ssn_forward.6} parent=0 // pred_check_branch
    %11 = sbr.rel (0) target = $region9
  $region8: #{rscnn_ssn_forward.6} parent=0 // pred_region
    _
  $region9: #{rscnn_ssn_forward.6} parent=0 // pred_fallthru
    _
  // Predicated region
  $region10: #{rscnn_ssn_forward.6} parent=0 // pred_check
    _
  $region11: #{rscnn_ssn_forward.6} parent=0 // pred_check_branch
    %13 = sbr.rel (0) target = $region13
  $region12: #{rscnn_ssn_forward.6} parent=0 // pred_region
    _
  $region13: #{rscnn_ssn_forward.6} parent=0 // pred_fallthru
    _
  %v15 = vld [vmem:[%s1] sm:$0xff]
  %v16 = vld [vmem:[%s1 + $0x8] sm:$0xff]
  %v17 = vld [vmem:[%s1 + $0x10] sm:$0xff]
  %v18 = vld [vmem:[%s1 + $0x18] sm:$0xff]
  %v19 = vld [vmem:[%s1 + $0x20] sm:$0xff]
  %v20 = vld [vmem:[%s1 + $0x28] sm:$0xff]
  %v21 = vld [vmem:[%s1 + $0x30] sm:$0xff]
  %v22 = vld [vmem:[%s1 + $0x38] sm:$0xff]
  %v23 = vld [vmem:[%s1 + $0x40] sm:$0xff]
  %v24 = vld [vmem:[%s1 + $0x48] sm:$0xff]
  %v25 = vld [vmem:[%s1 + $0x50] sm:$0xff]
  %v26 = vld [vmem:[%s1 + $0x58] sm:$0xff]
  %v27 = vld [vmem:[%s1 + $0x60] sm:$0xff]
  %v28 = vld [vmem:[%s1 + $0x68] sm:$0xff]
  %v29 = vld [vmem:[%s1 + $0x70] sm:$0xff]
  %v30 = vld [vmem:[%s1 + $0x78] sm:$0xff]
  %v31 = vld [vmem:[%s1 + $0x80] sm:$0xff]
  %v32 = vld [vmem:[%s1 + $0x88] sm:$0xff]
  %v33 = vld [vmem:[%s1 + $0x90] sm:$0xff]
  %v34 = vld [vmem:[%s1 + $0x98] sm:$0xff]
  %v35 = vld [vmem:[%s1 + $0xa0] sm:$0xff]
  %v36 = vld [vmem:[%s1 + $0xa8] sm:$0xff]
  %v37 = vld [vmem:[%s1 + $0xb0] sm:$0xff]
  %v38 = vld [vmem:[%s1 + $0xb8] sm:$0xff]
  %v39 = vld [vmem:[%s1 + $0xc0] sm:$0xff]
  %v40 = vld [vmem:[%s1 + $0xc8] sm:$0xff]
  %v41 = vld [vmem:[%s1 + $0xd0] sm:$0xff]
  %v42 = vld [vmem:[%s1 + $0xd8] sm:$0xff]
  %v43 = vld [vmem:[%s1 + $0xe0] sm:$0xff]
  %v44 = vld [vmem:[%s1 + $0xe8] sm:$0xff]
  %v45 = vld [vmem:[%s1 + $0xf0] sm:$0xff]
  %v46 = vld [vmem:[%s1 + $0xf8] sm:$0xff]
  %v47 = vld [vmem:[%s1 + $0x100] sm:$0xff]
  %v48 = vld [vmem:[%s1 + $0x108] sm:$0xff]
  %v49 = vld [vmem:[%s1 + $0x110] sm:$0xff]
  %v50 = vld [vmem:[%s1 + $0x118] sm:$0xff]
  %v51 = vld [vmem:[%s1 + $0x120] sm:$0xff]
  %v52 = vld [vmem:[%s1 + $0x128] sm:$0xff]
  %v53 = vld [vmem:[%s1 + $0x130] sm:$0xff]
  %v54 = vld [vmem:[%s1 + $0x138] sm:$0xff]
  %v55 = vld [vmem:[%s1 + $0x140] sm:$0xff]
  %v56 = vld [vmem:[%s1 + $0x148] sm:$0xff]
  %v57 = vld [vmem:[%s1 + $0x150] sm:$0xff]
  %v58 = vld [vmem:[%s1 + $0x158] sm:$0xff]
  %v59 = vld [vmem:[%s1 + $0x160] sm:$0xff]
  %v60 = vld [vmem:[%s1 + $0x168] sm:$0xff]
  %v61 = vld [vmem:[%s1 + $0x170] sm:$0xff]
  %v62 = vld [vmem:[%s1 + $0x178] sm:$0xff]
  %v63 = vld [vmem:[%s1 + $0x180] sm:$0xff]
  %v64 = vld [vmem:[%s1 + $0x188] sm:$0xff]
  %v65 = vld [vmem:[%s1 + $0x190] sm:$0xff]
  %v66 = vld [vmem:[%s1 + $0x198] sm:$0xff]
  %v67 = vld [vmem:[%s1 + $0x1a0] sm:$0xff]
  %v68 = vld [vmem:[%s1 + $0x1a8] sm:$0xff]
  %v69 = vld [vmem:[%s1 + $0x1b0] sm:$0xff]
  %v70 = vld [vmem:[%s1 + $0x1b8] sm:$0xff]
  %v71 = vld [vmem:[%s1 + $0x1c0] sm:$0xff]
  %v72 = vld [vmem:[%s1 + $0x1c8] sm:$0xff]
  %v73 = vld [vmem:[%s1 + $0x1d0] sm:$0xff]
  %v74 = vld [vmem:[%s1 + $0x1d8] sm:$0xff]
  %v75 = vld [vmem:[%s1 + $0x1e0] sm:$0xff]
  %v76 = vld [vmem:[%s1 + $0x1e8] sm:$0xff]
  %v77 = vld [vmem:[%s1 + $0x1f0] sm:$0xff]
  %v78 = vld [vmem:[%s1 + $0x1f8] sm:$0xff]
  %v79 = vld [vmem:[%s1 + $0x200] sm:$0xff]
  %v80 = vld [vmem:[%s1 + $0x208] sm:$0xff]
  %v81 = vld [vmem:[%s1 + $0x210] sm:$0xff]
  %v82 = vld [vmem:[%s1 + $0x218] sm:$0xff]
  %v83 = vld [vmem:[%s1 + $0x220] sm:$0xff]
  %v84 = vld [vmem:[%s1 + $0x228] sm:$0xff]
  %v85 = vld [vmem:[%s1 + $0x230] sm:$0xff]
  %v86 = vld [vmem:[%s1 + $0x238] sm:$0xff]
  %v87 = vld [vmem:[%s1 + $0x240] sm:$0xff]
  %v88 = vld [vmem:[%s1 + $0x248] sm:$0xff]
  %v89 = vld [vmem:[%s1 + $0x250] sm:$0xff]
  %v90 = vld [vmem:[%s1 + $0x258] sm:$0xff]
  %v91 = vld [vmem:[%s1 + $0x260] sm:$0xff]
  %v92 = vld [vmem:[%s1 + $0x268] sm:$0xff]
  %v93 = vld [vmem:[%s1 + $0x270] sm:$0xff]
  %v94 = vld [vmem:[%s1 + $0x278] sm:$0xff]
  %v95 = vld [vmem:[%s1 + $0x280] sm:$0xff]
  %v96 = vld [vmem:[%s1 + $0x288] sm:$0xff]
  %v97 = vld [vmem:[%s1 + $0x290] sm:$0xff]
  %v98 = vld [vmem:[%s1 + $0x298] sm:$0xff]
  %v99 = vld [vmem:[%s1 + $0x2a0] sm:$0xff]
  %v100 = vld [vmem:[%s1 + $0x2a8] sm:$0xff]
  %v101 = vld [vmem:[%s1 + $0x2b0] sm:$0xff]
  %v102 = vld [vmem:[%s1 + $0x2b8] sm:$0xff]
  %v103 = vld [vmem:[%s1 + $0x2c0] sm:$0xff]
  %v104 = vld [vmem:[%s1 + $0x2c8] sm:$0xff]
  %v105 = vld [vmem:[%s1 + $0x2d0] sm:$0xff]
  %v106 = vld [vmem:[%s1 + $0x2d8] sm:$0xff]
  %v107 = vld [vmem:[%s1 + $0x2e0] sm:$0xff]
  %v108 = vld [vmem:[%s1 + $0x2e8] sm:$0xff]
  %v109 = vld [vmem:[%s1 + $0x2f0] sm:$0xff]
  %v110 = vld [vmem:[%s1 + $0x2f8] sm:$0xff]
  %v111 = vld [vmem:[%s1 + $0x300] sm:$0xff]
  %v112 = vld [vmem:[%s1 + $0x308] sm:$0xff]
  %v113 = vld [vmem:[%s1 + $0x310] sm:$0xff]
  %v114 = vld [vmem:[%s1 + $0x318] sm:$0xff]
  %v115 = vld [vmem:[%s1 + $0x320] sm:$0xff]
  %v116 = vld [vmem:[%s1 + $0x328] sm:$0xff]
  %v117 = vld [vmem:[%s1 + $0x330] sm:$0xff]
  %v118 = vld [vmem:[%s1 + $0x338] sm:$0xff]
  %v119 = vld [vmem:[%s1 + $0x340] sm:$0xff]
  %v120 = vld [vmem:[%s1 + $0x348] sm:$0xff]
  %v121 = vld [vmem:[%s1 + $0x350] sm:$0xff]
  %v122 = vld [vmem:[%s1 + $0x358] sm:$0xff]
  %v123 = vld [vmem:[%s1 + $0x360] sm:$0xff]
  %v124 = vld [vmem:[%s1 + $0x368] sm:$0xff]
  %v125 = vld [vmem:[%s1 + $0x370] sm:$0xff]
  %v126 = vld [vmem:[%s1 + $0x378] sm:$0xff]
  %v127 = vld [vmem:[%s1 + $0x380] sm:$0xff]
  %v128 = vld [vmem:[%s1 + $0x388] sm:$0xff]
  %v129 = vld [vmem:[%s1 + $0x390] sm:$0xff]
  %v130 = vld [vmem:[%s1 + $0x398] sm:$0xff]
  %v131 = vld [vmem:[%s1 + $0x3a0] sm:$0xff]
  %v132 = vld [vmem:[%s1 + $0x3a8] sm:$0xff]
  %v133 = vld [vmem:[%s1 + $0x3b0] sm:$0xff]
  %v134 = vld [vmem:[%s1 + $0x3b8] sm:$0xff]
  %v135 = vld [vmem:[%s1 + $0x3c0] sm:$0xff]
  %v136 = vld [vmem:[%s1 + $0x3c8] sm:$0xff]
  %v137 = vld [vmem:[%s1 + $0x3d0] sm:$0xff]
  %v138 = vld [vmem:[%s1 + $0x3d8] sm:$0xff]
  %v139 = vld [vmem:[%s1 + $0x3e0] sm:$0xff]
  %v140 = vld [vmem:[%s1 + $0x3e8] sm:$0xff]
  %v141 = vld [vmem:[%s1 + $0x3f0] sm:$0xff]
  %v142 = vld [vmem:[%s1 + $0x3f8] sm:$0xff]
  %v143 = vld [vmem:[%s1 + $0x400] sm:$0xff]
  %v144 = vld [vmem:[%s1 + $0x408] sm:$0xff]
  %v145 = vld [vmem:[%s1 + $0x410] sm:$0xff]
  %v146 = vld [vmem:[%s1 + $0x418] sm:$0xff]
  %v147 = vld [vmem:[%s1 + $0x420] sm:$0xff]
  %v148 = vld [vmem:[%s1 + $0x428] sm:$0xff]
  %v149 = vld [vmem:[%s1 + $0x430] sm:$0xff]
  %v150 = vld [vmem:[%s1 + $0x438] sm:$0xff]
  %v151 = vld [vmem:[%s1 + $0x440] sm:$0xff]
  %v152 = vld [vmem:[%s1 + $0x448] sm:$0xff]
  %v153 = vld [vmem:[%s1 + $0x450] sm:$0xff]
  %v154 = vld [vmem:[%s1 + $0x458] sm:$0xff]
  %v155 = vld [vmem:[%s1 + $0x460] sm:$0xff]
  %v156 = vld [vmem:[%s1 + $0x468] sm:$0xff]
  %v157 = vld [vmem:[%s1 + $0x470] sm:$0xff]
  %v158 = vld [vmem:[%s1 + $0x478] sm:$0xff]
  %v159 = vld [vmem:[%s1 + $0x480] sm:$0xff]
  %v160 = vld [vmem:[%s1 + $0x488] sm:$0xff]
  %v161 = vld [vmem:[%s1 + $0x490] sm:$0xff]
  %v162 = vld [vmem:[%s1 + $0x498] sm:$0xff]
  %v163 = vld [vmem:[%s1 + $0x4a0] sm:$0xff]
  %v164 = vld [vmem:[%s1 + $0x4a8] sm:$0xff]
  %v165 = vld [vmem:[%s1 + $0x4b0] sm:$0xff]
  %v166 = vld [vmem:[%s1 + $0x4b8] sm:$0xff]
  %v167 = vld [vmem:[%s1 + $0x4c0] sm:$0xff]
  %v168 = vld [vmem:[%s1 + $0x4c8] sm:$0xff]
  %v169 = vld [vmem:[%s1 + $0x4d0] sm:$0xff]
  %v170 = vld [vmem:[%s1 + $0x4d8] sm:$0xff]
  %v171 = vld [vmem:[%s1 + $0x4e0] sm:$0xff]
  %v172 = vld [vmem:[%s1 + $0x4e8] sm:$0xff]
  %v173 = vld [vmem:[%s1 + $0x4f0] sm:$0xff]
  %v174 = vld [vmem:[%s1 + $0x4f8] sm:$0xff]
  %v175 = vld [vmem:[%s1 + $0x500] sm:$0xff]
  %v176 = vld [vmem:[%s1 + $0x508] sm:$0xff]
  %v177 = vld [vmem:[%s1 + $0x510] sm:$0xff]
  %v178 = vld [vmem:[%s1 + $0x518] sm:$0xff]
  %v179 = vld [vmem:[%s1 + $0x520] sm:$0xff]
  %v180 = vld [vmem:[%s1 + $0x528] sm:$0xff]
  %v181 = vld [vmem:[%s1 + $0x530] sm:$0xff]
  %v182 = vld [vmem:[%s1 + $0x538] sm:$0xff]
  %v183 = vld [vmem:[%s1 + $0x540] sm:$0xff]
  %v184 = vld [vmem:[%s1 + $0x548] sm:$0xff]
  %v185 = vld [vmem:[%s1 + $0x550] sm:$0xff]
  %v186 = vld [vmem:[%s1 + $0x558] sm:$0xff]
  %v187 = vld [vmem:[%s1 + $0x560] sm:$0xff]
  %v188 = vld [vmem:[%s1 + $0x568] sm:$0xff]
  %v189 = vld [vmem:[%s1 + $0x570] sm:$0xff]
  %v190 = vld [vmem:[%s1 + $0x578] sm:$0xff]
  %v191 = vld [vmem:[%s1 + $0x580] sm:$0xff]
  %v192 = vld [vmem:[%s1 + $0x588] sm:$0xff]
  %v193 = vld [vmem:[%s1 + $0x590] sm:$0xff]
  %v194 = vld [vmem:[%s1 + $0x598] sm:$0xff]
  %v195 = vld [vmem:[%s1 + $0x5a0] sm:$0xff]
  %v196 = vld [vmem:[%s1 + $0x5a8] sm:$0xff]
  %v197 = vld [vmem:[%s1 + $0x5b0] sm:$0xff]
  %v198 = vld [vmem:[%s1 + $0x5b8] sm:$0xff]
  %v199 = vld [vmem:[%s1 + $0x5c0] sm:$0xff]
  %v200 = vld [vmem:[%s1 + $0x5c8] sm:$0xff]
  %v201 = vld [vmem:[%s1 + $0x5d0] sm:$0xff]
  %v202 = vld [vmem:[%s1 + $0x5d8] sm:$0xff]
  %v203 = vld [vmem:[%s1 + $0x5e0] sm:$0xff]
  %v204 = vld [vmem:[%s1 + $0x5e8] sm:$0xff]
  %v205 = vld [vmem:[%s1 + $0x5f0] sm:$0xff]
  %v206 = vld [vmem:[%s1 + $0x5f8] sm:$0xff]
  %v207 = vld [vmem:[%s1 + $0x600] sm:$0xff]
  %v208 = vld [vmem:[%s1 + $0x608] sm:$0xff]
  %v209 = vld [vmem:[%s1 + $0x610] sm:$0xff]
  %v210 = vld [vmem:[%s1 + $0x618] sm:$0xff]
  %v211 = vld [vmem:[%s1 + $0x620] sm:$0xff]
  %v212 = vld [vmem:[%s1 + $0x628] sm:$0xff]
  %v213 = vld [vmem:[%s1 + $0x630] sm:$0xff]
  %v214 = vld [vmem:[%s1 + $0x638] sm:$0xff]
  %v215 = vld [vmem:[%s1 + $0x640] sm:$0xff]
  %v216 = vld [vmem:[%s1 + $0x648] sm:$0xff]
  %v217 = vld [vmem:[%s1 + $0x650] sm:$0xff]
  %v218 = vld [vmem:[%s1 + $0x658] sm:$0xff]
  %v219 = vld [vmem:[%s1 + $0x660] sm:$0xff]
  %v220 = vld [vmem:[%s1 + $0x668] sm:$0xff]
  %v221 = vld [vmem:[%s1 + $0x670] sm:$0xff]
  %v222 = vld [vmem:[%s1 + $0x678] sm:$0xff]
  %v223 = vld [vmem:[%s1 + $0x680] sm:$0xff]
  %v224 = vld [vmem:[%s1 + $0x688] sm:$0xff]
  %v225 = vld [vmem:[%s1 + $0x690] sm:$0xff]
  %v226 = vld [vmem:[%s1 + $0x698] sm:$0xff]
  %v227 = vld [vmem:[%s1 + $0x6a0] sm:$0xff]
  %v228 = vld [vmem:[%s1 + $0x6a8] sm:$0xff]
  %v229 = vld [vmem:[%s1 + $0x6b0] sm:$0xff]
  %v230 = vld [vmem:[%s1 + $0x6b8] sm:$0xff]
  %v231 = vld [vmem:[%s1 + $0x6c0] sm:$0xff]
  %v232 = vld [vmem:[%s1 + $0x6c8] sm:$0xff]
  %v233 = vld [vmem:[%s1 + $0x6d0] sm:$0xff]
  %v234 = vld [vmem:[%s1 + $0x6d8] sm:$0xff]
  %v235 = vld [vmem:[%s1 + $0x6e0] sm:$0xff]
  %v236 = vld [vmem:[%s1 + $0x6e8] sm:$0xff]
  %v237 = vld [vmem:[%s1 + $0x6f0] sm:$0xff]
  %v238 = vld [vmem:[%s1 + $0x6f8] sm:$0xff]
  %v239 = vld [vmem:[%s1 + $0x700] sm:$0xff]
  %v240 = vld [vmem:[%s1 + $0x708] sm:$0xff]
  %v241 = vld [vmem:[%s1 + $0x710] sm:$0xff]
  %v242 = vld [vmem:[%s1 + $0x718] sm:$0xff]
  %v243 = vld [vmem:[%s1 + $0x720] sm:$0xff]
  %v244 = vld [vmem:[%s1 + $0x728] sm:$0xff]
  %v245 = vld [vmem:[%s1 + $0x730] sm:$0xff]
  %v246 = vld [vmem:[%s1 + $0x738] sm:$0xff]
  %v247 = vld [vmem:[%s1 + $0x740] sm:$0xff]
  %v248 = vld [vmem:[%s1 + $0x748] sm:$0xff]
  %v249 = vld [vmem:[%s1 + $0x750] sm:$0xff]
  %v250 = vld [vmem:[%s1 + $0x758] sm:$0xff]
  %v251 = vld [vmem:[%s1 + $0x760] sm:$0xff]
  %v252 = vld [vmem:[%s1 + $0x768] sm:$0xff]
  %v253 = vld [vmem:[%s1 + $0x770] sm:$0xff]
  %v254 = vld [vmem:[%s1 + $0x778] sm:$0xff]
  %v255 = vld [vmem:[%s1 + $0x780] sm:$0xff]
  %v256 = vld [vmem:[%s1 + $0x788] sm:$0xff]
  %v257 = vld [vmem:[%s1 + $0x790] sm:$0xff]
  %v258 = vld [vmem:[%s1 + $0x798] sm:$0xff]
  %v259 = vld [vmem:[%s1 + $0x7a0] sm:$0xff]
  %v260 = vld [vmem:[%s1 + $0x7a8] sm:$0xff]
  %v261 = vld [vmem:[%s1 + $0x7b0] sm:$0xff]
  %v262 = vld [vmem:[%s1 + $0x7b8] sm:$0xff]
  %v263 = vld [vmem:[%s1 + $0x7c0] sm:$0xff]
  %v264 = vld [vmem:[%s1 + $0x7c8] sm:$0xff]
  %v265 = vld [vmem:[%s1 + $0x7d0] sm:$0xff]
  %v266 = vld [vmem:[%s1 + $0x7d8] sm:$0xff]
  %v267 = vld [vmem:[%s1 + $0x7e0] sm:$0xff]
  %v268 = vld [vmem:[%s1 + $0x7e8] sm:$0xff]
  %v269 = vld [vmem:[%s1 + $0x7f0] sm:$0xff]
  %v270 = vld [vmem:[%s1 + $0x7f8] sm:$0xff]
  %v271 = vld [vmem:[%s1 + $0x800] sm:$0xff]
  %v272 = vld [vmem:[%s1 + $0x808] sm:$0xff]
  %v273 = vld [vmem:[%s1 + $0x810] sm:$0xff]
  %v274 = vld [vmem:[%s1 + $0x818] sm:$0xff]
  %v275 = vld [vmem:[%s1 + $0x820] sm:$0xff]
  %v276 = vld [vmem:[%s1 + $0x828] sm:$0xff]
  %v277 = vld [vmem:[%s1 + $0x830] sm:$0xff]
  %v278 = vld [vmem:[%s1 + $0x838] sm:$0xff]
  %v279 = vld [vmem:[%s1 + $0x840] sm:$0xff]
  %v280 = vld [vmem:[%s1 + $0x848] sm:$0xff]
  %v281 = vld [vmem:[%s1 + $0x850] sm:$0xff]
  %v282 = vld [vmem:[%s1 + $0x858] sm:$0xff]
  %v283 = vld [vmem:[%s1 + $0x860] sm:$0xff]
  %v284 = vld [vmem:[%s1 + $0x868] sm:$0xff]
  %v285 = vld [vmem:[%s1 + $0x870] sm:$0xff]
  %v286 = vld [vmem:[%s1 + $0x878] sm:$0xff]
  %v287 = vld [vmem:[%s1 + $0x880] sm:$0xff]
  %v288 = vld [vmem:[%s1 + $0x888] sm:$0xff]
  %v289 = vld [vmem:[%s1 + $0x890] sm:$0xff]
  %v290 = vld [vmem:[%s1 + $0x898] sm:$0xff]
  %v291 = vld [vmem:[%s1 + $0x8a0] sm:$0xff]
  %v292 = vld [vmem:[%s1 + $0x8a8] sm:$0xff]
  %v293 = vld [vmem:[%s1 + $0x8b0] sm:$0xff]
  %v294 = vld [vmem:[%s1 + $0x8b8] sm:$0xff]
  %v295 = vld [vmem:[%s1 + $0x8c0] sm:$0xff]
  %v296 = vld [vmem:[%s1 + $0x8c8] sm:$0xff]
  %v297 = vld [vmem:[%s1 + $0x8d0] sm:$0xff]
  %v298 = vld [vmem:[%s1 + $0x8d8] sm:$0xff]
  %v299 = vld [vmem:[%s1 + $0x8e0] sm:$0xff]
  %v300 = vld [vmem:[%s1 + $0x8e8] sm:$0xff]
  %v301 = vld [vmem:[%s1 + $0x8f0] sm:$0xff]
  %v302 = vld [vmem:[%s1 + $0x8f8] sm:$0xff]
  %v303 = vld [vmem:[%s1 + $0x900] sm:$0xff]
  %v304 = vld [vmem:[%s1 + $0x908] sm:$0xff]
  %v305 = vld [vmem:[%s1 + $0x910] sm:$0xff]
  %v306 = vld [vmem:[%s1 + $0x918] sm:$0xff]
  %v307 = vld [vmem:[%s1 + $0x920] sm:$0xff]
  %v308 = vld [vmem:[%s1 + $0x928] sm:$0xff]
  %v309 = vld [vmem:[%s1 + $0x930] sm:$0xff]
  %v310 = vld [vmem:[%s1 + $0x938] sm:$0xff]
  %v311 = vld [vmem:[%s1 + $0x940] sm:$0xff]
  %v312 = vld [vmem:[%s1 + $0x948] sm:$0xff]
  %v313 = vld [vmem:[%s1 + $0x950] sm:$0xff]
  %v314 = vld [vmem:[%s1 + $0x958] sm:$0xff]
  %v315 = vld [vmem:[%s1 + $0x960] sm:$0xff]
  %v316 = vld [vmem:[%s1 + $0x968] sm:$0xff]
  %v317 = vld [vmem:[%s1 + $0x970] sm:$0xff]
  %v318 = vld [vmem:[%s1 + $0x978] sm:$0xff]
  %v319 = vld [vmem:[%s1 + $0x980] sm:$0xff]
  %v320 = vld [vmem:[%s1 + $0x988] sm:$0xff]
  %v321 = vld [vmem:[%s1 + $0x990] sm:$0xff]
  %v322 = vld [vmem:[%s1 + $0x998] sm:$0xff]
  %v323 = vld [vmem:[%s1 + $0x9a0] sm:$0xff]
  %v324 = vld [vmem:[%s1 + $0x9a8] sm:$0xff]
  %v325 = vld [vmem:[%s1 + $0x9b0] sm:$0xff]
  %v326 = vld [vmem:[%s1 + $0x9b8] sm:$0xff]
  %v327 = vld [vmem:[%s1 + $0x9c0] sm:$0xff]
  %v328 = vld [vmem:[%s1 + $0x9c8] sm:$0xff]
  %v329 = vld [vmem:[%s1 + $0x9d0] sm:$0xff]
  %v330 = vld [vmem:[%s1 + $0x9d8] sm:$0xff]
  %v331 = vld [vmem:[%s1 + $0x9e0] sm:$0xff]
  %v332 = vld [vmem:[%s1 + $0x9e8] sm:$0xff]
  %v333 = vld [vmem:[%s1 + $0x9f0] sm:$0xff]
  %v334 = vld [vmem:[%s1 + $0x9f8] sm:$0xff]
  %v335 = vld [vmem:[%s2] sm:$0xff]
  %v336 = vld [vmem:[%s0] sm:$0xff]
  %v337 = vld [vmem:[%s0 + $0x8] sm:$0xff]
  %v338 = vld [vmem:[%s0 + $0x10] sm:$0xf]
  %v339 = vld [vmem:[%s0 + $0x28] sm:$0xff]
  %v340 = vld [vmem:[%s0 + $0x30] sm:$0xff]
  %v341 = vld [vmem:[%s0 + $0x38] sm:$0xf]
  %v343 = vlaneseq
  %v344 = vshrl.u32 %v343, 7
  %v345 = vsub.s32 0, %v344
  %v346 = vrot.slane %v335, %v345
  %v347 = vlaneseq
  %v348 = vshrl.u32 %v347, 7
  %v349 = vsub.s32 1, %v348
  %v350 = vrot.slane %v335, %v349
  %v351 = vlaneseq
  %v352 = vshrl.u32 %v351, 7
  %v353 = vsub.s32 2, %v352
  %v354 = vrot.slane %v335, %v353
  %v355 = vlaneseq
  %v356 = vshrl.u32 %v355, 7
  %v357 = vsub.s32 3, %v356
  %v358 = vrot.slane %v335, %v357
  %v359 = vlaneseq
  %v360 = vshrl.u32 %v359, 7
  %v361 = vsub.s32 4, %v360
  %v362 = vrot.slane %v335, %v361
  %v363 = vlaneseq
  %v364 = vshrl.u32 %v363, 7
  %v365 = vsub.s32 5, %v364
  %v366 = vrot.slane %v335, %v365
  %v367 = vlaneseq
  %v368 = vshrl.u32 %v367, 7
  %v369 = vsub.s32 6, %v368
  %v370 = vrot.slane %v335, %v369
  %v371 = vlaneseq
  %v372 = vshrl.u32 %v371, 7
  %v373 = vsub.s32 7, %v372
  %v374 = vrot.slane %v335, %v373
  %v389 = vunpack.c.l.b16 %v336
  %v390 = vunpack.c.h.b16 %v336
  %v391 = vunpack.c.l.b16 %v337
  %v392 = vunpack.c.h.b16 %v337
  %v393 = vunpack.c.l.b16 %v338
  %v394 = vunpack.c.l.b16 %v339
  %v395 = vunpack.c.h.b16 %v339
  %v396 = vunpack.c.l.b16 %v340
  %v397 = vunpack.c.h.b16 %v340
  %v398 = vunpack.c.l.b16 %v341
  %v399 = vpack.c.b16 %v394, %v389
  %v400 = vpack.c.b16 %v395, %v390
  %v401 = vpack.c.b16 %v396, %v391
  %v402 = vpack.c.b16 %v397, %v392
  %v403 = vpack.c.b16 %v398, %v393
  %v729 = vunpack.c.l.b16 %v15
  %v730 = vunpack.c.h.b16 %v15
  %v731 = vunpack.c.l.b16 %v16
  %v732 = vunpack.c.h.b16 %v16
  %v733 = vunpack.c.l.b16 %v17
  %v734 = vunpack.c.h.b16 %v17
  %v735 = vunpack.c.l.b16 %v18
  %v736 = vunpack.c.h.b16 %v18
  %v737 = vunpack.c.l.b16 %v19
  %v738 = vunpack.c.h.b16 %v19
  %v739 = vunpack.c.l.b16 %v20
  %v740 = vunpack.c.h.b16 %v20
  %v741 = vunpack.c.l.b16 %v21
  %v742 = vunpack.c.h.b16 %v21
  %v743 = vunpack.c.l.b16 %v22
  %v744 = vunpack.c.h.b16 %v22
  %v745 = vunpack.c.l.b16 %v23
  %v746 = vunpack.c.h.b16 %v23
  %v747 = vunpack.c.l.b16 %v24
  %v748 = vunpack.c.h.b16 %v24
  %v749 = vunpack.c.l.b16 %v25
  %v750 = vunpack.c.h.b16 %v25
  %v751 = vunpack.c.l.b16 %v26
  %v752 = vunpack.c.h.b16 %v26
  %v753 = vunpack.c.l.b16 %v27
  %v754 = vunpack.c.h.b16 %v27
  %v755 = vunpack.c.l.b16 %v28
  %v756 = vunpack.c.h.b16 %v28
  %v757 = vunpack.c.l.b16 %v29
  %v758 = vunpack.c.h.b16 %v29
  %v759 = vunpack.c.l.b16 %v30
  %v760 = vunpack.c.h.b16 %v30
  %v761 = vunpack.c.l.b16 %v31
  %v762 = vunpack.c.h.b16 %v31
  %v763 = vunpack.c.l.b16 %v32
  %v764 = vunpack.c.h.b16 %v32
  %v765 = vunpack.c.l.b16 %v33
  %v766 = vunpack.c.h.b16 %v33
  %v767 = vunpack.c.l.b16 %v34
  %v768 = vunpack.c.h.b16 %v34
  %v769 = vunpack.c.l.b16 %v35
  %v770 = vunpack.c.h.b16 %v35
  %v771 = vunpack.c.l.b16 %v36
  %v772 = vunpack.c.h.b16 %v36
  %v773 = vunpack.c.l.b16 %v37
  %v774 = vunpack.c.h.b16 %v37
  %v775 = vunpack.c.l.b16 %v38
  %v776 = vunpack.c.h.b16 %v38
  %v777 = vunpack.c.l.b16 %v39
  %v778 = vunpack.c.h.b16 %v39
  %v779 = vunpack.c.l.b16 %v40
  %v780 = vunpack.c.h.b16 %v40
  %v781 = vunpack.c.l.b16 %v41
  %v782 = vunpack.c.h.b16 %v41
  %v783 = vunpack.c.l.b16 %v42
  %v784 = vunpack.c.h.b16 %v42
  %v785 = vunpack.c.l.b16 %v43
  %v786 = vunpack.c.h.b16 %v43
  %v787 = vunpack.c.l.b16 %v44
  %v788 = vunpack.c.h.b16 %v44
  %v789 = vunpack.c.l.b16 %v45
  %v790 = vunpack.c.h.b16 %v45
  %v791 = vunpack.c.l.b16 %v46
  %v792 = vunpack.c.h.b16 %v46
  %v793 = vunpack.c.l.b16 %v47
  %v794 = vunpack.c.h.b16 %v47
  %v795 = vunpack.c.l.b16 %v48
  %v796 = vunpack.c.h.b16 %v48
  %v797 = vunpack.c.l.b16 %v49
  %v798 = vunpack.c.h.b16 %v49
  %v799 = vunpack.c.l.b16 %v50
  %v800 = vunpack.c.h.b16 %v50
  %v801 = vunpack.c.l.b16 %v51
  %v802 = vunpack.c.h.b16 %v51
  %v803 = vunpack.c.l.b16 %v52
  %v804 = vunpack.c.h.b16 %v52
  %v805 = vunpack.c.l.b16 %v53
  %v806 = vunpack.c.h.b16 %v53
  %v807 = vunpack.c.l.b16 %v54
  %v808 = vunpack.c.h.b16 %v54
  %v809 = vunpack.c.l.b16 %v55
  %v810 = vunpack.c.h.b16 %v55
  %v811 = vunpack.c.l.b16 %v56
  %v812 = vunpack.c.h.b16 %v56
  %v813 = vunpack.c.l.b16 %v57
  %v814 = vunpack.c.h.b16 %v57
  %v815 = vunpack.c.l.b16 %v58
  %v816 = vunpack.c.h.b16 %v58
  %v817 = vunpack.c.l.b16 %v59
  %v818 = vunpack.c.h.b16 %v59
  %v819 = vunpack.c.l.b16 %v60
  %v820 = vunpack.c.h.b16 %v60
  %v821 = vunpack.c.l.b16 %v61
  %v822 = vunpack.c.h.b16 %v61
  %v823 = vunpack.c.l.b16 %v62
  %v824 = vunpack.c.h.b16 %v62
  %v825 = vunpack.c.l.b16 %v63
  %v826 = vunpack.c.h.b16 %v63
  %v827 = vunpack.c.l.b16 %v64
  %v828 = vunpack.c.h.b16 %v64
  %v829 = vunpack.c.l.b16 %v65
  %v830 = vunpack.c.h.b16 %v65
  %v831 = vunpack.c.l.b16 %v66
  %v832 = vunpack.c.h.b16 %v66
  %v833 = vunpack.c.l.b16 %v67
  %v834 = vunpack.c.h.b16 %v67
  %v835 = vunpack.c.l.b16 %v68
  %v836 = vunpack.c.h.b16 %v68
  %v837 = vunpack.c.l.b16 %v69
  %v838 = vunpack.c.h.b16 %v69
  %v839 = vunpack.c.l.b16 %v70
  %v840 = vunpack.c.h.b16 %v70
  %v841 = vunpack.c.l.b16 %v71
  %v842 = vunpack.c.h.b16 %v71
  %v843 = vunpack.c.l.b16 %v72
  %v844 = vunpack.c.h.b16 %v72
  %v845 = vunpack.c.l.b16 %v73
  %v846 = vunpack.c.h.b16 %v73
  %v847 = vunpack.c.l.b16 %v74
  %v848 = vunpack.c.h.b16 %v74
  %v849 = vunpack.c.l.b16 %v75
  %v850 = vunpack.c.h.b16 %v75
  %v851 = vunpack.c.l.b16 %v76
  %v852 = vunpack.c.h.b16 %v76
  %v853 = vunpack.c.l.b16 %v77
  %v854 = vunpack.c.h.b16 %v77
  %v855 = vunpack.c.l.b16 %v78
  %v856 = vunpack.c.h.b16 %v78
  %v857 = vunpack.c.l.b16 %v79
  %v858 = vunpack.c.h.b16 %v79
  %v859 = vunpack.c.l.b16 %v80
  %v860 = vunpack.c.h.b16 %v80
  %v861 = vunpack.c.l.b16 %v81
  %v862 = vunpack.c.h.b16 %v81
  %v863 = vunpack.c.l.b16 %v82
  %v864 = vunpack.c.h.b16 %v82
  %v865 = vunpack.c.l.b16 %v83
  %v866 = vunpack.c.h.b16 %v83
  %v867 = vunpack.c.l.b16 %v84
  %v868 = vunpack.c.h.b16 %v84
  %v869 = vunpack.c.l.b16 %v85
  %v870 = vunpack.c.h.b16 %v85
  %v871 = vunpack.c.l.b16 %v86
  %v872 = vunpack.c.h.b16 %v86
  %v873 = vunpack.c.l.b16 %v87
  %v874 = vunpack.c.h.b16 %v87
  %v875 = vunpack.c.l.b16 %v88
  %v876 = vunpack.c.h.b16 %v88
  %v877 = vunpack.c.l.b16 %v89
  %v878 = vunpack.c.h.b16 %v89
  %v879 = vunpack.c.l.b16 %v90
  %v880 = vunpack.c.h.b16 %v90
  %v881 = vunpack.c.l.b16 %v91
  %v882 = vunpack.c.h.b16 %v91
  %v883 = vunpack.c.l.b16 %v92
  %v884 = vunpack.c.h.b16 %v92
  %v885 = vunpack.c.l.b16 %v93
  %v886 = vunpack.c.h.b16 %v93
  %v887 = vunpack.c.l.b16 %v94
  %v888 = vunpack.c.h.b16 %v94
  %v889 = vunpack.c.l.b16 %v95
  %v890 = vunpack.c.h.b16 %v95
  %v891 = vunpack.c.l.b16 %v96
  %v892 = vunpack.c.h.b16 %v96
  %v893 = vunpack.c.l.b16 %v97
  %v894 = vunpack.c.h.b16 %v97
  %v895 = vunpack.c.l.b16 %v98
  %v896 = vunpack.c.h.b16 %v98
  %v897 = vunpack.c.l.b16 %v99
  %v898 = vunpack.c.h.b16 %v99
  %v899 = vunpack.c.l.b16 %v100
  %v900 = vunpack.c.h.b16 %v100
  %v901 = vunpack.c.l.b16 %v101
  %v902 = vunpack.c.h.b16 %v101
  %v903 = vunpack.c.l.b16 %v102
  %v904 = vunpack.c.h.b16 %v102
  %v905 = vunpack.c.l.b16 %v103
  %v906 = vunpack.c.h.b16 %v103
  %v907 = vunpack.c.l.b16 %v104
  %v908 = vunpack.c.h.b16 %v104
  %v909 = vunpack.c.l.b16 %v105
  %v910 = vunpack.c.h.b16 %v105
  %v911 = vunpack.c.l.b16 %v106
  %v912 = vunpack.c.h.b16 %v106
  %v913 = vunpack.c.l.b16 %v107
  %v914 = vunpack.c.h.b16 %v107
  %v915 = vunpack.c.l.b16 %v108
  %v916 = vunpack.c.h.b16 %v108
  %v917 = vunpack.c.l.b16 %v109
  %v918 = vunpack.c.h.b16 %v109
  %v919 = vunpack.c.l.b16 %v110
  %v920 = vunpack.c.h.b16 %v110
  %v921 = vunpack.c.l.b16 %v111
  %v922 = vunpack.c.h.b16 %v111
  %v923 = vunpack.c.l.b16 %v112
  %v924 = vunpack.c.h.b16 %v112
  %v925 = vunpack.c.l.b16 %v113
  %v926 = vunpack.c.h.b16 %v113
  %v927 = vunpack.c.l.b16 %v114
  %v928 = vunpack.c.h.b16 %v114
  %v929 = vunpack.c.l.b16 %v115
  %v930 = vunpack.c.h.b16 %v115
  %v931 = vunpack.c.l.b16 %v116
  %v932 = vunpack.c.h.b16 %v116
  %v933 = vunpack.c.l.b16 %v117
  %v934 = vunpack.c.h.b16 %v117
  %v935 = vunpack.c.l.b16 %v118
  %v936 = vunpack.c.h.b16 %v118
  %v937 = vunpack.c.l.b16 %v119
  %v938 = vunpack.c.h.b16 %v119
  %v939 = vunpack.c.l.b16 %v120
  %v940 = vunpack.c.h.b16 %v120
  %v941 = vunpack.c.l.b16 %v121
  %v942 = vunpack.c.h.b16 %v121
  %v943 = vunpack.c.l.b16 %v122
  %v944 = vunpack.c.h.b16 %v122
  %v945 = vunpack.c.l.b16 %v123
  %v946 = vunpack.c.h.b16 %v123
  %v947 = vunpack.c.l.b16 %v124
  %v948 = vunpack.c.h.b16 %v124
  %v949 = vunpack.c.l.b16 %v125
  %v950 = vunpack.c.h.b16 %v125
  %v951 = vunpack.c.l.b16 %v126
  %v952 = vunpack.c.h.b16 %v126
  %v953 = vunpack.c.l.b16 %v127
  %v954 = vunpack.c.h.b16 %v127
  %v955 = vunpack.c.l.b16 %v128
  %v956 = vunpack.c.h.b16 %v128
  %v957 = vunpack.c.l.b16 %v129
  %v958 = vunpack.c.h.b16 %v129
  %v959 = vunpack.c.l.b16 %v130
  %v960 = vunpack.c.h.b16 %v130
  %v961 = vunpack.c.l.b16 %v131
  %v962 = vunpack.c.h.b16 %v131
  %v963 = vunpack.c.l.b16 %v132
  %v964 = vunpack.c.h.b16 %v132
  %v965 = vunpack.c.l.b16 %v133
  %v966 = vunpack.c.h.b16 %v133
  %v967 = vunpack.c.l.b16 %v134
  %v968 = vunpack.c.h.b16 %v134
  %v969 = vunpack.c.l.b16 %v135
  %v970 = vunpack.c.h.b16 %v135
  %v971 = vunpack.c.l.b16 %v136
  %v972 = vunpack.c.h.b16 %v136
  %v973 = vunpack.c.l.b16 %v137
  %v974 = vunpack.c.h.b16 %v137
  %v975 = vunpack.c.l.b16 %v138
  %v976 = vunpack.c.h.b16 %v138
  %v977 = vunpack.c.l.b16 %v139
  %v978 = vunpack.c.h.b16 %v139
  %v979 = vunpack.c.l.b16 %v140
  %v980 = vunpack.c.h.b16 %v140
  %v981 = vunpack.c.l.b16 %v141
  %v982 = vunpack.c.h.b16 %v141
  %v983 = vunpack.c.l.b16 %v142
  %v984 = vunpack.c.h.b16 %v142
  %v985 = vunpack.c.l.b16 %v143
  %v986 = vunpack.c.h.b16 %v143
  %v987 = vunpack.c.l.b16 %v144
  %v988 = vunpack.c.h.b16 %v144
  %v989 = vunpack.c.l.b16 %v145
  %v990 = vunpack.c.h.b16 %v145
  %v991 = vunpack.c.l.b16 %v146
  %v992 = vunpack.c.h.b16 %v146
  %v993 = vunpack.c.l.b16 %v147
  %v994 = vunpack.c.h.b16 %v147
  %v995 = vunpack.c.l.b16 %v148
  %v996 = vunpack.c.h.b16 %v148
  %v997 = vunpack.c.l.b16 %v149
  %v998 = vunpack.c.h.b16 %v149
  %v999 = vunpack.c.l.b16 %v150
  %v1000 = vunpack.c.h.b16 %v150
  %v1001 = vunpack.c.l.b16 %v151
  %v1002 = vunpack.c.h.b16 %v151
  %v1003 = vunpack.c.l.b16 %v152
  %v1004 = vunpack.c.h.b16 %v152
  %v1005 = vunpack.c.l.b16 %v153
  %v1006 = vunpack.c.h.b16 %v153
  %v1007 = vunpack.c.l.b16 %v154
  %v1008 = vunpack.c.h.b16 %v154
  %v1009 = vunpack.c.l.b16 %v155
  %v1010 = vunpack.c.h.b16 %v155
  %v1011 = vunpack.c.l.b16 %v156
  %v1012 = vunpack.c.h.b16 %v156
  %v1013 = vunpack.c.l.b16 %v157
  %v1014 = vunpack.c.h.b16 %v157
  %v1015 = vunpack.c.l.b16 %v158
  %v1016 = vunpack.c.h.b16 %v158
  %v1017 = vunpack.c.l.b16 %v159
  %v1018 = vunpack.c.h.b16 %v159
  %v1019 = vunpack.c.l.b16 %v160
  %v1020 = vunpack.c.h.b16 %v160
  %v1021 = vunpack.c.l.b16 %v161
  %v1022 = vunpack.c.h.b16 %v161
  %v1023 = vunpack.c.l.b16 %v162
  %v1024 = vunpack.c.h.b16 %v162
  %v1025 = vunpack.c.l.b16 %v163
  %v1026 = vunpack.c.h.b16 %v163
  %v1027 = vunpack.c.l.b16 %v164
  %v1028 = vunpack.c.h.b16 %v164
  %v1029 = vunpack.c.l.b16 %v165
  %v1030 = vunpack.c.h.b16 %v165
  %v1031 = vunpack.c.l.b16 %v166
  %v1032 = vunpack.c.h.b16 %v166
  %v1033 = vunpack.c.l.b16 %v167
  %v1034 = vunpack.c.h.b16 %v167
  %v1035 = vunpack.c.l.b16 %v168
  %v1036 = vunpack.c.h.b16 %v168
  %v1037 = vunpack.c.l.b16 %v169
  %v1038 = vunpack.c.h.b16 %v169
  %v1039 = vunpack.c.l.b16 %v170
  %v1040 = vunpack.c.h.b16 %v170
  %v1041 = vunpack.c.l.b16 %v171
  %v1042 = vunpack.c.h.b16 %v171
  %v1043 = vunpack.c.l.b16 %v172
  %v1044 = vunpack.c.h.b16 %v172
  %v1045 = vunpack.c.l.b16 %v173
  %v1046 = vunpack.c.h.b16 %v173
  %v1047 = vunpack.c.l.b16 %v174
  %v1048 = vunpack.c.h.b16 %v174
  %v1049 = vunpack.c.l.b16 %v175
  %v1050 = vunpack.c.h.b16 %v175
  %v1051 = vunpack.c.l.b16 %v176
  %v1052 = vunpack.c.h.b16 %v176
  %v1053 = vunpack.c.l.b16 %v177
  %v1054 = vunpack.c.h.b16 %v177
  %v1055 = vunpack.c.l.b16 %v178
  %v1056 = vunpack.c.h.b16 %v178
  %v1057 = vunpack.c.l.b16 %v179
  %v1058 = vunpack.c.h.b16 %v179
  %v1059 = vunpack.c.l.b16 %v180
  %v1060 = vunpack.c.h.b16 %v180
  %v1061 = vunpack.c.l.b16 %v181
  %v1062 = vunpack.c.h.b16 %v181
  %v1063 = vunpack.c.l.b16 %v182
  %v1064 = vunpack.c.h.b16 %v182
  %v1065 = vunpack.c.l.b16 %v183
  %v1066 = vunpack.c.h.b16 %v183
  %v1067 = vunpack.c.l.b16 %v184
  %v1068 = vunpack.c.h.b16 %v184
  %v1069 = vunpack.c.l.b16 %v185
  %v1070 = vunpack.c.h.b16 %v185
  %v1071 = vunpack.c.l.b16 %v186
  %v1072 = vunpack.c.h.b16 %v186
  %v1073 = vunpack.c.l.b16 %v187
  %v1074 = vunpack.c.h.b16 %v187
  %v1075 = vunpack.c.l.b16 %v188
  %v1076 = vunpack.c.h.b16 %v188
  %v1077 = vunpack.c.l.b16 %v189
  %v1078 = vunpack.c.h.b16 %v189
  %v1079 = vunpack.c.l.b16 %v190
  %v1080 = vunpack.c.h.b16 %v190
  %v1081 = vunpack.c.l.b16 %v191
  %v1082 = vunpack.c.h.b16 %v191
  %v1083 = vunpack.c.l.b16 %v192
  %v1084 = vunpack.c.h.b16 %v192
  %v1085 = vunpack.c.l.b16 %v193
  %v1086 = vunpack.c.h.b16 %v193
  %v1087 = vunpack.c.l.b16 %v194
  %v1088 = vunpack.c.h.b16 %v194
  %v1089 = vunpack.c.l.b16 %v195
  %v1090 = vunpack.c.h.b16 %v195
  %v1091 = vunpack.c.l.b16 %v196
  %v1092 = vunpack.c.h.b16 %v196
  %v1093 = vunpack.c.l.b16 %v197
  %v1094 = vunpack.c.h.b16 %v197
  %v1095 = vunpack.c.l.b16 %v198
  %v1096 = vunpack.c.h.b16 %v198
  %v1097 = vunpack.c.l.b16 %v199
  %v1098 = vunpack.c.h.b16 %v199
  %v1099 = vunpack.c.l.b16 %v200
  %v1100 = vunpack.c.h.b16 %v200
  %v1101 = vunpack.c.l.b16 %v201
  %v1102 = vunpack.c.h.b16 %v201
  %v1103 = vunpack.c.l.b16 %v202
  %v1104 = vunpack.c.h.b16 %v202
  %v1105 = vunpack.c.l.b16 %v203
  %v1106 = vunpack.c.h.b16 %v203
  %v1107 = vunpack.c.l.b16 %v204
  %v1108 = vunpack.c.h.b16 %v204
  %v1109 = vunpack.c.l.b16 %v205
  %v1110 = vunpack.c.h.b16 %v205
  %v1111 = vunpack.c.l.b16 %v206
  %v1112 = vunpack.c.h.b16 %v206
  %v1113 = vunpack.c.l.b16 %v207
  %v1114 = vunpack.c.h.b16 %v207
  %v1115 = vunpack.c.l.b16 %v208
  %v1116 = vunpack.c.h.b16 %v208
  %v1117 = vunpack.c.l.b16 %v209
  %v1118 = vunpack.c.h.b16 %v209
  %v1119 = vunpack.c.l.b16 %v210
  %v1120 = vunpack.c.h.b16 %v210
  %v1121 = vunpack.c.l.b16 %v211
  %v1122 = vunpack.c.h.b16 %v211
  %v1123 = vunpack.c.l.b16 %v212
  %v1124 = vunpack.c.h.b16 %v212
  %v1125 = vunpack.c.l.b16 %v213
  %v1126 = vunpack.c.h.b16 %v213
  %v1127 = vunpack.c.l.b16 %v214
  %v1128 = vunpack.c.h.b16 %v214
  %v1129 = vunpack.c.l.b16 %v215
  %v1130 = vunpack.c.h.b16 %v215
  %v1131 = vunpack.c.l.b16 %v216
  %v1132 = vunpack.c.h.b16 %v216
  %v1133 = vunpack.c.l.b16 %v217
  %v1134 = vunpack.c.h.b16 %v217
  %v1135 = vunpack.c.l.b16 %v218
  %v1136 = vunpack.c.h.b16 %v218
  %v1137 = vunpack.c.l.b16 %v219
  %v1138 = vunpack.c.h.b16 %v219
  %v1139 = vunpack.c.l.b16 %v220
  %v1140 = vunpack.c.h.b16 %v220
  %v1141 = vunpack.c.l.b16 %v221
  %v1142 = vunpack.c.h.b16 %v221
  %v1143 = vunpack.c.l.b16 %v222
  %v1144 = vunpack.c.h.b16 %v222
  %v1145 = vunpack.c.l.b16 %v223
  %v1146 = vunpack.c.h.b16 %v223
  %v1147 = vunpack.c.l.b16 %v224
  %v1148 = vunpack.c.h.b16 %v224
  %v1149 = vunpack.c.l.b16 %v225
  %v1150 = vunpack.c.h.b16 %v225
  %v1151 = vunpack.c.l.b16 %v226
  %v1152 = vunpack.c.h.b16 %v226
  %v1153 = vunpack.c.l.b16 %v227
  %v1154 = vunpack.c.h.b16 %v227
  %v1155 = vunpack.c.l.b16 %v228
  %v1156 = vunpack.c.h.b16 %v228
  %v1157 = vunpack.c.l.b16 %v229
  %v1158 = vunpack.c.h.b16 %v229
  %v1159 = vunpack.c.l.b16 %v230
  %v1160 = vunpack.c.h.b16 %v230
  %v1161 = vunpack.c.l.b16 %v231
  %v1162 = vunpack.c.h.b16 %v231
  %v1163 = vunpack.c.l.b16 %v232
  %v1164 = vunpack.c.h.b16 %v232
  %v1165 = vunpack.c.l.b16 %v233
  %v1166 = vunpack.c.h.b16 %v233
  %v1167 = vunpack.c.l.b16 %v234
  %v1168 = vunpack.c.h.b16 %v234
  %v1169 = vunpack.c.l.b16 %v235
  %v1170 = vunpack.c.h.b16 %v235
  %v1171 = vunpack.c.l.b16 %v236
  %v1172 = vunpack.c.h.b16 %v236
  %v1173 = vunpack.c.l.b16 %v237
  %v1174 = vunpack.c.h.b16 %v237
  %v1175 = vunpack.c.l.b16 %v238
  %v1176 = vunpack.c.h.b16 %v238
  %v1177 = vunpack.c.l.b16 %v239
  %v1178 = vunpack.c.h.b16 %v239
  %v1179 = vunpack.c.l.b16 %v240
  %v1180 = vunpack.c.h.b16 %v240
  %v1181 = vunpack.c.l.b16 %v241
  %v1182 = vunpack.c.h.b16 %v241
  %v1183 = vunpack.c.l.b16 %v242
  %v1184 = vunpack.c.h.b16 %v242
  %v1185 = vunpack.c.l.b16 %v243
  %v1186 = vunpack.c.h.b16 %v243
  %v1187 = vunpack.c.l.b16 %v244
  %v1188 = vunpack.c.h.b16 %v244
  %v1189 = vunpack.c.l.b16 %v245
  %v1190 = vunpack.c.h.b16 %v245
  %v1191 = vunpack.c.l.b16 %v246
  %v1192 = vunpack.c.h.b16 %v246
  %v1193 = vunpack.c.l.b16 %v247
  %v1194 = vunpack.c.h.b16 %v247
  %v1195 = vunpack.c.l.b16 %v248
  %v1196 = vunpack.c.h.b16 %v248
  %v1197 = vunpack.c.l.b16 %v249
  %v1198 = vunpack.c.h.b16 %v249
  %v1199 = vunpack.c.l.b16 %v250
  %v1200 = vunpack.c.h.b16 %v250
  %v1201 = vunpack.c.l.b16 %v251
  %v1202 = vunpack.c.h.b16 %v251
  %v1203 = vunpack.c.l.b16 %v252
  %v1204 = vunpack.c.h.b16 %v252
  %v1205 = vunpack.c.l.b16 %v253
  %v1206 = vunpack.c.h.b16 %v253
  %v1207 = vunpack.c.l.b16 %v254
  %v1208 = vunpack.c.h.b16 %v254
  %v1209 = vunpack.c.l.b16 %v255
  %v1210 = vunpack.c.h.b16 %v255
  %v1211 = vunpack.c.l.b16 %v256
  %v1212 = vunpack.c.h.b16 %v256
  %v1213 = vunpack.c.l.b16 %v257
  %v1214 = vunpack.c.h.b16 %v257
  %v1215 = vunpack.c.l.b16 %v258
  %v1216 = vunpack.c.h.b16 %v258
  %v1217 = vunpack.c.l.b16 %v259
  %v1218 = vunpack.c.h.b16 %v259
  %v1219 = vunpack.c.l.b16 %v260
  %v1220 = vunpack.c.h.b16 %v260
  %v1221 = vunpack.c.l.b16 %v261
  %v1222 = vunpack.c.h.b16 %v261
  %v1223 = vunpack.c.l.b16 %v262
  %v1224 = vunpack.c.h.b16 %v262
  %v1225 = vunpack.c.l.b16 %v263
  %v1226 = vunpack.c.h.b16 %v263
  %v1227 = vunpack.c.l.b16 %v264
  %v1228 = vunpack.c.h.b16 %v264
  %v1229 = vunpack.c.l.b16 %v265
  %v1230 = vunpack.c.h.b16 %v265
  %v1231 = vunpack.c.l.b16 %v266
  %v1232 = vunpack.c.h.b16 %v266
  %v1233 = vunpack.c.l.b16 %v267
  %v1234 = vunpack.c.h.b16 %v267
  %v1235 = vunpack.c.l.b16 %v268
  %v1236 = vunpack.c.h.b16 %v268
  %v1237 = vunpack.c.l.b16 %v269
  %v1238 = vunpack.c.h.b16 %v269
  %v1239 = vunpack.c.l.b16 %v270
  %v1240 = vunpack.c.h.b16 %v270
  %v1241 = vunpack.c.l.b16 %v271
  %v1242 = vunpack.c.h.b16 %v271
  %v1243 = vunpack.c.l.b16 %v272
  %v1244 = vunpack.c.h.b16 %v272
  %v1245 = vunpack.c.l.b16 %v273
  %v1246 = vunpack.c.h.b16 %v273
  %v1247 = vunpack.c.l.b16 %v274
  %v1248 = vunpack.c.h.b16 %v274
  %v1249 = vunpack.c.l.b16 %v275
  %v1250 = vunpack.c.h.b16 %v275
  %v1251 = vunpack.c.l.b16 %v276
  %v1252 = vunpack.c.h.b16 %v276
  %v1253 = vunpack.c.l.b16 %v277
  %v1254 = vunpack.c.h.b16 %v277
  %v1255 = vunpack.c.l.b16 %v278
  %v1256 = vunpack.c.h.b16 %v278
  %v1257 = vunpack.c.l.b16 %v279
  %v1258 = vunpack.c.h.b16 %v279
  %v1259 = vunpack.c.l.b16 %v280
  %v1260 = vunpack.c.h.b16 %v280
  %v1261 = vunpack.c.l.b16 %v281
  %v1262 = vunpack.c.h.b16 %v281
  %v1263 = vunpack.c.l.b16 %v282
  %v1264 = vunpack.c.h.b16 %v282
  %v1265 = vunpack.c.l.b16 %v283
  %v1266 = vunpack.c.h.b16 %v283
  %v1267 = vunpack.c.l.b16 %v284
  %v1268 = vunpack.c.h.b16 %v284
  %v1269 = vunpack.c.l.b16 %v285
  %v1270 = vunpack.c.h.b16 %v285
  %v1271 = vunpack.c.l.b16 %v286
  %v1272 = vunpack.c.h.b16 %v286
  %v1273 = vunpack.c.l.b16 %v287
  %v1274 = vunpack.c.h.b16 %v287
  %v1275 = vunpack.c.l.b16 %v288
  %v1276 = vunpack.c.h.b16 %v288
  %v1277 = vunpack.c.l.b16 %v289
  %v1278 = vunpack.c.h.b16 %v289
  %v1279 = vunpack.c.l.b16 %v290
  %v1280 = vunpack.c.h.b16 %v290
  %v1281 = vunpack.c.l.b16 %v291
  %v1282 = vunpack.c.h.b16 %v291
  %v1283 = vunpack.c.l.b16 %v292
  %v1284 = vunpack.c.h.b16 %v292
  %v1285 = vunpack.c.l.b16 %v293
  %v1286 = vunpack.c.h.b16 %v293
  %v1287 = vunpack.c.l.b16 %v294
  %v1288 = vunpack.c.h.b16 %v294
  %v1289 = vunpack.c.l.b16 %v295
  %v1290 = vunpack.c.h.b16 %v295
  %v1291 = vunpack.c.l.b16 %v296
  %v1292 = vunpack.c.h.b16 %v296
  %v1293 = vunpack.c.l.b16 %v297
  %v1294 = vunpack.c.h.b16 %v297
  %v1295 = vunpack.c.l.b16 %v298
  %v1296 = vunpack.c.h.b16 %v298
  %v1297 = vunpack.c.l.b16 %v299
  %v1298 = vunpack.c.h.b16 %v299
  %v1299 = vunpack.c.l.b16 %v300
  %v1300 = vunpack.c.h.b16 %v300
  %v1301 = vunpack.c.l.b16 %v301
  %v1302 = vunpack.c.h.b16 %v301
  %v1303 = vunpack.c.l.b16 %v302
  %v1304 = vunpack.c.h.b16 %v302
  %v1305 = vunpack.c.l.b16 %v303
  %v1306 = vunpack.c.h.b16 %v303
  %v1307 = vunpack.c.l.b16 %v304
  %v1308 = vunpack.c.h.b16 %v304
  %v1309 = vunpack.c.l.b16 %v305
  %v1310 = vunpack.c.h.b16 %v305
  %v1311 = vunpack.c.l.b16 %v306
  %v1312 = vunpack.c.h.b16 %v306
  %v1313 = vunpack.c.l.b16 %v307
  %v1314 = vunpack.c.h.b16 %v307
  %v1315 = vunpack.c.l.b16 %v308
  %v1316 = vunpack.c.h.b16 %v308
  %v1317 = vunpack.c.l.b16 %v309
  %v1318 = vunpack.c.h.b16 %v309
  %v1319 = vunpack.c.l.b16 %v310
  %v1320 = vunpack.c.h.b16 %v310
  %v1321 = vunpack.c.l.b16 %v311
  %v1322 = vunpack.c.h.b16 %v311
  %v1323 = vunpack.c.l.b16 %v312
  %v1324 = vunpack.c.h.b16 %v312
  %v1325 = vunpack.c.l.b16 %v313
  %v1326 = vunpack.c.h.b16 %v313
  %v1327 = vunpack.c.l.b16 %v314
  %v1328 = vunpack.c.h.b16 %v314
  %v1329 = vunpack.c.l.b16 %v315
  %v1330 = vunpack.c.h.b16 %v315
  %v1331 = vunpack.c.l.b16 %v316
  %v1332 = vunpack.c.h.b16 %v316
  %v1333 = vunpack.c.l.b16 %v317
  %v1334 = vunpack.c.h.b16 %v317
  %v1335 = vunpack.c.l.b16 %v318
  %v1336 = vunpack.c.h.b16 %v318
  %v1337 = vunpack.c.l.b16 %v319
  %v1338 = vunpack.c.h.b16 %v319
  %v1339 = vunpack.c.l.b16 %v320
  %v1340 = vunpack.c.h.b16 %v320
  %v1341 = vunpack.c.l.b16 %v321
  %v1342 = vunpack.c.h.b16 %v321
  %v1343 = vunpack.c.l.b16 %v322
  %v1344 = vunpack.c.h.b16 %v322
  %v1345 = vunpack.c.l.b16 %v323
  %v1346 = vunpack.c.h.b16 %v323
  %v1347 = vunpack.c.l.b16 %v324
  %v1348 = vunpack.c.h.b16 %v324
  %v1349 = vunpack.c.l.b16 %v325
  %v1350 = vunpack.c.h.b16 %v325
  %v1351 = vunpack.c.l.b16 %v326
  %v1352 = vunpack.c.h.b16 %v326
  %v1353 = vunpack.c.l.b16 %v327
  %v1354 = vunpack.c.h.b16 %v327
  %v1355 = vunpack.c.l.b16 %v328
  %v1356 = vunpack.c.h.b16 %v328
  %v1357 = vunpack.c.l.b16 %v329
  %v1358 = vunpack.c.h.b16 %v329
  %v1359 = vunpack.c.l.b16 %v330
  %v1360 = vunpack.c.h.b16 %v330
  %v1361 = vunpack.c.l.b16 %v331
  %v1362 = vunpack.c.h.b16 %v331
  %v1363 = vunpack.c.l.b16 %v332
  %v1364 = vunpack.c.h.b16 %v332
  %v1365 = vunpack.c.l.b16 %v333
  %v1366 = vunpack.c.h.b16 %v333
  %v1367 = vunpack.c.l.b16 %v334
  %v1368 = vunpack.c.h.b16 %v334
  %v1369 = vpack.c.b16 %v737, %v729
  %v1370 = vpack.c.b16 %v738, %v730
  %v1371 = vpack.c.b16 %v739, %v731
  %v1372 = vpack.c.b16 %v740, %v732
  %v1373 = vpack.c.b16 %v741, %v733
  %v1374 = vpack.c.b16 %v742, %v734
  %v1375 = vpack.c.b16 %v743, %v735
  %v1376 = vpack.c.b16 %v744, %v736
  %v1377 = vpack.c.b16 %v753, %v745
  %v1378 = vpack.c.b16 %v754, %v746
  %v1379 = vpack.c.b16 %v755, %v747
  %v1380 = vpack.c.b16 %v756, %v748
  %v1381 = vpack.c.b16 %v757, %v749
  %v1382 = vpack.c.b16 %v758, %v750
  %v1383 = vpack.c.b16 %v759, %v751
  %v1384 = vpack.c.b16 %v760, %v752
  %v1385 = vpack.c.b16 %v769, %v761
  %v1386 = vpack.c.b16 %v770, %v762
  %v1387 = vpack.c.b16 %v771, %v763
  %v1388 = vpack.c.b16 %v772, %v764
  %v1389 = vpack.c.b16 %v773, %v765
  %v1390 = vpack.c.b16 %v774, %v766
  %v1391 = vpack.c.b16 %v775, %v767
  %v1392 = vpack.c.b16 %v776, %v768
  %v1393 = vpack.c.b16 %v785, %v777
  %v1394 = vpack.c.b16 %v786, %v778
  %v1395 = vpack.c.b16 %v787, %v779
  %v1396 = vpack.c.b16 %v788, %v780
  %v1397 = vpack.c.b16 %v789, %v781
  %v1398 = vpack.c.b16 %v790, %v782
  %v1399 = vpack.c.b16 %v791, %v783
  %v1400 = vpack.c.b16 %v792, %v784
  %v1401 = vpack.c.b16 %v801, %v793
  %v1402 = vpack.c.b16 %v802, %v794
  %v1403 = vpack.c.b16 %v803, %v795
  %v1404 = vpack.c.b16 %v804, %v796
  %v1405 = vpack.c.b16 %v805, %v797
  %v1406 = vpack.c.b16 %v806, %v798
  %v1407 = vpack.c.b16 %v807, %v799
  %v1408 = vpack.c.b16 %v808, %v800
  %v1409 = vpack.c.b16 %v817, %v809
  %v1410 = vpack.c.b16 %v818, %v810
  %v1411 = vpack.c.b16 %v819, %v811
  %v1412 = vpack.c.b16 %v820, %v812
  %v1413 = vpack.c.b16 %v821, %v813
  %v1414 = vpack.c.b16 %v822, %v814
  %v1415 = vpack.c.b16 %v823, %v815
  %v1416 = vpack.c.b16 %v824, %v816
  %v1417 = vpack.c.b16 %v833, %v825
  %v1418 = vpack.c.b16 %v834, %v826
  %v1419 = vpack.c.b16 %v835, %v827
  %v1420 = vpack.c.b16 %v836, %v828
  %v1421 = vpack.c.b16 %v837, %v829
  %v1422 = vpack.c.b16 %v838, %v830
  %v1423 = vpack.c.b16 %v839, %v831
  %v1424 = vpack.c.b16 %v840, %v832
  %v1425 = vpack.c.b16 %v849, %v841
  %v1426 = vpack.c.b16 %v850, %v842
  %v1427 = vpack.c.b16 %v851, %v843
  %v1428 = vpack.c.b16 %v852, %v844
  %v1429 = vpack.c.b16 %v853, %v845
  %v1430 = vpack.c.b16 %v854, %v846
  %v1431 = vpack.c.b16 %v855, %v847
  %v1432 = vpack.c.b16 %v856, %v848
  %v1433 = vpack.c.b16 %v865, %v857
  %v1434 = vpack.c.b16 %v866, %v858
  %v1435 = vpack.c.b16 %v867, %v859
  %v1436 = vpack.c.b16 %v868, %v860
  %v1437 = vpack.c.b16 %v869, %v861
  %v1438 = vpack.c.b16 %v870, %v862
  %v1439 = vpack.c.b16 %v871, %v863
  %v1440 = vpack.c.b16 %v872, %v864
  %v1441 = vpack.c.b16 %v881, %v873
  %v1442 = vpack.c.b16 %v882, %v874
  %v1443 = vpack.c.b16 %v883, %v875
  %v1444 = vpack.c.b16 %v884, %v876
  %v1445 = vpack.c.b16 %v885, %v877
  %v1446 = vpack.c.b16 %v886, %v878
  %v1447 = vpack.c.b16 %v887, %v879
  %v1448 = vpack.c.b16 %v888, %v880
  %v1449 = vpack.c.b16 %v897, %v889
  %v1450 = vpack.c.b16 %v898, %v890
  %v1451 = vpack.c.b16 %v899, %v891
  %v1452 = vpack.c.b16 %v900, %v892
  %v1453 = vpack.c.b16 %v901, %v893
  %v1454 = vpack.c.b16 %v902, %v894
  %v1455 = vpack.c.b16 %v903, %v895
  %v1456 = vpack.c.b16 %v904, %v896
  %v1457 = vpack.c.b16 %v913, %v905
  %v1458 = vpack.c.b16 %v914, %v906
  %v1459 = vpack.c.b16 %v915, %v907
  %v1460 = vpack.c.b16 %v916, %v908
  %v1461 = vpack.c.b16 %v917, %v909
  %v1462 = vpack.c.b16 %v918, %v910
  %v1463 = vpack.c.b16 %v919, %v911
  %v1464 = vpack.c.b16 %v920, %v912
  %v1465 = vpack.c.b16 %v929, %v921
  %v1466 = vpack.c.b16 %v930, %v922
  %v1467 = vpack.c.b16 %v931, %v923
  %v1468 = vpack.c.b16 %v932, %v924
  %v1469 = vpack.c.b16 %v933, %v925
  %v1470 = vpack.c.b16 %v934, %v926
  %v1471 = vpack.c.b16 %v935, %v927
  %v1472 = vpack.c.b16 %v936, %v928
  %v1473 = vpack.c.b16 %v945, %v937
  %v1474 = vpack.c.b16 %v946, %v938
  %v1475 = vpack.c.b16 %v947, %v939
  %v1476 = vpack.c.b16 %v948, %v940
  %v1477 = vpack.c.b16 %v949, %v941
  %v1478 = vpack.c.b16 %v950, %v942
  %v1479 = vpack.c.b16 %v951, %v943
  %v1480 = vpack.c.b16 %v952, %v944
  %v1481 = vpack.c.b16 %v961, %v953
  %v1482 = vpack.c.b16 %v962, %v954
  %v1483 = vpack.c.b16 %v963, %v955
  %v1484 = vpack.c.b16 %v964, %v956
  %v1485 = vpack.c.b16 %v965, %v957
  %v1486 = vpack.c.b16 %v966, %v958
  %v1487 = vpack.c.b16 %v967, %v959
  %v1488 = vpack.c.b16 %v968, %v960
  %v1489 = vpack.c.b16 %v977, %v969
  %v1490 = vpack.c.b16 %v978, %v970
  %v1491 = vpack.c.b16 %v979, %v971
  %v1492 = vpack.c.b16 %v980, %v972
  %v1493 = vpack.c.b16 %v981, %v973
  %v1494 = vpack.c.b16 %v982, %v974
  %v1495 = vpack.c.b16 %v983, %v975
  %v1496 = vpack.c.b16 %v984, %v976
  %v1497 = vpack.c.b16 %v993, %v985
  %v1498 = vpack.c.b16 %v994, %v986
  %v1499 = vpack.c.b16 %v995, %v987
  %v1500 = vpack.c.b16 %v996, %v988
  %v1501 = vpack.c.b16 %v997, %v989
  %v1502 = vpack.c.b16 %v998, %v990
  %v1503 = vpack.c.b16 %v999, %v991
  %v1504 = vpack.c.b16 %v1000, %v992
  %v1505 = vpack.c.b16 %v1009, %v1001
  %v1506 = vpack.c.b16 %v1010, %v1002
  %v1507 = vpack.c.b16 %v1011, %v1003
  %v1508 = vpack.c.b16 %v1012, %v1004
  %v1509 = vpack.c.b16 %v1013, %v1005
  %v1510 = vpack.c.b16 %v1014, %v1006
  %v1511 = vpack.c.b16 %v1015, %v1007
  %v1512 = vpack.c.b16 %v1016, %v1008
  %v1513 = vpack.c.b16 %v1025, %v1017
  %v1514 = vpack.c.b16 %v1026, %v1018
  %v1515 = vpack.c.b16 %v1027, %v1019
  %v1516 = vpack.c.b16 %v1028, %v1020
  %v1517 = vpack.c.b16 %v1029, %v1021
  %v1518 = vpack.c.b16 %v1030, %v1022
  %v1519 = vpack.c.b16 %v1031, %v1023
  %v1520 = vpack.c.b16 %v1032, %v1024
  %v1521 = vpack.c.b16 %v1041, %v1033
  %v1522 = vpack.c.b16 %v1042, %v1034
  %v1523 = vpack.c.b16 %v1043, %v1035
  %v1524 = vpack.c.b16 %v1044, %v1036
  %v1525 = vpack.c.b16 %v1045, %v1037
  %v1526 = vpack.c.b16 %v1046, %v1038
  %v1527 = vpack.c.b16 %v1047, %v1039
  %v1528 = vpack.c.b16 %v1048, %v1040
  %v1529 = vpack.c.b16 %v1057, %v1049
  %v1530 = vpack.c.b16 %v1058, %v1050
  %v1531 = vpack.c.b16 %v1059, %v1051
  %v1532 = vpack.c.b16 %v1060, %v1052
  %v1533 = vpack.c.b16 %v1061, %v1053
  %v1534 = vpack.c.b16 %v1062, %v1054
  %v1535 = vpack.c.b16 %v1063, %v1055
  %v1536 = vpack.c.b16 %v1064, %v1056
  %v1537 = vpack.c.b16 %v1073, %v1065
  %v1538 = vpack.c.b16 %v1074, %v1066
  %v1539 = vpack.c.b16 %v1075, %v1067
  %v1540 = vpack.c.b16 %v1076, %v1068
  %v1541 = vpack.c.b16 %v1077, %v1069
  %v1542 = vpack.c.b16 %v1078, %v1070
  %v1543 = vpack.c.b16 %v1079, %v1071
  %v1544 = vpack.c.b16 %v1080, %v1072
  %v1545 = vpack.c.b16 %v1089, %v1081
  %v1546 = vpack.c.b16 %v1090, %v1082
  %v1547 = vpack.c.b16 %v1091, %v1083
  %v1548 = vpack.c.b16 %v1092, %v1084
  %v1549 = vpack.c.b16 %v1093, %v1085
  %v1550 = vpack.c.b16 %v1094, %v1086
  %v1551 = vpack.c.b16 %v1095, %v1087
  %v1552 = vpack.c.b16 %v1096, %v1088
  %v1553 = vpack.c.b16 %v1105, %v1097
  %v1554 = vpack.c.b16 %v1106, %v1098
  %v1555 = vpack.c.b16 %v1107, %v1099
  %v1556 = vpack.c.b16 %v1108, %v1100
  %v1557 = vpack.c.b16 %v1109, %v1101
  %v1558 = vpack.c.b16 %v1110, %v1102
  %v1559 = vpack.c.b16 %v1111, %v1103
  %v1560 = vpack.c.b16 %v1112, %v1104
  %v1561 = vpack.c.b16 %v1121, %v1113
  %v1562 = vpack.c.b16 %v1122, %v1114
  %v1563 = vpack.c.b16 %v1123, %v1115
  %v1564 = vpack.c.b16 %v1124, %v1116
  %v1565 = vpack.c.b16 %v1125, %v1117
  %v1566 = vpack.c.b16 %v1126, %v1118
  %v1567 = vpack.c.b16 %v1127, %v1119
  %v1568 = vpack.c.b16 %v1128, %v1120
  %v1569 = vpack.c.b16 %v1137, %v1129
  %v1570 = vpack.c.b16 %v1138, %v1130
  %v1571 = vpack.c.b16 %v1139, %v1131
  %v1572 = vpack.c.b16 %v1140, %v1132
  %v1573 = vpack.c.b16 %v1141, %v1133
  %v1574 = vpack.c.b16 %v1142, %v1134
  %v1575 = vpack.c.b16 %v1143, %v1135
  %v1576 = vpack.c.b16 %v1144, %v1136
  %v1577 = vpack.c.b16 %v1153, %v1145
  %v1578 = vpack.c.b16 %v1154, %v1146
  %v1579 = vpack.c.b16 %v1155, %v1147
  %v1580 = vpack.c.b16 %v1156, %v1148
  %v1581 = vpack.c.b16 %v1157, %v1149
  %v1582 = vpack.c.b16 %v1158, %v1150
  %v1583 = vpack.c.b16 %v1159, %v1151
  %v1584 = vpack.c.b16 %v1160, %v1152
  %v1585 = vpack.c.b16 %v1169, %v1161
  %v1586 = vpack.c.b16 %v1170, %v1162
  %v1587 = vpack.c.b16 %v1171, %v1163
  %v1588 = vpack.c.b16 %v1172, %v1164
  %v1589 = vpack.c.b16 %v1173, %v1165
  %v1590 = vpack.c.b16 %v1174, %v1166
  %v1591 = vpack.c.b16 %v1175, %v1167
  %v1592 = vpack.c.b16 %v1176, %v1168
  %v1593 = vpack.c.b16 %v1185, %v1177
  %v1594 = vpack.c.b16 %v1186, %v1178
  %v1595 = vpack.c.b16 %v1187, %v1179
  %v1596 = vpack.c.b16 %v1188, %v1180
  %v1597 = vpack.c.b16 %v1189, %v1181
  %v1598 = vpack.c.b16 %v1190, %v1182
  %v1599 = vpack.c.b16 %v1191, %v1183
  %v1600 = vpack.c.b16 %v1192, %v1184
  %v1601 = vpack.c.b16 %v1201, %v1193
  %v1602 = vpack.c.b16 %v1202, %v1194
  %v1603 = vpack.c.b16 %v1203, %v1195
  %v1604 = vpack.c.b16 %v1204, %v1196
  %v1605 = vpack.c.b16 %v1205, %v1197
  %v1606 = vpack.c.b16 %v1206, %v1198
  %v1607 = vpack.c.b16 %v1207, %v1199
  %v1608 = vpack.c.b16 %v1208, %v1200
  %v1609 = vpack.c.b16 %v1217, %v1209
  %v1610 = vpack.c.b16 %v1218, %v1210
  %v1611 = vpack.c.b16 %v1219, %v1211
  %v1612 = vpack.c.b16 %v1220, %v1212
  %v1613 = vpack.c.b16 %v1221, %v1213
  %v1614 = vpack.c.b16 %v1222, %v1214
  %v1615 = vpack.c.b16 %v1223, %v1215
  %v1616 = vpack.c.b16 %v1224, %v1216
  %v1617 = vpack.c.b16 %v1233, %v1225
  %v1618 = vpack.c.b16 %v1234, %v1226
  %v1619 = vpack.c.b16 %v1235, %v1227
  %v1620 = vpack.c.b16 %v1236, %v1228
  %v1621 = vpack.c.b16 %v1237, %v1229
  %v1622 = vpack.c.b16 %v1238, %v1230
  %v1623 = vpack.c.b16 %v1239, %v1231
  %v1624 = vpack.c.b16 %v1240, %v1232
  %v1625 = vpack.c.b16 %v1249, %v1241
  %v1626 = vpack.c.b16 %v1250, %v1242
  %v1627 = vpack.c.b16 %v1251, %v1243
  %v1628 = vpack.c.b16 %v1252, %v1244
  %v1629 = vpack.c.b16 %v1253, %v1245
  %v1630 = vpack.c.b16 %v1254, %v1246
  %v1631 = vpack.c.b16 %v1255, %v1247
  %v1632 = vpack.c.b16 %v1256, %v1248
  %v1633 = vpack.c.b16 %v1265, %v1257
  %v1634 = vpack.c.b16 %v1266, %v1258
  %v1635 = vpack.c.b16 %v1267, %v1259
  %v1636 = vpack.c.b16 %v1268, %v1260
  %v1637 = vpack.c.b16 %v1269, %v1261
  %v1638 = vpack.c.b16 %v1270, %v1262
  %v1639 = vpack.c.b16 %v1271, %v1263
  %v1640 = vpack.c.b16 %v1272, %v1264
  %v1641 = vpack.c.b16 %v1281, %v1273
  %v1642 = vpack.c.b16 %v1282, %v1274
  %v1643 = vpack.c.b16 %v1283, %v1275
  %v1644 = vpack.c.b16 %v1284, %v1276
  %v1645 = vpack.c.b16 %v1285, %v1277
  %v1646 = vpack.c.b16 %v1286, %v1278
  %v1647 = vpack.c.b16 %v1287, %v1279
  %v1648 = vpack.c.b16 %v1288, %v1280
  %v1649 = vpack.c.b16 %v1297, %v1289
  %v1650 = vpack.c.b16 %v1298, %v1290
  %v1651 = vpack.c.b16 %v1299, %v1291
  %v1652 = vpack.c.b16 %v1300, %v1292
  %v1653 = vpack.c.b16 %v1301, %v1293
  %v1654 = vpack.c.b16 %v1302, %v1294
  %v1655 = vpack.c.b16 %v1303, %v1295
  %v1656 = vpack.c.b16 %v1304, %v1296
  %v1657 = vpack.c.b16 %v1313, %v1305
  %v1658 = vpack.c.b16 %v1314, %v1306
  %v1659 = vpack.c.b16 %v1315, %v1307
  %v1660 = vpack.c.b16 %v1316, %v1308
  %v1661 = vpack.c.b16 %v1317, %v1309
  %v1662 = vpack.c.b16 %v1318, %v1310
  %v1663 = vpack.c.b16 %v1319, %v1311
  %v1664 = vpack.c.b16 %v1320, %v1312
  %v1665 = vpack.c.b16 %v1329, %v1321
  %v1666 = vpack.c.b16 %v1330, %v1322
  %v1667 = vpack.c.b16 %v1331, %v1323
  %v1668 = vpack.c.b16 %v1332, %v1324
  %v1669 = vpack.c.b16 %v1333, %v1325
  %v1670 = vpack.c.b16 %v1334, %v1326
  %v1671 = vpack.c.b16 %v1335, %v1327
  %v1672 = vpack.c.b16 %v1336, %v1328
  %v1673 = vpack.c.b16 %v1345, %v1337
  %v1674 = vpack.c.b16 %v1346, %v1338
  %v1675 = vpack.c.b16 %v1347, %v1339
  %v1676 = vpack.c.b16 %v1348, %v1340
  %v1677 = vpack.c.b16 %v1349, %v1341
  %v1678 = vpack.c.b16 %v1350, %v1342
  %v1679 = vpack.c.b16 %v1351, %v1343
  %v1680 = vpack.c.b16 %v1352, %v1344
  %v1681 = vpack.c.b16 %v1361, %v1353
  %v1682 = vpack.c.b16 %v1362, %v1354
  %v1683 = vpack.c.b16 %v1363, %v1355
  %v1684 = vpack.c.b16 %v1364, %v1356
  %v1685 = vpack.c.b16 %v1365, %v1357
  %v1686 = vpack.c.b16 %v1366, %v1358
  %v1687 = vpack.c.b16 %v1367, %v1359
  %v1688 = vpack.c.b16 %v1368, %v1360
  %2009 = vmatprep.subr.bf16.mxu0 %v1426
  %2010 = vmatpush1.bf16.msra.mxu0 %v1425
  %2011 = vmatprep.subr.bf16.mxu0 %v1418
  %2012 = vmatpush1.bf16.msra.mxu0 %v1417
  %2013 = vmatprep.subr.bf16.mxu0 %v1410
  %2014 = vmatpush1.bf16.msra.mxu0 %v1409
  %2015 = vmatprep.subr.bf16.mxu0 %v1402
  %2016 = vmatpush1.bf16.msra.mxu0 %v1401
  %2017 = vmatprep.subr.bf16.mxu0 %v1394
  %2018 = vmatpush1.bf16.msra.mxu0 %v1393
  %2019 = vmatprep.subr.bf16.mxu0 %v1386
  %2020 = vmatpush1.bf16.msra.mxu0 %v1385
  %2021 = vmatprep.subr.bf16.mxu0 %v1378
  %2022 = vmatpush1.bf16.msra.mxu0 %v1377
  %2023 = vmatprep.subr.bf16.mxu0 %v1370
  %2024 = vmatpush1.bf16.msra.mxu0 %v1369
  %2025 = vmatprep.subr.bf16.mxu0 %v1490
  %2026 = vmatpush2.bf16.msra.mxu0 %v1489
  %2027 = vmatprep.subr.bf16.mxu0 %v1482
  %2028 = vmatpush2.bf16.msra.mxu0 %v1481
  %2029 = vmatprep.subr.bf16.mxu0 %v1474
  %2030 = vmatpush2.bf16.msra.mxu0 %v1473
  %2031 = vmatprep.subr.bf16.mxu0 %v1466
  %2032 = vmatpush2.bf16.msra.mxu0 %v1465
  %2033 = vmatprep.subr.bf16.mxu0 %v1458
  %2034 = vmatpush2.bf16.msra.mxu0 %v1457
  %2035 = vmatprep.subr.bf16.mxu0 %v1450
  %2036 = vmatpush2.bf16.msra.mxu0 %v1449
  %2037 = vmatprep.subr.bf16.mxu0 %v1442
  %2038 = vmatpush2.bf16.msra.mxu0 %v1441
  %2039 = vmatprep.subr.bf16.mxu0 %v1434
  %2040 = vmatpush2.bf16.msra.mxu0 %v1433
  %2041 = vmatprep.mubr.bf16.mxu0 %v400
  %2042 = vmatmul.mubr.bf16.gmra.mxu0 %v399
  %v2043 = vpop.f32.mrf.mxu0
  %v2044 = vadd.f32 %v346, %v2043
  %v2045 = vpop.f32.mrf.mxu0
  %v2046 = vadd.f32 %v350, %v2045
  %v2047 = vpop.f32.mrf.mxu0
  %v2048 = vadd.f32 %v346, %v2047
  %v2049 = vpop.f32.mrf.mxu0
  %v2050 = vadd.f32 %v350, %v2049
  %2051 = vdwg.mxu0
  %2052 = vmatprep.subr.bf16.mxu0 %v1554
  %2053 = vmatpush1.bf16.msra.mxu0 %v1553
  %2054 = vmatprep.subr.bf16.mxu0 %v1546
  %2055 = vmatpush1.bf16.msra.mxu0 %v1545
  %2056 = vmatprep.subr.bf16.mxu0 %v1538
  %2057 = vmatpush1.bf16.msra.mxu0 %v1537
  %2058 = vmatprep.subr.bf16.mxu0 %v1530
  %2059 = vmatpush1.bf16.msra.mxu0 %v1529
  %2060 = vmatprep.subr.bf16.mxu0 %v1522
  %2061 = vmatpush1.bf16.msra.mxu0 %v1521
  %2062 = vmatprep.subr.bf16.mxu0 %v1514
  %2063 = vmatpush1.bf16.msra.mxu0 %v1513
  %2064 = vmatprep.subr.bf16.mxu0 %v1506
  %2065 = vmatpush1.bf16.msra.mxu0 %v1505
  %2066 = vmatprep.subr.bf16.mxu0 %v1498
  %2067 = vmatpush1.bf16.msra.mxu0 %v1497
  %2068 = vmatprep.subr.bf16.mxu0 %v1618
  %2069 = vmatpush2.bf16.msra.mxu0 %v1617
  %2070 = vmatprep.subr.bf16.mxu0 %v1610
  %2071 = vmatpush2.bf16.msra.mxu0 %v1609
  %2072 = vmatprep.subr.bf16.mxu0 %v1602
  %2073 = vmatpush2.bf16.msra.mxu0 %v1601
  %2074 = vmatprep.subr.bf16.mxu0 %v1594
  %2075 = vmatpush2.bf16.msra.mxu0 %v1593
  %2076 = vmatprep.subr.bf16.mxu0 %v1586
  %2077 = vmatpush2.bf16.msra.mxu0 %v1585
  %2078 = vmatprep.subr.bf16.mxu0 %v1578
  %2079 = vmatpush2.bf16.msra.mxu0 %v1577
  %2080 = vmatprep.subr.bf16.mxu0 %v1570
  %2081 = vmatpush2.bf16.msra.mxu0 %v1569
  %2082 = vmatprep.subr.bf16.mxu0 %v1562
  %2083 = vmatpush2.bf16.msra.mxu0 %v1561
  %2084 = vmatprep.mubr.bf16.mxu0 %v402
  %2085 = vmatmul.mubr.bf16.gmra.mxu0 %v401
  %v2086 = vpop.f32.mrf.mxu0
  %v2087 = vadd.f32 %v2044, %v2086
  %v2088 = vpop.f32.mrf.mxu0
  %v2089 = vadd.f32 %v2046, %v2088
  %v2090 = vpop.f32.mrf.mxu0
  %v2091 = vadd.f32 %v2048, %v2090
  %v2092 = vpop.f32.mrf.mxu0
  %v2093 = vadd.f32 %v2050, %v2092
  %2094 = vdwg.mxu0
  %2095 = vmatprep.subr.bf16.mxu0 %v1682
  %2096 = vmatpush1.bf16.msra.mxu0 %v1681
  %2097 = vmatprep.subr.bf16.mxu0 %v1674
  %2098 = vmatpush1.bf16.msra.mxu0 %v1673
  %2099 = vmatprep.subr.bf16.mxu0 %v1666
  %2100 = vmatpush1.bf16.msra.mxu0 %v1665
  %2101 = vmatprep.subr.bf16.mxu0 %v1658
  %2102 = vmatpush1.bf16.msra.mxu0 %v1657
  %2103 = vmatprep.subr.bf16.mxu0 %v1650
  %2104 = vmatpush1.bf16.msra.mxu0 %v1649
  %2105 = vmatprep.subr.bf16.mxu0 %v1642
  %2106 = vmatpush1.bf16.msra.mxu0 %v1641
  %2107 = vmatprep.subr.bf16.mxu0 %v1634
  %2108 = vmatpush1.bf16.msra.mxu0 %v1633
  %2109 = vmatprep.subr.bf16.mxu0 %v1626
  %2110 = vmatpush1.bf16.msra.mxu0 %v1625
  %2111 = vmatprep.subr.bf16.mxu0 0
  %2112 = vmatpush2.bf16.msra.mxu0 0
  %2113 = vmatprep.subr.bf16.mxu0 0
  %2114 = vmatpush2.bf16.msra.mxu0 0
  %2115 = vmatprep.subr.bf16.mxu0 0
  %2116 = vmatpush2.bf16.msra.mxu0 0
  %2117 = vmatprep.subr.bf16.mxu0 0
  %2118 = vmatpush2.bf16.msra.mxu0 0
  %2119 = vmatprep.subr.bf16.mxu0 0
  %2120 = vmatpush2.bf16.msra.mxu0 0
  %2121 = vmatprep.subr.bf16.mxu0 0
  %2122 = vmatpush2.bf16.msra.mxu0 0
  %2123 = vmatprep.subr.bf16.mxu0 0
  %2124 = vmatpush2.bf16.msra.mxu0 0
  %2125 = vmatprep.subr.bf16.mxu0 0
  %2126 = vmatpush2.bf16.msra.mxu0 0
  %2127 = vmatprep.mubr.bf16.mxu0 0
  %2128 = vmatmul.mubr.bf16.gmra.mxu0 %v403
  %v2129 = vpop.f32.mrf.mxu0
  %v2130 = vadd.f32 %v2087, %v2129
  %v2131 = vpop.f32.mrf.mxu0
  %v2132 = vadd.f32 %v2089, %v2131
  %v2133 = vpop.f32.mrf.mxu0
  %v2134 = vadd.f32 %v2091, %v2133
  %v2135 = vpop.f32.mrf.mxu0
  %v2136 = vadd.f32 %v2093, %v2135
  %2137 = vdwg.mxu0
  %2138 = vmatprep.subr.bf16.mxu0 %v1428
  %2139 = vmatpush1.bf16.msra.mxu0 %v1427
  %2140 = vmatprep.subr.bf16.mxu0 %v1420
  %2141 = vmatpush1.bf16.msra.mxu0 %v1419
  %2142 = vmatprep.subr.bf16.mxu0 %v1412
  %2143 = vmatpush1.bf16.msra.mxu0 %v1411
  %2144 = vmatprep.subr.bf16.mxu0 %v1404
  %2145 = vmatpush1.bf16.msra.mxu0 %v1403
  %2146 = vmatprep.subr.bf16.mxu0 %v1396
  %2147 = vmatpush1.bf16.msra.mxu0 %v1395
  %2148 = vmatprep.subr.bf16.mxu0 %v1388
  %2149 = vmatpush1.bf16.msra.mxu0 %v1387
  %2150 = vmatprep.subr.bf16.mxu0 %v1380
  %2151 = vmatpush1.bf16.msra.mxu0 %v1379
  %2152 = vmatprep.subr.bf16.mxu0 %v1372
  %2153 = vmatpush1.bf16.msra.mxu0 %v1371
  %2154 = vmatprep.subr.bf16.mxu0 %v1492
  %2155 = vmatpush2.bf16.msra.mxu0 %v1491
  %2156 = vmatprep.subr.bf16.mxu0 %v1484
  %2157 = vmatpush2.bf16.msra.mxu0 %v1483
  %2158 = vmatprep.subr.bf16.mxu0 %v1476
  %2159 = vmatpush2.bf16.msra.mxu0 %v1475
  %2160 = vmatprep.subr.bf16.mxu0 %v1468
  %2161 = vmatpush2.bf16.msra.mxu0 %v1467
  %2162 = vmatprep.subr.bf16.mxu0 %v1460
  %2163 = vmatpush2.bf16.msra.mxu0 %v1459
  %2164 = vmatprep.subr.bf16.mxu0 %v1452
  %2165 = vmatpush2.bf16.msra.mxu0 %v1451
  %2166 = vmatprep.subr.bf16.mxu0 %v1444
  %2167 = vmatpush2.bf16.msra.mxu0 %v1443
  %2168 = vmatprep.subr.bf16.mxu0 %v1436
  %2169 = vmatpush2.bf16.msra.mxu0 %v1435
  %2170 = vmatprep.mubr.bf16.mxu0 %v400
  %2171 = vmatmul.mubr.bf16.gmra.mxu0 %v399
  %v2172 = vpop.f32.mrf.mxu0
  %v2173 = vadd.f32 %v354, %v2172
  %v2174 = vpop.f32.mrf.mxu0
  %v2175 = vadd.f32 %v358, %v2174
  %v2176 = vpop.f32.mrf.mxu0
  %v2177 = vadd.f32 %v354, %v2176
  %v2178 = vpop.f32.mrf.mxu0
  %v2179 = vadd.f32 %v358, %v2178
  %2180 = vdwg.mxu0
  %2181 = vmatprep.subr.bf16.mxu0 %v1556
  %2182 = vmatpush1.bf16.msra.mxu0 %v1555
  %2183 = vmatprep.subr.bf16.mxu0 %v1548
  %2184 = vmatpush1.bf16.msra.mxu0 %v1547
  %2185 = vmatprep.subr.bf16.mxu0 %v1540
  %2186 = vmatpush1.bf16.msra.mxu0 %v1539
  %2187 = vmatprep.subr.bf16.mxu0 %v1532
  %2188 = vmatpush1.bf16.msra.mxu0 %v1531
  %2189 = vmatprep.subr.bf16.mxu0 %v1524
  %2190 = vmatpush1.bf16.msra.mxu0 %v1523
  %2191 = vmatprep.subr.bf16.mxu0 %v1516
  %2192 = vmatpush1.bf16.msra.mxu0 %v1515
  %2193 = vmatprep.subr.bf16.mxu0 %v1508
  %2194 = vmatpush1.bf16.msra.mxu0 %v1507
  %2195 = vmatprep.subr.bf16.mxu0 %v1500
  %2196 = vmatpush1.bf16.msra.mxu0 %v1499
  %2197 = vmatprep.subr.bf16.mxu0 %v1620
  %2198 = vmatpush2.bf16.msra.mxu0 %v1619
  %2199 = vmatprep.subr.bf16.mxu0 %v1612
  %2200 = vmatpush2.bf16.msra.mxu0 %v1611
  %2201 = vmatprep.subr.bf16.mxu0 %v1604
  %2202 = vmatpush2.bf16.msra.mxu0 %v1603
  %2203 = vmatprep.subr.bf16.mxu0 %v1596
  %2204 = vmatpush2.bf16.msra.mxu0 %v1595
  %2205 = vmatprep.subr.bf16.mxu0 %v1588
  %2206 = vmatpush2.bf16.msra.mxu0 %v1587
  %2207 = vmatprep.subr.bf16.mxu0 %v1580
  %2208 = vmatpush2.bf16.msra.mxu0 %v1579
  %2209 = vmatprep.subr.bf16.mxu0 %v1572
  %2210 = vmatpush2.bf16.msra.mxu0 %v1571
  %2211 = vmatprep.subr.bf16.mxu0 %v1564
  %2212 = vmatpush2.bf16.msra.mxu0 %v1563
  %2213 = vmatprep.mubr.bf16.mxu0 %v402
  %2214 = vmatmul.mubr.bf16.gmra.mxu0 %v401
  %v2215 = vpop.f32.mrf.mxu0
  %v2216 = vadd.f32 %v2173, %v2215
  %v2217 = vpop.f32.mrf.mxu0
  %v2218 = vadd.f32 %v2175, %v2217
  %v2219 = vpop.f32.mrf.mxu0
  %v2220 = vadd.f32 %v2177, %v2219
  %v2221 = vpop.f32.mrf.mxu0
  %v2222 = vadd.f32 %v2179, %v2221
  %2223 = vdwg.mxu0
  %2224 = vmatprep.subr.bf16.mxu0 %v1684
  %2225 = vmatpush1.bf16.msra.mxu0 %v1683
  %2226 = vmatprep.subr.bf16.mxu0 %v1676
  %2227 = vmatpush1.bf16.msra.mxu0 %v1675
  %2228 = vmatprep.subr.bf16.mxu0 %v1668
  %2229 = vmatpush1.bf16.msra.mxu0 %v1667
  %2230 = vmatprep.subr.bf16.mxu0 %v1660
  %2231 = vmatpush1.bf16.msra.mxu0 %v1659
  %2232 = vmatprep.subr.bf16.mxu0 %v1652
  %2233 = vmatpush1.bf16.msra.mxu0 %v1651
  %2234 = vmatprep.subr.bf16.mxu0 %v1644
  %2235 = vmatpush1.bf16.msra.mxu0 %v1643
  %2236 = vmatprep.subr.bf16.mxu0 %v1636
  %2237 = vmatpush1.bf16.msra.mxu0 %v1635
  %2238 = vmatprep.subr.bf16.mxu0 %v1628
  %2239 = vmatpush1.bf16.msra.mxu0 %v1627
  %2240 = vmatprep.subr.bf16.mxu0 0
  %2241 = vmatpush2.bf16.msra.mxu0 0
  %2242 = vmatprep.subr.bf16.mxu0 0
  %2243 = vmatpush2.bf16.msra.mxu0 0
  %2244 = vmatprep.subr.bf16.mxu0 0
  %2245 = vmatpush2.bf16.msra.mxu0 0
  %2246 = vmatprep.subr.bf16.mxu0 0
  %2247 = vmatpush2.bf16.msra.mxu0 0
  %2248 = vmatprep.subr.bf16.mxu0 0
  %2249 = vmatpush2.bf16.msra.mxu0 0
  %2250 = vmatprep.subr.bf16.mxu0 0
  %2251 = vmatpush2.bf16.msra.mxu0 0
  %2252 = vmatprep.subr.bf16.mxu0 0
  %2253 = vmatpush2.bf16.msra.mxu0 0
  %2254 = vmatprep.subr.bf16.mxu0 0
  %2255 = vmatpush2.bf16.msra.mxu0 0
  %2256 = vmatprep.mubr.bf16.mxu0 0
  %2257 = vmatmul.mubr.bf16.gmra.mxu0 %v403
  %v2258 = vpop.f32.mrf.mxu0
  %v2259 = vadd.f32 %v2216, %v2258
  %v2260 = vpop.f32.mrf.mxu0
  %v2261 = vadd.f32 %v2218, %v2260
  %v2262 = vpop.f32.mrf.mxu0
  %v2263 = vadd.f32 %v2220, %v2262
  %v2264 = vpop.f32.mrf.mxu0
  %v2265 = vadd.f32 %v2222, %v2264
  %2266 = vdwg.mxu0
  %2267 = vmatprep.subr.bf16.mxu0 %v1430
  %2268 = vmatpush1.bf16.msra.mxu0 %v1429
  %2269 = vmatprep.subr.bf16.mxu0 %v1422
  %2270 = vmatpush1.bf16.msra.mxu0 %v1421
  %2271 = vmatprep.subr.bf16.mxu0 %v1414
  %2272 = vmatpush1.bf16.msra.mxu0 %v1413
  %2273 = vmatprep.subr.bf16.mxu0 %v1406
  %2274 = vmatpush1.bf16.msra.mxu0 %v1405
  %2275 = vmatprep.subr.bf16.mxu0 %v1398
  %2276 = vmatpush1.bf16.msra.mxu0 %v1397
  %2277 = vmatprep.subr.bf16.mxu0 %v1390
  %2278 = vmatpush1.bf16.msra.mxu0 %v1389
  %2279 = vmatprep.subr.bf16.mxu0 %v1382
  %2280 = vmatpush1.bf16.msra.mxu0 %v1381
  %2281 = vmatprep.subr.bf16.mxu0 %v1374
  %2282 = vmatpush1.bf16.msra.mxu0 %v1373
  %2283 = vmatprep.subr.bf16.mxu0 %v1494
  %2284 = vmatpush2.bf16.msra.mxu0 %v1493
  %2285 = vmatprep.subr.bf16.mxu0 %v1486
  %2286 = vmatpush2.bf16.msra.mxu0 %v1485
  %2287 = vmatprep.subr.bf16.mxu0 %v1478
  %2288 = vmatpush2.bf16.msra.mxu0 %v1477
  %2289 = vmatprep.subr.bf16.mxu0 %v1470
  %2290 = vmatpush2.bf16.msra.mxu0 %v1469
  %2291 = vmatprep.subr.bf16.mxu0 %v1462
  %2292 = vmatpush2.bf16.msra.mxu0 %v1461
  %2293 = vmatprep.subr.bf16.mxu0 %v1454
  %2294 = vmatpush2.bf16.msra.mxu0 %v1453
  %2295 = vmatprep.subr.bf16.mxu0 %v1446
  %2296 = vmatpush2.bf16.msra.mxu0 %v1445
  %2297 = vmatprep.subr.bf16.mxu0 %v1438
  %2298 = vmatpush2.bf16.msra.mxu0 %v1437
  %2299 = vmatprep.mubr.bf16.mxu0 %v400
  %2300 = vmatmul.mubr.bf16.gmra.mxu0 %v399
  %v2301 = vpop.f32.mrf.mxu0
  %v2302 = vadd.f32 %v362, %v2301
  %v2303 = vpop.f32.mrf.mxu0
  %v2304 = vadd.f32 %v366, %v2303
  %v2305 = vpop.f32.mrf.mxu0
  %v2306 = vadd.f32 %v362, %v2305
  %v2307 = vpop.f32.mrf.mxu0
  %v2308 = vadd.f32 %v366, %v2307
  %2309 = vdwg.mxu0
  %2310 = vmatprep.subr.bf16.mxu0 %v1558
  %2311 = vmatpush1.bf16.msra.mxu0 %v1557
  %2312 = vmatprep.subr.bf16.mxu0 %v1550
  %2313 = vmatpush1.bf16.msra.mxu0 %v1549
  %2314 = vmatprep.subr.bf16.mxu0 %v1542
  %2315 = vmatpush1.bf16.msra.mxu0 %v1541
  %2316 = vmatprep.subr.bf16.mxu0 %v1534
  %2317 = vmatpush1.bf16.msra.mxu0 %v1533
  %2318 = vmatprep.subr.bf16.mxu0 %v1526
  %2319 = vmatpush1.bf16.msra.mxu0 %v1525
  %2320 = vmatprep.subr.bf16.mxu0 %v1518
  %2321 = vmatpush1.bf16.msra.mxu0 %v1517
  %2322 = vmatprep.subr.bf16.mxu0 %v1510
  %2323 = vmatpush1.bf16.msra.mxu0 %v1509
  %2324 = vmatprep.subr.bf16.mxu0 %v1502
  %2325 = vmatpush1.bf16.msra.mxu0 %v1501
  %2326 = vmatprep.subr.bf16.mxu0 %v1622
  %2327 = vmatpush2.bf16.msra.mxu0 %v1621
  %2328 = vmatprep.subr.bf16.mxu0 %v1614
  %2329 = vmatpush2.bf16.msra.mxu0 %v1613
  %2330 = vmatprep.subr.bf16.mxu0 %v1606
  %2331 = vmatpush2.bf16.msra.mxu0 %v1605
  %2332 = vmatprep.subr.bf16.mxu0 %v1598
  %2333 = vmatpush2.bf16.msra.mxu0 %v1597
  %2334 = vmatprep.subr.bf16.mxu0 %v1590
  %2335 = vmatpush2.bf16.msra.mxu0 %v1589
  %2336 = vmatprep.subr.bf16.mxu0 %v1582
  %2337 = vmatpush2.bf16.msra.mxu0 %v1581
  %2338 = vmatprep.subr.bf16.mxu0 %v1574
  %2339 = vmatpush2.bf16.msra.mxu0 %v1573
  %2340 = vmatprep.subr.bf16.mxu0 %v1566
  %2341 = vmatpush2.bf16.msra.mxu0 %v1565
  %2342 = vmatprep.mubr.bf16.mxu0 %v402
  %2343 = vmatmul.mubr.bf16.gmra.mxu0 %v401
  %v2344 = vpop.f32.mrf.mxu0
  %v2345 = vadd.f32 %v2302, %v2344
  %v2346 = vpop.f32.mrf.mxu0
  %v2347 = vadd.f32 %v2304, %v2346
  %v2348 = vpop.f32.mrf.mxu0
  %v2349 = vadd.f32 %v2306, %v2348
  %v2350 = vpop.f32.mrf.mxu0
  %v2351 = vadd.f32 %v2308, %v2350
  %2352 = vdwg.mxu0
  %2353 = vmatprep.subr.bf16.mxu0 %v1686
  %2354 = vmatpush1.bf16.msra.mxu0 %v1685
  %2355 = vmatprep.subr.bf16.mxu0 %v1678
  %2356 = vmatpush1.bf16.msra.mxu0 %v1677
  %2357 = vmatprep.subr.bf16.mxu0 %v1670
  %2358 = vmatpush1.bf16.msra.mxu0 %v1669
  %2359 = vmatprep.subr.bf16.mxu0 %v1662
  %2360 = vmatpush1.bf16.msra.mxu0 %v1661
  %2361 = vmatprep.subr.bf16.mxu0 %v1654
  %2362 = vmatpush1.bf16.msra.mxu0 %v1653
  %2363 = vmatprep.subr.bf16.mxu0 %v1646
  %2364 = vmatpush1.bf16.msra.mxu0 %v1645
  %2365 = vmatprep.subr.bf16.mxu0 %v1638
  %2366 = vmatpush1.bf16.msra.mxu0 %v1637
  %2367 = vmatprep.subr.bf16.mxu0 %v1630
  %2368 = vmatpush1.bf16.msra.mxu0 %v1629
  %2369 = vmatprep.subr.bf16.mxu0 0
  %2370 = vmatpush2.bf16.msra.mxu0 0
  %2371 = vmatprep.subr.bf16.mxu0 0
  %2372 = vmatpush2.bf16.msra.mxu0 0
  %2373 = vmatprep.subr.bf16.mxu0 0
  %2374 = vmatpush2.bf16.msra.mxu0 0
  %2375 = vmatprep.subr.bf16.mxu0 0
  %2376 = vmatpush2.bf16.msra.mxu0 0
  %2377 = vmatprep.subr.bf16.mxu0 0
  %2378 = vmatpush2.bf16.msra.mxu0 0
  %2379 = vmatprep.subr.bf16.mxu0 0
  %2380 = vmatpush2.bf16.msra.mxu0 0
  %2381 = vmatprep.subr.bf16.mxu0 0
  %2382 = vmatpush2.bf16.msra.mxu0 0
  %2383 = vmatprep.subr.bf16.mxu0 0
  %2384 = vmatpush2.bf16.msra.mxu0 0
  %2385 = vmatprep.mubr.bf16.mxu0 0
  %2386 = vmatmul.mubr.bf16.gmra.mxu0 %v403
  %v2387 = vpop.f32.mrf.mxu0
  %v2388 = vadd.f32 %v2345, %v2387
  %v2389 = vpop.f32.mrf.mxu0
  %v2390 = vadd.f32 %v2347, %v2389
  %v2391 = vpop.f32.mrf.mxu0
  %v2392 = vadd.f32 %v2349, %v2391
  %v2393 = vpop.f32.mrf.mxu0
  %v2394 = vadd.f32 %v2351, %v2393
  %2395 = vdwg.mxu0
  %2396 = vmatprep.subr.bf16.mxu0 %v1432
  %2397 = vmatpush1.bf16.msra.mxu0 %v1431
  %2398 = vmatprep.subr.bf16.mxu0 %v1424
  %2399 = vmatpush1.bf16.msra.mxu0 %v1423
  %2400 = vmatprep.subr.bf16.mxu0 %v1416
  %2401 = vmatpush1.bf16.msra.mxu0 %v1415
  %2402 = vmatprep.subr.bf16.mxu0 %v1408
  %2403 = vmatpush1.bf16.msra.mxu0 %v1407
  %2404 = vmatprep.subr.bf16.mxu0 %v1400
  %2405 = vmatpush1.bf16.msra.mxu0 %v1399
  %2406 = vmatprep.subr.bf16.mxu0 %v1392
  %2407 = vmatpush1.bf16.msra.mxu0 %v1391
  %2408 = vmatprep.subr.bf16.mxu0 %v1384
  %2409 = vmatpush1.bf16.msra.mxu0 %v1383
  %2410 = vmatprep.subr.bf16.mxu0 %v1376
  %2411 = vmatpush1.bf16.msra.mxu0 %v1375
  %2412 = vmatprep.subr.bf16.mxu0 %v1496
  %2413 = vmatpush2.bf16.msra.mxu0 %v1495
  %2414 = vmatprep.subr.bf16.mxu0 %v1488
  %2415 = vmatpush2.bf16.msra.mxu0 %v1487
  %2416 = vmatprep.subr.bf16.mxu0 %v1480
  %2417 = vmatpush2.bf16.msra.mxu0 %v1479
  %2418 = vmatprep.subr.bf16.mxu0 %v1472
  %2419 = vmatpush2.bf16.msra.mxu0 %v1471
  %2420 = vmatprep.subr.bf16.mxu0 %v1464
  %2421 = vmatpush2.bf16.msra.mxu0 %v1463
  %2422 = vmatprep.subr.bf16.mxu0 %v1456
  %2423 = vmatpush2.bf16.msra.mxu0 %v1455
  %2424 = vmatprep.subr.bf16.mxu0 %v1448
  %2425 = vmatpush2.bf16.msra.mxu0 %v1447
  %2426 = vmatprep.subr.bf16.mxu0 %v1440
  %2427 = vmatpush2.bf16.msra.mxu0 %v1439
  %2428 = vmatprep.mubr.bf16.mxu0 %v400
  %2429 = vmatmul.mubr.bf16.gmra.mxu0 %v399
  %v2430 = vpop.f32.mrf.mxu0
  %v2431 = vadd.f32 %v370, %v2430
  %v2432 = vpop.f32.mrf.mxu0
  %v2433 = vadd.f32 %v374, %v2432
  %v2434 = vpop.f32.mrf.mxu0
  %v2435 = vadd.f32 %v370, %v2434
  %v2436 = vpop.f32.mrf.mxu0
  %v2437 = vadd.f32 %v374, %v2436
  %2438 = vdwg.mxu0
  %2439 = vmatprep.subr.bf16.mxu0 %v1560
  %2440 = vmatpush1.bf16.msra.mxu0 %v1559
  %2441 = vmatprep.subr.bf16.mxu0 %v1552
  %2442 = vmatpush1.bf16.msra.mxu0 %v1551
  %2443 = vmatprep.subr.bf16.mxu0 %v1544
  %2444 = vmatpush1.bf16.msra.mxu0 %v1543
  %2445 = vmatprep.subr.bf16.mxu0 %v1536
  %2446 = vmatpush1.bf16.msra.mxu0 %v1535
  %2447 = vmatprep.subr.bf16.mxu0 %v1528
  %2448 = vmatpush1.bf16.msra.mxu0 %v1527
  %2449 = vmatprep.subr.bf16.mxu0 %v1520
  %2450 = vmatpush1.bf16.msra.mxu0 %v1519
  %2451 = vmatprep.subr.bf16.mxu0 %v1512
  %2452 = vmatpush1.bf16.msra.mxu0 %v1511
  %2453 = vmatprep.subr.bf16.mxu0 %v1504
  %2454 = vmatpush1.bf16.msra.mxu0 %v1503
  %2455 = vmatprep.subr.bf16.mxu0 %v1624
  %2456 = vmatpush2.bf16.msra.mxu0 %v1623
  %2457 = vmatprep.subr.bf16.mxu0 %v1616
  %2458 = vmatpush2.bf16.msra.mxu0 %v1615
  %2459 = vmatprep.subr.bf16.mxu0 %v1608
  %2460 = vmatpush2.bf16.msra.mxu0 %v1607
  %2461 = vmatprep.subr.bf16.mxu0 %v1600
  %2462 = vmatpush2.bf16.msra.mxu0 %v1599
  %2463 = vmatprep.subr.bf16.mxu0 %v1592
  %2464 = vmatpush2.bf16.msra.mxu0 %v1591
  %2465 = vmatprep.subr.bf16.mxu0 %v1584
  %2466 = vmatpush2.bf16.msra.mxu0 %v1583
  %2467 = vmatprep.subr.bf16.mxu0 %v1576
  %2468 = vmatpush2.bf16.msra.mxu0 %v1575
  %2469 = vmatprep.subr.bf16.mxu0 %v1568
  %2470 = vmatpush2.bf16.msra.mxu0 %v1567
  %2471 = vmatprep.mubr.bf16.mxu0 %v402
  %2472 = vmatmul.mubr.bf16.gmra.mxu0 %v401
  %v2473 = vpop.f32.mrf.mxu0
  %v2474 = vadd.f32 %v2431, %v2473
  %v2475 = vpop.f32.mrf.mxu0
  %v2476 = vadd.f32 %v2433, %v2475
  %v2477 = vpop.f32.mrf.mxu0
  %v2478 = vadd.f32 %v2435, %v2477
  %v2479 = vpop.f32.mrf.mxu0
  %v2480 = vadd.f32 %v2437, %v2479
  %2481 = vdwg.mxu0
  %2482 = vmatprep.subr.bf16.mxu0 %v1688
  %2483 = vmatpush1.bf16.msra.mxu0 %v1687
  %2484 = vmatprep.subr.bf16.mxu0 %v1680
  %2485 = vmatpush1.bf16.msra.mxu0 %v1679
  %2486 = vmatprep.subr.bf16.mxu0 %v1672
  %2487 = vmatpush1.bf16.msra.mxu0 %v1671
  %2488 = vmatprep.subr.bf16.mxu0 %v1664
  %2489 = vmatpush1.bf16.msra.mxu0 %v1663
  %2490 = vmatprep.subr.bf16.mxu0 %v1656
  %2491 = vmatpush1.bf16.msra.mxu0 %v1655
  %2492 = vmatprep.subr.bf16.mxu0 %v1648
  %2493 = vmatpush1.bf16.msra.mxu0 %v1647
  %2494 = vmatprep.subr.bf16.mxu0 %v1640
  %2495 = vmatpush1.bf16.msra.mxu0 %v1639
  %2496 = vmatprep.subr.bf16.mxu0 %v1632
  %2497 = vmatpush1.bf16.msra.mxu0 %v1631
  %2498 = vmatprep.subr.bf16.mxu0 0
  %2499 = vmatpush2.bf16.msra.mxu0 0
  %2500 = vmatprep.subr.bf16.mxu0 0
  %2501 = vmatpush2.bf16.msra.mxu0 0
  %2502 = vmatprep.subr.bf16.mxu0 0
  %2503 = vmatpush2.bf16.msra.mxu0 0
  %2504 = vmatprep.subr.bf16.mxu0 0
  %2505 = vmatpush2.bf16.msra.mxu0 0
  %2506 = vmatprep.subr.bf16.mxu0 0
  %2507 = vmatpush2.bf16.msra.mxu0 0
  %2508 = vmatprep.subr.bf16.mxu0 0
  %2509 = vmatpush2.bf16.msra.mxu0 0
  %2510 = vmatprep.subr.bf16.mxu0 0
  %2511 = vmatpush2.bf16.msra.mxu0 0
  %2512 = vmatprep.subr.bf16.mxu0 0
  %2513 = vmatpush2.bf16.msra.mxu0 0
  %2514 = vmatprep.mubr.bf16.mxu0 0
  %2515 = vmatmul.mubr.bf16.gmra.mxu0 %v403
  %v2516 = vpop.f32.mrf.mxu0
  %v2517 = vadd.f32 %v2474, %v2516
  %v2518 = vpop.f32.mrf.mxu0
  %v2519 = vadd.f32 %v2476, %v2518
  %v2520 = vpop.f32.mrf.mxu0
  %v2521 = vadd.f32 %v2478, %v2520
  %v2522 = vpop.f32.mrf.mxu0
  %v2523 = vadd.f32 %v2480, %v2522
  %2524 = vdwg.mxu0
  %v2525 = vmax.f32 %v2130, 0.0
  %v2526 = vmax.f32 %v2132, 0.0
  %v2527 = vmax.f32 %v2259, 0.0
  %v2528 = vmax.f32 %v2261, 0.0
  %v2529 = vmax.f32 %v2388, 0.0
  %v2530 = vmax.f32 %v2390, 0.0
  %v2531 = vmax.f32 %v2517, 0.0
  %v2532 = vmax.f32 %v2519, 0.0
  %v2533 = vmax.f32 %v2134, 0.0
  %v2534 = vmax.f32 %v2136, 0.0
  %v2535 = vmax.f32 %v2263, 0.0
  %v2536 = vmax.f32 %v2265, 0.0
  %v2537 = vmax.f32 %v2392, 0.0
  %v2538 = vmax.f32 %v2394, 0.0
  %v2539 = vmax.f32 %v2521, 0.0
  %v2540 = vmax.f32 %v2523, 0.0
  %v2541 = vrot.slane %v2525, 4
  %v2542 = vmax.f32 %v2525, %v2541
  %v2543 = vrot.slane %v2542, 2
  %v2544 = vmax.f32 %v2542, %v2543
  %v2545 = vrot.slane %v2544, 1
  %v2546 = vmax.f32 %v2544, %v2545
  %v2547 = vrot.slane %v2526, 4
  %v2548 = vmax.f32 %v2526, %v2547
  %v2549 = vrot.slane %v2548, 2
  %v2550 = vmax.f32 %v2548, %v2549
  %v2551 = vrot.slane %v2550, 1
  %v2552 = vmax.f32 %v2550, %v2551
  %v2553 = vrot.slane %v2527, 4
  %v2554 = vmax.f32 %v2527, %v2553
  %v2555 = vrot.slane %v2554, 2
  %v2556 = vmax.f32 %v2554, %v2555
  %v2557 = vrot.slane %v2556, 1
  %v2558 = vmax.f32 %v2556, %v2557
  %v2559 = vrot.slane %v2528, 4
  %v2560 = vmax.f32 %v2528, %v2559
  %v2561 = vrot.slane %v2560, 2
  %v2562 = vmax.f32 %v2560, %v2561
  %v2563 = vrot.slane %v2562, 1
  %v2564 = vmax.f32 %v2562, %v2563
  %v2565 = vrot.slane %v2529, 4
  %v2566 = vmax.f32 %v2529, %v2565
  %v2567 = vrot.slane %v2566, 2
  %v2568 = vmax.f32 %v2566, %v2567
  %v2569 = vrot.slane %v2568, 1
  %v2570 = vmax.f32 %v2568, %v2569
  %v2571 = vrot.slane %v2530, 4
  %v2572 = vmax.f32 %v2530, %v2571
  %v2573 = vrot.slane %v2572, 2
  %v2574 = vmax.f32 %v2572, %v2573
  %v2575 = vrot.slane %v2574, 1
  %v2576 = vmax.f32 %v2574, %v2575
  %v2577 = vrot.slane %v2531, 4
  %v2578 = vmax.f32 %v2531, %v2577
  %v2579 = vrot.slane %v2578, 2
  %v2580 = vmax.f32 %v2578, %v2579
  %v2581 = vrot.slane %v2580, 1
  %v2582 = vmax.f32 %v2580, %v2581
  %v2583 = vrot.slane %v2532, 4
  %v2584 = vmax.f32 %v2532, %v2583
  %v2585 = vrot.slane %v2584, 2
  %v2586 = vmax.f32 %v2584, %v2585
  %v2587 = vrot.slane %v2586, 1
  %v2588 = vmax.f32 %v2586, %v2587
  %v2589 = vrot.slane %v2533, 4
  %v2590 = vmax.f32 %v2533, %v2589
  %v2591 = vrot.slane %v2590, 2
  %v2592 = vmax.f32 %v2590, %v2591
  %v2593 = vrot.slane %v2592, 1
  %v2594 = vmax.f32 %v2592, %v2593
  %v2595 = vrot.slane %v2534, 4
  %v2596 = vmax.f32 %v2534, %v2595
  %v2597 = vrot.slane %v2596, 2
  %v2598 = vmax.f32 %v2596, %v2597
  %v2599 = vrot.slane %v2598, 1
  %v2600 = vmax.f32 %v2598, %v2599
  %v2601 = vrot.slane %v2535, 4
  %v2602 = vmax.f32 %v2535, %v2601
  %v2603 = vrot.slane %v2602, 2
  %v2604 = vmax.f32 %v2602, %v2603
  %v2605 = vrot.slane %v2604, 1
  %v2606 = vmax.f32 %v2604, %v2605
  %v2607 = vrot.slane %v2536, 4
  %v2608 = vmax.f32 %v2536, %v2607
  %v2609 = vrot.slane %v2608, 2
  %v2610 = vmax.f32 %v2608, %v2609
  %v2611 = vrot.slane %v2610, 1
  %v2612 = vmax.f32 %v2610, %v2611
  %v2613 = vrot.slane %v2537, 4
  %v2614 = vmax.f32 %v2537, %v2613
  %v2615 = vrot.slane %v2614, 2
  %v2616 = vmax.f32 %v2614, %v2615
  %v2617 = vrot.slane %v2616, 1
  %v2618 = vmax.f32 %v2616, %v2617
  %v2619 = vrot.slane %v2538, 4
  %v2620 = vmax.f32 %v2538, %v2619
  %v2621 = vrot.slane %v2620, 2
  %v2622 = vmax.f32 %v2620, %v2621
  %v2623 = vrot.slane %v2622, 1
  %v2624 = vmax.f32 %v2622, %v2623
  %v2625 = vrot.slane %v2539, 4
  %v2626 = vmax.f32 %v2539, %v2625
  %v2627 = vrot.slane %v2626, 2
  %v2628 = vmax.f32 %v2626, %v2627
  %v2629 = vrot.slane %v2628, 1
  %v2630 = vmax.f32 %v2628, %v2629
  %v2631 = vrot.slane %v2540, 4
  %v2632 = vmax.f32 %v2540, %v2631
  %v2633 = vrot.slane %v2632, 2
  %v2634 = vmax.f32 %v2632, %v2633
  %v2635 = vrot.slane %v2634, 1
  %v2636 = vmax.f32 %v2634, %v2635
  %v2637 = vld [vmem:[%s0 + $0x14] sm:$0xff]
  %v2638 = vld [vmem:[%s0 + $0x1c] sm:$0xff]
  %v2639 = vld [vmem:[%s0 + $0x24] sm:$0xf]
  %v2640 = vld [vmem:[%s0 + $0x3c] sm:$0xff]
  %v2641 = vld [vmem:[%s0 + $0x44] sm:$0xff]
  %v2642 = vld [vmem:[%s0 + $0x4c] sm:$0xf]
  %v2649 = vunpack.c.l.b16 %v2637
  %v2650 = vunpack.c.h.b16 %v2637
  %v2651 = vunpack.c.l.b16 %v2638
  %v2652 = vunpack.c.h.b16 %v2638
  %v2653 = vunpack.c.l.b16 %v2639
  %v2654 = vunpack.c.l.b16 %v2640
  %v2655 = vunpack.c.h.b16 %v2640
  %v2656 = vunpack.c.l.b16 %v2641
  %v2657 = vunpack.c.h.b16 %v2641
  %v2658 = vunpack.c.l.b16 %v2642
  %v2659 = vpack.c.b16 %v2654, %v2649
  %v2660 = vpack.c.b16 %v2655, %v2650
  %v2661 = vpack.c.b16 %v2656, %v2651
  %v2662 = vpack.c.b16 %v2657, %v2652
  %v2663 = vpack.c.b16 %v2658, %v2653
  %2669 = vmatprep.subr.bf16.mxu0 %v1426
  %2670 = vmatpush1.bf16.msra.mxu0 %v1425
  %2671 = vmatprep.subr.bf16.mxu0 %v1418
  %2672 = vmatpush1.bf16.msra.mxu0 %v1417
  %2673 = vmatprep.subr.bf16.mxu0 %v1410
  %2674 = vmatpush1.bf16.msra.mxu0 %v1409
  %2675 = vmatprep.subr.bf16.mxu0 %v1402
  %2676 = vmatpush1.bf16.msra.mxu0 %v1401
  %2677 = vmatprep.subr.bf16.mxu0 %v1394
  %2678 = vmatpush1.bf16.msra.mxu0 %v1393
  %2679 = vmatprep.subr.bf16.mxu0 %v1386
  %2680 = vmatpush1.bf16.msra.mxu0 %v1385
  %2681 = vmatprep.subr.bf16.mxu0 %v1378
  %2682 = vmatpush1.bf16.msra.mxu0 %v1377
  %2683 = vmatprep.subr.bf16.mxu0 %v1370
  %2684 = vmatpush1.bf16.msra.mxu0 %v1369
  %2685 = vmatprep.subr.bf16.mxu0 %v1490
  %2686 = vmatpush2.bf16.msra.mxu0 %v1489
  %2687 = vmatprep.subr.bf16.mxu0 %v1482
  %2688 = vmatpush2.bf16.msra.mxu0 %v1481
  %2689 = vmatprep.subr.bf16.mxu0 %v1474
  %2690 = vmatpush2.bf16.msra.mxu0 %v1473
  %2691 = vmatprep.subr.bf16.mxu0 %v1466
  %2692 = vmatpush2.bf16.msra.mxu0 %v1465
  %2693 = vmatprep.subr.bf16.mxu0 %v1458
  %2694 = vmatpush2.bf16.msra.mxu0 %v1457
  %2695 = vmatprep.subr.bf16.mxu0 %v1450
  %2696 = vmatpush2.bf16.msra.mxu0 %v1449
  %2697 = vmatprep.subr.bf16.mxu0 %v1442
  %2698 = vmatpush2.bf16.msra.mxu0 %v1441
  %2699 = vmatprep.subr.bf16.mxu0 %v1434
  %2700 = vmatpush2.bf16.msra.mxu0 %v1433
  %2701 = vmatprep.mubr.bf16.mxu0 %v2660
  %2702 = vmatmul.mubr.bf16.gmra.mxu0 %v2659
  %v2703 = vpop.f32.mrf.mxu0
  %v2704 = vadd.f32 %v346, %v2703
  %v2705 = vpop.f32.mrf.mxu0
  %v2706 = vadd.f32 %v350, %v2705
  %v2707 = vpop.f32.mrf.mxu0
  %v2708 = vadd.f32 %v346, %v2707
  %v2709 = vpop.f32.mrf.mxu0
  %v2710 = vadd.f32 %v350, %v2709
  %2711 = vdwg.mxu0
  %2712 = vmatprep.subr.bf16.mxu0 %v1554
  %2713 = vmatpush1.bf16.msra.mxu0 %v1553
  %2714 = vmatprep.subr.bf16.mxu0 %v1546
  %2715 = vmatpush1.bf16.msra.mxu0 %v1545
  %2716 = vmatprep.subr.bf16.mxu0 %v1538
  %2717 = vmatpush1.bf16.msra.mxu0 %v1537
  %2718 = vmatprep.subr.bf16.mxu0 %v1530
  %2719 = vmatpush1.bf16.msra.mxu0 %v1529
  %2720 = vmatprep.subr.bf16.mxu0 %v1522
  %2721 = vmatpush1.bf16.msra.mxu0 %v1521
  %2722 = vmatprep.subr.bf16.mxu0 %v1514
  %2723 = vmatpush1.bf16.msra.mxu0 %v1513
  %2724 = vmatprep.subr.bf16.mxu0 %v1506
  %2725 = vmatpush1.bf16.msra.mxu0 %v1505
  %2726 = vmatprep.subr.bf16.mxu0 %v1498
  %2727 = vmatpush1.bf16.msra.mxu0 %v1497
  %2728 = vmatprep.subr.bf16.mxu0 %v1618
  %2729 = vmatpush2.bf16.msra.mxu0 %v1617
  %2730 = vmatprep.subr.bf16.mxu0 %v1610
  %2731 = vmatpush2.bf16.msra.mxu0 %v1609
  %2732 = vmatprep.subr.bf16.mxu0 %v1602
  %2733 = vmatpush2.bf16.msra.mxu0 %v1601
  %2734 = vmatprep.subr.bf16.mxu0 %v1594
  %2735 = vmatpush2.bf16.msra.mxu0 %v1593
  %2736 = vmatprep.subr.bf16.mxu0 %v1586
  %2737 = vmatpush2.bf16.msra.mxu0 %v1585
  %2738 = vmatprep.subr.bf16.mxu0 %v1578
  %2739 = vmatpush2.bf16.msra.mxu0 %v1577
  %2740 = vmatprep.subr.bf16.mxu0 %v1570
  %2741 = vmatpush2.bf16.msra.mxu0 %v1569
  %2742 = vmatprep.subr.bf16.mxu0 %v1562
  %2743 = vmatpush2.bf16.msra.mxu0 %v1561
  %2744 = vmatprep.mubr.bf16.mxu0 %v2662
  %2745 = vmatmul.mubr.bf16.gmra.mxu0 %v2661
  %v2746 = vpop.f32.mrf.mxu0
  %v2747 = vadd.f32 %v2704, %v2746
  %v2748 = vpop.f32.mrf.mxu0
  %v2749 = vadd.f32 %v2706, %v2748
  %v2750 = vpop.f32.mrf.mxu0
  %v2751 = vadd.f32 %v2708, %v2750
  %v2752 = vpop.f32.mrf.mxu0
  %v2753 = vadd.f32 %v2710, %v2752
  %2754 = vdwg.mxu0
  %2755 = vmatprep.subr.bf16.mxu0 %v1682
  %2756 = vmatpush1.bf16.msra.mxu0 %v1681
  %2757 = vmatprep.subr.bf16.mxu0 %v1674
  %2758 = vmatpush1.bf16.msra.mxu0 %v1673
  %2759 = vmatprep.subr.bf16.mxu0 %v1666
  %2760 = vmatpush1.bf16.msra.mxu0 %v1665
  %2761 = vmatprep.subr.bf16.mxu0 %v1658
  %2762 = vmatpush1.bf16.msra.mxu0 %v1657
  %2763 = vmatprep.subr.bf16.mxu0 %v1650
  %2764 = vmatpush1.bf16.msra.mxu0 %v1649
  %2765 = vmatprep.subr.bf16.mxu0 %v1642
  %2766 = vmatpush1.bf16.msra.mxu0 %v1641
  %2767 = vmatprep.subr.bf16.mxu0 %v1634
  %2768 = vmatpush1.bf16.msra.mxu0 %v1633
  %2769 = vmatprep.subr.bf16.mxu0 %v1626
  %2770 = vmatpush1.bf16.msra.mxu0 %v1625
  %2771 = vmatprep.subr.bf16.mxu0 0
  %2772 = vmatpush2.bf16.msra.mxu0 0
  %2773 = vmatprep.subr.bf16.mxu0 0
  %2774 = vmatpush2.bf16.msra.mxu0 0
  %2775 = vmatprep.subr.bf16.mxu0 0
  %2776 = vmatpush2.bf16.msra.mxu0 0
  %2777 = vmatprep.subr.bf16.mxu0 0
  %2778 = vmatpush2.bf16.msra.mxu0 0
  %2779 = vmatprep.subr.bf16.mxu0 0
  %2780 = vmatpush2.bf16.msra.mxu0 0
  %2781 = vmatprep.subr.bf16.mxu0 0
  %2782 = vmatpush2.bf16.msra.mxu0 0
  %2783 = vmatprep.subr.bf16.mxu0 0
  %2784 = vmatpush2.bf16.msra.mxu0 0
  %2785 = vmatprep.subr.bf16.mxu0 0
  %2786 = vmatpush2.bf16.msra.mxu0 0
  %2787 = vmatprep.mubr.bf16.mxu0 0
  %2788 = vmatmul.mubr.bf16.gmra.mxu0 %v2663
  %v2789 = vpop.f32.mrf.mxu0
  %v2790 = vadd.f32 %v2747, %v2789
  %v2791 = vpop.f32.mrf.mxu0
  %v2792 = vadd.f32 %v2749, %v2791
  %v2793 = vpop.f32.mrf.mxu0
  %v2794 = vadd.f32 %v2751, %v2793
  %v2795 = vpop.f32.mrf.mxu0
  %v2796 = vadd.f32 %v2753, %v2795
  %2797 = vdwg.mxu0
  %2798 = vmatprep.subr.bf16.mxu0 %v1428
  %2799 = vmatpush1.bf16.msra.mxu0 %v1427
  %2800 = vmatprep.subr.bf16.mxu0 %v1420
  %2801 = vmatpush1.bf16.msra.mxu0 %v1419
  %2802 = vmatprep.subr.bf16.mxu0 %v1412
  %2803 = vmatpush1.bf16.msra.mxu0 %v1411
  %2804 = vmatprep.subr.bf16.mxu0 %v1404
  %2805 = vmatpush1.bf16.msra.mxu0 %v1403
  %2806 = vmatprep.subr.bf16.mxu0 %v1396
  %2807 = vmatpush1.bf16.msra.mxu0 %v1395
  %2808 = vmatprep.subr.bf16.mxu0 %v1388
  %2809 = vmatpush1.bf16.msra.mxu0 %v1387
  %2810 = vmatprep.subr.bf16.mxu0 %v1380
  %2811 = vmatpush1.bf16.msra.mxu0 %v1379
  %2812 = vmatprep.subr.bf16.mxu0 %v1372
  %2813 = vmatpush1.bf16.msra.mxu0 %v1371
  %2814 = vmatprep.subr.bf16.mxu0 %v1492
  %2815 = vmatpush2.bf16.msra.mxu0 %v1491
  %2816 = vmatprep.subr.bf16.mxu0 %v1484
  %2817 = vmatpush2.bf16.msra.mxu0 %v1483
  %2818 = vmatprep.subr.bf16.mxu0 %v1476
  %2819 = vmatpush2.bf16.msra.mxu0 %v1475
  %2820 = vmatprep.subr.bf16.mxu0 %v1468
  %2821 = vmatpush2.bf16.msra.mxu0 %v1467
  %2822 = vmatprep.subr.bf16.mxu0 %v1460
  %2823 = vmatpush2.bf16.msra.mxu0 %v1459
  %2824 = vmatprep.subr.bf16.mxu0 %v1452
  %2825 = vmatpush2.bf16.msra.mxu0 %v1451
  %2826 = vmatprep.subr.bf16.mxu0 %v1444
  %2827 = vmatpush2.bf16.msra.mxu0 %v1443
  %2828 = vmatprep.subr.bf16.mxu0 %v1436
  %2829 = vmatpush2.bf16.msra.mxu0 %v1435
  %2830 = vmatprep.mubr.bf16.mxu0 %v2660
  %2831 = vmatmul.mubr.bf16.gmra.mxu0 %v2659
  %v2832 = vpop.f32.mrf.mxu0
  %v2833 = vadd.f32 %v354, %v2832
  %v2834 = vpop.f32.mrf.mxu0
  %v2835 = vadd.f32 %v358, %v2834
  %v2836 = vpop.f32.mrf.mxu0
  %v2837 = vadd.f32 %v354, %v2836
  %v2838 = vpop.f32.mrf.mxu0
  %v2839 = vadd.f32 %v358, %v2838
  %2840 = vdwg.mxu0
  %2841 = vmatprep.subr.bf16.mxu0 %v1556
  %2842 = vmatpush1.bf16.msra.mxu0 %v1555
  %2843 = vmatprep.subr.bf16.mxu0 %v1548
  %2844 = vmatpush1.bf16.msra.mxu0 %v1547
  %2845 = vmatprep.subr.bf16.mxu0 %v1540
  %2846 = vmatpush1.bf16.msra.mxu0 %v1539
  %2847 = vmatprep.subr.bf16.mxu0 %v1532
  %2848 = vmatpush1.bf16.msra.mxu0 %v1531
  %2849 = vmatprep.subr.bf16.mxu0 %v1524
  %2850 = vmatpush1.bf16.msra.mxu0 %v1523
  %2851 = vmatprep.subr.bf16.mxu0 %v1516
  %2852 = vmatpush1.bf16.msra.mxu0 %v1515
  %2853 = vmatprep.subr.bf16.mxu0 %v1508
  %2854 = vmatpush1.bf16.msra.mxu0 %v1507
  %2855 = vmatprep.subr.bf16.mxu0 %v1500
  %2856 = vmatpush1.bf16.msra.mxu0 %v1499
  %2857 = vmatprep.subr.bf16.mxu0 %v1620
  %2858 = vmatpush2.bf16.msra.mxu0 %v1619
  %2859 = vmatprep.subr.bf16.mxu0 %v1612
  %2860 = vmatpush2.bf16.msra.mxu0 %v1611
  %2861 = vmatprep.subr.bf16.mxu0 %v1604
  %2862 = vmatpush2.bf16.msra.mxu0 %v1603
  %2863 = vmatprep.subr.bf16.mxu0 %v1596
  %2864 = vmatpush2.bf16.msra.mxu0 %v1595
  %2865 = vmatprep.subr.bf16.mxu0 %v1588
  %2866 = vmatpush2.bf16.msra.mxu0 %v1587
  %2867 = vmatprep.subr.bf16.mxu0 %v1580
  %2868 = vmatpush2.bf16.msra.mxu0 %v1579
  %2869 = vmatprep.subr.bf16.mxu0 %v1572
  %2870 = vmatpush2.bf16.msra.mxu0 %v1571
  %2871 = vmatprep.subr.bf16.mxu0 %v1564
  %2872 = vmatpush2.bf16.msra.mxu0 %v1563
  %2873 = vmatprep.mubr.bf16.mxu0 %v2662
  %2874 = vmatmul.mubr.bf16.gmra.mxu0 %v2661
  %v2875 = vpop.f32.mrf.mxu0
  %v2876 = vadd.f32 %v2833, %v2875
  %v2877 = vpop.f32.mrf.mxu0
  %v2878 = vadd.f32 %v2835, %v2877
  %v2879 = vpop.f32.mrf.mxu0
  %v2880 = vadd.f32 %v2837, %v2879
  %v2881 = vpop.f32.mrf.mxu0
  %v2882 = vadd.f32 %v2839, %v2881
  %2883 = vdwg.mxu0
  %2884 = vmatprep.subr.bf16.mxu0 %v1684
  %2885 = vmatpush1.bf16.msra.mxu0 %v1683
  %2886 = vmatprep.subr.bf16.mxu0 %v1676
  %2887 = vmatpush1.bf16.msra.mxu0 %v1675
  %2888 = vmatprep.subr.bf16.mxu0 %v1668
  %2889 = vmatpush1.bf16.msra.mxu0 %v1667
  %2890 = vmatprep.subr.bf16.mxu0 %v1660
  %2891 = vmatpush1.bf16.msra.mxu0 %v1659
  %2892 = vmatprep.subr.bf16.mxu0 %v1652
  %2893 = vmatpush1.bf16.msra.mxu0 %v1651
  %2894 = vmatprep.subr.bf16.mxu0 %v1644
  %2895 = vmatpush1.bf16.msra.mxu0 %v1643
  %2896 = vmatprep.subr.bf16.mxu0 %v1636
  %2897 = vmatpush1.bf16.msra.mxu0 %v1635
  %2898 = vmatprep.subr.bf16.mxu0 %v1628
  %2899 = vmatpush1.bf16.msra.mxu0 %v1627
  %2900 = vmatprep.subr.bf16.mxu0 0
  %2901 = vmatpush2.bf16.msra.mxu0 0
  %2902 = vmatprep.subr.bf16.mxu0 0
  %2903 = vmatpush2.bf16.msra.mxu0 0
  %2904 = vmatprep.subr.bf16.mxu0 0
  %2905 = vmatpush2.bf16.msra.mxu0 0
  %2906 = vmatprep.subr.bf16.mxu0 0
  %2907 = vmatpush2.bf16.msra.mxu0 0
  %2908 = vmatprep.subr.bf16.mxu0 0
  %2909 = vmatpush2.bf16.msra.mxu0 0
  %2910 = vmatprep.subr.bf16.mxu0 0
  %2911 = vmatpush2.bf16.msra.mxu0 0
  %2912 = vmatprep.subr.bf16.mxu0 0
  %2913 = vmatpush2.bf16.msra.mxu0 0
  %2914 = vmatprep.subr.bf16.mxu0 0
  %2915 = vmatpush2.bf16.msra.mxu0 0
  %2916 = vmatprep.mubr.bf16.mxu0 0
  %2917 = vmatmul.mubr.bf16.gmra.mxu0 %v2663
  %v2918 = vpop.f32.mrf.mxu0
  %v2919 = vadd.f32 %v2876, %v2918
  %v2920 = vpop.f32.mrf.mxu0
  %v2921 = vadd.f32 %v2878, %v2920
  %v2922 = vpop.f32.mrf.mxu0
  %v2923 = vadd.f32 %v2880, %v2922
  %v2924 = vpop.f32.mrf.mxu0
  %v2925 = vadd.f32 %v2882, %v2924
  %2926 = vdwg.mxu0
  %2927 = vmatprep.subr.bf16.mxu0 %v1430
  %2928 = vmatpush1.bf16.msra.mxu0 %v1429
  %2929 = vmatprep.subr.bf16.mxu0 %v1422
  %2930 = vmatpush1.bf16.msra.mxu0 %v1421
  %2931 = vmatprep.subr.bf16.mxu0 %v1414
  %2932 = vmatpush1.bf16.msra.mxu0 %v1413
  %2933 = vmatprep.subr.bf16.mxu0 %v1406
  %2934 = vmatpush1.bf16.msra.mxu0 %v1405
  %2935 = vmatprep.subr.bf16.mxu0 %v1398
  %2936 = vmatpush1.bf16.msra.mxu0 %v1397
  %2937 = vmatprep.subr.bf16.mxu0 %v1390
  %2938 = vmatpush1.bf16.msra.mxu0 %v1389
  %2939 = vmatprep.subr.bf16.mxu0 %v1382
  %2940 = vmatpush1.bf16.msra.mxu0 %v1381
  %2941 = vmatprep.subr.bf16.mxu0 %v1374
  %2942 = vmatpush1.bf16.msra.mxu0 %v1373
  %2943 = vmatprep.subr.bf16.mxu0 %v1494
  %2944 = vmatpush2.bf16.msra.mxu0 %v1493
  %2945 = vmatprep.subr.bf16.mxu0 %v1486
  %2946 = vmatpush2.bf16.msra.mxu0 %v1485
  %2947 = vmatprep.subr.bf16.mxu0 %v1478
  %2948 = vmatpush2.bf16.msra.mxu0 %v1477
  %2949 = vmatprep.subr.bf16.mxu0 %v1470
  %2950 = vmatpush2.bf16.msra.mxu0 %v1469
  %2951 = vmatprep.subr.bf16.mxu0 %v1462
  %2952 = vmatpush2.bf16.msra.mxu0 %v1461
  %2953 = vmatprep.subr.bf16.mxu0 %v1454
  %2954 = vmatpush2.bf16.msra.mxu0 %v1453
  %2955 = vmatprep.subr.bf16.mxu0 %v1446
  %2956 = vmatpush2.bf16.msra.mxu0 %v1445
  %2957 = vmatprep.subr.bf16.mxu0 %v1438
  %2958 = vmatpush2.bf16.msra.mxu0 %v1437
  %2959 = vmatprep.mubr.bf16.mxu0 %v2660
  %2960 = vmatmul.mubr.bf16.gmra.mxu0 %v2659
  %v2961 = vpop.f32.mrf.mxu0
  %v2962 = vadd.f32 %v362, %v2961
  %v2963 = vpop.f32.mrf.mxu0
  %v2964 = vadd.f32 %v366, %v2963
  %v2965 = vpop.f32.mrf.mxu0
  %v2966 = vadd.f32 %v362, %v2965
  %v2967 = vpop.f32.mrf.mxu0
  %v2968 = vadd.f32 %v366, %v2967
  %2969 = vdwg.mxu0
  %2970 = vmatprep.subr.bf16.mxu0 %v1558
  %2971 = vmatpush1.bf16.msra.mxu0 %v1557
  %2972 = vmatprep.subr.bf16.mxu0 %v1550
  %2973 = vmatpush1.bf16.msra.mxu0 %v1549
  %2974 = vmatprep.subr.bf16.mxu0 %v1542
  %2975 = vmatpush1.bf16.msra.mxu0 %v1541
  %2976 = vmatprep.subr.bf16.mxu0 %v1534
  %2977 = vmatpush1.bf16.msra.mxu0 %v1533
  %2978 = vmatprep.subr.bf16.mxu0 %v1526
  %2979 = vmatpush1.bf16.msra.mxu0 %v1525
  %2980 = vmatprep.subr.bf16.mxu0 %v1518
  %2981 = vmatpush1.bf16.msra.mxu0 %v1517
  %2982 = vmatprep.subr.bf16.mxu0 %v1510
  %2983 = vmatpush1.bf16.msra.mxu0 %v1509
  %2984 = vmatprep.subr.bf16.mxu0 %v1502
  %2985 = vmatpush1.bf16.msra.mxu0 %v1501
  %2986 = vmatprep.subr.bf16.mxu0 %v1622
  %2987 = vmatpush2.bf16.msra.mxu0 %v1621
  %2988 = vmatprep.subr.bf16.mxu0 %v1614
  %2989 = vmatpush2.bf16.msra.mxu0 %v1613
  %2990 = vmatprep.subr.bf16.mxu0 %v1606
  %2991 = vmatpush2.bf16.msra.mxu0 %v1605
  %2992 = vmatprep.subr.bf16.mxu0 %v1598
  %2993 = vmatpush2.bf16.msra.mxu0 %v1597
  %2994 = vmatprep.subr.bf16.mxu0 %v1590
  %2995 = vmatpush2.bf16.msra.mxu0 %v1589
  %2996 = vmatprep.subr.bf16.mxu0 %v1582
  %2997 = vmatpush2.bf16.msra.mxu0 %v1581
  %2998 = vmatprep.subr.bf16.mxu0 %v1574
  %2999 = vmatpush2.bf16.msra.mxu0 %v1573
  %3000 = vmatprep.subr.bf16.mxu0 %v1566
  %3001 = vmatpush2.bf16.msra.mxu0 %v1565
  %3002 = vmatprep.mubr.bf16.mxu0 %v2662
  %3003 = vmatmul.mubr.bf16.gmra.mxu0 %v2661
  %v3004 = vpop.f32.mrf.mxu0
  %v3005 = vadd.f32 %v2962, %v3004
  %v3006 = vpop.f32.mrf.mxu0
  %v3007 = vadd.f32 %v2964, %v3006
  %v3008 = vpop.f32.mrf.mxu0
  %v3009 = vadd.f32 %v2966, %v3008
  %v3010 = vpop.f32.mrf.mxu0
  %v3011 = vadd.f32 %v2968, %v3010
  %3012 = vdwg.mxu0
  %3013 = vmatprep.subr.bf16.mxu0 %v1686
  %3014 = vmatpush1.bf16.msra.mxu0 %v1685
  %3015 = vmatprep.subr.bf16.mxu0 %v1678
  %3016 = vmatpush1.bf16.msra.mxu0 %v1677
  %3017 = vmatprep.subr.bf16.mxu0 %v1670
  %3018 = vmatpush1.bf16.msra.mxu0 %v1669
  %3019 = vmatprep.subr.bf16.mxu0 %v1662
  %3020 = vmatpush1.bf16.msra.mxu0 %v1661
  %3021 = vmatprep.subr.bf16.mxu0 %v1654
  %3022 = vmatpush1.bf16.msra.mxu0 %v1653
  %3023 = vmatprep.subr.bf16.mxu0 %v1646
  %3024 = vmatpush1.bf16.msra.mxu0 %v1645
  %3025 = vmatprep.subr.bf16.mxu0 %v1638
  %3026 = vmatpush1.bf16.msra.mxu0 %v1637
  %3027 = vmatprep.subr.bf16.mxu0 %v1630
  %3028 = vmatpush1.bf16.msra.mxu0 %v1629
  %3029 = vmatprep.subr.bf16.mxu0 0
  %3030 = vmatpush2.bf16.msra.mxu0 0
  %3031 = vmatprep.subr.bf16.mxu0 0
  %3032 = vmatpush2.bf16.msra.mxu0 0
  %3033 = vmatprep.subr.bf16.mxu0 0
  %3034 = vmatpush2.bf16.msra.mxu0 0
  %3035 = vmatprep.subr.bf16.mxu0 0
  %3036 = vmatpush2.bf16.msra.mxu0 0
  %3037 = vmatprep.subr.bf16.mxu0 0
  %3038 = vmatpush2.bf16.msra.mxu0 0
  %3039 = vmatprep.subr.bf16.mxu0 0
  %3040 = vmatpush2.bf16.msra.mxu0 0
  %3041 = vmatprep.subr.bf16.mxu0 0
  %3042 = vmatpush2.bf16.msra.mxu0 0
  %3043 = vmatprep.subr.bf16.mxu0 0
  %3044 = vmatpush2.bf16.msra.mxu0 0
  %3045 = vmatprep.mubr.bf16.mxu0 0
  %3046 = vmatmul.mubr.bf16.gmra.mxu0 %v2663
  %v3047 = vpop.f32.mrf.mxu0
  %v3048 = vadd.f32 %v3005, %v3047
  %v3049 = vpop.f32.mrf.mxu0
  %v3050 = vadd.f32 %v3007, %v3049
  %v3051 = vpop.f32.mrf.mxu0
  %v3052 = vadd.f32 %v3009, %v3051
  %v3053 = vpop.f32.mrf.mxu0
  %v3054 = vadd.f32 %v3011, %v3053
  %3055 = vdwg.mxu0
  %3056 = vmatprep.subr.bf16.mxu0 %v1432
  %3057 = vmatpush1.bf16.msra.mxu0 %v1431
  %3058 = vmatprep.subr.bf16.mxu0 %v1424
  %3059 = vmatpush1.bf16.msra.mxu0 %v1423
  %3060 = vmatprep.subr.bf16.mxu0 %v1416
  %3061 = vmatpush1.bf16.msra.mxu0 %v1415
  %3062 = vmatprep.subr.bf16.mxu0 %v1408
  %3063 = vmatpush1.bf16.msra.mxu0 %v1407
  %3064 = vmatprep.subr.bf16.mxu0 %v1400
  %3065 = vmatpush1.bf16.msra.mxu0 %v1399
  %3066 = vmatprep.subr.bf16.mxu0 %v1392
  %3067 = vmatpush1.bf16.msra.mxu0 %v1391
  %3068 = vmatprep.subr.bf16.mxu0 %v1384
  %3069 = vmatpush1.bf16.msra.mxu0 %v1383
  %3070 = vmatprep.subr.bf16.mxu0 %v1376
  %3071 = vmatpush1.bf16.msra.mxu0 %v1375
  %3072 = vmatprep.subr.bf16.mxu0 %v1496
  %3073 = vmatpush2.bf16.msra.mxu0 %v1495
  %3074 = vmatprep.subr.bf16.mxu0 %v1488
  %3075 = vmatpush2.bf16.msra.mxu0 %v1487
  %3076 = vmatprep.subr.bf16.mxu0 %v1480
  %3077 = vmatpush2.bf16.msra.mxu0 %v1479
  %3078 = vmatprep.subr.bf16.mxu0 %v1472
  %3079 = vmatpush2.bf16.msra.mxu0 %v1471
  %3080 = vmatprep.subr.bf16.mxu0 %v1464
  %3081 = vmatpush2.bf16.msra.mxu0 %v1463
  %3082 = vmatprep.subr.bf16.mxu0 %v1456
  %3083 = vmatpush2.bf16.msra.mxu0 %v1455
  %3084 = vmatprep.subr.bf16.mxu0 %v1448
  %3085 = vmatpush2.bf16.msra.mxu0 %v1447
  %3086 = vmatprep.subr.bf16.mxu0 %v1440
  %3087 = vmatpush2.bf16.msra.mxu0 %v1439
  %3088 = vmatprep.mubr.bf16.mxu0 %v2660
  %3089 = vmatmul.mubr.bf16.gmra.mxu0 %v2659
  %v3090 = vpop.f32.mrf.mxu0
  %v3091 = vadd.f32 %v370, %v3090
  %v3092 = vpop.f32.mrf.mxu0
  %v3093 = vadd.f32 %v374, %v3092
  %v3094 = vpop.f32.mrf.mxu0
  %v3095 = vadd.f32 %v370, %v3094
  %v3096 = vpop.f32.mrf.mxu0
  %v3097 = vadd.f32 %v374, %v3096
  %3098 = vdwg.mxu0
  %3099 = vmatprep.subr.bf16.mxu0 %v1560
  %3100 = vmatpush1.bf16.msra.mxu0 %v1559
  %3101 = vmatprep.subr.bf16.mxu0 %v1552
  %3102 = vmatpush1.bf16.msra.mxu0 %v1551
  %3103 = vmatprep.subr.bf16.mxu0 %v1544
  %3104 = vmatpush1.bf16.msra.mxu0 %v1543
  %3105 = vmatprep.subr.bf16.mxu0 %v1536
  %3106 = vmatpush1.bf16.msra.mxu0 %v1535
  %3107 = vmatprep.subr.bf16.mxu0 %v1528
  %3108 = vmatpush1.bf16.msra.mxu0 %v1527
  %3109 = vmatprep.subr.bf16.mxu0 %v1520
  %3110 = vmatpush1.bf16.msra.mxu0 %v1519
  %3111 = vmatprep.subr.bf16.mxu0 %v1512
  %3112 = vmatpush1.bf16.msra.mxu0 %v1511
  %3113 = vmatprep.subr.bf16.mxu0 %v1504
  %3114 = vmatpush1.bf16.msra.mxu0 %v1503
  %3115 = vmatprep.subr.bf16.mxu0 %v1624
  %3116 = vmatpush2.bf16.msra.mxu0 %v1623
  %3117 = vmatprep.subr.bf16.mxu0 %v1616
  %3118 = vmatpush2.bf16.msra.mxu0 %v1615
  %3119 = vmatprep.subr.bf16.mxu0 %v1608
  %3120 = vmatpush2.bf16.msra.mxu0 %v1607
  %3121 = vmatprep.subr.bf16.mxu0 %v1600
  %3122 = vmatpush2.bf16.msra.mxu0 %v1599
  %3123 = vmatprep.subr.bf16.mxu0 %v1592
  %3124 = vmatpush2.bf16.msra.mxu0 %v1591
  %3125 = vmatprep.subr.bf16.mxu0 %v1584
  %3126 = vmatpush2.bf16.msra.mxu0 %v1583
  %3127 = vmatprep.subr.bf16.mxu0 %v1576
  %3128 = vmatpush2.bf16.msra.mxu0 %v1575
  %3129 = vmatprep.subr.bf16.mxu0 %v1568
  %3130 = vmatpush2.bf16.msra.mxu0 %v1567
  %3131 = vmatprep.mubr.bf16.mxu0 %v2662
  %3132 = vmatmul.mubr.bf16.gmra.mxu0 %v2661
  %v3133 = vpop.f32.mrf.mxu0
  %v3134 = vadd.f32 %v3091, %v3133
  %v3135 = vpop.f32.mrf.mxu0
  %v3136 = vadd.f32 %v3093, %v3135
  %v3137 = vpop.f32.mrf.mxu0
  %v3138 = vadd.f32 %v3095, %v3137
  %v3139 = vpop.f32.mrf.mxu0
  %v3140 = vadd.f32 %v3097, %v3139
  %3141 = vdwg.mxu0
  %3142 = vmatprep.subr.bf16.mxu0 %v1688
  %3143 = vmatpush1.bf16.msra.mxu0 %v1687
  %3144 = vmatprep.subr.bf16.mxu0 %v1680
  %3145 = vmatpush1.bf16.msra.mxu0 %v1679
  %3146 = vmatprep.subr.bf16.mxu0 %v1672
  %3147 = vmatpush1.bf16.msra.mxu0 %v1671
  %3148 = vmatprep.subr.bf16.mxu0 %v1664
  %3149 = vmatpush1.bf16.msra.mxu0 %v1663
  %3150 = vmatprep.subr.bf16.mxu0 %v1656
  %3151 = vmatpush1.bf16.msra.mxu0 %v1655
  %3152 = vmatprep.subr.bf16.mxu0 %v1648
  %3153 = vmatpush1.bf16.msra.mxu0 %v1647
  %3154 = vmatprep.subr.bf16.mxu0 %v1640
  %3155 = vmatpush1.bf16.msra.mxu0 %v1639
  %3156 = vmatprep.subr.bf16.mxu0 %v1632
  %3157 = vmatpush1.bf16.msra.mxu0 %v1631
  %3158 = vmatprep.subr.bf16.mxu0 0
  %3159 = vmatpush2.bf16.msra.mxu0 0
  %3160 = vmatprep.subr.bf16.mxu0 0
  %3161 = vmatpush2.bf16.msra.mxu0 0
  %3162 = vmatprep.subr.bf16.mxu0 0
  %3163 = vmatpush2.bf16.msra.mxu0 0
  %3164 = vmatprep.subr.bf16.mxu0 0
  %3165 = vmatpush2.bf16.msra.mxu0 0
  %3166 = vmatprep.subr.bf16.mxu0 0
  %3167 = vmatpush2.bf16.msra.mxu0 0
  %3168 = vmatprep.subr.bf16.mxu0 0
  %3169 = vmatpush2.bf16.msra.mxu0 0
  %3170 = vmatprep.subr.bf16.mxu0 0
  %3171 = vmatpush2.bf16.msra.mxu0 0
  %3172 = vmatprep.subr.bf16.mxu0 0
  %3173 = vmatpush2.bf16.msra.mxu0 0
  %3174 = vmatprep.mubr.bf16.mxu0 0
  %3175 = vmatmul.mubr.bf16.gmra.mxu0 %v2663
  %v3176 = vpop.f32.mrf.mxu0
  %v3177 = vadd.f32 %v3134, %v3176
  %v3178 = vpop.f32.mrf.mxu0
  %v3179 = vadd.f32 %v3136, %v3178
  %v3180 = vpop.f32.mrf.mxu0
  %v3181 = vadd.f32 %v3138, %v3180
  %v3182 = vpop.f32.mrf.mxu0
  %v3183 = vadd.f32 %v3140, %v3182
  %3184 = vdwg.mxu0
  %v3185 = vmax.f32 %v2790, 0.0
  %v3186 = vmax.f32 %v2792, 0.0
  %v3187 = vmax.f32 %v2919, 0.0
  %v3188 = vmax.f32 %v2921, 0.0
  %v3189 = vmax.f32 %v3048, 0.0
  %v3190 = vmax.f32 %v3050, 0.0
  %v3191 = vmax.f32 %v3177, 0.0
  %v3192 = vmax.f32 %v3179, 0.0
  %v3193 = vmax.f32 %v2794, 0.0
  %v3194 = vmax.f32 %v2796, 0.0
  %v3195 = vmax.f32 %v2923, 0.0
  %v3196 = vmax.f32 %v2925, 0.0
  %v3197 = vmax.f32 %v3052, 0.0
  %v3198 = vmax.f32 %v3054, 0.0
  %v3199 = vmax.f32 %v3181, 0.0
  %v3200 = vmax.f32 %v3183, 0.0
  %v3201 = vrot.slane %v3185, 4
  %v3202 = vmax.f32 %v3185, %v3201
  %v3203 = vrot.slane %v3202, 2
  %v3204 = vmax.f32 %v3202, %v3203
  %v3205 = vrot.slane %v3204, 1
  %v3206 = vmax.f32 %v3204, %v3205
  %v3207 = vrot.slane %v3186, 4
  %v3208 = vmax.f32 %v3186, %v3207
  %v3209 = vrot.slane %v3208, 2
  %v3210 = vmax.f32 %v3208, %v3209
  %v3211 = vrot.slane %v3210, 1
  %v3212 = vmax.f32 %v3210, %v3211
  %v3213 = vrot.slane %v3187, 4
  %v3214 = vmax.f32 %v3187, %v3213
  %v3215 = vrot.slane %v3214, 2
  %v3216 = vmax.f32 %v3214, %v3215
  %v3217 = vrot.slane %v3216, 1
  %v3218 = vmax.f32 %v3216, %v3217
  %v3219 = vrot.slane %v3188, 4
  %v3220 = vmax.f32 %v3188, %v3219
  %v3221 = vrot.slane %v3220, 2
  %v3222 = vmax.f32 %v3220, %v3221
  %v3223 = vrot.slane %v3222, 1
  %v3224 = vmax.f32 %v3222, %v3223
  %v3225 = vrot.slane %v3189, 4
  %v3226 = vmax.f32 %v3189, %v3225
  %v3227 = vrot.slane %v3226, 2
  %v3228 = vmax.f32 %v3226, %v3227
  %v3229 = vrot.slane %v3228, 1
  %v3230 = vmax.f32 %v3228, %v3229
  %v3231 = vrot.slane %v3190, 4
  %v3232 = vmax.f32 %v3190, %v3231
  %v3233 = vrot.slane %v3232, 2
  %v3234 = vmax.f32 %v3232, %v3233
  %v3235 = vrot.slane %v3234, 1
  %v3236 = vmax.f32 %v3234, %v3235
  %v3237 = vrot.slane %v3191, 4
  %v3238 = vmax.f32 %v3191, %v3237
  %v3239 = vrot.slane %v3238, 2
  %v3240 = vmax.f32 %v3238, %v3239
  %v3241 = vrot.slane %v3240, 1
  %v3242 = vmax.f32 %v3240, %v3241
  %v3243 = vrot.slane %v3192, 4
  %v3244 = vmax.f32 %v3192, %v3243
  %v3245 = vrot.slane %v3244, 2
  %v3246 = vmax.f32 %v3244, %v3245
  %v3247 = vrot.slane %v3246, 1
  %v3248 = vmax.f32 %v3246, %v3247
  %v3249 = vrot.slane %v3193, 4
  %v3250 = vmax.f32 %v3193, %v3249
  %v3251 = vrot.slane %v3250, 2
  %v3252 = vmax.f32 %v3250, %v3251
  %v3253 = vrot.slane %v3252, 1
  %v3254 = vmax.f32 %v3252, %v3253
  %v3255 = vrot.slane %v3194, 4
  %v3256 = vmax.f32 %v3194, %v3255
  %v3257 = vrot.slane %v3256, 2
  %v3258 = vmax.f32 %v3256, %v3257
  %v3259 = vrot.slane %v3258, 1
  %v3260 = vmax.f32 %v3258, %v3259
  %v3261 = vrot.slane %v3195, 4
  %v3262 = vmax.f32 %v3195, %v3261
  %v3263 = vrot.slane %v3262, 2
  %v3264 = vmax.f32 %v3262, %v3263
  %v3265 = vrot.slane %v3264, 1
  %v3266 = vmax.f32 %v3264, %v3265
  %v3267 = vrot.slane %v3196, 4
  %v3268 = vmax.f32 %v3196, %v3267
  %v3269 = vrot.slane %v3268, 2
  %v3270 = vmax.f32 %v3268, %v3269
  %v3271 = vrot.slane %v3270, 1
  %v3272 = vmax.f32 %v3270, %v3271
  %v3273 = vrot.slane %v3197, 4
  %v3274 = vmax.f32 %v3197, %v3273
  %v3275 = vrot.slane %v3274, 2
  %v3276 = vmax.f32 %v3274, %v3275
  %v3277 = vrot.slane %v3276, 1
  %v3278 = vmax.f32 %v3276, %v3277
  %v3279 = vrot.slane %v3198, 4
  %v3280 = vmax.f32 %v3198, %v3279
  %v3281 = vrot.slane %v3280, 2
  %v3282 = vmax.f32 %v3280, %v3281
  %v3283 = vrot.slane %v3282, 1
  %v3284 = vmax.f32 %v3282, %v3283
  %v3285 = vrot.slane %v3199, 4
  %v3286 = vmax.f32 %v3199, %v3285
  %v3287 = vrot.slane %v3286, 2
  %v3288 = vmax.f32 %v3286, %v3287
  %v3289 = vrot.slane %v3288, 1
  %v3290 = vmax.f32 %v3288, %v3289
  %v3291 = vrot.slane %v3200, 4
  %v3292 = vmax.f32 %v3200, %v3291
  %v3293 = vrot.slane %v3292, 2
  %v3294 = vmax.f32 %v3292, %v3293
  %v3295 = vrot.slane %v3294, 1
  %v3296 = vmax.f32 %v3294, %v3295
  %v3297 = vmax.f32 %v2546, %v3206
  %v3298 = vmax.f32 %v2552, %v3212
  %v3299 = vmax.f32 %v2558, %v3218
  %v3300 = vmax.f32 %v2564, %v3224
  %v3301 = vmax.f32 %v2570, %v3230
  %v3302 = vmax.f32 %v2576, %v3236
  %v3303 = vmax.f32 %v2582, %v3242
  %v3304 = vmax.f32 %v2588, %v3248
  %v3305 = vmax.f32 %v2594, %v3254
  %v3306 = vmax.f32 %v2600, %v3260
  %v3307 = vmax.f32 %v2606, %v3266
  %v3308 = vmax.f32 %v2612, %v3272
  %v3309 = vmax.f32 %v2618, %v3278
  %v3310 = vmax.f32 %v2624, %v3284
  %v3311 = vmax.f32 %v2630, %v3290
  %v3312 = vmax.f32 %v2636, %v3296
  %v3329 = vcombine.low %v3297, %v3298
  %v3330 = vcombine.low %v3299, %v3300
  %v3332 = vunpack.c.l.s4 1983009808
  %v3333 = vunpack.c.0.s8 %v3332
  %v3334 = vlaneseq
  %v3335 = vshrl.u32 %v3334, 7
  %v3336 = vsub.s32 %v3333, %v3335
  %v3337 = vrot.slane %v3329, %v3336
  %v3339 = vunpack.c.l.s4 1983009808
  %v3340 = vunpack.c.0.s8 %v3339
  %v3341 = vlaneseq
  %v3342 = vshrl.u32 %v3341, 7
  %v3343 = vsub.s32 %v3340, %v3342
  %v3344 = vrot.slane %v3330, %v3343
  %v3345 = vcombine.low %v3337, %v3344
  %v3346 = vcombine.low %v3301, %v3302
  %v3347 = vcombine.low %v3303, %v3304
  %v3349 = vunpack.c.l.s4 1983009808
  %v3350 = vunpack.c.0.s8 %v3349
  %v3351 = vlaneseq
  %v3352 = vshrl.u32 %v3351, 7
  %v3353 = vsub.s32 %v3350, %v3352
  %v3354 = vrot.slane %v3346, %v3353
  %v3356 = vunpack.c.l.s4 1983009808
  %v3357 = vunpack.c.0.s8 %v3356
  %v3358 = vlaneseq
  %v3359 = vshrl.u32 %v3358, 7
  %v3360 = vsub.s32 %v3357, %v3359
  %v3361 = vrot.slane %v3347, %v3360
  %v3362 = vcombine.low %v3354, %v3361
  %v3363 = vcombine.low %v3305, %v3306
  %v3364 = vcombine.low %v3307, %v3308
  %v3366 = vunpack.c.l.s4 1983009808
  %v3367 = vunpack.c.0.s8 %v3366
  %v3368 = vlaneseq
  %v3369 = vshrl.u32 %v3368, 7
  %v3370 = vsub.s32 %v3367, %v3369
  %v3371 = vrot.slane %v3363, %v3370
  %v3373 = vunpack.c.l.s4 1983009808
  %v3374 = vunpack.c.0.s8 %v3373
  %v3375 = vlaneseq
  %v3376 = vshrl.u32 %v3375, 7
  %v3377 = vsub.s32 %v3374, %v3376
  %v3378 = vrot.slane %v3364, %v3377
  %v3379 = vcombine.low %v3371, %v3378
  %v3380 = vcombine.low %v3309, %v3310
  %v3381 = vcombine.low %v3311, %v3312
  %v3383 = vunpack.c.l.s4 1983009808
  %v3384 = vunpack.c.0.s8 %v3383
  %v3385 = vlaneseq
  %v3386 = vshrl.u32 %v3385, 7
  %v3387 = vsub.s32 %v3384, %v3386
  %v3388 = vrot.slane %v3380, %v3387
  %v3390 = vunpack.c.l.s4 1983009808
  %v3391 = vunpack.c.0.s8 %v3390
  %v3392 = vlaneseq
  %v3393 = vshrl.u32 %v3392, 7
  %v3394 = vsub.s32 %v3391, %v3393
  %v3395 = vrot.slane %v3381, %v3394
  %v3396 = vcombine.low %v3388, %v3395
  %vm3397 = vcmask 1044484
  %v3398 = vsel %vm3397, %v3345, %v3345
  %vm3399 = vcmask 1046534
  %v3400 = vsel %vm3399, %v3345, %v3398
  %v3401 = vrot.slane %v3379, 7
  %vm3402 = vcmask 1041409
  %v3403 = vsel %vm3402, %v3401, %v3400
  %vm3404 = vcmask 1043459
  %v3405 = vsel %vm3404, %v3401, %v3403
  %vm3406 = vcmask 1045509
  %v3407 = vsel %vm3406, %v3401, %v3405
  %vm3408 = vcmask 1047559
  %v3409 = vsel %vm3408, %v3401, %v3407
  %v3410 = vsel %vm3397, %v3362, %v3362
  %v3411 = vsel %vm3399, %v3362, %v3410
  %v3412 = vrot.slane %v3396, 7
  %v3413 = vsel %vm3402, %v3412, %v3411
  %v3414 = vsel %vm3404, %v3412, %v3413
  %v3415 = vsel %vm3406, %v3412, %v3414
  %v3416 = vsel %vm3408, %v3412, %v3415
  %3419 = vst [vmem:[%s3] sm:$0xff] %v3409
  %3420 = vst [vmem:[%s3 + $0x8] sm:$0xff] %v3416
  // Predicated region
  $region14: #{rscnn_ssn_forward.6} parent=0 // pred_check
    _
  $region15: #{rscnn_ssn_forward.6} parent=0 // pred_check_branch
    %3422 = sbr.rel (0) target = $region17
  $region16: #{rscnn_ssn_forward.6} parent=0 // pred_region
    _
  $region17: #{rscnn_ssn_forward.6} parent=0 // pred_fallthru
    _
  // Predicated region
  $region18: #{rscnn_ssn_forward.6} parent=0 // pred_check
    _
  $region19: #{rscnn_ssn_forward.6} parent=0 // pred_check_branch
    %3424 = sbr.rel (0) target = $region21
  $region20: #{rscnn_ssn_forward.6} parent=0 // pred_region
    _
  $region21: #{rscnn_ssn_forward.6} parent=0 // pred_fallthru
    _

</llo_original>
